<compile_context>
chip_gen: v6e
topology: v6e:2x2x1
jax: 0.10.0
libtpu: 0.0.40
codegen_flags: <defaults>
</compile_context>

<pallas_src>
import functools
import numpy as np

import jax
import jax.numpy as jnp
from jax.experimental import pallas as pl
from jax.experimental.pallas import tpu as pltpu


# ----------------------------------------------------------------------------
# db1 (Haar) wavelet filters, constructed exactly like create_wavelet_filter
# (pywt 'db1' coefficients hard-coded).
# ----------------------------------------------------------------------------
_R = np.float32(1.0 / np.sqrt(2.0))
_DEC_LO = np.array([_R, _R], dtype=np.float32)      # dec_lo[::-1]
_DEC_HI = np.array([_R, -_R], dtype=np.float32)     # dec_hi[::-1]
_REC_LO = np.array([_R, _R], dtype=np.float32)      # rec_lo[::-1] flipped
_REC_HI = np.array([_R, -_R], dtype=np.float32)     # rec_hi[::-1] flipped

# 2x2 analysis / synthesis filters, element [k, p, q] multiplies x[2i+p, 2j+q].
_DEC_F = np.stack([np.outer(_DEC_LO, _DEC_LO),
                   np.outer(_DEC_HI, _DEC_LO),
                   np.outer(_DEC_LO, _DEC_HI),
                   np.outer(_DEC_HI, _DEC_HI)]).astype(np.float32)
_REC_F = np.stack([np.outer(_REC_LO, _REC_LO),
                   np.outer(_REC_HI, _REC_LO),
                   np.outer(_REC_LO, _REC_HI),
                   np.outer(_REC_HI, _REC_HI)]).astype(np.float32)

# All db1 magnitudes are 0.5 -> folded into the wavelet conv weights on the host
# (factor 0.25 = |dec| * |rec|); only the signs remain in the kernel.
_DEC_SIGN = np.sign(_DEC_F)   # (4, 2, 2)
_REC_SIGN = np.sign(_REC_F)   # (4, 2, 2)


# ----------------------------------------------------------------------------
# Fused kernel: base depthwise conv + Haar WT -> depthwise conv -> inverse Haar,
# everything on de-interleaved (polyphase), host-padded, channels-last quadrants.
# ----------------------------------------------------------------------------
def _wtconv_kernel(x00_ref, x01_ref, x10_ref, x11_ref,
                   bw_ref, bb_ref, ww_ref,
                   y00_ref, y01_ref, y10_ref, y11_ref,
                   spad_ref, tag_ref, *, K, H2, W2, hp, hf):
    quad_refs = (x00_ref, x01_ref, x10_ref, x11_ref)   # index = 2*row_parity + col_parity
    out_refs = (y00_ref, y01_ref, y10_ref, y11_ref)
    off = hp - hf                                       # 0 for the default K=5 config

    # ---- wavelet path -------------------------------------------------------------
    # Haar analysis on the zero-padded quadrants (sign-only adds; the halo of the
    # resulting subband is a sum of zeros, i.e. exactly the 'same'-conv zero pad),
    # then the depthwise KxK conv with folded weights (0.25 * wavelet_scale * w).
    # Each subband tag is stored ONCE into the tag scratch; Haar synthesis happens in
    # the output combination below so no output block is ever read-modified-written.
    for k in range(4):
        s = _DEC_SIGN[k]
        sub = quad_refs[0][0] if s[0, 0] > 0 else -quad_refs[0][0]
        for idx, (p, q) in enumerate(((0, 1), (1, 0), (1, 1)), start=1):
            v = quad_refs[idx][0]
            sub = sub + v if s[p, q] > 0 else sub - v
        spad_ref[...] = sub                             # full padded subband plane

        tag = None
        for di in range(K):
            for dj in range(K):
                w = ww_ref[k, di:di + 1, dj:dj + 1, :]  # (1, 1, Ct)
                term = spad_ref[off + di:off + di + H2,
                                off + dj:off + dj + W2, :] * w
                tag = term if tag is None else tag + term
        tag_ref[k] = tag

    # ---- base path + Haar synthesis -----------------------------------------------
    # Depthwise KxK 'same' conv at full resolution, decomposed per output quadrant onto
    # the four padded input quadrants (base_scale folded into bw, bb = base_scale*bias).
    # The 25 weight lane-vectors are loaded once and reused by all four quadrants, and
    # each output quadrant is written exactly once.
    bb = bb_ref[...]                                                     # (1, 1, Ct)
    bw_taps = [[bw_ref[di:di + 1, dj:dj + 1, :] for dj in range(K)] for di in range(K)]

    for p in range(2):
        for q in range(2):
            acc = None
            for di in range(K):
                ti = di - hf + p
                pi, oi = ti % 2, ti // 2                 # source row parity / quad-row shift
                for dj in range(K):
                    tj = dj - hf + q
                    pj, oj = tj % 2, tj // 2
                    src = quad_refs[2 * pi + pj][0,
                                                 hp + oi:hp + oi + H2,
                                                 hp + oj:hp + oj + W2, :]
                    term = src * bw_taps[di][dj]
                    acc = term if acc is None else acc + term
            acc = acc + bb
            for k in range(4):                           # inverse Haar: signs only
                acc = acc + tag_ref[k] if _REC_SIGN[k, p, q] > 0 else acc - tag_ref[k]
            out_refs[2 * p + q][0] = acc


# ----------------------------------------------------------------------------
# VMEM-footprint / generation-aware tiling helpers.
# ----------------------------------------------------------------------------
def _vmem_capacity_bytes():
    try:
        return int(pltpu.get_tpu_info().vmem_capacity_bytes)
    except Exception:
        return 64 * 1024 * 1024      # conservative fallback (v7x per-core VMEM)


def _estimate_step_bytes(H2, W2, hp, Ct, K):
    """Approximate per-step VMEM footprint, accounting for (8,128) tile padding."""
    def plane(rows, sub, lane):
        return rows * (-(-sub // 8) * 8) * (-(-lane // 128) * 128) * 4
    p_out = plane(H2, W2, Ct)
    p_in = plane(H2 + 2 * hp, W2 + 2 * hp, Ct)
    blocks = 2 * 4 * (p_in + p_out)                     # 4 in + 4 out blocks, double buffered
    scratch = p_in + 4 * p_out                          # spad + tag scratch
    weights = 2 * (plane(K, K, Ct) + 4 * plane(K, K, Ct) + plane(1, 1, Ct))
    return blocks + scratch + weights


def _pick_channel_tile(B, C, H2, W2, hp, K, budget):
    """Largest lane-aligned channel tile whose footprint fits the VMEM budget, kept small
    enough that the grid has >= 2 steps (megacore / pipeline)."""
    cands = [ct for ct in (512, 256, 128) if C % ct == 0] or [C]
    ct = next((c for c in cands if _estimate_step_bytes(H2, W2, hp, c, K) <= budget),
              cands[-1])
    while B * (C // ct) < 2 and ct % 256 == 0:
        ct //= 2
    return ct


# ----------------------------------------------------------------------------
# Wrapper: layout plumbing (NCHW <-> padded channels-last polyphase quadrants),
# host-side constant folding, channel tiling and the pallas_call.
# ----------------------------------------------------------------------------
def wtconv2d_forward(x, params, *, kernel_size=5):
    B, C, H, W = x.shape
    assert H % 2 == 0 and W % 2 == 0  # TODO(synk): odd-size F.pad branch not implemented
    K = kernel_size
    H2, W2 = H // 2, W // 2
    hf = (K - 1) // 2                                    # full/half-res conv halo (2 for K=5)
    offs = [(di - hf + p) // 2 for di in range(K) for p in (0, 1)]
    hq = max(max(offs), -min(offs))                      # quadrant-domain halo of the base conv
    hp = max(hf, hq)                                     # host-side zero halo on the quadrants

    x = x.astype(jnp.float32)

    # channels-last, zero-pad by 2*hp at full resolution, then polyphase de-interleave:
    # each quadrant comes out padded by hp (one fused XLA pre-pass).
    x_cl = jnp.transpose(x, (0, 2, 3, 1))                # (B, H, W, C)
    x_pad = jnp.pad(x_cl, ((0, 0), (2 * hp, 2 * hp), (2 * hp, 2 * hp), (0, 0)))
    x00 = x_pad[:, 0::2, 0::2, :]
    x01 = x_pad[:, 0::2, 1::2, :]
    x10 = x_pad[:, 1::2, 0::2, :]
    x11 = x_pad[:, 1::2, 1::2, :]

    # host-side constant folding into channels-last weights
    base_scale = params["base_scale"].astype(jnp.float32)
    bw = params["base_w"].astype(jnp.float32) * base_scale[:, None, None]       # (C, K, K)
    bw = jnp.transpose(bw, (1, 2, 0))                                           # (K, K, C)
    bb = (params["base_b"].astype(jnp.float32) * base_scale).reshape(1, 1, C)   # (1, 1, C)

    # torch depthwise wavelet weight layout (4C, 1, K, K), channel index c*4 + k
    ww = params["wav_w"].astype(jnp.float32).reshape(C, 4, K, K)
    wsc = params["wav_scale"].astype(jnp.float32).reshape(C, 4)
    ww = ww * (0.25 * wsc)[:, :, None, None]             # fold |dec|*|rec|=0.25 and 0.1 scale
    ww = jnp.transpose(ww, (1, 2, 3, 0))                                        # (4, K, K, C)

    cap = _vmem_capacity_bytes()
    Ct = _pick_channel_tile(B, C, H2, W2, hp, K, budget=int(0.80 * cap))
    step_bytes = _estimate_step_bytes(H2, W2, hp, Ct, K)
    vmem_limit = int(min(max(step_bytes * 5 // 4, 32 * 1024 * 1024), int(0.95 * cap)))

    grid = (B, C // Ct)
    H2p, W2p = H2 + 2 * hp, W2 + 2 * hp

    in_quad_spec = pl.BlockSpec((1, H2p, W2p, Ct), lambda b, c: (b, 0, 0, c))
    out_quad_spec = pl.BlockSpec((1, H2, W2, Ct), lambda b, c: (b, 0, 0, c))
    quad_out_shape = jax.ShapeDtypeStruct((B, H2, W2, C), jnp.float32)

    y00, y01, y10, y11 = pl.pallas_call(
        functools.partial(_wtconv_kernel, K=K, H2=H2, W2=W2, hp=hp, hf=hf),
        out_shape=(quad_out_shape,) * 4,
        grid=grid,
        in_specs=[in_quad_spec, in_quad_spec, in_quad_spec, in_quad_spec,
                  pl.BlockSpec((K, K, Ct), lambda b, c: (0, 0, c)),
                  pl.BlockSpec((1, 1, Ct), lambda b, c: (0, 0, c)),
                  pl.BlockSpec((4, K, K, Ct), lambda b, c: (0, 0, 0, c))],
        out_specs=(out_quad_spec,) * 4,
        scratch_shapes=[
            pltpu.VMEM((H2p, W2p, Ct), jnp.float32),          # padded subband plane
            pltpu.VMEM((4, H2, W2, Ct), jnp.float32)],        # the four wavelet tags
        compiler_params=pltpu.CompilerParams(
            dimension_semantics=("parallel", "parallel"),
            vmem_limit_bytes=vmem_limit),
    )(x00, x01, x10, x11, bw, bb, ww)

    # re-interleave quadrants and go back to NCHW (single fused XLA post-pass)
    rows_even = jnp.stack([y00, y01], axis=3).reshape(B, H2, W, C)
    rows_odd = jnp.stack([y10, y11], axis=3).reshape(B, H2, W, C)
    out_cl = jnp.stack([rows_even, rows_odd], axis=2).reshape(B, H, W, C)
    return jnp.transpose(out_cl, (0, 3, 1, 2))


def init_params(key, C, K=5):
    """Deterministic synthetic parameters with the shapes WTConv2d.__init__ implies."""
    k1, k2, k3 = jax.random.split(key, 3)
    return dict(
        base_w=jax.random.normal(k1, (C, K, K), jnp.float32) * 0.1,        # depthwise (C,1,K,K)
        base_b=jax.random.normal(k2, (C,), jnp.float32) * 0.1,             # conv bias
        wav_w=jax.random.normal(k3, (4 * C, K, K), jnp.float32) * 0.1,     # depthwise (4C,1,K,K)
        base_scale=jnp.ones((C,), jnp.float32),                            # _ScaleModule init 1.0
        wav_scale=jnp.full((4 * C,), 0.1, jnp.float32),                    # _ScaleModule init 0.1
    )


if __name__ == "__main__":
    key = jax.random.PRNGKey(0)
    kx, kp = jax.random.split(key)
    B, C, H, W = 2, 4, 16, 16
    x = jax.random.normal(kx, (B, C, H, W), jnp.float32)
    params = init_params(kp, C)

    out = wtconv2d_forward(x, params)
    jax.block_until_ready(out)
    assert out.shape == (B, C, H, W) and out.dtype == jnp.float32
    print("KERNEL_OK")
</pallas_src>

<mosaic_0001>
module attributes {stable_mosaic.version = 11 : i64} {
  func.func @_wtconv_kernel(%arg0: i32, %arg1: i32, %arg2: memref<1x12x12x4xf32, #tpu.memory_space<vmem>>, %arg3: memref<1x12x12x4xf32, #tpu.memory_space<vmem>>, %arg4: memref<1x12x12x4xf32, #tpu.memory_space<vmem>>, %arg5: memref<1x12x12x4xf32, #tpu.memory_space<vmem>>, %arg6: memref<5x5x4xf32, #tpu.memory_space<vmem>>, %arg7: memref<1x1x4xf32, #tpu.memory_space<vmem>>, %arg8: memref<4x5x5x4xf32, #tpu.memory_space<vmem>>, %arg9: memref<1x8x8x4xf32, #tpu.memory_space<vmem>>, %arg10: memref<1x8x8x4xf32, #tpu.memory_space<vmem>>, %arg11: memref<1x8x8x4xf32, #tpu.memory_space<vmem>>, %arg12: memref<1x8x8x4xf32, #tpu.memory_space<vmem>>, %arg13: memref<12x12x4xf32, #tpu.memory_space<vmem>>, %arg14: memref<4x8x8x4xf32, #tpu.memory_space<vmem>>) attributes {dimension_semantics = [#tpu.dimension_semantics<parallel>, #tpu.dimension_semantics<parallel>], iteration_bounds = array<i64: 2, 1>, scalar_prefetch = 0 : i64, scratch_operands = 2 : i64, tpu.core_type = #tpu.core_type<tc>, window_params = [{transform_indices = @transform_0, window_bounds = array<i64: 1, 12, 12, 4>}, {transform_indices = @transform_1, window_bounds = array<i64: 1, 12, 12, 4>}, {transform_indices = @transform_2, window_bounds = array<i64: 1, 12, 12, 4>}, {transform_indices = @transform_3, window_bounds = array<i64: 1, 12, 12, 4>}, {transform_indices = @transform_4, window_bounds = array<i64: 5, 5, 4>}, {transform_indices = @transform_5, window_bounds = array<i64: 1, 1, 4>}, {transform_indices = @transform_6, window_bounds = array<i64: 4, 5, 5, 4>}, {transform_indices = @transform_7, window_bounds = array<i64: 1, 8, 8, 4>}, {transform_indices = @transform_8, window_bounds = array<i64: 1, 8, 8, 4>}, {transform_indices = @transform_9, window_bounds = array<i64: 1, 8, 8, 4>}, {transform_indices = @transform_10, window_bounds = array<i64: 1, 8, 8, 4>}]} {
    %c0 = arith.constant 0 : index
    %c0_0 = arith.constant 0 : index
    %c0_1 = arith.constant 0 : index
    %c0_2 = arith.constant 0 : index
    %0 = vector.load %arg2[%c0, %c0_0, %c0_1, %c0_2] : memref<1x12x12x4xf32, #tpu.memory_space<vmem>>, vector<1x12x12x4xf32>
    %1 = vector.shape_cast %0 : vector<1x12x12x4xf32> to vector<12x12x4xf32>
    %c0_3 = arith.constant 0 : index
    %c0_4 = arith.constant 0 : index
    %c0_5 = arith.constant 0 : index
    %c0_6 = arith.constant 0 : index
    %2 = vector.load %arg3[%c0_3, %c0_4, %c0_5, %c0_6] : memref<1x12x12x4xf32, #tpu.memory_space<vmem>>, vector<1x12x12x4xf32>
    %3 = vector.shape_cast %2 : vector<1x12x12x4xf32> to vector<12x12x4xf32>
    %4 = arith.addf %1, %3 : vector<12x12x4xf32>
    %c0_7 = arith.constant 0 : index
    %c0_8 = arith.constant 0 : index
    %c0_9 = arith.constant 0 : index
    %c0_10 = arith.constant 0 : index
    %5 = vector.load %arg4[%c0_7, %c0_8, %c0_9, %c0_10] : memref<1x12x12x4xf32, #tpu.memory_space<vmem>>, vector<1x12x12x4xf32>
    %6 = vector.shape_cast %5 : vector<1x12x12x4xf32> to vector<12x12x4xf32>
    %7 = arith.addf %4, %6 : vector<12x12x4xf32>
    %c0_11 = arith.constant 0 : index
    %c0_12 = arith.constant 0 : index
    %c0_13 = arith.constant 0 : index
    %c0_14 = arith.constant 0 : index
    %8 = vector.load %arg5[%c0_11, %c0_12, %c0_13, %c0_14] : memref<1x12x12x4xf32, #tpu.memory_space<vmem>>, vector<1x12x12x4xf32>
    %9 = vector.shape_cast %8 : vector<1x12x12x4xf32> to vector<12x12x4xf32>
    %10 = arith.addf %7, %9 : vector<12x12x4xf32>
    %c0_15 = arith.constant 0 : index
    %c0_16 = arith.constant 0 : index
    %c0_17 = arith.constant 0 : index
    %11 = vector.load %arg13[%c0_15, %c0_16, %c0_17] : memref<12x12x4xf32, #tpu.memory_space<vmem>>, vector<12x12x4xf32>
    tpu.vector_store %arg13[%c0_15, %c0_16, %c0_17], %10 {strides = array<i32>} : memref<12x12x4xf32, #tpu.memory_space<vmem>>, vector<12x12x4xf32>,
    %c0_18 = arith.constant 0 : index
    %c0_19 = arith.constant 0 : index
    %c0_20 = arith.constant 0 : index
    %c0_21 = arith.constant 0 : index
    %12 = vector.load %arg8[%c0_18, %c0_19, %c0_20, %c0_21] : memref<4x5x5x4xf32, #tpu.memory_space<vmem>>, vector<1x1x1x4xf32>
    %13 = vector.shape_cast %12 : vector<1x1x1x4xf32> to vector<1x1x4xf32>
    %c0_22 = arith.constant 0 : index
    %c0_23 = arith.constant 0 : index
    %c0_24 = arith.constant 0 : index
    %14 = vector.load %arg13[%c0_22, %c0_23, %c0_24] : memref<12x12x4xf32, #tpu.memory_space<vmem>>, vector<8x8x4xf32>
    %15 = vector.broadcast %13 : vector<1x1x4xf32> to vector<8x8x4xf32>
    %16 = arith.mulf %14, %15 : vector<8x8x4xf32>
    %c0_25 = arith.constant 0 : index
    %c0_26 = arith.constant 0 : index
    %c1 = arith.constant 1 : index
    %c0_27 = arith.constant 0 : index
    %17 = vector.load %arg8[%c0_25, %c0_26, %c1, %c0_27] : memref<4x5x5x4xf32, #tpu.memory_space<vmem>>, vector<1x1x1x4xf32>
    %18 = vector.shape_cast %17 : vector<1x1x1x4xf32> to vector<1x1x4xf32>
    %c0_28 = arith.constant 0 : index
    %c1_29 = arith.constant 1 : index
    %c0_30 = arith.constant 0 : index
    %19 = vector.load %arg13[%c0_28, %c1_29, %c0_30] : memref<12x12x4xf32, #tpu.memory_space<vmem>>, vector<8x8x4xf32>
    %20 = vector.broadcast %18 : vector<1x1x4xf32> to vector<8x8x4xf32>
    %21 = arith.mulf %19, %20 : vector<8x8x4xf32>
    %22 = arith.addf %16, %21 : vector<8x8x4xf32>
    %c0_31 = arith.constant 0 : index
    %c0_32 = arith.constant 0 : index
    %c2 = arith.constant 2 : index
    %c0_33 = arith.constant 0 : index
    %23 = vector.load %arg8[%c0_31, %c0_32, %c2, %c0_33] : memref<4x5x5x4xf32, #tpu.memory_space<vmem>>, vector<1x1x1x4xf32>
    %24 = vector.shape_cast %23 : vector<1x1x1x4xf32> to vector<1x1x4xf32>
    %c0_34 = arith.constant 0 : index
    %c2_35 = arith.constant 2 : index
    %c0_36 = arith.constant 0 : index
    %25 = vector.load %arg13[%c0_34, %c2_35, %c0_36] : memref<12x12x4xf32, #tpu.memory_space<vmem>>, vector<8x8x4xf32>
    %26 = vector.broadcast %24 : vector<1x1x4xf32> to vector<8x8x4xf32>
    %27 = arith.mulf %25, %26 : vector<8x8x4xf32>
    %28 = arith.addf %22, %27 : vector<8x8x4xf32>
    %c0_37 = arith.constant 0 : index
    %c0_38 = arith.constant 0 : index
    %c3 = arith.constant 3 : index
    %c0_39 = arith.constant 0 : index
    %29 = vector.load %arg8[%c0_37, %c0_38, %c3, %c0_39] : memref<4x5x5x4xf32, #tpu.memory_space<vmem>>, vector<1x1x1x4xf32>
    %30 = vector.shape_cast %29 : vector<1x1x1x4xf32> to vector<1x1x4xf32>
    %c0_40 = arith.constant 0 : index
    %c3_41 = arith.constant 3 : index
    %c0_42 = arith.constant 0 : index
    %31 = vector.load %arg13[%c0_40, %c3_41, %c0_42] : memref<12x12x4xf32, #tpu.memory_space<vmem>>, vector<8x8x4xf32>
    %32 = vector.broadcast %30 : vector<1x1x4xf32> to vector<8x8x4xf32>
    %33 = arith.mulf %31, %32 : vector<8x8x4xf32>
    %34 = arith.addf %28, %33 : vector<8x8x4xf32>
    %c0_43 = arith.constant 0 : index
    %c0_44 = arith.constant 0 : index
    %c4 = arith.constant 4 : index
    %c0_45 = arith.constant 0 : index
    %35 = vector.load %arg8[%c0_43, %c0_44, %c4, %c0_45] : memref<4x5x5x4xf32, #tpu.memory_space<vmem>>, vector<1x1x1x4xf32>
    %36 = vector.shape_cast %35 : vector<1x1x1x4xf32> to vector<1x1x4xf32>
    %c0_46 = arith.constant 0 : index
    %c4_47 = arith.constant 4 : index
    %c0_48 = arith.constant 0 : index
    %37 = vector.load %arg13[%c0_46, %c4_47, %c0_48] : memref<12x12x4xf32, #tpu.memory_space<vmem>>, vector<8x8x4xf32>
    %38 = vector.broadcast %36 : vector<1x1x4xf32> to vector<8x8x4xf32>
    %39 = arith.mulf %37, %38 : vector<8x8x4xf32>
    %40 = arith.addf %34, %39 : vector<8x8x4xf32>
    %c0_49 = arith.constant 0 : index
    %c1_50 = arith.constant 1 : index
    %c0_51 = arith.constant 0 : index
    %c0_52 = arith.constant 0 : index
    %41 = vector.load %arg8[%c0_49, %c1_50, %c0_51, %c0_52] : memref<4x5x5x4xf32, #tpu.memory_space<vmem>>, vector<1x1x1x4xf32>
    %42 = vector.shape_cast %41 : vector<1x1x1x4xf32> to vector<1x1x4xf32>
    %c1_53 = arith.constant 1 : index
    %c0_54 = arith.constant 0 : index
    %c0_55 = arith.constant 0 : index
    %43 = vector.load %arg13[%c1_53, %c0_54, %c0_55] : memref<12x12x4xf32, #tpu.memory_space<vmem>>, vector<8x8x4xf32>
    %44 = vector.broadcast %42 : vector<1x1x4xf32> to vector<8x8x4xf32>
    %45 = arith.mulf %43, %44 : vector<8x8x4xf32>
    %46 = arith.addf %40, %45 : vector<8x8x4xf32>
    %c0_56 = arith.constant 0 : index
    %c1_57 = arith.constant 1 : index
    %c1_58 = arith.constant 1 : index
    %c0_59 = arith.constant 0 : index
    %47 = vector.load %arg8[%c0_56, %c1_57, %c1_58, %c0_59] : memref<4x5x5x4xf32, #tpu.memory_space<vmem>>, vector<1x1x1x4xf32>
    %48 = vector.shape_cast %47 : vector<1x1x1x4xf32> to vector<1x1x4xf32>
    %c1_60 = arith.constant 1 : index
    %c1_61 = arith.constant 1 : index
    %c0_62 = arith.constant 0 : index
    %49 = vector.load %arg13[%c1_60, %c1_61, %c0_62] : memref<12x12x4xf32, #tpu.memory_space<vmem>>, vector<8x8x4xf32>
    %50 = vector.broadcast %48 : vector<1x1x4xf32> to vector<8x8x4xf32>
    %51 = arith.mulf %49, %50 : vector<8x8x4xf32>
    %52 = arith.addf %46, %51 : vector<8x8x4xf32>
    %c0_63 = arith.constant 0 : index
    %c1_64 = arith.constant 1 : index
    %c2_65 = arith.constant 2 : index
    %c0_66 = arith.constant 0 : index
    %53 = vector.load %arg8[%c0_63, %c1_64, %c2_65, %c0_66] : memref<4x5x5x4xf32, #tpu.memory_space<vmem>>, vector<1x1x1x4xf32>
    %54 = vector.shape_cast %53 : vector<1x1x1x4xf32> to vector<1x1x4xf32>
    %c1_67 = arith.constant 1 : index
    %c2_68 = arith.constant 2 : index
    %c0_69 = arith.constant 0 : index
    %55 = vector.load %arg13[%c1_67, %c2_68, %c0_69] : memref<12x12x4xf32, #tpu.memory_space<vmem>>, vector<8x8x4xf32>
    %56 = vector.broadcast %54 : vector<1x1x4xf32> to vector<8x8x4xf32>
    %57 = arith.mulf %55, %56 : vector<8x8x4xf32>
    %58 = arith.addf %52, %57 : vector<8x8x4xf32>
    %c0_70 = arith.constant 0 : index
    %c1_71 = arith.constant 1 : index
    %c3_72 = arith.constant 3 : index
    %c0_73 = arith.constant 0 : index
    %59 = vector.load %arg8[%c0_70, %c1_71, %c3_72, %c0_73] : memref<4x5x5x4xf32, #tpu.memory_space<vmem>>, vector<1x1x1x4xf32>
    %60 = vector.shape_cast %59 : vector<1x1x1x4xf32> to vector<1x1x4xf32>
    %c1_74 = arith.constant 1 : index
    %c3_75 = arith.constant 3 : index
    %c0_76 = arith.constant 0 : index
    %61 = vector.load %arg13[%c1_74, %c3_75, %c0_76] : memref<12x12x4xf32, #tpu.memory_space<vmem>>, vector<8x8x4xf32>
    %62 = vector.broadcast %60 : vector<1x1x4xf32> to vector<8x8x4xf32>
    %63 = arith.mulf %61, %62 : vector<8x8x4xf32>
    %64 = arith.addf %58, %63 : vector<8x8x4xf32>
    %c0_77 = arith.constant 0 : index
    %c1_78 = arith.constant 1 : index
    %c4_79 = arith.constant 4 : index
    %c0_80 = arith.constant 0 : index
    %65 = vector.load %arg8[%c0_77, %c1_78, %c4_79, %c0_80] : memref<4x5x5x4xf32, #tpu.memory_space<vmem>>, vector<1x1x1x4xf32>
    %66 = vector.shape_cast %65 : vector<1x1x1x4xf32> to vector<1x1x4xf32>
    %c1_81 = arith.constant 1 : index
    %c4_82 = arith.constant 4 : index
    %c0_83 = arith.constant 0 : index
    %67 = vector.load %arg13[%c1_81, %c4_82, %c0_83] : memref<12x12x4xf32, #tpu.memory_space<vmem>>, vector<8x8x4xf32>
    %68 = vector.broadcast %66 : vector<1x1x4xf32> to vector<8x8x4xf32>
    %69 = arith.mulf %67, %68 : vector<8x8x4xf32>
    %70 = arith.addf %64, %69 : vector<8x8x4xf32>
    %c0_84 = arith.constant 0 : index
    %c2_85 = arith.constant 2 : index
    %c0_86 = arith.constant 0 : index
    %c0_87 = arith.constant 0 : index
    %71 = vector.load %arg8[%c0_84, %c2_85, %c0_86, %c0_87] : memref<4x5x5x4xf32, #tpu.memory_space<vmem>>, vector<1x1x1x4xf32>
    %72 = vector.shape_cast %71 : vector<1x1x1x4xf32> to vector<1x1x4xf32>
    %c2_88 = arith.constant 2 : index
    %c0_89 = arith.constant 0 : index
    %c0_90 = arith.constant 0 : index
    %73 = vector.load %arg13[%c2_88, %c0_89, %c0_90] : memref<12x12x4xf32, #tpu.memory_space<vmem>>, vector<8x8x4xf32>
    %74 = vector.broadcast %72 : vector<1x1x4xf32> to vector<8x8x4xf32>
    %75 = arith.mulf %73, %74 : vector<8x8x4xf32>
    %76 = arith.addf %70, %75 : vector<8x8x4xf32>
    %c0_91 = arith.constant 0 : index
    %c2_92 = arith.constant 2 : index
    %c1_93 = arith.constant 1 : index
    %c0_94 = arith.constant 0 : index
    %77 = vector.load %arg8[%c0_91, %c2_92, %c1_93, %c0_94] : memref<4x5x5x4xf32, #tpu.memory_space<vmem>>, vector<1x1x1x4xf32>
    %78 = vector.shape_cast %77 : vector<1x1x1x4xf32> to vector<1x1x4xf32>
    %c2_95 = arith.constant 2 : index
    %c1_96 = arith.constant 1 : index
    %c0_97 = arith.constant 0 : index
    %79 = vector.load %arg13[%c2_95, %c1_96, %c0_97] : memref<12x12x4xf32, #tpu.memory_space<vmem>>, vector<8x8x4xf32>
    %80 = vector.broadcast %78 : vector<1x1x4xf32> to vector<8x8x4xf32>
    %81 = arith.mulf %79, %80 : vector<8x8x4xf32>
    %82 = arith.addf %76, %81 : vector<8x8x4xf32>
    %c0_98 = arith.constant 0 : index
    %c2_99 = arith.constant 2 : index
    %c2_100 = arith.constant 2 : index
    %c0_101 = arith.constant 0 : index
    %83 = vector.load %arg8[%c0_98, %c2_99, %c2_100, %c0_101] : memref<4x5x5x4xf32, #tpu.memory_space<vmem>>, vector<1x1x1x4xf32>
    %84 = vector.shape_cast %83 : vector<1x1x1x4xf32> to vector<1x1x4xf32>
    %c2_102 = arith.constant 2 : index
    %c2_103 = arith.constant 2 : index
    %c0_104 = arith.constant 0 : index
    %85 = vector.load %arg13[%c2_102, %c2_103, %c0_104] : memref<12x12x4xf32, #tpu.memory_space<vmem>>, vector<8x8x4xf32>
    %86 = vector.broadcast %84 : vector<1x1x4xf32> to vector<8x8x4xf32>
    %87 = arith.mulf %85, %86 : vector<8x8x4xf32>
    %88 = arith.addf %82, %87 : vector<8x8x4xf32>
    %c0_105 = arith.constant 0 : index
    %c2_106 = arith.constant 2 : index
    %c3_107 = arith.constant 3 : index
    %c0_108 = arith.constant 0 : index
    %89 = vector.load %arg8[%c0_105, %c2_106, %c3_107, %c0_108] : memref<4x5x5x4xf32, #tpu.memory_space<vmem>>, vector<1x1x1x4xf32>
    %90 = vector.shape_cast %89 : vector<1x1x1x4xf32> to vector<1x1x4xf32>
    %c2_109 = arith.constant 2 : index
    %c3_110 = arith.constant 3 : index
    %c0_111 = arith.constant 0 : index
    %91 = vector.load %arg13[%c2_109, %c3_110, %c0_111] : memref<12x12x4xf32, #tpu.memory_space<vmem>>, vector<8x8x4xf32>
    %92 = vector.broadcast %90 : vector<1x1x4xf32> to vector<8x8x4xf32>
    %93 = arith.mulf %91, %92 : vector<8x8x4xf32>
    %94 = arith.addf %88, %93 : vector<8x8x4xf32>
    %c0_112 = arith.constant 0 : index
    %c2_113 = arith.constant 2 : index
    %c4_114 = arith.constant 4 : index
    %c0_115 = arith.constant 0 : index
    %95 = vector.load %arg8[%c0_112, %c2_113, %c4_114, %c0_115] : memref<4x5x5x4xf32, #tpu.memory_space<vmem>>, vector<1x1x1x4xf32>
    %96 = vector.shape_cast %95 : vector<1x1x1x4xf32> to vector<1x1x4xf32>
    %c2_116 = arith.constant 2 : index
    %c4_117 = arith.constant 4 : index
    %c0_118 = arith.constant 0 : index
    %97 = vector.load %arg13[%c2_116, %c4_117, %c0_118] : memref<12x12x4xf32, #tpu.memory_space<vmem>>, vector<8x8x4xf32>
    %98 = vector.broadcast %96 : vector<1x1x4xf32> to vector<8x8x4xf32>
    %99 = arith.mulf %97, %98 : vector<8x8x4xf32>
    %100 = arith.addf %94, %99 : vector<8x8x4xf32>
    %c0_119 = arith.constant 0 : index
    %c3_120 = arith.constant 3 : index
    %c0_121 = arith.constant 0 : index
    %c0_122 = arith.constant 0 : index
    %101 = vector.load %arg8[%c0_119, %c3_120, %c0_121, %c0_122] : memref<4x5x5x4xf32, #tpu.memory_space<vmem>>, vector<1x1x1x4xf32>
    %102 = vector.shape_cast %101 : vector<1x1x1x4xf32> to vector<1x1x4xf32>
    %c3_123 = arith.constant 3 : index
    %c0_124 = arith.constant 0 : index
    %c0_125 = arith.constant 0 : index
    %103 = vector.load %arg13[%c3_123, %c0_124, %c0_125] : memref<12x12x4xf32, #tpu.memory_space<vmem>>, vector<8x8x4xf32>
    %104 = vector.broadcast %102 : vector<1x1x4xf32> to vector<8x8x4xf32>
    %105 = arith.mulf %103, %104 : vector<8x8x4xf32>
    %106 = arith.addf %100, %105 : vector<8x8x4xf32>
    %c0_126 = arith.constant 0 : index
    %c3_127 = arith.constant 3 : index
    %c1_128 = arith.constant 1 : index
    %c0_129 = arith.constant 0 : index
    %107 = vector.load %arg8[%c0_126, %c3_127, %c1_128, %c0_129] : memref<4x5x5x4xf32, #tpu.memory_space<vmem>>, vector<1x1x1x4xf32>
    %108 = vector.shape_cast %107 : vector<1x1x1x4xf32> to vector<1x1x4xf32>
    %c3_130 = arith.constant 3 : index
    %c1_131 = arith.constant 1 : index
    %c0_132 = arith.constant 0 : index
    %109 = vector.load %arg13[%c3_130, %c1_131, %c0_132] : memref<12x12x4xf32, #tpu.memory_space<vmem>>, vector<8x8x4xf32>
    %110 = vector.broadcast %108 : vector<1x1x4xf32> to vector<8x8x4xf32>
    %111 = arith.mulf %109, %110 : vector<8x8x4xf32>
    %112 = arith.addf %106, %111 : vector<8x8x4xf32>
    %c0_133 = arith.constant 0 : index
    %c3_134 = arith.constant 3 : index
    %c2_135 = arith.constant 2 : index
    %c0_136 = arith.constant 0 : index
    %113 = vector.load %arg8[%c0_133, %c3_134, %c2_135, %c0_136] : memref<4x5x5x4xf32, #tpu.memory_space<vmem>>, vector<1x1x1x4xf32>
    %114 = vector.shape_cast %113 : vector<1x1x1x4xf32> to vector<1x1x4xf32>
    %c3_137 = arith.constant 3 : index
    %c2_138 = arith.constant 2 : index
    %c0_139 = arith.constant 0 : index
    %115 = vector.load %arg13[%c3_137, %c2_138, %c0_139] : memref<12x12x4xf32, #tpu.memory_space<vmem>>, vector<8x8x4xf32>
    %116 = vector.broadcast %114 : vector<1x1x4xf32> to vector<8x8x4xf32>
    %117 = arith.mulf %115, %116 : vector<8x8x4xf32>
    %118 = arith.addf %112, %117 : vector<8x8x4xf32>
    %c0_140 = arith.constant 0 : index
    %c3_141 = arith.constant 3 : index
    %c3_142 = arith.constant 3 : index
    %c0_143 = arith.constant 0 : index
    %119 = vector.load %arg8[%c0_140, %c3_141, %c3_142, %c0_143] : memref<4x5x5x4xf32, #tpu.memory_space<vmem>>, vector<1x1x1x4xf32>
    %120 = vector.shape_cast %119 : vector<1x1x1x4xf32> to vector<1x1x4xf32>
    %c3_144 = arith.constant 3 : index
    %c3_145 = arith.constant 3 : index
    %c0_146 = arith.constant 0 : index
    %121 = vector.load %arg13[%c3_144, %c3_145, %c0_146] : memref<12x12x4xf32, #tpu.memory_space<vmem>>, vector<8x8x4xf32>
    %122 = vector.broadcast %120 : vector<1x1x4xf32> to vector<8x8x4xf32>
    %123 = arith.mulf %121, %122 : vector<8x8x4xf32>
    %124 = arith.addf %118, %123 : vector<8x8x4xf32>
    %c0_147 = arith.constant 0 : index
    %c3_148 = arith.constant 3 : index
    %c4_149 = arith.constant 4 : index
    %c0_150 = arith.constant 0 : index
    %125 = vector.load %arg8[%c0_147, %c3_148, %c4_149, %c0_150] : memref<4x5x5x4xf32, #tpu.memory_space<vmem>>, vector<1x1x1x4xf32>
    %126 = vector.shape_cast %125 : vector<1x1x1x4xf32> to vector<1x1x4xf32>
    %c3_151 = arith.constant 3 : index
    %c4_152 = arith.constant 4 : index
    %c0_153 = arith.constant 0 : index
    %127 = vector.load %arg13[%c3_151, %c4_152, %c0_153] : memref<12x12x4xf32, #tpu.memory_space<vmem>>, vector<8x8x4xf32>
    %128 = vector.broadcast %126 : vector<1x1x4xf32> to vector<8x8x4xf32>
    %129 = arith.mulf %127, %128 : vector<8x8x4xf32>
    %130 = arith.addf %124, %129 : vector<8x8x4xf32>
    %c0_154 = arith.constant 0 : index
    %c4_155 = arith.constant 4 : index
    %c0_156 = arith.constant 0 : index
    %c0_157 = arith.constant 0 : index
    %131 = vector.load %arg8[%c0_154, %c4_155, %c0_156, %c0_157] : memref<4x5x5x4xf32, #tpu.memory_space<vmem>>, vector<1x1x1x4xf32>
    %132 = vector.shape_cast %131 : vector<1x1x1x4xf32> to vector<1x1x4xf32>
    %c4_158 = arith.constant 4 : index
    %c0_159 = arith.constant 0 : index
    %c0_160 = arith.constant 0 : index
    %133 = vector.load %arg13[%c4_158, %c0_159, %c0_160] : memref<12x12x4xf32, #tpu.memory_space<vmem>>, vector<8x8x4xf32>
    %134 = vector.broadcast %132 : vector<1x1x4xf32> to vector<8x8x4xf32>
    %135 = arith.mulf %133, %134 : vector<8x8x4xf32>
    %136 = arith.addf %130, %135 : vector<8x8x4xf32>
    %c0_161 = arith.constant 0 : index
    %c4_162 = arith.constant 4 : index
    %c1_163 = arith.constant 1 : index
    %c0_164 = arith.constant 0 : index
    %137 = vector.load %arg8[%c0_161, %c4_162, %c1_163, %c0_164] : memref<4x5x5x4xf32, #tpu.memory_space<vmem>>, vector<1x1x1x4xf32>
    %138 = vector.shape_cast %137 : vector<1x1x1x4xf32> to vector<1x1x4xf32>
    %c4_165 = arith.constant 4 : index
    %c1_166 = arith.constant 1 : index
    %c0_167 = arith.constant 0 : index
    %139 = vector.load %arg13[%c4_165, %c1_166, %c0_167] : memref<12x12x4xf32, #tpu.memory_space<vmem>>, vector<8x8x4xf32>
    %140 = vector.broadcast %138 : vector<1x1x4xf32> to vector<8x8x4xf32>
    %141 = arith.mulf %139, %140 : vector<8x8x4xf32>
    %142 = arith.addf %136, %141 : vector<8x8x4xf32>
    %c0_168 = arith.constant 0 : index
    %c4_169 = arith.constant 4 : index
    %c2_170 = arith.constant 2 : index
    %c0_171 = arith.constant 0 : index
    %143 = vector.load %arg8[%c0_168, %c4_169, %c2_170, %c0_171] : memref<4x5x5x4xf32, #tpu.memory_space<vmem>>, vector<1x1x1x4xf32>
    %144 = vector.shape_cast %143 : vector<1x1x1x4xf32> to vector<1x1x4xf32>
    %c4_172 = arith.constant 4 : index
    %c2_173 = arith.constant 2 : index
    %c0_174 = arith.constant 0 : index
    %145 = vector.load %arg13[%c4_172, %c2_173, %c0_174] : memref<12x12x4xf32, #tpu.memory_space<vmem>>, vector<8x8x4xf32>
    %146 = vector.broadcast %144 : vector<1x1x4xf32> to vector<8x8x4xf32>
    %147 = arith.mulf %145, %146 : vector<8x8x4xf32>
    %148 = arith.addf %142, %147 : vector<8x8x4xf32>
    %c0_175 = arith.constant 0 : index
    %c4_176 = arith.constant 4 : index
    %c3_177 = arith.constant 3 : index
    %c0_178 = arith.constant 0 : index
    %149 = vector.load %arg8[%c0_175, %c4_176, %c3_177, %c0_178] : memref<4x5x5x4xf32, #tpu.memory_space<vmem>>, vector<1x1x1x4xf32>
    %150 = vector.shape_cast %149 : vector<1x1x1x4xf32> to vector<1x1x4xf32>
    %c4_179 = arith.constant 4 : index
    %c3_180 = arith.constant 3 : index
    %c0_181 = arith.constant 0 : index
    %151 = vector.load %arg13[%c4_179, %c3_180, %c0_181] : memref<12x12x4xf32, #tpu.memory_space<vmem>>, vector<8x8x4xf32>
    %152 = vector.broadcast %150 : vector<1x1x4xf32> to vector<8x8x4xf32>
    %153 = arith.mulf %151, %152 : vector<8x8x4xf32>
    %154 = arith.addf %148, %153 : vector<8x8x4xf32>
    %c0_182 = arith.constant 0 : index
    %c4_183 = arith.constant 4 : index
    %c4_184 = arith.constant 4 : index
    %c0_185 = arith.constant 0 : index
    %155 = vector.load %arg8[%c0_182, %c4_183, %c4_184, %c0_185] : memref<4x5x5x4xf32, #tpu.memory_space<vmem>>, vector<1x1x1x4xf32>
    %156 = vector.shape_cast %155 : vector<1x1x1x4xf32> to vector<1x1x4xf32>
    %c4_186 = arith.constant 4 : index
    %c4_187 = arith.constant 4 : index
    %c0_188 = arith.constant 0 : index
    %157 = vector.load %arg13[%c4_186, %c4_187, %c0_188] : memref<12x12x4xf32, #tpu.memory_space<vmem>>, vector<8x8x4xf32>
    %158 = vector.broadcast %156 : vector<1x1x4xf32> to vector<8x8x4xf32>
    %159 = arith.mulf %157, %158 : vector<8x8x4xf32>
    %160 = arith.addf %154, %159 : vector<8x8x4xf32>
    %c0_189 = arith.constant 0 : index
    %c0_190 = arith.constant 0 : index
    %c0_191 = arith.constant 0 : index
    %c0_192 = arith.constant 0 : index
    %161 = vector.load %arg14[%c0_189, %c0_190, %c0_191, %c0_192] : memref<4x8x8x4xf32, #tpu.memory_space<vmem>>, vector<1x8x8x4xf32>
    %162 = vector.shape_cast %161 : vector<1x8x8x4xf32> to vector<8x8x4xf32>
    %163 = vector.shape_cast %160 : vector<8x8x4xf32> to vector<1x8x8x4xf32>
    tpu.vector_store %arg14[%c0_189, %c0_190, %c0_191, %c0_192], %163 {strides = array<i32>} : memref<4x8x8x4xf32, #tpu.memory_space<vmem>>, vector<1x8x8x4xf32>,
    %c0_193 = arith.constant 0 : index
    %c0_194 = arith.constant 0 : index
    %c0_195 = arith.constant 0 : index
    %c0_196 = arith.constant 0 : index
    %164 = vector.load %arg2[%c0_193, %c0_194, %c0_195, %c0_196] : memref<1x12x12x4xf32, #tpu.memory_space<vmem>>, vector<1x12x12x4xf32>
    %165 = vector.shape_cast %164 : vector<1x12x12x4xf32> to vector<12x12x4xf32>
    %c0_197 = arith.constant 0 : index
    %c0_198 = arith.constant 0 : index
    %c0_199 = arith.constant 0 : index
    %c0_200 = arith.constant 0 : index
    %166 = vector.load %arg3[%c0_197, %c0_198, %c0_199, %c0_200] : memref<1x12x12x4xf32, #tpu.memory_space<vmem>>, vector<1x12x12x4xf32>
    %167 = vector.shape_cast %166 : vector<1x12x12x4xf32> to vector<12x12x4xf32>
    %168 = arith.addf %165, %167 : vector<12x12x4xf32>
    %c0_201 = arith.constant 0 : index
    %c0_202 = arith.constant 0 : index
    %c0_203 = arith.constant 0 : index
    %c0_204 = arith.constant 0 : index
    %169 = vector.load %arg4[%c0_201, %c0_202, %c0_203, %c0_204] : memref<1x12x12x4xf32, #tpu.memory_space<vmem>>, vector<1x12x12x4xf32>
    %170 = vector.shape_cast %169 : vector<1x12x12x4xf32> to vector<12x12x4xf32>
    %171 = arith.subf %168, %170 : vector<12x12x4xf32>
    %c0_205 = arith.constant 0 : index
    %c0_206 = arith.constant 0 : index
    %c0_207 = arith.constant 0 : index
    %c0_208 = arith.constant 0 : index
    %172 = vector.load %arg5[%c0_205, %c0_206, %c0_207, %c0_208] : memref<1x12x12x4xf32, #tpu.memory_space<vmem>>, vector<1x12x12x4xf32>
    %173 = vector.shape_cast %172 : vector<1x12x12x4xf32> to vector<12x12x4xf32>
    %174 = arith.subf %171, %173 : vector<12x12x4xf32>
    %c0_209 = arith.constant 0 : index
    %c0_210 = arith.constant 0 : index
    %c0_211 = arith.constant 0 : index
    %175 = vector.load %arg13[%c0_209, %c0_210, %c0_211] : memref<12x12x4xf32, #tpu.memory_space<vmem>>, vector<12x12x4xf32>
    tpu.vector_store %arg13[%c0_209, %c0_210, %c0_211], %174 {strides = array<i32>} : memref<12x12x4xf32, #tpu.memory_space<vmem>>, vector<12x12x4xf32>,
    %c1_212 = arith.constant 1 : index
    %c0_213 = arith.constant 0 : index
    %c0_214 = arith.constant 0 : index
    %c0_215 = arith.constant 0 : index
    %176 = vector.load %arg8[%c1_212, %c0_213, %c0_214, %c0_215] : memref<4x5x5x4xf32, #tpu.memory_space<vmem>>, vector<1x1x1x4xf32>
    %177 = vector.shape_cast %176 : vector<1x1x1x4xf32> to vector<1x1x4xf32>
    %c0_216 = arith.constant 0 : index
    %c0_217 = arith.constant 0 : index
    %c0_218 = arith.constant 0 : index
    %178 = vector.load %arg13[%c0_216, %c0_217, %c0_218] : memref<12x12x4xf32, #tpu.memory_space<vmem>>, vector<8x8x4xf32>
    %179 = vector.broadcast %177 : vector<1x1x4xf32> to vector<8x8x4xf32>
    %180 = arith.mulf %178, %179 : vector<8x8x4xf32>
    %c1_219 = arith.constant 1 : index
    %c0_220 = arith.constant 0 : index
    %c1_221 = arith.constant 1 : index
    %c0_222 = arith.constant 0 : index
    %181 = vector.load %arg8[%c1_219, %c0_220, %c1_221, %c0_222] : memref<4x5x5x4xf32, #tpu.memory_space<vmem>>, vector<1x1x1x4xf32>
    %182 = vector.shape_cast %181 : vector<1x1x1x4xf32> to vector<1x1x4xf32>
    %c0_223 = arith.constant 0 : index
    %c1_224 = arith.constant 1 : index
    %c0_225 = arith.constant 0 : index
    %183 = vector.load %arg13[%c0_223, %c1_224, %c0_225] : memref<12x12x4xf32, #tpu.memory_space<vmem>>, vector<8x8x4xf32>
    %184 = vector.broadcast %182 : vector<1x1x4xf32> to vector<8x8x4xf32>
    %185 = arith.mulf %183, %184 : vector<8x8x4xf32>
    %186 = arith.addf %180, %185 : vector<8x8x4xf32>
    %c1_226 = arith.constant 1 : index
    %c0_227 = arith.constant 0 : index
    %c2_228 = arith.constant 2 : index
    %c0_229 = arith.constant 0 : index
    %187 = vector.load %arg8[%c1_226, %c0_227, %c2_228, %c0_229] : memref<4x5x5x4xf32, #tpu.memory_space<vmem>>, vector<1x1x1x4xf32>
    %188 = vector.shape_cast %187 : vector<1x1x1x4xf32> to vector<1x1x4xf32>
    %c0_230 = arith.constant 0 : index
    %c2_231 = arith.constant 2 : index
    %c0_232 = arith.constant 0 : index
    %189 = vector.load %arg13[%c0_230, %c2_231, %c0_232] : memref<12x12x4xf32, #tpu.memory_space<vmem>>, vector<8x8x4xf32>
    %190 = vector.broadcast %188 : vector<1x1x4xf32> to vector<8x8x4xf32>
    %191 = arith.mulf %189, %190 : vector<8x8x4xf32>
    %192 = arith.addf %186, %191 : vector<8x8x4xf32>
    %c1_233 = arith.constant 1 : index
    %c0_234 = arith.constant 0 : index
    %c3_235 = arith.constant 3 : index
    %c0_236 = arith.constant 0 : index
    %193 = vector.load %arg8[%c1_233, %c0_234, %c3_235, %c0_236] : memref<4x5x5x4xf32, #tpu.memory_space<vmem>>, vector<1x1x1x4xf32>
    %194 = vector.shape_cast %193 : vector<1x1x1x4xf32> to vector<1x1x4xf32>
    %c0_237 = arith.constant 0 : index
    %c3_238 = arith.constant 3 : index
    %c0_239 = arith.constant 0 : index
    %195 = vector.load %arg13[%c0_237, %c3_238, %c0_239] : memref<12x12x4xf32, #tpu.memory_space<vmem>>, vector<8x8x4xf32>
    %196 = vector.broadcast %194 : vector<1x1x4xf32> to vector<8x8x4xf32>
    %197 = arith.mulf %195, %196 : vector<8x8x4xf32>
    %198 = arith.addf %192, %197 : vector<8x8x4xf32>
    %c1_240 = arith.constant 1 : index
    %c0_241 = arith.constant 0 : index
    %c4_242 = arith.constant 4 : index
    %c0_243 = arith.constant 0 : index
    %199 = vector.load %arg8[%c1_240, %c0_241, %c4_242, %c0_243] : memref<4x5x5x4xf32, #tpu.memory_space<vmem>>, vector<1x1x1x4xf32>
    %200 = vector.shape_cast %199 : vector<1x1x1x4xf32> to vector<1x1x4xf32>
    %c0_244 = arith.constant 0 : index
    %c4_245 = arith.constant 4 : index
    %c0_246 = arith.constant 0 : index
    %201 = vector.load %arg13[%c0_244, %c4_245, %c0_246] : memref<12x12x4xf32, #tpu.memory_space<vmem>>, vector<8x8x4xf32>
    %202 = vector.broadcast %200 : vector<1x1x4xf32> to vector<8x8x4xf32>
    %203 = arith.mulf %201, %202 : vector<8x8x4xf32>
    %204 = arith.addf %198, %203 : vector<8x8x4xf32>
    %c1_247 = arith.constant 1 : index
    %c1_248 = arith.constant 1 : index
    %c0_249 = arith.constant 0 : index
    %c0_250 = arith.constant 0 : index
    %205 = vector.load %arg8[%c1_247, %c1_248, %c0_249, %c0_250] : memref<4x5x5x4xf32, #tpu.memory_space<vmem>>, vector<1x1x1x4xf32>
    %206 = vector.shape_cast %205 : vector<1x1x1x4xf32> to vector<1x1x4xf32>
    %c1_251 = arith.constant 1 : index
    %c0_252 = arith.constant 0 : index
    %c0_253 = arith.constant 0 : index
    %207 = vector.load %arg13[%c1_251, %c0_252, %c0_253] : memref<12x12x4xf32, #tpu.memory_space<vmem>>, vector<8x8x4xf32>
    %208 = vector.broadcast %206 : vector<1x1x4xf32> to vector<8x8x4xf32>
    %209 = arith.mulf %207, %208 : vector<8x8x4xf32>
    %210 = arith.addf %204, %209 : vector<8x8x4xf32>
    %c1_254 = arith.constant 1 : index
    %c1_255 = arith.constant 1 : index
    %c1_256 = arith.constant 1 : index
    %c0_257 = arith.constant 0 : index
    %211 = vector.load %arg8[%c1_254, %c1_255, %c1_256, %c0_257] : memref<4x5x5x4xf32, #tpu.memory_space<vmem>>, vector<1x1x1x4xf32>
    %212 = vector.shape_cast %211 : vector<1x1x1x4xf32> to vector<1x1x4xf32>
    %c1_258 = arith.constant 1 : index
    %c1_259 = arith.constant 1 : index
    %c0_260 = arith.constant 0 : index
    %213 = vector.load %arg13[%c1_258, %c1_259, %c0_260] : memref<12x12x4xf32, #tpu.memory_space<vmem>>, vector<8x8x4xf32>
    %214 = vector.broadcast %212 : vector<1x1x4xf32> to vector<8x8x4xf32>
    %215 = arith.mulf %213, %214 : vector<8x8x4xf32>
    %216 = arith.addf %210, %215 : vector<8x8x4xf32>
    %c1_261 = arith.constant 1 : index
    %c1_262 = arith.constant 1 : index
    %c2_263 = arith.constant 2 : index
    %c0_264 = arith.constant 0 : index
    %217 = vector.load %arg8[%c1_261, %c1_262, %c2_263, %c0_264] : memref<4x5x5x4xf32, #tpu.memory_space<vmem>>, vector<1x1x1x4xf32>
    %218 = vector.shape_cast %217 : vector<1x1x1x4xf32> to vector<1x1x4xf32>
    %c1_265 = arith.constant 1 : index
    %c2_266 = arith.constant 2 : index
    %c0_267 = arith.constant 0 : index
    %219 = vector.load %arg13[%c1_265, %c2_266, %c0_267] : memref<12x12x4xf32, #tpu.memory_space<vmem>>, vector<8x8x4xf32>
    %220 = vector.broadcast %218 : vector<1x1x4xf32> to vector<8x8x4xf32>
    %221 = arith.mulf %219, %220 : vector<8x8x4xf32>
    %222 = arith.addf %216, %221 : vector<8x8x4xf32>
    %c1_268 = arith.constant 1 : index
    %c1_269 = arith.constant 1 : index
    %c3_270 = arith.constant 3 : index
    %c0_271 = arith.constant 0 : index
    %223 = vector.load %arg8[%c1_268, %c1_269, %c3_270, %c0_271] : memref<4x5x5x4xf32, #tpu.memory_space<vmem>>, vector<1x1x1x4xf32>
    %224 = vector.shape_cast %223 : vector<1x1x1x4xf32> to vector<1x1x4xf32>
    %c1_272 = arith.constant 1 : index
    %c3_273 = arith.constant 3 : index
    %c0_274 = arith.constant 0 : index
    %225 = vector.load %arg13[%c1_272, %c3_273, %c0_274] : memref<12x12x4xf32, #tpu.memory_space<vmem>>, vector<8x8x4xf32>
    %226 = vector.broadcast %224 : vector<1x1x4xf32> to vector<8x8x4xf32>
    %227 = arith.mulf %225, %226 : vector<8x8x4xf32>
    %228 = arith.addf %222, %227 : vector<8x8x4xf32>
    %c1_275 = arith.constant 1 : index
    %c1_276 = arith.constant 1 : index
    %c4_277 = arith.constant 4 : index
    %c0_278 = arith.constant 0 : index
    %229 = vector.load %arg8[%c1_275, %c1_276, %c4_277, %c0_278] : memref<4x5x5x4xf32, #tpu.memory_space<vmem>>, vector<1x1x1x4xf32>
    %230 = vector.shape_cast %229 : vector<1x1x1x4xf32> to vector<1x1x4xf32>
    %c1_279 = arith.constant 1 : index
    %c4_280 = arith.constant 4 : index
    %c0_281 = arith.constant 0 : index
    %231 = vector.load %arg13[%c1_279, %c4_280, %c0_281] : memref<12x12x4xf32, #tpu.memory_space<vmem>>, vector<8x8x4xf32>
    %232 = vector.broadcast %230 : vector<1x1x4xf32> to vector<8x8x4xf32>
    %233 = arith.mulf %231, %232 : vector<8x8x4xf32>
    %234 = arith.addf %228, %233 : vector<8x8x4xf32>
    %c1_282 = arith.constant 1 : index
    %c2_283 = arith.constant 2 : index
    %c0_284 = arith.constant 0 : index
    %c0_285 = arith.constant 0 : index
    %235 = vector.load %arg8[%c1_282, %c2_283, %c0_284, %c0_285] : memref<4x5x5x4xf32, #tpu.memory_space<vmem>>, vector<1x1x1x4xf32>
    %236 = vector.shape_cast %235 : vector<1x1x1x4xf32> to vector<1x1x4xf32>
    %c2_286 = arith.constant 2 : index
    %c0_287 = arith.constant 0 : index
    %c0_288 = arith.constant 0 : index
    %237 = vector.load %arg13[%c2_286, %c0_287, %c0_288] : memref<12x12x4xf32, #tpu.memory_space<vmem>>, vector<8x8x4xf32>
    %238 = vector.broadcast %236 : vector<1x1x4xf32> to vector<8x8x4xf32>
    %239 = arith.mulf %237, %238 : vector<8x8x4xf32>
    %240 = arith.addf %234, %239 : vector<8x8x4xf32>
    %c1_289 = arith.constant 1 : index
    %c2_290 = arith.constant 2 : index
    %c1_291 = arith.constant 1 : index
    %c0_292 = arith.constant 0 : index
    %241 = vector.load %arg8[%c1_289, %c2_290, %c1_291, %c0_292] : memref<4x5x5x4xf32, #tpu.memory_space<vmem>>, vector<1x1x1x4xf32>
    %242 = vector.shape_cast %241 : vector<1x1x1x4xf32> to vector<1x1x4xf32>
    %c2_293 = arith.constant 2 : index
    %c1_294 = arith.constant 1 : index
    %c0_295 = arith.constant 0 : index
    %243 = vector.load %arg13[%c2_293, %c1_294, %c0_295] : memref<12x12x4xf32, #tpu.memory_space<vmem>>, vector<8x8x4xf32>
    %244 = vector.broadcast %242 : vector<1x1x4xf32> to vector<8x8x4xf32>
    %245 = arith.mulf %243, %244 : vector<8x8x4xf32>
    %246 = arith.addf %240, %245 : vector<8x8x4xf32>
    %c1_296 = arith.constant 1 : index
    %c2_297 = arith.constant 2 : index
    %c2_298 = arith.constant 2 : index
    %c0_299 = arith.constant 0 : index
    %247 = vector.load %arg8[%c1_296, %c2_297, %c2_298, %c0_299] : memref<4x5x5x4xf32, #tpu.memory_space<vmem>>, vector<1x1x1x4xf32>
    %248 = vector.shape_cast %247 : vector<1x1x1x4xf32> to vector<1x1x4xf32>
    %c2_300 = arith.constant 2 : index
    %c2_301 = arith.constant 2 : index
    %c0_302 = arith.constant 0 : index
    %249 = vector.load %arg13[%c2_300, %c2_301, %c0_302] : memref<12x12x4xf32, #tpu.memory_space<vmem>>, vector<8x8x4xf32>
    %250 = vector.broadcast %248 : vector<1x1x4xf32> to vector<8x8x4xf32>
    %251 = arith.mulf %249, %250 : vector<8x8x4xf32>
    %252 = arith.addf %246, %251 : vector<8x8x4xf32>
    %c1_303 = arith.constant 1 : index
    %c2_304 = arith.constant 2 : index
    %c3_305 = arith.constant 3 : index
    %c0_306 = arith.constant 0 : index
    %253 = vector.load %arg8[%c1_303, %c2_304, %c3_305, %c0_306] : memref<4x5x5x4xf32, #tpu.memory_space<vmem>>, vector<1x1x1x4xf32>
    %254 = vector.shape_cast %253 : vector<1x1x1x4xf32> to vector<1x1x4xf32>
    %c2_307 = arith.constant 2 : index
    %c3_308 = arith.constant 3 : index
    %c0_309 = arith.constant 0 : index
    %255 = vector.load %arg13[%c2_307, %c3_308, %c0_309] : memref<12x12x4xf32, #tpu.memory_space<vmem>>, vector<8x8x4xf32>
    %256 = vector.broadcast %254 : vector<1x1x4xf32> to vector<8x8x4xf32>
    %257 = arith.mulf %255, %256 : vector<8x8x4xf32>
    %258 = arith.addf %252, %257 : vector<8x8x4xf32>
    %c1_310 = arith.constant 1 : index
    %c2_311 = arith.constant 2 : index
    %c4_312 = arith.constant 4 : index
    %c0_313 = arith.constant 0 : index
    %259 = vector.load %arg8[%c1_310, %c2_311, %c4_312, %c0_313] : memref<4x5x5x4xf32, #tpu.memory_space<vmem>>, vector<1x1x1x4xf32>
    %260 = vector.shape_cast %259 : vector<1x1x1x4xf32> to vector<1x1x4xf32>
    %c2_314 = arith.constant 2 : index
    %c4_315 = arith.constant 4 : index
    %c0_316 = arith.constant 0 : index
    %261 = vector.load %arg13[%c2_314, %c4_315, %c0_316] : memref<12x12x4xf32, #tpu.memory_space<vmem>>, vector<8x8x4xf32>
    %262 = vector.broadcast %260 : vector<1x1x4xf32> to vector<8x8x4xf32>
    %263 = arith.mulf %261, %262 : vector<8x8x4xf32>
    %264 = arith.addf %258, %263 : vector<8x8x4xf32>
    %c1_317 = arith.constant 1 : index
    %c3_318 = arith.constant 3 : index
    %c0_319 = arith.constant 0 : index
    %c0_320 = arith.constant 0 : index
    %265 = vector.load %arg8[%c1_317, %c3_318, %c0_319, %c0_320] : memref<4x5x5x4xf32, #tpu.memory_space<vmem>>, vector<1x1x1x4xf32>
    %266 = vector.shape_cast %265 : vector<1x1x1x4xf32> to vector<1x1x4xf32>
    %c3_321 = arith.constant 3 : index
    %c0_322 = arith.constant 0 : index
    %c0_323 = arith.constant 0 : index
    %267 = vector.load %arg13[%c3_321, %c0_322, %c0_323] : memref<12x12x4xf32, #tpu.memory_space<vmem>>, vector<8x8x4xf32>
    %268 = vector.broadcast %266 : vector<1x1x4xf32> to vector<8x8x4xf32>
    %269 = arith.mulf %267, %268 : vector<8x8x4xf32>
    %270 = arith.addf %264, %269 : vector<8x8x4xf32>
    %c1_324 = arith.constant 1 : index
    %c3_325 = arith.constant 3 : index
    %c1_326 = arith.constant 1 : index
    %c0_327 = arith.constant 0 : index
    %271 = vector.load %arg8[%c1_324, %c3_325, %c1_326, %c0_327] : memref<4x5x5x4xf32, #tpu.memory_space<vmem>>, vector<1x1x1x4xf32>
    %272 = vector.shape_cast %271 : vector<1x1x1x4xf32> to vector<1x1x4xf32>
    %c3_328 = arith.constant 3 : index
    %c1_329 = arith.constant 1 : index
    %c0_330 = arith.constant 0 : index
    %273 = vector.load %arg13[%c3_328, %c1_329, %c0_330] : memref<12x12x4xf32, #tpu.memory_space<vmem>>, vector<8x8x4xf32>
    %274 = vector.broadcast %272 : vector<1x1x4xf32> to vector<8x8x4xf32>
    %275 = arith.mulf %273, %274 : vector<8x8x4xf32>
    %276 = arith.addf %270, %275 : vector<8x8x4xf32>
    %c1_331 = arith.constant 1 : index
    %c3_332 = arith.constant 3 : index
    %c2_333 = arith.constant 2 : index
    %c0_334 = arith.constant 0 : index
    %277 = vector.load %arg8[%c1_331, %c3_332, %c2_333, %c0_334] : memref<4x5x5x4xf32, #tpu.memory_space<vmem>>, vector<1x1x1x4xf32>
    %278 = vector.shape_cast %277 : vector<1x1x1x4xf32> to vector<1x1x4xf32>
    %c3_335 = arith.constant 3 : index
    %c2_336 = arith.constant 2 : index
    %c0_337 = arith.constant 0 : index
    %279 = vector.load %arg13[%c3_335, %c2_336, %c0_337] : memref<12x12x4xf32, #tpu.memory_space<vmem>>, vector<8x8x4xf32>
    %280 = vector.broadcast %278 : vector<1x1x4xf32> to vector<8x8x4xf32>
    %281 = arith.mulf %279, %280 : vector<8x8x4xf32>
    %282 = arith.addf %276, %281 : vector<8x8x4xf32>
    %c1_338 = arith.constant 1 : index
    %c3_339 = arith.constant 3 : index
    %c3_340 = arith.constant 3 : index
    %c0_341 = arith.constant 0 : index
    %283 = vector.load %arg8[%c1_338, %c3_339, %c3_340, %c0_341] : memref<4x5x5x4xf32, #tpu.memory_space<vmem>>, vector<1x1x1x4xf32>
    %284 = vector.shape_cast %283 : vector<1x1x1x4xf32> to vector<1x1x4xf32>
    %c3_342 = arith.constant 3 : index
    %c3_343 = arith.constant 3 : index
    %c0_344 = arith.constant 0 : index
    %285 = vector.load %arg13[%c3_342, %c3_343, %c0_344] : memref<12x12x4xf32, #tpu.memory_space<vmem>>, vector<8x8x4xf32>
    %286 = vector.broadcast %284 : vector<1x1x4xf32> to vector<8x8x4xf32>
    %287 = arith.mulf %285, %286 : vector<8x8x4xf32>
    %288 = arith.addf %282, %287 : vector<8x8x4xf32>
    %c1_345 = arith.constant 1 : index
    %c3_346 = arith.constant 3 : index
    %c4_347 = arith.constant 4 : index
    %c0_348 = arith.constant 0 : index
    %289 = vector.load %arg8[%c1_345, %c3_346, %c4_347, %c0_348] : memref<4x5x5x4xf32, #tpu.memory_space<vmem>>, vector<1x1x1x4xf32>
    %290 = vector.shape_cast %289 : vector<1x1x1x4xf32> to vector<1x1x4xf32>
    %c3_349 = arith.constant 3 : index
    %c4_350 = arith.constant 4 : index
    %c0_351 = arith.constant 0 : index
    %291 = vector.load %arg13[%c3_349, %c4_350, %c0_351] : memref<12x12x4xf32, #tpu.memory_space<vmem>>, vector<8x8x4xf32>
    %292 = vector.broadcast %290 : vector<1x1x4xf32> to vector<8x8x4xf32>
    %293 = arith.mulf %291, %292 : vector<8x8x4xf32>
    %294 = arith.addf %288, %293 : vector<8x8x4xf32>
    %c1_352 = arith.constant 1 : index
    %c4_353 = arith.constant 4 : index
    %c0_354 = arith.constant 0 : index
    %c0_355 = arith.constant 0 : index
    %295 = vector.load %arg8[%c1_352, %c4_353, %c0_354, %c0_355] : memref<4x5x5x4xf32, #tpu.memory_space<vmem>>, vector<1x1x1x4xf32>
    %296 = vector.shape_cast %295 : vector<1x1x1x4xf32> to vector<1x1x4xf32>
    %c4_356 = arith.constant 4 : index
    %c0_357 = arith.constant 0 : index
    %c0_358 = arith.constant 0 : index
    %297 = vector.load %arg13[%c4_356, %c0_357, %c0_358] : memref<12x12x4xf32, #tpu.memory_space<vmem>>, vector<8x8x4xf32>
    %298 = vector.broadcast %296 : vector<1x1x4xf32> to vector<8x8x4xf32>
    %299 = arith.mulf %297, %298 : vector<8x8x4xf32>
    %300 = arith.addf %294, %299 : vector<8x8x4xf32>
    %c1_359 = arith.constant 1 : index
    %c4_360 = arith.constant 4 : index
    %c1_361 = arith.constant 1 : index
    %c0_362 = arith.constant 0 : index
    %301 = vector.load %arg8[%c1_359, %c4_360, %c1_361, %c0_362] : memref<4x5x5x4xf32, #tpu.memory_space<vmem>>, vector<1x1x1x4xf32>
    %302 = vector.shape_cast %301 : vector<1x1x1x4xf32> to vector<1x1x4xf32>
    %c4_363 = arith.constant 4 : index
    %c1_364 = arith.constant 1 : index
    %c0_365 = arith.constant 0 : index
    %303 = vector.load %arg13[%c4_363, %c1_364, %c0_365] : memref<12x12x4xf32, #tpu.memory_space<vmem>>, vector<8x8x4xf32>
    %304 = vector.broadcast %302 : vector<1x1x4xf32> to vector<8x8x4xf32>
    %305 = arith.mulf %303, %304 : vector<8x8x4xf32>
    %306 = arith.addf %300, %305 : vector<8x8x4xf32>
    %c1_366 = arith.constant 1 : index
    %c4_367 = arith.constant 4 : index
    %c2_368 = arith.constant 2 : index
    %c0_369 = arith.constant 0 : index
    %307 = vector.load %arg8[%c1_366, %c4_367, %c2_368, %c0_369] : memref<4x5x5x4xf32, #tpu.memory_space<vmem>>, vector<1x1x1x4xf32>
    %308 = vector.shape_cast %307 : vector<1x1x1x4xf32> to vector<1x1x4xf32>
    %c4_370 = arith.constant 4 : index
    %c2_371 = arith.constant 2 : index
    %c0_372 = arith.constant 0 : index
    %309 = vector.load %arg13[%c4_370, %c2_371, %c0_372] : memref<12x12x4xf32, #tpu.memory_space<vmem>>, vector<8x8x4xf32>
    %310 = vector.broadcast %308 : vector<1x1x4xf32> to vector<8x8x4xf32>
    %311 = arith.mulf %309, %310 : vector<8x8x4xf32>
    %312 = arith.addf %306, %311 : vector<8x8x4xf32>
    %c1_373 = arith.constant 1 : index
    %c4_374 = arith.constant 4 : index
    %c3_375 = arith.constant 3 : index
    %c0_376 = arith.constant 0 : index
    %313 = vector.load %arg8[%c1_373, %c4_374, %c3_375, %c0_376] : memref<4x5x5x4xf32, #tpu.memory_space<vmem>>, vector<1x1x1x4xf32>
    %314 = vector.shape_cast %313 : vector<1x1x1x4xf32> to vector<1x1x4xf32>
    %c4_377 = arith.constant 4 : index
    %c3_378 = arith.constant 3 : index
    %c0_379 = arith.constant 0 : index
    %315 = vector.load %arg13[%c4_377, %c3_378, %c0_379] : memref<12x12x4xf32, #tpu.memory_space<vmem>>, vector<8x8x4xf32>
    %316 = vector.broadcast %314 : vector<1x1x4xf32> to vector<8x8x4xf32>
    %317 = arith.mulf %315, %316 : vector<8x8x4xf32>
    %318 = arith.addf %312, %317 : vector<8x8x4xf32>
    %c1_380 = arith.constant 1 : index
    %c4_381 = arith.constant 4 : index
    %c4_382 = arith.constant 4 : index
    %c0_383 = arith.constant 0 : index
    %319 = vector.load %arg8[%c1_380, %c4_381, %c4_382, %c0_383] : memref<4x5x5x4xf32, #tpu.memory_space<vmem>>, vector<1x1x1x4xf32>
    %320 = vector.shape_cast %319 : vector<1x1x1x4xf32> to vector<1x1x4xf32>
    %c4_384 = arith.constant 4 : index
    %c4_385 = arith.constant 4 : index
    %c0_386 = arith.constant 0 : index
    %321 = vector.load %arg13[%c4_384, %c4_385, %c0_386] : memref<12x12x4xf32, #tpu.memory_space<vmem>>, vector<8x8x4xf32>
    %322 = vector.broadcast %320 : vector<1x1x4xf32> to vector<8x8x4xf32>
    %323 = arith.mulf %321, %322 : vector<8x8x4xf32>
    %324 = arith.addf %318, %323 : vector<8x8x4xf32>
    %c1_387 = arith.constant 1 : index
    %c0_388 = arith.constant 0 : index
    %c0_389 = arith.constant 0 : index
    %c0_390 = arith.constant 0 : index
    %325 = vector.load %arg14[%c1_387, %c0_388, %c0_389, %c0_390] : memref<4x8x8x4xf32, #tpu.memory_space<vmem>>, vector<1x8x8x4xf32>
    %326 = vector.shape_cast %325 : vector<1x8x8x4xf32> to vector<8x8x4xf32>
    %327 = vector.shape_cast %324 : vector<8x8x4xf32> to vector<1x8x8x4xf32>
    tpu.vector_store %arg14[%c1_387, %c0_388, %c0_389, %c0_390], %327 {strides = array<i32>} : memref<4x8x8x4xf32, #tpu.memory_space<vmem>>, vector<1x8x8x4xf32>,
    %c0_391 = arith.constant 0 : index
    %c0_392 = arith.constant 0 : index
    %c0_393 = arith.constant 0 : index
    %c0_394 = arith.constant 0 : index
    %328 = vector.load %arg2[%c0_391, %c0_392, %c0_393, %c0_394] : memref<1x12x12x4xf32, #tpu.memory_space<vmem>>, vector<1x12x12x4xf32>
    %329 = vector.shape_cast %328 : vector<1x12x12x4xf32> to vector<12x12x4xf32>
    %c0_395 = arith.constant 0 : index
    %c0_396 = arith.constant 0 : index
    %c0_397 = arith.constant 0 : index
    %c0_398 = arith.constant 0 : index
    %330 = vector.load %arg3[%c0_395, %c0_396, %c0_397, %c0_398] : memref<1x12x12x4xf32, #tpu.memory_space<vmem>>, vector<1x12x12x4xf32>
    %331 = vector.shape_cast %330 : vector<1x12x12x4xf32> to vector<12x12x4xf32>
    %332 = arith.subf %329, %331 : vector<12x12x4xf32>
    %c0_399 = arith.constant 0 : index
    %c0_400 = arith.constant 0 : index
    %c0_401 = arith.constant 0 : index
    %c0_402 = arith.constant 0 : index
    %333 = vector.load %arg4[%c0_399, %c0_400, %c0_401, %c0_402] : memref<1x12x12x4xf32, #tpu.memory_space<vmem>>, vector<1x12x12x4xf32>
    %334 = vector.shape_cast %333 : vector<1x12x12x4xf32> to vector<12x12x4xf32>
    %335 = arith.addf %332, %334 : vector<12x12x4xf32>
    %c0_403 = arith.constant 0 : index
    %c0_404 = arith.constant 0 : index
    %c0_405 = arith.constant 0 : index
    %c0_406 = arith.constant 0 : index
    %336 = vector.load %arg5[%c0_403, %c0_404, %c0_405, %c0_406] : memref<1x12x12x4xf32, #tpu.memory_space<vmem>>, vector<1x12x12x4xf32>
    %337 = vector.shape_cast %336 : vector<1x12x12x4xf32> to vector<12x12x4xf32>
    %338 = arith.subf %335, %337 : vector<12x12x4xf32>
    %c0_407 = arith.constant 0 : index
    %c0_408 = arith.constant 0 : index
    %c0_409 = arith.constant 0 : index
    %339 = vector.load %arg13[%c0_407, %c0_408, %c0_409] : memref<12x12x4xf32, #tpu.memory_space<vmem>>, vector<12x12x4xf32>
    tpu.vector_store %arg13[%c0_407, %c0_408, %c0_409], %338 {strides = array<i32>} : memref<12x12x4xf32, #tpu.memory_space<vmem>>, vector<12x12x4xf32>,
    %c2_410 = arith.constant 2 : index
    %c0_411 = arith.constant 0 : index
    %c0_412 = arith.constant 0 : index
    %c0_413 = arith.constant 0 : index
    %340 = vector.load %arg8[%c2_410, %c0_411, %c0_412, %c0_413] : memref<4x5x5x4xf32, #tpu.memory_space<vmem>>, vector<1x1x1x4xf32>
    %341 = vector.shape_cast %340 : vector<1x1x1x4xf32> to vector<1x1x4xf32>
    %c0_414 = arith.constant 0 : index
    %c0_415 = arith.constant 0 : index
    %c0_416 = arith.constant 0 : index
    %342 = vector.load %arg13[%c0_414, %c0_415, %c0_416] : memref<12x12x4xf32, #tpu.memory_space<vmem>>, vector<8x8x4xf32>
    %343 = vector.broadcast %341 : vector<1x1x4xf32> to vector<8x8x4xf32>
    %344 = arith.mulf %342, %343 : vector<8x8x4xf32>
    %c2_417 = arith.constant 2 : index
    %c0_418 = arith.constant 0 : index
    %c1_419 = arith.constant 1 : index
    %c0_420 = arith.constant 0 : index
    %345 = vector.load %arg8[%c2_417, %c0_418, %c1_419, %c0_420] : memref<4x5x5x4xf32, #tpu.memory_space<vmem>>, vector<1x1x1x4xf32>
    %346 = vector.shape_cast %345 : vector<1x1x1x4xf32> to vector<1x1x4xf32>
    %c0_421 = arith.constant 0 : index
    %c1_422 = arith.constant 1 : index
    %c0_423 = arith.constant 0 : index
    %347 = vector.load %arg13[%c0_421, %c1_422, %c0_423] : memref<12x12x4xf32, #tpu.memory_space<vmem>>, vector<8x8x4xf32>
    %348 = vector.broadcast %346 : vector<1x1x4xf32> to vector<8x8x4xf32>
    %349 = arith.mulf %347, %348 : vector<8x8x4xf32>
    %350 = arith.addf %344, %349 : vector<8x8x4xf32>
    %c2_424 = arith.constant 2 : index
    %c0_425 = arith.constant 0 : index
    %c2_426 = arith.constant 2 : index
    %c0_427 = arith.constant 0 : index
    %351 = vector.load %arg8[%c2_424, %c0_425, %c2_426, %c0_427] : memref<4x5x5x4xf32, #tpu.memory_space<vmem>>, vector<1x1x1x4xf32>
    %352 = vector.shape_cast %351 : vector<1x1x1x4xf32> to vector<1x1x4xf32>
    %c0_428 = arith.constant 0 : index
    %c2_429 = arith.constant 2 : index
    %c0_430 = arith.constant 0 : index
    %353 = vector.load %arg13[%c0_428, %c2_429, %c0_430] : memref<12x12x4xf32, #tpu.memory_space<vmem>>, vector<8x8x4xf32>
    %354 = vector.broadcast %352 : vector<1x1x4xf32> to vector<8x8x4xf32>
    %355 = arith.mulf %353, %354 : vector<8x8x4xf32>
    %356 = arith.addf %350, %355 : vector<8x8x4xf32>
    %c2_431 = arith.constant 2 : index
    %c0_432 = arith.constant 0 : index
    %c3_433 = arith.constant 3 : index
    %c0_434 = arith.constant 0 : index
    %357 = vector.load %arg8[%c2_431, %c0_432, %c3_433, %c0_434] : memref<4x5x5x4xf32, #tpu.memory_space<vmem>>, vector<1x1x1x4xf32>
    %358 = vector.shape_cast %357 : vector<1x1x1x4xf32> to vector<1x1x4xf32>
    %c0_435 = arith.constant 0 : index
    %c3_436 = arith.constant 3 : index
    %c0_437 = arith.constant 0 : index
    %359 = vector.load %arg13[%c0_435, %c3_436, %c0_437] : memref<12x12x4xf32, #tpu.memory_space<vmem>>, vector<8x8x4xf32>
    %360 = vector.broadcast %358 : vector<1x1x4xf32> to vector<8x8x4xf32>
    %361 = arith.mulf %359, %360 : vector<8x8x4xf32>
    %362 = arith.addf %356, %361 : vector<8x8x4xf32>
    %c2_438 = arith.constant 2 : index
    %c0_439 = arith.constant 0 : index
    %c4_440 = arith.constant 4 : index
    %c0_441 = arith.constant 0 : index
    %363 = vector.load %arg8[%c2_438, %c0_439, %c4_440, %c0_441] : memref<4x5x5x4xf32, #tpu.memory_space<vmem>>, vector<1x1x1x4xf32>
    %364 = vector.shape_cast %363 : vector<1x1x1x4xf32> to vector<1x1x4xf32>
    %c0_442 = arith.constant 0 : index
    %c4_443 = arith.constant 4 : index
    %c0_444 = arith.constant 0 : index
    %365 = vector.load %arg13[%c0_442, %c4_443, %c0_444] : memref<12x12x4xf32, #tpu.memory_space<vmem>>, vector<8x8x4xf32>
    %366 = vector.broadcast %364 : vector<1x1x4xf32> to vector<8x8x4xf32>
    %367 = arith.mulf %365, %366 : vector<8x8x4xf32>
    %368 = arith.addf %362, %367 : vector<8x8x4xf32>
    %c2_445 = arith.constant 2 : index
    %c1_446 = arith.constant 1 : index
    %c0_447 = arith.constant 0 : index
    %c0_448 = arith.constant 0 : index
    %369 = vector.load %arg8[%c2_445, %c1_446, %c0_447, %c0_448] : memref<4x5x5x4xf32, #tpu.memory_space<vmem>>, vector<1x1x1x4xf32>
    %370 = vector.shape_cast %369 : vector<1x1x1x4xf32> to vector<1x1x4xf32>
    %c1_449 = arith.constant 1 : index
    %c0_450 = arith.constant 0 : index
    %c0_451 = arith.constant 0 : index
    %371 = vector.load %arg13[%c1_449, %c0_450, %c0_451] : memref<12x12x4xf32, #tpu.memory_space<vmem>>, vector<8x8x4xf32>
    %372 = vector.broadcast %370 : vector<1x1x4xf32> to vector<8x8x4xf32>
    %373 = arith.mulf %371, %372 : vector<8x8x4xf32>
    %374 = arith.addf %368, %373 : vector<8x8x4xf32>
    %c2_452 = arith.constant 2 : index
    %c1_453 = arith.constant 1 : index
    %c1_454 = arith.constant 1 : index
    %c0_455 = arith.constant 0 : index
    %375 = vector.load %arg8[%c2_452, %c1_453, %c1_454, %c0_455] : memref<4x5x5x4xf32, #tpu.memory_space<vmem>>, vector<1x1x1x4xf32>
    %376 = vector.shape_cast %375 : vector<1x1x1x4xf32> to vector<1x1x4xf32>
    %c1_456 = arith.constant 1 : index
    %c1_457 = arith.constant 1 : index
    %c0_458 = arith.constant 0 : index
    %377 = vector.load %arg13[%c1_456, %c1_457, %c0_458] : memref<12x12x4xf32, #tpu.memory_space<vmem>>, vector<8x8x4xf32>
    %378 = vector.broadcast %376 : vector<1x1x4xf32> to vector<8x8x4xf32>
    %379 = arith.mulf %377, %378 : vector<8x8x4xf32>
    %380 = arith.addf %374, %379 : vector<8x8x4xf32>
    %c2_459 = arith.constant 2 : index
    %c1_460 = arith.constant 1 : index
    %c2_461 = arith.constant 2 : index
    %c0_462 = arith.constant 0 : index
    %381 = vector.load %arg8[%c2_459, %c1_460, %c2_461, %c0_462] : memref<4x5x5x4xf32, #tpu.memory_space<vmem>>, vector<1x1x1x4xf32>
    %382 = vector.shape_cast %381 : vector<1x1x1x4xf32> to vector<1x1x4xf32>
    %c1_463 = arith.constant 1 : index
    %c2_464 = arith.constant 2 : index
    %c0_465 = arith.constant 0 : index
    %383 = vector.load %arg13[%c1_463, %c2_464, %c0_465] : memref<12x12x4xf32, #tpu.memory_space<vmem>>, vector<8x8x4xf32>
    %384 = vector.broadcast %382 : vector<1x1x4xf32> to vector<8x8x4xf32>
    %385 = arith.mulf %383, %384 : vector<8x8x4xf32>
    %386 = arith.addf %380, %385 : vector<8x8x4xf32>
    %c2_466 = arith.constant 2 : index
    %c1_467 = arith.constant 1 : index
    %c3_468 = arith.constant 3 : index
    %c0_469 = arith.constant 0 : index
    %387 = vector.load %arg8[%c2_466, %c1_467, %c3_468, %c0_469] : memref<4x5x5x4xf32, #tpu.memory_space<vmem>>, vector<1x1x1x4xf32>
    %388 = vector.shape_cast %387 : vector<1x1x1x4xf32> to vector<1x1x4xf32>
    %c1_470 = arith.constant 1 : index
    %c3_471 = arith.constant 3 : index
    %c0_472 = arith.constant 0 : index
    %389 = vector.load %arg13[%c1_470, %c3_471, %c0_472] : memref<12x12x4xf32, #tpu.memory_space<vmem>>, vector<8x8x4xf32>
    %390 = vector.broadcast %388 : vector<1x1x4xf32> to vector<8x8x4xf32>
    %391 = arith.mulf %389, %390 : vector<8x8x4xf32>
    %392 = arith.addf %386, %391 : vector<8x8x4xf32>
    %c2_473 = arith.constant 2 : index
    %c1_474 = arith.constant 1 : index
    %c4_475 = arith.constant 4 : index
    %c0_476 = arith.constant 0 : index
    %393 = vector.load %arg8[%c2_473, %c1_474, %c4_475, %c0_476] : memref<4x5x5x4xf32, #tpu.memory_space<vmem>>, vector<1x1x1x4xf32>
    %394 = vector.shape_cast %393 : vector<1x1x1x4xf32> to vector<1x1x4xf32>
    %c1_477 = arith.constant 1 : index
    %c4_478 = arith.constant 4 : index
    %c0_479 = arith.constant 0 : index
    %395 = vector.load %arg13[%c1_477, %c4_478, %c0_479] : memref<12x12x4xf32, #tpu.memory_space<vmem>>, vector<8x8x4xf32>
    %396 = vector.broadcast %394 : vector<1x1x4xf32> to vector<8x8x4xf32>
    %397 = arith.mulf %395, %396 : vector<8x8x4xf32>
    %398 = arith.addf %392, %397 : vector<8x8x4xf32>
    %c2_480 = arith.constant 2 : index
    %c2_481 = arith.constant 2 : index
    %c0_482 = arith.constant 0 : index
    %c0_483 = arith.constant 0 : index
    %399 = vector.load %arg8[%c2_480, %c2_481, %c0_482, %c0_483] : memref<4x5x5x4xf32, #tpu.memory_space<vmem>>, vector<1x1x1x4xf32>
    %400 = vector.shape_cast %399 : vector<1x1x1x4xf32> to vector<1x1x4xf32>
    %c2_484 = arith.constant 2 : index
    %c0_485 = arith.constant 0 : index
    %c0_486 = arith.constant 0 : index
    %401 = vector.load %arg13[%c2_484, %c0_485, %c0_486] : memref<12x12x4xf32, #tpu.memory_space<vmem>>, vector<8x8x4xf32>
    %402 = vector.broadcast %400 : vector<1x1x4xf32> to vector<8x8x4xf32>
    %403 = arith.mulf %401, %402 : vector<8x8x4xf32>
    %404 = arith.addf %398, %403 : vector<8x8x4xf32>
    %c2_487 = arith.constant 2 : index
    %c2_488 = arith.constant 2 : index
    %c1_489 = arith.constant 1 : index
    %c0_490 = arith.constant 0 : index
    %405 = vector.load %arg8[%c2_487, %c2_488, %c1_489, %c0_490] : memref<4x5x5x4xf32, #tpu.memory_space<vmem>>, vector<1x1x1x4xf32>
    %406 = vector.shape_cast %405 : vector<1x1x1x4xf32> to vector<1x1x4xf32>
    %c2_491 = arith.constant 2 : index
    %c1_492 = arith.constant 1 : index
    %c0_493 = arith.constant 0 : index
    %407 = vector.load %arg13[%c2_491, %c1_492, %c0_493] : memref<12x12x4xf32, #tpu.memory_space<vmem>>, vector<8x8x4xf32>
    %408 = vector.broadcast %406 : vector<1x1x4xf32> to vector<8x8x4xf32>
    %409 = arith.mulf %407, %408 : vector<8x8x4xf32>
    %410 = arith.addf %404, %409 : vector<8x8x4xf32>
    %c2_494 = arith.constant 2 : index
    %c2_495 = arith.constant 2 : index
    %c2_496 = arith.constant 2 : index
    %c0_497 = arith.constant 0 : index
    %411 = vector.load %arg8[%c2_494, %c2_495, %c2_496, %c0_497] : memref<4x5x5x4xf32, #tpu.memory_space<vmem>>, vector<1x1x1x4xf32>
    %412 = vector.shape_cast %411 : vector<1x1x1x4xf32> to vector<1x1x4xf32>
    %c2_498 = arith.constant 2 : index
    %c2_499 = arith.constant 2 : index
    %c0_500 = arith.constant 0 : index
    %413 = vector.load %arg13[%c2_498, %c2_499, %c0_500] : memref<12x12x4xf32, #tpu.memory_space<vmem>>, vector<8x8x4xf32>
    %414 = vector.broadcast %412 : vector<1x1x4xf32> to vector<8x8x4xf32>
    %415 = arith.mulf %413, %414 : vector<8x8x4xf32>
    %416 = arith.addf %410, %415 : vector<8x8x4xf32>
    %c2_501 = arith.constant 2 : index
    %c2_502 = arith.constant 2 : index
    %c3_503 = arith.constant 3 : index
    %c0_504 = arith.constant 0 : index
    %417 = vector.load %arg8[%c2_501, %c2_502, %c3_503, %c0_504] : memref<4x5x5x4xf32, #tpu.memory_space<vmem>>, vector<1x1x1x4xf32>
    %418 = vector.shape_cast %417 : vector<1x1x1x4xf32> to vector<1x1x4xf32>
    %c2_505 = arith.constant 2 : index
    %c3_506 = arith.constant 3 : index
    %c0_507 = arith.constant 0 : index
    %419 = vector.load %arg13[%c2_505, %c3_506, %c0_507] : memref<12x12x4xf32, #tpu.memory_space<vmem>>, vector<8x8x4xf32>
    %420 = vector.broadcast %418 : vector<1x1x4xf32> to vector<8x8x4xf32>
    %421 = arith.mulf %419, %420 : vector<8x8x4xf32>
    %422 = arith.addf %416, %421 : vector<8x8x4xf32>
    %c2_508 = arith.constant 2 : index
    %c2_509 = arith.constant 2 : index
    %c4_510 = arith.constant 4 : index
    %c0_511 = arith.constant 0 : index
    %423 = vector.load %arg8[%c2_508, %c2_509, %c4_510, %c0_511] : memref<4x5x5x4xf32, #tpu.memory_space<vmem>>, vector<1x1x1x4xf32>
    %424 = vector.shape_cast %423 : vector<1x1x1x4xf32> to vector<1x1x4xf32>
    %c2_512 = arith.constant 2 : index
    %c4_513 = arith.constant 4 : index
    %c0_514 = arith.constant 0 : index
    %425 = vector.load %arg13[%c2_512, %c4_513, %c0_514] : memref<12x12x4xf32, #tpu.memory_space<vmem>>, vector<8x8x4xf32>
    %426 = vector.broadcast %424 : vector<1x1x4xf32> to vector<8x8x4xf32>
    %427 = arith.mulf %425, %426 : vector<8x8x4xf32>
    %428 = arith.addf %422, %427 : vector<8x8x4xf32>
    %c2_515 = arith.constant 2 : index
    %c3_516 = arith.constant 3 : index
    %c0_517 = arith.constant 0 : index
    %c0_518 = arith.constant 0 : index
    %429 = vector.load %arg8[%c2_515, %c3_516, %c0_517, %c0_518] : memref<4x5x5x4xf32, #tpu.memory_space<vmem>>, vector<1x1x1x4xf32>
    %430 = vector.shape_cast %429 : vector<1x1x1x4xf32> to vector<1x1x4xf32>
    %c3_519 = arith.constant 3 : index
    %c0_520 = arith.constant 0 : index
    %c0_521 = arith.constant 0 : index
    %431 = vector.load %arg13[%c3_519, %c0_520, %c0_521] : memref<12x12x4xf32, #tpu.memory_space<vmem>>, vector<8x8x4xf32>
    %432 = vector.broadcast %430 : vector<1x1x4xf32> to vector<8x8x4xf32>
    %433 = arith.mulf %431, %432 : vector<8x8x4xf32>
    %434 = arith.addf %428, %433 : vector<8x8x4xf32>
    %c2_522 = arith.constant 2 : index
    %c3_523 = arith.constant 3 : index
    %c1_524 = arith.constant 1 : index
    %c0_525 = arith.constant 0 : index
    %435 = vector.load %arg8[%c2_522, %c3_523, %c1_524, %c0_525] : memref<4x5x5x4xf32, #tpu.memory_space<vmem>>, vector<1x1x1x4xf32>
    %436 = vector.shape_cast %435 : vector<1x1x1x4xf32> to vector<1x1x4xf32>
    %c3_526 = arith.constant 3 : index
    %c1_527 = arith.constant 1 : index
    %c0_528 = arith.constant 0 : index
    %437 = vector.load %arg13[%c3_526, %c1_527, %c0_528] : memref<12x12x4xf32, #tpu.memory_space<vmem>>, vector<8x8x4xf32>
    %438 = vector.broadcast %436 : vector<1x1x4xf32> to vector<8x8x4xf32>
    %439 = arith.mulf %437, %438 : vector<8x8x4xf32>
    %440 = arith.addf %434, %439 : vector<8x8x4xf32>
    %c2_529 = arith.constant 2 : index
    %c3_530 = arith.constant 3 : index
    %c2_531 = arith.constant 2 : index
    %c0_532 = arith.constant 0 : index
    %441 = vector.load %arg8[%c2_529, %c3_530, %c2_531, %c0_532] : memref<4x5x5x4xf32, #tpu.memory_space<vmem>>, vector<1x1x1x4xf32>
    %442 = vector.shape_cast %441 : vector<1x1x1x4xf32> to vector<1x1x4xf32>
    %c3_533 = arith.constant 3 : index
    %c2_534 = arith.constant 2 : index
    %c0_535 = arith.constant 0 : index
    %443 = vector.load %arg13[%c3_533, %c2_534, %c0_535] : memref<12x12x4xf32, #tpu.memory_space<vmem>>, vector<8x8x4xf32>
    %444 = vector.broadcast %442 : vector<1x1x4xf32> to vector<8x8x4xf32>
    %445 = arith.mulf %443, %444 : vector<8x8x4xf32>
    %446 = arith.addf %440, %445 : vector<8x8x4xf32>
    %c2_536 = arith.constant 2 : index
    %c3_537 = arith.constant 3 : index
    %c3_538 = arith.constant 3 : index
    %c0_539 = arith.constant 0 : index
    %447 = vector.load %arg8[%c2_536, %c3_537, %c3_538, %c0_539] : memref<4x5x5x4xf32, #tpu.memory_space<vmem>>, vector<1x1x1x4xf32>
    %448 = vector.shape_cast %447 : vector<1x1x1x4xf32> to vector<1x1x4xf32>
    %c3_540 = arith.constant 3 : index
    %c3_541 = arith.constant 3 : index
    %c0_542 = arith.constant 0 : index
    %449 = vector.load %arg13[%c3_540, %c3_541, %c0_542] : memref<12x12x4xf32, #tpu.memory_space<vmem>>, vector<8x8x4xf32>
    %450 = vector.broadcast %448 : vector<1x1x4xf32> to vector<8x8x4xf32>
    %451 = arith.mulf %449, %450 : vector<8x8x4xf32>
    %452 = arith.addf %446, %451 : vector<8x8x4xf32>
    %c2_543 = arith.constant 2 : index
    %c3_544 = arith.constant 3 : index
    %c4_545 = arith.constant 4 : index
    %c0_546 = arith.constant 0 : index
    %453 = vector.load %arg8[%c2_543, %c3_544, %c4_545, %c0_546] : memref<4x5x5x4xf32, #tpu.memory_space<vmem>>, vector<1x1x1x4xf32>
    %454 = vector.shape_cast %453 : vector<1x1x1x4xf32> to vector<1x1x4xf32>
    %c3_547 = arith.constant 3 : index
    %c4_548 = arith.constant 4 : index
    %c0_549 = arith.constant 0 : index
    %455 = vector.load %arg13[%c3_547, %c4_548, %c0_549] : memref<12x12x4xf32, #tpu.memory_space<vmem>>, vector<8x8x4xf32>
    %456 = vector.broadcast %454 : vector<1x1x4xf32> to vector<8x8x4xf32>
    %457 = arith.mulf %455, %456 : vector<8x8x4xf32>
    %458 = arith.addf %452, %457 : vector<8x8x4xf32>
    %c2_550 = arith.constant 2 : index
    %c4_551 = arith.constant 4 : index
    %c0_552 = arith.constant 0 : index
    %c0_553 = arith.constant 0 : index
    %459 = vector.load %arg8[%c2_550, %c4_551, %c0_552, %c0_553] : memref<4x5x5x4xf32, #tpu.memory_space<vmem>>, vector<1x1x1x4xf32>
    %460 = vector.shape_cast %459 : vector<1x1x1x4xf32> to vector<1x1x4xf32>
    %c4_554 = arith.constant 4 : index
    %c0_555 = arith.constant 0 : index
    %c0_556 = arith.constant 0 : index
    %461 = vector.load %arg13[%c4_554, %c0_555, %c0_556] : memref<12x12x4xf32, #tpu.memory_space<vmem>>, vector<8x8x4xf32>
    %462 = vector.broadcast %460 : vector<1x1x4xf32> to vector<8x8x4xf32>
    %463 = arith.mulf %461, %462 : vector<8x8x4xf32>
    %464 = arith.addf %458, %463 : vector<8x8x4xf32>
    %c2_557 = arith.constant 2 : index
    %c4_558 = arith.constant 4 : index
    %c1_559 = arith.constant 1 : index
    %c0_560 = arith.constant 0 : index
    %465 = vector.load %arg8[%c2_557, %c4_558, %c1_559, %c0_560] : memref<4x5x5x4xf32, #tpu.memory_space<vmem>>, vector<1x1x1x4xf32>
    %466 = vector.shape_cast %465 : vector<1x1x1x4xf32> to vector<1x1x4xf32>
    %c4_561 = arith.constant 4 : index
    %c1_562 = arith.constant 1 : index
    %c0_563 = arith.constant 0 : index
    %467 = vector.load %arg13[%c4_561, %c1_562, %c0_563] : memref<12x12x4xf32, #tpu.memory_space<vmem>>, vector<8x8x4xf32>
    %468 = vector.broadcast %466 : vector<1x1x4xf32> to vector<8x8x4xf32>
    %469 = arith.mulf %467, %468 : vector<8x8x4xf32>
    %470 = arith.addf %464, %469 : vector<8x8x4xf32>
    %c2_564 = arith.constant 2 : index
    %c4_565 = arith.constant 4 : index
    %c2_566 = arith.constant 2 : index
    %c0_567 = arith.constant 0 : index
    %471 = vector.load %arg8[%c2_564, %c4_565, %c2_566, %c0_567] : memref<4x5x5x4xf32, #tpu.memory_space<vmem>>, vector<1x1x1x4xf32>
    %472 = vector.shape_cast %471 : vector<1x1x1x4xf32> to vector<1x1x4xf32>
    %c4_568 = arith.constant 4 : index
    %c2_569 = arith.constant 2 : index
    %c0_570 = arith.constant 0 : index
    %473 = vector.load %arg13[%c4_568, %c2_569, %c0_570] : memref<12x12x4xf32, #tpu.memory_space<vmem>>, vector<8x8x4xf32>
    %474 = vector.broadcast %472 : vector<1x1x4xf32> to vector<8x8x4xf32>
    %475 = arith.mulf %473, %474 : vector<8x8x4xf32>
    %476 = arith.addf %470, %475 : vector<8x8x4xf32>
    %c2_571 = arith.constant 2 : index
    %c4_572 = arith.constant 4 : index
    %c3_573 = arith.constant 3 : index
    %c0_574 = arith.constant 0 : index
    %477 = vector.load %arg8[%c2_571, %c4_572, %c3_573, %c0_574] : memref<4x5x5x4xf32, #tpu.memory_space<vmem>>, vector<1x1x1x4xf32>
    %478 = vector.shape_cast %477 : vector<1x1x1x4xf32> to vector<1x1x4xf32>
    %c4_575 = arith.constant 4 : index
    %c3_576 = arith.constant 3 : index
    %c0_577 = arith.constant 0 : index
    %479 = vector.load %arg13[%c4_575, %c3_576, %c0_577] : memref<12x12x4xf32, #tpu.memory_space<vmem>>, vector<8x8x4xf32>
    %480 = vector.broadcast %478 : vector<1x1x4xf32> to vector<8x8x4xf32>
    %481 = arith.mulf %479, %480 : vector<8x8x4xf32>
    %482 = arith.addf %476, %481 : vector<8x8x4xf32>
    %c2_578 = arith.constant 2 : index
    %c4_579 = arith.constant 4 : index
    %c4_580 = arith.constant 4 : index
    %c0_581 = arith.constant 0 : index
    %483 = vector.load %arg8[%c2_578, %c4_579, %c4_580, %c0_581] : memref<4x5x5x4xf32, #tpu.memory_space<vmem>>, vector<1x1x1x4xf32>
    %484 = vector.shape_cast %483 : vector<1x1x1x4xf32> to vector<1x1x4xf32>
    %c4_582 = arith.constant 4 : index
    %c4_583 = arith.constant 4 : index
    %c0_584 = arith.constant 0 : index
    %485 = vector.load %arg13[%c4_582, %c4_583, %c0_584] : memref<12x12x4xf32, #tpu.memory_space<vmem>>, vector<8x8x4xf32>
    %486 = vector.broadcast %484 : vector<1x1x4xf32> to vector<8x8x4xf32>
    %487 = arith.mulf %485, %486 : vector<8x8x4xf32>
    %488 = arith.addf %482, %487 : vector<8x8x4xf32>
    %c2_585 = arith.constant 2 : index
    %c0_586 = arith.constant 0 : index
    %c0_587 = arith.constant 0 : index
    %c0_588 = arith.constant 0 : index
    %489 = vector.load %arg14[%c2_585, %c0_586, %c0_587, %c0_588] : memref<4x8x8x4xf32, #tpu.memory_space<vmem>>, vector<1x8x8x4xf32>
    %490 = vector.shape_cast %489 : vector<1x8x8x4xf32> to vector<8x8x4xf32>
    %491 = vector.shape_cast %488 : vector<8x8x4xf32> to vector<1x8x8x4xf32>
    tpu.vector_store %arg14[%c2_585, %c0_586, %c0_587, %c0_588], %491 {strides = array<i32>} : memref<4x8x8x4xf32, #tpu.memory_space<vmem>>, vector<1x8x8x4xf32>,
    %c0_589 = arith.constant 0 : index
    %c0_590 = arith.constant 0 : index
    %c0_591 = arith.constant 0 : index
    %c0_592 = arith.constant 0 : index
    %492 = vector.load %arg2[%c0_589, %c0_590, %c0_591, %c0_592] : memref<1x12x12x4xf32, #tpu.memory_space<vmem>>, vector<1x12x12x4xf32>
    %493 = vector.shape_cast %492 : vector<1x12x12x4xf32> to vector<12x12x4xf32>
    %c0_593 = arith.constant 0 : index
    %c0_594 = arith.constant 0 : index
    %c0_595 = arith.constant 0 : index
    %c0_596 = arith.constant 0 : index
    %494 = vector.load %arg3[%c0_593, %c0_594, %c0_595, %c0_596] : memref<1x12x12x4xf32, #tpu.memory_space<vmem>>, vector<1x12x12x4xf32>
    %495 = vector.shape_cast %494 : vector<1x12x12x4xf32> to vector<12x12x4xf32>
    %496 = arith.subf %493, %495 : vector<12x12x4xf32>
    %c0_597 = arith.constant 0 : index
    %c0_598 = arith.constant 0 : index
    %c0_599 = arith.constant 0 : index
    %c0_600 = arith.constant 0 : index
    %497 = vector.load %arg4[%c0_597, %c0_598, %c0_599, %c0_600] : memref<1x12x12x4xf32, #tpu.memory_space<vmem>>, vector<1x12x12x4xf32>
    %498 = vector.shape_cast %497 : vector<1x12x12x4xf32> to vector<12x12x4xf32>
    %499 = arith.subf %496, %498 : vector<12x12x4xf32>
    %c0_601 = arith.constant 0 : index
    %c0_602 = arith.constant 0 : index
    %c0_603 = arith.constant 0 : index
    %c0_604 = arith.constant 0 : index
    %500 = vector.load %arg5[%c0_601, %c0_602, %c0_603, %c0_604] : memref<1x12x12x4xf32, #tpu.memory_space<vmem>>, vector<1x12x12x4xf32>
    %501 = vector.shape_cast %500 : vector<1x12x12x4xf32> to vector<12x12x4xf32>
    %502 = arith.addf %499, %501 : vector<12x12x4xf32>
    %c0_605 = arith.constant 0 : index
    %c0_606 = arith.constant 0 : index
    %c0_607 = arith.constant 0 : index
    %503 = vector.load %arg13[%c0_605, %c0_606, %c0_607] : memref<12x12x4xf32, #tpu.memory_space<vmem>>, vector<12x12x4xf32>
    tpu.vector_store %arg13[%c0_605, %c0_606, %c0_607], %502 {strides = array<i32>} : memref<12x12x4xf32, #tpu.memory_space<vmem>>, vector<12x12x4xf32>,
    %c3_608 = arith.constant 3 : index
    %c0_609 = arith.constant 0 : index
    %c0_610 = arith.constant 0 : index
    %c0_611 = arith.constant 0 : index
    %504 = vector.load %arg8[%c3_608, %c0_609, %c0_610, %c0_611] : memref<4x5x5x4xf32, #tpu.memory_space<vmem>>, vector<1x1x1x4xf32>
    %505 = vector.shape_cast %504 : vector<1x1x1x4xf32> to vector<1x1x4xf32>
    %c0_612 = arith.constant 0 : index
    %c0_613 = arith.constant 0 : index
    %c0_614 = arith.constant 0 : index
    %506 = vector.load %arg13[%c0_612, %c0_613, %c0_614] : memref<12x12x4xf32, #tpu.memory_space<vmem>>, vector<8x8x4xf32>
    %507 = vector.broadcast %505 : vector<1x1x4xf32> to vector<8x8x4xf32>
    %508 = arith.mulf %506, %507 : vector<8x8x4xf32>
    %c3_615 = arith.constant 3 : index
    %c0_616 = arith.constant 0 : index
    %c1_617 = arith.constant 1 : index
    %c0_618 = arith.constant 0 : index
    %509 = vector.load %arg8[%c3_615, %c0_616, %c1_617, %c0_618] : memref<4x5x5x4xf32, #tpu.memory_space<vmem>>, vector<1x1x1x4xf32>
    %510 = vector.shape_cast %509 : vector<1x1x1x4xf32> to vector<1x1x4xf32>
    %c0_619 = arith.constant 0 : index
    %c1_620 = arith.constant 1 : index
    %c0_621 = arith.constant 0 : index
    %511 = vector.load %arg13[%c0_619, %c1_620, %c0_621] : memref<12x12x4xf32, #tpu.memory_space<vmem>>, vector<8x8x4xf32>
    %512 = vector.broadcast %510 : vector<1x1x4xf32> to vector<8x8x4xf32>
    %513 = arith.mulf %511, %512 : vector<8x8x4xf32>
    %514 = arith.addf %508, %513 : vector<8x8x4xf32>
    %c3_622 = arith.constant 3 : index
    %c0_623 = arith.constant 0 : index
    %c2_624 = arith.constant 2 : index
    %c0_625 = arith.constant 0 : index
    %515 = vector.load %arg8[%c3_622, %c0_623, %c2_624, %c0_625] : memref<4x5x5x4xf32, #tpu.memory_space<vmem>>, vector<1x1x1x4xf32>
    %516 = vector.shape_cast %515 : vector<1x1x1x4xf32> to vector<1x1x4xf32>
    %c0_626 = arith.constant 0 : index
    %c2_627 = arith.constant 2 : index
    %c0_628 = arith.constant 0 : index
    %517 = vector.load %arg13[%c0_626, %c2_627, %c0_628] : memref<12x12x4xf32, #tpu.memory_space<vmem>>, vector<8x8x4xf32>
    %518 = vector.broadcast %516 : vector<1x1x4xf32> to vector<8x8x4xf32>
    %519 = arith.mulf %517, %518 : vector<8x8x4xf32>
    %520 = arith.addf %514, %519 : vector<8x8x4xf32>
    %c3_629 = arith.constant 3 : index
    %c0_630 = arith.constant 0 : index
    %c3_631 = arith.constant 3 : index
    %c0_632 = arith.constant 0 : index
    %521 = vector.load %arg8[%c3_629, %c0_630, %c3_631, %c0_632] : memref<4x5x5x4xf32, #tpu.memory_space<vmem>>, vector<1x1x1x4xf32>
    %522 = vector.shape_cast %521 : vector<1x1x1x4xf32> to vector<1x1x4xf32>
    %c0_633 = arith.constant 0 : index
    %c3_634 = arith.constant 3 : index
    %c0_635 = arith.constant 0 : index
    %523 = vector.load %arg13[%c0_633, %c3_634, %c0_635] : memref<12x12x4xf32, #tpu.memory_space<vmem>>, vector<8x8x4xf32>
    %524 = vector.broadcast %522 : vector<1x1x4xf32> to vector<8x8x4xf32>
    %525 = arith.mulf %523, %524 : vector<8x8x4xf32>
    %526 = arith.addf %520, %525 : vector<8x8x4xf32>
    %c3_636 = arith.constant 3 : index
    %c0_637 = arith.constant 0 : index
    %c4_638 = arith.constant 4 : index
    %c0_639 = arith.constant 0 : index
    %527 = vector.load %arg8[%c3_636, %c0_637, %c4_638, %c0_639] : memref<4x5x5x4xf32, #tpu.memory_space<vmem>>, vector<1x1x1x4xf32>
    %528 = vector.shape_cast %527 : vector<1x1x1x4xf32> to vector<1x1x4xf32>
    %c0_640 = arith.constant 0 : index
    %c4_641 = arith.constant 4 : index
    %c0_642 = arith.constant 0 : index
    %529 = vector.load %arg13[%c0_640, %c4_641, %c0_642] : memref<12x12x4xf32, #tpu.memory_space<vmem>>, vector<8x8x4xf32>
    %530 = vector.broadcast %528 : vector<1x1x4xf32> to vector<8x8x4xf32>
    %531 = arith.mulf %529, %530 : vector<8x8x4xf32>
    %532 = arith.addf %526, %531 : vector<8x8x4xf32>
    %c3_643 = arith.constant 3 : index
    %c1_644 = arith.constant 1 : index
    %c0_645 = arith.constant 0 : index
    %c0_646 = arith.constant 0 : index
    %533 = vector.load %arg8[%c3_643, %c1_644, %c0_645, %c0_646] : memref<4x5x5x4xf32, #tpu.memory_space<vmem>>, vector<1x1x1x4xf32>
    %534 = vector.shape_cast %533 : vector<1x1x1x4xf32> to vector<1x1x4xf32>
    %c1_647 = arith.constant 1 : index
    %c0_648 = arith.constant 0 : index
    %c0_649 = arith.constant 0 : index
    %535 = vector.load %arg13[%c1_647, %c0_648, %c0_649] : memref<12x12x4xf32, #tpu.memory_space<vmem>>, vector<8x8x4xf32>
    %536 = vector.broadcast %534 : vector<1x1x4xf32> to vector<8x8x4xf32>
    %537 = arith.mulf %535, %536 : vector<8x8x4xf32>
    %538 = arith.addf %532, %537 : vector<8x8x4xf32>
    %c3_650 = arith.constant 3 : index
    %c1_651 = arith.constant 1 : index
    %c1_652 = arith.constant 1 : index
    %c0_653 = arith.constant 0 : index
    %539 = vector.load %arg8[%c3_650, %c1_651, %c1_652, %c0_653] : memref<4x5x5x4xf32, #tpu.memory_space<vmem>>, vector<1x1x1x4xf32>
    %540 = vector.shape_cast %539 : vector<1x1x1x4xf32> to vector<1x1x4xf32>
    %c1_654 = arith.constant 1 : index
    %c1_655 = arith.constant 1 : index
    %c0_656 = arith.constant 0 : index
    %541 = vector.load %arg13[%c1_654, %c1_655, %c0_656] : memref<12x12x4xf32, #tpu.memory_space<vmem>>, vector<8x8x4xf32>
    %542 = vector.broadcast %540 : vector<1x1x4xf32> to vector<8x8x4xf32>
    %543 = arith.mulf %541, %542 : vector<8x8x4xf32>
    %544 = arith.addf %538, %543 : vector<8x8x4xf32>
    %c3_657 = arith.constant 3 : index
    %c1_658 = arith.constant 1 : index
    %c2_659 = arith.constant 2 : index
    %c0_660 = arith.constant 0 : index
    %545 = vector.load %arg8[%c3_657, %c1_658, %c2_659, %c0_660] : memref<4x5x5x4xf32, #tpu.memory_space<vmem>>, vector<1x1x1x4xf32>
    %546 = vector.shape_cast %545 : vector<1x1x1x4xf32> to vector<1x1x4xf32>
    %c1_661 = arith.constant 1 : index
    %c2_662 = arith.constant 2 : index
    %c0_663 = arith.constant 0 : index
    %547 = vector.load %arg13[%c1_661, %c2_662, %c0_663] : memref<12x12x4xf32, #tpu.memory_space<vmem>>, vector<8x8x4xf32>
    %548 = vector.broadcast %546 : vector<1x1x4xf32> to vector<8x8x4xf32>
    %549 = arith.mulf %547, %548 : vector<8x8x4xf32>
    %550 = arith.addf %544, %549 : vector<8x8x4xf32>
    %c3_664 = arith.constant 3 : index
    %c1_665 = arith.constant 1 : index
    %c3_666 = arith.constant 3 : index
    %c0_667 = arith.constant 0 : index
    %551 = vector.load %arg8[%c3_664, %c1_665, %c3_666, %c0_667] : memref<4x5x5x4xf32, #tpu.memory_space<vmem>>, vector<1x1x1x4xf32>
    %552 = vector.shape_cast %551 : vector<1x1x1x4xf32> to vector<1x1x4xf32>
    %c1_668 = arith.constant 1 : index
    %c3_669 = arith.constant 3 : index
    %c0_670 = arith.constant 0 : index
    %553 = vector.load %arg13[%c1_668, %c3_669, %c0_670] : memref<12x12x4xf32, #tpu.memory_space<vmem>>, vector<8x8x4xf32>
    %554 = vector.broadcast %552 : vector<1x1x4xf32> to vector<8x8x4xf32>
    %555 = arith.mulf %553, %554 : vector<8x8x4xf32>
    %556 = arith.addf %550, %555 : vector<8x8x4xf32>
    %c3_671 = arith.constant 3 : index
    %c1_672 = arith.constant 1 : index
    %c4_673 = arith.constant 4 : index
    %c0_674 = arith.constant 0 : index
    %557 = vector.load %arg8[%c3_671, %c1_672, %c4_673, %c0_674] : memref<4x5x5x4xf32, #tpu.memory_space<vmem>>, vector<1x1x1x4xf32>
    %558 = vector.shape_cast %557 : vector<1x1x1x4xf32> to vector<1x1x4xf32>
    %c1_675 = arith.constant 1 : index
    %c4_676 = arith.constant 4 : index
    %c0_677 = arith.constant 0 : index
    %559 = vector.load %arg13[%c1_675, %c4_676, %c0_677] : memref<12x12x4xf32, #tpu.memory_space<vmem>>, vector<8x8x4xf32>
    %560 = vector.broadcast %558 : vector<1x1x4xf32> to vector<8x8x4xf32>
    %561 = arith.mulf %559, %560 : vector<8x8x4xf32>
    %562 = arith.addf %556, %561 : vector<8x8x4xf32>
    %c3_678 = arith.constant 3 : index
    %c2_679 = arith.constant 2 : index
    %c0_680 = arith.constant 0 : index
    %c0_681 = arith.constant 0 : index
    %563 = vector.load %arg8[%c3_678, %c2_679, %c0_680, %c0_681] : memref<4x5x5x4xf32, #tpu.memory_space<vmem>>, vector<1x1x1x4xf32>
    %564 = vector.shape_cast %563 : vector<1x1x1x4xf32> to vector<1x1x4xf32>
    %c2_682 = arith.constant 2 : index
    %c0_683 = arith.constant 0 : index
    %c0_684 = arith.constant 0 : index
    %565 = vector.load %arg13[%c2_682, %c0_683, %c0_684] : memref<12x12x4xf32, #tpu.memory_space<vmem>>, vector<8x8x4xf32>
    %566 = vector.broadcast %564 : vector<1x1x4xf32> to vector<8x8x4xf32>
    %567 = arith.mulf %565, %566 : vector<8x8x4xf32>
    %568 = arith.addf %562, %567 : vector<8x8x4xf32>
    %c3_685 = arith.constant 3 : index
    %c2_686 = arith.constant 2 : index
    %c1_687 = arith.constant 1 : index
    %c0_688 = arith.constant 0 : index
    %569 = vector.load %arg8[%c3_685, %c2_686, %c1_687, %c0_688] : memref<4x5x5x4xf32, #tpu.memory_space<vmem>>, vector<1x1x1x4xf32>
    %570 = vector.shape_cast %569 : vector<1x1x1x4xf32> to vector<1x1x4xf32>
    %c2_689 = arith.constant 2 : index
    %c1_690 = arith.constant 1 : index
    %c0_691 = arith.constant 0 : index
    %571 = vector.load %arg13[%c2_689, %c1_690, %c0_691] : memref<12x12x4xf32, #tpu.memory_space<vmem>>, vector<8x8x4xf32>
    %572 = vector.broadcast %570 : vector<1x1x4xf32> to vector<8x8x4xf32>
    %573 = arith.mulf %571, %572 : vector<8x8x4xf32>
    %574 = arith.addf %568, %573 : vector<8x8x4xf32>
    %c3_692 = arith.constant 3 : index
    %c2_693 = arith.constant 2 : index
    %c2_694 = arith.constant 2 : index
    %c0_695 = arith.constant 0 : index
    %575 = vector.load %arg8[%c3_692, %c2_693, %c2_694, %c0_695] : memref<4x5x5x4xf32, #tpu.memory_space<vmem>>, vector<1x1x1x4xf32>
    %576 = vector.shape_cast %575 : vector<1x1x1x4xf32> to vector<1x1x4xf32>
    %c2_696 = arith.constant 2 : index
    %c2_697 = arith.constant 2 : index
    %c0_698 = arith.constant 0 : index
    %577 = vector.load %arg13[%c2_696, %c2_697, %c0_698] : memref<12x12x4xf32, #tpu.memory_space<vmem>>, vector<8x8x4xf32>
    %578 = vector.broadcast %576 : vector<1x1x4xf32> to vector<8x8x4xf32>
    %579 = arith.mulf %577, %578 : vector<8x8x4xf32>
    %580 = arith.addf %574, %579 : vector<8x8x4xf32>
    %c3_699 = arith.constant 3 : index
    %c2_700 = arith.constant 2 : index
    %c3_701 = arith.constant 3 : index
    %c0_702 = arith.constant 0 : index
    %581 = vector.load %arg8[%c3_699, %c2_700, %c3_701, %c0_702] : memref<4x5x5x4xf32, #tpu.memory_space<vmem>>, vector<1x1x1x4xf32>
    %582 = vector.shape_cast %581 : vector<1x1x1x4xf32> to vector<1x1x4xf32>
    %c2_703 = arith.constant 2 : index
    %c3_704 = arith.constant 3 : index
    %c0_705 = arith.constant 0 : index
    %583 = vector.load %arg13[%c2_703, %c3_704, %c0_705] : memref<12x12x4xf32, #tpu.memory_space<vmem>>, vector<8x8x4xf32>
    %584 = vector.broadcast %582 : vector<1x1x4xf32> to vector<8x8x4xf32>
    %585 = arith.mulf %583, %584 : vector<8x8x4xf32>
    %586 = arith.addf %580, %585 : vector<8x8x4xf32>
    %c3_706 = arith.constant 3 : index
    %c2_707 = arith.constant 2 : index
    %c4_708 = arith.constant 4 : index
    %c0_709 = arith.constant 0 : index
    %587 = vector.load %arg8[%c3_706, %c2_707, %c4_708, %c0_709] : memref<4x5x5x4xf32, #tpu.memory_space<vmem>>, vector<1x1x1x4xf32>
    %588 = vector.shape_cast %587 : vector<1x1x1x4xf32> to vector<1x1x4xf32>
    %c2_710 = arith.constant 2 : index
    %c4_711 = arith.constant 4 : index
    %c0_712 = arith.constant 0 : index
    %589 = vector.load %arg13[%c2_710, %c4_711, %c0_712] : memref<12x12x4xf32, #tpu.memory_space<vmem>>, vector<8x8x4xf32>
    %590 = vector.broadcast %588 : vector<1x1x4xf32> to vector<8x8x4xf32>
    %591 = arith.mulf %589, %590 : vector<8x8x4xf32>
    %592 = arith.addf %586, %591 : vector<8x8x4xf32>
    %c3_713 = arith.constant 3 : index
    %c3_714 = arith.constant 3 : index
    %c0_715 = arith.constant 0 : index
    %c0_716 = arith.constant 0 : index
    %593 = vector.load %arg8[%c3_713, %c3_714, %c0_715, %c0_716] : memref<4x5x5x4xf32, #tpu.memory_space<vmem>>, vector<1x1x1x4xf32>
    %594 = vector.shape_cast %593 : vector<1x1x1x4xf32> to vector<1x1x4xf32>
    %c3_717 = arith.constant 3 : index
    %c0_718 = arith.constant 0 : index
    %c0_719 = arith.constant 0 : index
    %595 = vector.load %arg13[%c3_717, %c0_718, %c0_719] : memref<12x12x4xf32, #tpu.memory_space<vmem>>, vector<8x8x4xf32>
    %596 = vector.broadcast %594 : vector<1x1x4xf32> to vector<8x8x4xf32>
    %597 = arith.mulf %595, %596 : vector<8x8x4xf32>
    %598 = arith.addf %592, %597 : vector<8x8x4xf32>
    %c3_720 = arith.constant 3 : index
    %c3_721 = arith.constant 3 : index
    %c1_722 = arith.constant 1 : index
    %c0_723 = arith.constant 0 : index
    %599 = vector.load %arg8[%c3_720, %c3_721, %c1_722, %c0_723] : memref<4x5x5x4xf32, #tpu.memory_space<vmem>>, vector<1x1x1x4xf32>
    %600 = vector.shape_cast %599 : vector<1x1x1x4xf32> to vector<1x1x4xf32>
    %c3_724 = arith.constant 3 : index
    %c1_725 = arith.constant 1 : index
    %c0_726 = arith.constant 0 : index
    %601 = vector.load %arg13[%c3_724, %c1_725, %c0_726] : memref<12x12x4xf32, #tpu.memory_space<vmem>>, vector<8x8x4xf32>
    %602 = vector.broadcast %600 : vector<1x1x4xf32> to vector<8x8x4xf32>
    %603 = arith.mulf %601, %602 : vector<8x8x4xf32>
    %604 = arith.addf %598, %603 : vector<8x8x4xf32>
    %c3_727 = arith.constant 3 : index
    %c3_728 = arith.constant 3 : index
    %c2_729 = arith.constant 2 : index
    %c0_730 = arith.constant 0 : index
    %605 = vector.load %arg8[%c3_727, %c3_728, %c2_729, %c0_730] : memref<4x5x5x4xf32, #tpu.memory_space<vmem>>, vector<1x1x1x4xf32>
    %606 = vector.shape_cast %605 : vector<1x1x1x4xf32> to vector<1x1x4xf32>
    %c3_731 = arith.constant 3 : index
    %c2_732 = arith.constant 2 : index
    %c0_733 = arith.constant 0 : index
    %607 = vector.load %arg13[%c3_731, %c2_732, %c0_733] : memref<12x12x4xf32, #tpu.memory_space<vmem>>, vector<8x8x4xf32>
    %608 = vector.broadcast %606 : vector<1x1x4xf32> to vector<8x8x4xf32>
    %609 = arith.mulf %607, %608 : vector<8x8x4xf32>
    %610 = arith.addf %604, %609 : vector<8x8x4xf32>
    %c3_734 = arith.constant 3 : index
    %c3_735 = arith.constant 3 : index
    %c3_736 = arith.constant 3 : index
    %c0_737 = arith.constant 0 : index
    %611 = vector.load %arg8[%c3_734, %c3_735, %c3_736, %c0_737] : memref<4x5x5x4xf32, #tpu.memory_space<vmem>>, vector<1x1x1x4xf32>
    %612 = vector.shape_cast %611 : vector<1x1x1x4xf32> to vector<1x1x4xf32>
    %c3_738 = arith.constant 3 : index
    %c3_739 = arith.constant 3 : index
    %c0_740 = arith.constant 0 : index
    %613 = vector.load %arg13[%c3_738, %c3_739, %c0_740] : memref<12x12x4xf32, #tpu.memory_space<vmem>>, vector<8x8x4xf32>
    %614 = vector.broadcast %612 : vector<1x1x4xf32> to vector<8x8x4xf32>
    %615 = arith.mulf %613, %614 : vector<8x8x4xf32>
    %616 = arith.addf %610, %615 : vector<8x8x4xf32>
    %c3_741 = arith.constant 3 : index
    %c3_742 = arith.constant 3 : index
    %c4_743 = arith.constant 4 : index
    %c0_744 = arith.constant 0 : index
    %617 = vector.load %arg8[%c3_741, %c3_742, %c4_743, %c0_744] : memref<4x5x5x4xf32, #tpu.memory_space<vmem>>, vector<1x1x1x4xf32>
    %618 = vector.shape_cast %617 : vector<1x1x1x4xf32> to vector<1x1x4xf32>
    %c3_745 = arith.constant 3 : index
    %c4_746 = arith.constant 4 : index
    %c0_747 = arith.constant 0 : index
    %619 = vector.load %arg13[%c3_745, %c4_746, %c0_747] : memref<12x12x4xf32, #tpu.memory_space<vmem>>, vector<8x8x4xf32>
    %620 = vector.broadcast %618 : vector<1x1x4xf32> to vector<8x8x4xf32>
    %621 = arith.mulf %619, %620 : vector<8x8x4xf32>
    %622 = arith.addf %616, %621 : vector<8x8x4xf32>
    %c3_748 = arith.constant 3 : index
    %c4_749 = arith.constant 4 : index
    %c0_750 = arith.constant 0 : index
    %c0_751 = arith.constant 0 : index
    %623 = vector.load %arg8[%c3_748, %c4_749, %c0_750, %c0_751] : memref<4x5x5x4xf32, #tpu.memory_space<vmem>>, vector<1x1x1x4xf32>
    %624 = vector.shape_cast %623 : vector<1x1x1x4xf32> to vector<1x1x4xf32>
    %c4_752 = arith.constant 4 : index
    %c0_753 = arith.constant 0 : index
    %c0_754 = arith.constant 0 : index
    %625 = vector.load %arg13[%c4_752, %c0_753, %c0_754] : memref<12x12x4xf32, #tpu.memory_space<vmem>>, vector<8x8x4xf32>
    %626 = vector.broadcast %624 : vector<1x1x4xf32> to vector<8x8x4xf32>
    %627 = arith.mulf %625, %626 : vector<8x8x4xf32>
    %628 = arith.addf %622, %627 : vector<8x8x4xf32>
    %c3_755 = arith.constant 3 : index
    %c4_756 = arith.constant 4 : index
    %c1_757 = arith.constant 1 : index
    %c0_758 = arith.constant 0 : index
    %629 = vector.load %arg8[%c3_755, %c4_756, %c1_757, %c0_758] : memref<4x5x5x4xf32, #tpu.memory_space<vmem>>, vector<1x1x1x4xf32>
    %630 = vector.shape_cast %629 : vector<1x1x1x4xf32> to vector<1x1x4xf32>
    %c4_759 = arith.constant 4 : index
    %c1_760 = arith.constant 1 : index
    %c0_761 = arith.constant 0 : index
    %631 = vector.load %arg13[%c4_759, %c1_760, %c0_761] : memref<12x12x4xf32, #tpu.memory_space<vmem>>, vector<8x8x4xf32>
    %632 = vector.broadcast %630 : vector<1x1x4xf32> to vector<8x8x4xf32>
    %633 = arith.mulf %631, %632 : vector<8x8x4xf32>
    %634 = arith.addf %628, %633 : vector<8x8x4xf32>
    %c3_762 = arith.constant 3 : index
    %c4_763 = arith.constant 4 : index
    %c2_764 = arith.constant 2 : index
    %c0_765 = arith.constant 0 : index
    %635 = vector.load %arg8[%c3_762, %c4_763, %c2_764, %c0_765] : memref<4x5x5x4xf32, #tpu.memory_space<vmem>>, vector<1x1x1x4xf32>
    %636 = vector.shape_cast %635 : vector<1x1x1x4xf32> to vector<1x1x4xf32>
    %c4_766 = arith.constant 4 : index
    %c2_767 = arith.constant 2 : index
    %c0_768 = arith.constant 0 : index
    %637 = vector.load %arg13[%c4_766, %c2_767, %c0_768] : memref<12x12x4xf32, #tpu.memory_space<vmem>>, vector<8x8x4xf32>
    %638 = vector.broadcast %636 : vector<1x1x4xf32> to vector<8x8x4xf32>
    %639 = arith.mulf %637, %638 : vector<8x8x4xf32>
    %640 = arith.addf %634, %639 : vector<8x8x4xf32>
    %c3_769 = arith.constant 3 : index
    %c4_770 = arith.constant 4 : index
    %c3_771 = arith.constant 3 : index
    %c0_772 = arith.constant 0 : index
    %641 = vector.load %arg8[%c3_769, %c4_770, %c3_771, %c0_772] : memref<4x5x5x4xf32, #tpu.memory_space<vmem>>, vector<1x1x1x4xf32>
    %642 = vector.shape_cast %641 : vector<1x1x1x4xf32> to vector<1x1x4xf32>
    %c4_773 = arith.constant 4 : index
    %c3_774 = arith.constant 3 : index
    %c0_775 = arith.constant 0 : index
    %643 = vector.load %arg13[%c4_773, %c3_774, %c0_775] : memref<12x12x4xf32, #tpu.memory_space<vmem>>, vector<8x8x4xf32>
    %644 = vector.broadcast %642 : vector<1x1x4xf32> to vector<8x8x4xf32>
    %645 = arith.mulf %643, %644 : vector<8x8x4xf32>
    %646 = arith.addf %640, %645 : vector<8x8x4xf32>
    %c3_776 = arith.constant 3 : index
    %c4_777 = arith.constant 4 : index
    %c4_778 = arith.constant 4 : index
    %c0_779 = arith.constant 0 : index
    %647 = vector.load %arg8[%c3_776, %c4_777, %c4_778, %c0_779] : memref<4x5x5x4xf32, #tpu.memory_space<vmem>>, vector<1x1x1x4xf32>
    %648 = vector.shape_cast %647 : vector<1x1x1x4xf32> to vector<1x1x4xf32>
    %c4_780 = arith.constant 4 : index
    %c4_781 = arith.constant 4 : index
    %c0_782 = arith.constant 0 : index
    %649 = vector.load %arg13[%c4_780, %c4_781, %c0_782] : memref<12x12x4xf32, #tpu.memory_space<vmem>>, vector<8x8x4xf32>
    %650 = vector.broadcast %648 : vector<1x1x4xf32> to vector<8x8x4xf32>
    %651 = arith.mulf %649, %650 : vector<8x8x4xf32>
    %652 = arith.addf %646, %651 : vector<8x8x4xf32>
    %c3_783 = arith.constant 3 : index
    %c0_784 = arith.constant 0 : index
    %c0_785 = arith.constant 0 : index
    %c0_786 = arith.constant 0 : index
    %653 = vector.load %arg14[%c3_783, %c0_784, %c0_785, %c0_786] : memref<4x8x8x4xf32, #tpu.memory_space<vmem>>, vector<1x8x8x4xf32>
    %654 = vector.shape_cast %653 : vector<1x8x8x4xf32> to vector<8x8x4xf32>
    %655 = vector.shape_cast %652 : vector<8x8x4xf32> to vector<1x8x8x4xf32>
    tpu.vector_store %arg14[%c3_783, %c0_784, %c0_785, %c0_786], %655 {strides = array<i32>} : memref<4x8x8x4xf32, #tpu.memory_space<vmem>>, vector<1x8x8x4xf32>,
    %c0_787 = arith.constant 0 : index
    %c0_788 = arith.constant 0 : index
    %c0_789 = arith.constant 0 : index
    %656 = vector.load %arg7[%c0_787, %c0_788, %c0_789] : memref<1x1x4xf32, #tpu.memory_space<vmem>>, vector<1x1x4xf32>
    %c0_790 = arith.constant 0 : index
    %c0_791 = arith.constant 0 : index
    %c0_792 = arith.constant 0 : index
    %657 = vector.load %arg6[%c0_790, %c0_791, %c0_792] : memref<5x5x4xf32, #tpu.memory_space<vmem>>, vector<1x1x4xf32>
    %c0_793 = arith.constant 0 : index
    %c1_794 = arith.constant 1 : index
    %c0_795 = arith.constant 0 : index
    %658 = vector.load %arg6[%c0_793, %c1_794, %c0_795] : memref<5x5x4xf32, #tpu.memory_space<vmem>>, vector<1x1x4xf32>
    %c0_796 = arith.constant 0 : index
    %c2_797 = arith.constant 2 : index
    %c0_798 = arith.constant 0 : index
    %659 = vector.load %arg6[%c0_796, %c2_797, %c0_798] : memref<5x5x4xf32, #tpu.memory_space<vmem>>, vector<1x1x4xf32>
    %c0_799 = arith.constant 0 : index
    %c3_800 = arith.constant 3 : index
    %c0_801 = arith.constant 0 : index
    %660 = vector.load %arg6[%c0_799, %c3_800, %c0_801] : memref<5x5x4xf32, #tpu.memory_space<vmem>>, vector<1x1x4xf32>
    %c0_802 = arith.constant 0 : index
    %c4_803 = arith.constant 4 : index
    %c0_804 = arith.constant 0 : index
    %661 = vector.load %arg6[%c0_802, %c4_803, %c0_804] : memref<5x5x4xf32, #tpu.memory_space<vmem>>, vector<1x1x4xf32>
    %c1_805 = arith.constant 1 : index
    %c0_806 = arith.constant 0 : index
    %c0_807 = arith.constant 0 : index
    %662 = vector.load %arg6[%c1_805, %c0_806, %c0_807] : memref<5x5x4xf32, #tpu.memory_space<vmem>>, vector<1x1x4xf32>
    %c1_808 = arith.constant 1 : index
    %c1_809 = arith.constant 1 : index
    %c0_810 = arith.constant 0 : index
    %663 = vector.load %arg6[%c1_808, %c1_809, %c0_810] : memref<5x5x4xf32, #tpu.memory_space<vmem>>, vector<1x1x4xf32>
    %c1_811 = arith.constant 1 : index
    %c2_812 = arith.constant 2 : index
    %c0_813 = arith.constant 0 : index
    %664 = vector.load %arg6[%c1_811, %c2_812, %c0_813] : memref<5x5x4xf32, #tpu.memory_space<vmem>>, vector<1x1x4xf32>
    %c1_814 = arith.constant 1 : index
    %c3_815 = arith.constant 3 : index
    %c0_816 = arith.constant 0 : index
    %665 = vector.load %arg6[%c1_814, %c3_815, %c0_816] : memref<5x5x4xf32, #tpu.memory_space<vmem>>, vector<1x1x4xf32>
    %c1_817 = arith.constant 1 : index
    %c4_818 = arith.constant 4 : index
    %c0_819 = arith.constant 0 : index
    %666 = vector.load %arg6[%c1_817, %c4_818, %c0_819] : memref<5x5x4xf32, #tpu.memory_space<vmem>>, vector<1x1x4xf32>
    %c2_820 = arith.constant 2 : index
    %c0_821 = arith.constant 0 : index
    %c0_822 = arith.constant 0 : index
    %667 = vector.load %arg6[%c2_820, %c0_821, %c0_822] : memref<5x5x4xf32, #tpu.memory_space<vmem>>, vector<1x1x4xf32>
    %c2_823 = arith.constant 2 : index
    %c1_824 = arith.constant 1 : index
    %c0_825 = arith.constant 0 : index
    %668 = vector.load %arg6[%c2_823, %c1_824, %c0_825] : memref<5x5x4xf32, #tpu.memory_space<vmem>>, vector<1x1x4xf32>
    %c2_826 = arith.constant 2 : index
    %c2_827 = arith.constant 2 : index
    %c0_828 = arith.constant 0 : index
    %669 = vector.load %arg6[%c2_826, %c2_827, %c0_828] : memref<5x5x4xf32, #tpu.memory_space<vmem>>, vector<1x1x4xf32>
    %c2_829 = arith.constant 2 : index
    %c3_830 = arith.constant 3 : index
    %c0_831 = arith.constant 0 : index
    %670 = vector.load %arg6[%c2_829, %c3_830, %c0_831] : memref<5x5x4xf32, #tpu.memory_space<vmem>>, vector<1x1x4xf32>
    %c2_832 = arith.constant 2 : index
    %c4_833 = arith.constant 4 : index
    %c0_834 = arith.constant 0 : index
    %671 = vector.load %arg6[%c2_832, %c4_833, %c0_834] : memref<5x5x4xf32, #tpu.memory_space<vmem>>, vector<1x1x4xf32>
    %c3_835 = arith.constant 3 : index
    %c0_836 = arith.constant 0 : index
    %c0_837 = arith.constant 0 : index
    %672 = vector.load %arg6[%c3_835, %c0_836, %c0_837] : memref<5x5x4xf32, #tpu.memory_space<vmem>>, vector<1x1x4xf32>
    %c3_838 = arith.constant 3 : index
    %c1_839 = arith.constant 1 : index
    %c0_840 = arith.constant 0 : index
    %673 = vector.load %arg6[%c3_838, %c1_839, %c0_840] : memref<5x5x4xf32, #tpu.memory_space<vmem>>, vector<1x1x4xf32>
    %c3_841 = arith.constant 3 : index
    %c2_842 = arith.constant 2 : index
    %c0_843 = arith.constant 0 : index
    %674 = vector.load %arg6[%c3_841, %c2_842, %c0_843] : memref<5x5x4xf32, #tpu.memory_space<vmem>>, vector<1x1x4xf32>
    %c3_844 = arith.constant 3 : index
    %c3_845 = arith.constant 3 : index
    %c0_846 = arith.constant 0 : index
    %675 = vector.load %arg6[%c3_844, %c3_845, %c0_846] : memref<5x5x4xf32, #tpu.memory_space<vmem>>, vector<1x1x4xf32>
    %c3_847 = arith.constant 3 : index
    %c4_848 = arith.constant 4 : index
    %c0_849 = arith.constant 0 : index
    %676 = vector.load %arg6[%c3_847, %c4_848, %c0_849] : memref<5x5x4xf32, #tpu.memory_space<vmem>>, vector<1x1x4xf32>
    %c4_850 = arith.constant 4 : index
    %c0_851 = arith.constant 0 : index
    %c0_852 = arith.constant 0 : index
    %677 = vector.load %arg6[%c4_850, %c0_851, %c0_852] : memref<5x5x4xf32, #tpu.memory_space<vmem>>, vector<1x1x4xf32>
    %c4_853 = arith.constant 4 : index
    %c1_854 = arith.constant 1 : index
    %c0_855 = arith.constant 0 : index
    %678 = vector.load %arg6[%c4_853, %c1_854, %c0_855] : memref<5x5x4xf32, #tpu.memory_space<vmem>>, vector<1x1x4xf32>
    %c4_856 = arith.constant 4 : index
    %c2_857 = arith.constant 2 : index
    %c0_858 = arith.constant 0 : index
    %679 = vector.load %arg6[%c4_856, %c2_857, %c0_858] : memref<5x5x4xf32, #tpu.memory_space<vmem>>, vector<1x1x4xf32>
    %c4_859 = arith.constant 4 : index
    %c3_860 = arith.constant 3 : index
    %c0_861 = arith.constant 0 : index
    %680 = vector.load %arg6[%c4_859, %c3_860, %c0_861] : memref<5x5x4xf32, #tpu.memory_space<vmem>>, vector<1x1x4xf32>
    %c4_862 = arith.constant 4 : index
    %c4_863 = arith.constant 4 : index
    %c0_864 = arith.constant 0 : index
    %681 = vector.load %arg6[%c4_862, %c4_863, %c0_864] : memref<5x5x4xf32, #tpu.memory_space<vmem>>, vector<1x1x4xf32>
    %c0_865 = arith.constant 0 : index
    %c1_866 = arith.constant 1 : index
    %c1_867 = arith.constant 1 : index
    %c0_868 = arith.constant 0 : index
    %682 = vector.load %arg2[%c0_865, %c1_866, %c1_867, %c0_868] : memref<1x12x12x4xf32, #tpu.memory_space<vmem>>, vector<1x8x8x4xf32>
    %683 = vector.shape_cast %682 : vector<1x8x8x4xf32> to vector<8x8x4xf32>
    %684 = vector.broadcast %657 : vector<1x1x4xf32> to vector<8x8x4xf32>
    %685 = arith.mulf %683, %684 : vector<8x8x4xf32>
    %c0_869 = arith.constant 0 : index
    %c1_870 = arith.constant 1 : index
    %c1_871 = arith.constant 1 : index
    %c0_872 = arith.constant 0 : index
    %686 = vector.load %arg3[%c0_869, %c1_870, %c1_871, %c0_872] : memref<1x12x12x4xf32, #tpu.memory_space<vmem>>, vector<1x8x8x4xf32>
    %687 = vector.shape_cast %686 : vector<1x8x8x4xf32> to vector<8x8x4xf32>
    %688 = vector.broadcast %658 : vector<1x1x4xf32> to vector<8x8x4xf32>
    %689 = arith.mulf %687, %688 : vector<8x8x4xf32>
    %690 = arith.addf %685, %689 : vector<8x8x4xf32>
    %c0_873 = arith.constant 0 : index
    %c1_874 = arith.constant 1 : index
    %c2_875 = arith.constant 2 : index
    %c0_876 = arith.constant 0 : index
    %691 = vector.load %arg2[%c0_873, %c1_874, %c2_875, %c0_876] : memref<1x12x12x4xf32, #tpu.memory_space<vmem>>, vector<1x8x8x4xf32>
    %692 = vector.shape_cast %691 : vector<1x8x8x4xf32> to vector<8x8x4xf32>
    %693 = vector.broadcast %659 : vector<1x1x4xf32> to vector<8x8x4xf32>
    %694 = arith.mulf %692, %693 : vector<8x8x4xf32>
    %695 = arith.addf %690, %694 : vector<8x8x4xf32>
    %c0_877 = arith.constant 0 : index
    %c1_878 = arith.constant 1 : index
    %c2_879 = arith.constant 2 : index
    %c0_880 = arith.constant 0 : index
    %696 = vector.load %arg3[%c0_877, %c1_878, %c2_879, %c0_880] : memref<1x12x12x4xf32, #tpu.memory_space<vmem>>, vector<1x8x8x4xf32>
    %697 = vector.shape_cast %696 : vector<1x8x8x4xf32> to vector<8x8x4xf32>
    %698 = vector.broadcast %660 : vector<1x1x4xf32> to vector<8x8x4xf32>
    %699 = arith.mulf %697, %698 : vector<8x8x4xf32>
    %700 = arith.addf %695, %699 : vector<8x8x4xf32>
    %c0_881 = arith.constant 0 : index
    %c1_882 = arith.constant 1 : index
    %c3_883 = arith.constant 3 : index
    %c0_884 = arith.constant 0 : index
    %701 = vector.load %arg2[%c0_881, %c1_882, %c3_883, %c0_884] : memref<1x12x12x4xf32, #tpu.memory_space<vmem>>, vector<1x8x8x4xf32>
    %702 = vector.shape_cast %701 : vector<1x8x8x4xf32> to vector<8x8x4xf32>
    %703 = vector.broadcast %661 : vector<1x1x4xf32> to vector<8x8x4xf32>
    %704 = arith.mulf %702, %703 : vector<8x8x4xf32>
    %705 = arith.addf %700, %704 : vector<8x8x4xf32>
    %c0_885 = arith.constant 0 : index
    %c1_886 = arith.constant 1 : index
    %c1_887 = arith.constant 1 : index
    %c0_888 = arith.constant 0 : index
    %706 = vector.load %arg4[%c0_885, %c1_886, %c1_887, %c0_888] : memref<1x12x12x4xf32, #tpu.memory_space<vmem>>, vector<1x8x8x4xf32>
    %707 = vector.shape_cast %706 : vector<1x8x8x4xf32> to vector<8x8x4xf32>
    %708 = vector.broadcast %662 : vector<1x1x4xf32> to vector<8x8x4xf32>
    %709 = arith.mulf %707, %708 : vector<8x8x4xf32>
    %710 = arith.addf %705, %709 : vector<8x8x4xf32>
    %c0_889 = arith.constant 0 : index
    %c1_890 = arith.constant 1 : index
    %c1_891 = arith.constant 1 : index
    %c0_892 = arith.constant 0 : index
    %711 = vector.load %arg5[%c0_889, %c1_890, %c1_891, %c0_892] : memref<1x12x12x4xf32, #tpu.memory_space<vmem>>, vector<1x8x8x4xf32>
    %712 = vector.shape_cast %711 : vector<1x8x8x4xf32> to vector<8x8x4xf32>
    %713 = vector.broadcast %663 : vector<1x1x4xf32> to vector<8x8x4xf32>
    %714 = arith.mulf %712, %713 : vector<8x8x4xf32>
    %715 = arith.addf %710, %714 : vector<8x8x4xf32>
    %c0_893 = arith.constant 0 : index
    %c1_894 = arith.constant 1 : index
    %c2_895 = arith.constant 2 : index
    %c0_896 = arith.constant 0 : index
    %716 = vector.load %arg4[%c0_893, %c1_894, %c2_895, %c0_896] : memref<1x12x12x4xf32, #tpu.memory_space<vmem>>, vector<1x8x8x4xf32>
    %717 = vector.shape_cast %716 : vector<1x8x8x4xf32> to vector<8x8x4xf32>
    %718 = vector.broadcast %664 : vector<1x1x4xf32> to vector<8x8x4xf32>
    %719 = arith.mulf %717, %718 : vector<8x8x4xf32>
    %720 = arith.addf %715, %719 : vector<8x8x4xf32>
    %c0_897 = arith.constant 0 : index
    %c1_898 = arith.constant 1 : index
    %c2_899 = arith.constant 2 : index
    %c0_900 = arith.constant 0 : index
    %721 = vector.load %arg5[%c0_897, %c1_898, %c2_899, %c0_900] : memref<1x12x12x4xf32, #tpu.memory_space<vmem>>, vector<1x8x8x4xf32>
    %722 = vector.shape_cast %721 : vector<1x8x8x4xf32> to vector<8x8x4xf32>
    %723 = vector.broadcast %665 : vector<1x1x4xf32> to vector<8x8x4xf32>
    %724 = arith.mulf %722, %723 : vector<8x8x4xf32>
    %725 = arith.addf %720, %724 : vector<8x8x4xf32>
    %c0_901 = arith.constant 0 : index
    %c1_902 = arith.constant 1 : index
    %c3_903 = arith.constant 3 : index
    %c0_904 = arith.constant 0 : index
    %726 = vector.load %arg4[%c0_901, %c1_902, %c3_903, %c0_904] : memref<1x12x12x4xf32, #tpu.memory_space<vmem>>, vector<1x8x8x4xf32>
    %727 = vector.shape_cast %726 : vector<1x8x8x4xf32> to vector<8x8x4xf32>
    %728 = vector.broadcast %666 : vector<1x1x4xf32> to vector<8x8x4xf32>
    %729 = arith.mulf %727, %728 : vector<8x8x4xf32>
    %730 = arith.addf %725, %729 : vector<8x8x4xf32>
    %c0_905 = arith.constant 0 : index
    %c2_906 = arith.constant 2 : index
    %c1_907 = arith.constant 1 : index
    %c0_908 = arith.constant 0 : index
    %731 = vector.load %arg2[%c0_905, %c2_906, %c1_907, %c0_908] : memref<1x12x12x4xf32, #tpu.memory_space<vmem>>, vector<1x8x8x4xf32>
    %732 = vector.shape_cast %731 : vector<1x8x8x4xf32> to vector<8x8x4xf32>
    %733 = vector.broadcast %667 : vector<1x1x4xf32> to vector<8x8x4xf32>
    %734 = arith.mulf %732, %733 : vector<8x8x4xf32>
    %735 = arith.addf %730, %734 : vector<8x8x4xf32>
    %c0_909 = arith.constant 0 : index
    %c2_910 = arith.constant 2 : index
    %c1_911 = arith.constant 1 : index
    %c0_912 = arith.constant 0 : index
    %736 = vector.load %arg3[%c0_909, %c2_910, %c1_911, %c0_912] : memref<1x12x12x4xf32, #tpu.memory_space<vmem>>, vector<1x8x8x4xf32>
    %737 = vector.shape_cast %736 : vector<1x8x8x4xf32> to vector<8x8x4xf32>
    %738 = vector.broadcast %668 : vector<1x1x4xf32> to vector<8x8x4xf32>
    %739 = arith.mulf %737, %738 : vector<8x8x4xf32>
    %740 = arith.addf %735, %739 : vector<8x8x4xf32>
    %c0_913 = arith.constant 0 : index
    %c2_914 = arith.constant 2 : index
    %c2_915 = arith.constant 2 : index
    %c0_916 = arith.constant 0 : index
    %741 = vector.load %arg2[%c0_913, %c2_914, %c2_915, %c0_916] : memref<1x12x12x4xf32, #tpu.memory_space<vmem>>, vector<1x8x8x4xf32>
    %742 = vector.shape_cast %741 : vector<1x8x8x4xf32> to vector<8x8x4xf32>
    %743 = vector.broadcast %669 : vector<1x1x4xf32> to vector<8x8x4xf32>
    %744 = arith.mulf %742, %743 : vector<8x8x4xf32>
    %745 = arith.addf %740, %744 : vector<8x8x4xf32>
    %c0_917 = arith.constant 0 : index
    %c2_918 = arith.constant 2 : index
    %c2_919 = arith.constant 2 : index
    %c0_920 = arith.constant 0 : index
    %746 = vector.load %arg3[%c0_917, %c2_918, %c2_919, %c0_920] : memref<1x12x12x4xf32, #tpu.memory_space<vmem>>, vector<1x8x8x4xf32>
    %747 = vector.shape_cast %746 : vector<1x8x8x4xf32> to vector<8x8x4xf32>
    %748 = vector.broadcast %670 : vector<1x1x4xf32> to vector<8x8x4xf32>
    %749 = arith.mulf %747, %748 : vector<8x8x4xf32>
    %750 = arith.addf %745, %749 : vector<8x8x4xf32>
    %c0_921 = arith.constant 0 : index
    %c2_922 = arith.constant 2 : index
    %c3_923 = arith.constant 3 : index
    %c0_924 = arith.constant 0 : index
    %751 = vector.load %arg2[%c0_921, %c2_922, %c3_923, %c0_924] : memref<1x12x12x4xf32, #tpu.memory_space<vmem>>, vector<1x8x8x4xf32>
    %752 = vector.shape_cast %751 : vector<1x8x8x4xf32> to vector<8x8x4xf32>
    %753 = vector.broadcast %671 : vector<1x1x4xf32> to vector<8x8x4xf32>
    %754 = arith.mulf %752, %753 : vector<8x8x4xf32>
    %755 = arith.addf %750, %754 : vector<8x8x4xf32>
    %c0_925 = arith.constant 0 : index
    %c2_926 = arith.constant 2 : index
    %c1_927 = arith.constant 1 : index
    %c0_928 = arith.constant 0 : index
    %756 = vector.load %arg4[%c0_925, %c2_926, %c1_927, %c0_928] : memref<1x12x12x4xf32, #tpu.memory_space<vmem>>, vector<1x8x8x4xf32>
    %757 = vector.shape_cast %756 : vector<1x8x8x4xf32> to vector<8x8x4xf32>
    %758 = vector.broadcast %672 : vector<1x1x4xf32> to vector<8x8x4xf32>
    %759 = arith.mulf %757, %758 : vector<8x8x4xf32>
    %760 = arith.addf %755, %759 : vector<8x8x4xf32>
    %c0_929 = arith.constant 0 : index
    %c2_930 = arith.constant 2 : index
    %c1_931 = arith.constant 1 : index
    %c0_932 = arith.constant 0 : index
    %761 = vector.load %arg5[%c0_929, %c2_930, %c1_931, %c0_932] : memref<1x12x12x4xf32, #tpu.memory_space<vmem>>, vector<1x8x8x4xf32>
    %762 = vector.shape_cast %761 : vector<1x8x8x4xf32> to vector<8x8x4xf32>
    %763 = vector.broadcast %673 : vector<1x1x4xf32> to vector<8x8x4xf32>
    %764 = arith.mulf %762, %763 : vector<8x8x4xf32>
    %765 = arith.addf %760, %764 : vector<8x8x4xf32>
    %c0_933 = arith.constant 0 : index
    %c2_934 = arith.constant 2 : index
    %c2_935 = arith.constant 2 : index
    %c0_936 = arith.constant 0 : index
    %766 = vector.load %arg4[%c0_933, %c2_934, %c2_935, %c0_936] : memref<1x12x12x4xf32, #tpu.memory_space<vmem>>, vector<1x8x8x4xf32>
    %767 = vector.shape_cast %766 : vector<1x8x8x4xf32> to vector<8x8x4xf32>
    %768 = vector.broadcast %674 : vector<1x1x4xf32> to vector<8x8x4xf32>
    %769 = arith.mulf %767, %768 : vector<8x8x4xf32>
    %770 = arith.addf %765, %769 : vector<8x8x4xf32>
    %c0_937 = arith.constant 0 : index
    %c2_938 = arith.constant 2 : index
    %c2_939 = arith.constant 2 : index
    %c0_940 = arith.constant 0 : index
    %771 = vector.load %arg5[%c0_937, %c2_938, %c2_939, %c0_940] : memref<1x12x12x4xf32, #tpu.memory_space<vmem>>, vector<1x8x8x4xf32>
    %772 = vector.shape_cast %771 : vector<1x8x8x4xf32> to vector<8x8x4xf32>
    %773 = vector.broadcast %675 : vector<1x1x4xf32> to vector<8x8x4xf32>
    %774 = arith.mulf %772, %773 : vector<8x8x4xf32>
    %775 = arith.addf %770, %774 : vector<8x8x4xf32>
    %c0_941 = arith.constant 0 : index
    %c2_942 = arith.constant 2 : index
    %c3_943 = arith.constant 3 : index
    %c0_944 = arith.constant 0 : index
    %776 = vector.load %arg4[%c0_941, %c2_942, %c3_943, %c0_944] : memref<1x12x12x4xf32, #tpu.memory_space<vmem>>, vector<1x8x8x4xf32>
    %777 = vector.shape_cast %776 : vector<1x8x8x4xf32> to vector<8x8x4xf32>
    %778 = vector.broadcast %676 : vector<1x1x4xf32> to vector<8x8x4xf32>
    %779 = arith.mulf %777, %778 : vector<8x8x4xf32>
    %780 = arith.addf %775, %779 : vector<8x8x4xf32>
    %c0_945 = arith.constant 0 : index
    %c3_946 = arith.constant 3 : index
    %c1_947 = arith.constant 1 : index
    %c0_948 = arith.constant 0 : index
    %781 = vector.load %arg2[%c0_945, %c3_946, %c1_947, %c0_948] : memref<1x12x12x4xf32, #tpu.memory_space<vmem>>, vector<1x8x8x4xf32>
    %782 = vector.shape_cast %781 : vector<1x8x8x4xf32> to vector<8x8x4xf32>
    %783 = vector.broadcast %677 : vector<1x1x4xf32> to vector<8x8x4xf32>
    %784 = arith.mulf %782, %783 : vector<8x8x4xf32>
    %785 = arith.addf %780, %784 : vector<8x8x4xf32>
    %c0_949 = arith.constant 0 : index
    %c3_950 = arith.constant 3 : index
    %c1_951 = arith.constant 1 : index
    %c0_952 = arith.constant 0 : index
    %786 = vector.load %arg3[%c0_949, %c3_950, %c1_951, %c0_952] : memref<1x12x12x4xf32, #tpu.memory_space<vmem>>, vector<1x8x8x4xf32>
    %787 = vector.shape_cast %786 : vector<1x8x8x4xf32> to vector<8x8x4xf32>
    %788 = vector.broadcast %678 : vector<1x1x4xf32> to vector<8x8x4xf32>
    %789 = arith.mulf %787, %788 : vector<8x8x4xf32>
    %790 = arith.addf %785, %789 : vector<8x8x4xf32>
    %c0_953 = arith.constant 0 : index
    %c3_954 = arith.constant 3 : index
    %c2_955 = arith.constant 2 : index
    %c0_956 = arith.constant 0 : index
    %791 = vector.load %arg2[%c0_953, %c3_954, %c2_955, %c0_956] : memref<1x12x12x4xf32, #tpu.memory_space<vmem>>, vector<1x8x8x4xf32>
    %792 = vector.shape_cast %791 : vector<1x8x8x4xf32> to vector<8x8x4xf32>
    %793 = vector.broadcast %679 : vector<1x1x4xf32> to vector<8x8x4xf32>
    %794 = arith.mulf %792, %793 : vector<8x8x4xf32>
    %795 = arith.addf %790, %794 : vector<8x8x4xf32>
    %c0_957 = arith.constant 0 : index
    %c3_958 = arith.constant 3 : index
    %c2_959 = arith.constant 2 : index
    %c0_960 = arith.constant 0 : index
    %796 = vector.load %arg3[%c0_957, %c3_958, %c2_959, %c0_960] : memref<1x12x12x4xf32, #tpu.memory_space<vmem>>, vector<1x8x8x4xf32>
    %797 = vector.shape_cast %796 : vector<1x8x8x4xf32> to vector<8x8x4xf32>
    %798 = vector.broadcast %680 : vector<1x1x4xf32> to vector<8x8x4xf32>
    %799 = arith.mulf %797, %798 : vector<8x8x4xf32>
    %800 = arith.addf %795, %799 : vector<8x8x4xf32>
    %c0_961 = arith.constant 0 : index
    %c3_962 = arith.constant 3 : index
    %c3_963 = arith.constant 3 : index
    %c0_964 = arith.constant 0 : index
    %801 = vector.load %arg2[%c0_961, %c3_962, %c3_963, %c0_964] : memref<1x12x12x4xf32, #tpu.memory_space<vmem>>, vector<1x8x8x4xf32>
    %802 = vector.shape_cast %801 : vector<1x8x8x4xf32> to vector<8x8x4xf32>
    %803 = vector.broadcast %681 : vector<1x1x4xf32> to vector<8x8x4xf32>
    %804 = arith.mulf %802, %803 : vector<8x8x4xf32>
    %805 = arith.addf %800, %804 : vector<8x8x4xf32>
    %806 = vector.broadcast %656 : vector<1x1x4xf32> to vector<8x8x4xf32>
    %807 = arith.addf %805, %806 : vector<8x8x4xf32>
    %c0_965 = arith.constant 0 : index
    %c0_966 = arith.constant 0 : index
    %c0_967 = arith.constant 0 : index
    %c0_968 = arith.constant 0 : index
    %808 = vector.load %arg14[%c0_965, %c0_966, %c0_967, %c0_968] : memref<4x8x8x4xf32, #tpu.memory_space<vmem>>, vector<1x8x8x4xf32>
    %809 = vector.shape_cast %808 : vector<1x8x8x4xf32> to vector<8x8x4xf32>
    %810 = arith.addf %807, %809 : vector<8x8x4xf32>
    %c1_969 = arith.constant 1 : index
    %c0_970 = arith.constant 0 : index
    %c0_971 = arith.constant 0 : index
    %c0_972 = arith.constant 0 : index
    %811 = vector.load %arg14[%c1_969, %c0_970, %c0_971, %c0_972] : memref<4x8x8x4xf32, #tpu.memory_space<vmem>>, vector<1x8x8x4xf32>
    %812 = vector.shape_cast %811 : vector<1x8x8x4xf32> to vector<8x8x4xf32>
    %813 = arith.addf %810, %812 : vector<8x8x4xf32>
    %c2_973 = arith.constant 2 : index
    %c0_974 = arith.constant 0 : index
    %c0_975 = arith.constant 0 : index
    %c0_976 = arith.constant 0 : index
    %814 = vector.load %arg14[%c2_973, %c0_974, %c0_975, %c0_976] : memref<4x8x8x4xf32, #tpu.memory_space<vmem>>, vector<1x8x8x4xf32>
    %815 = vector.shape_cast %814 : vector<1x8x8x4xf32> to vector<8x8x4xf32>
    %816 = arith.addf %813, %815 : vector<8x8x4xf32>
    %c3_977 = arith.constant 3 : index
    %c0_978 = arith.constant 0 : index
    %c0_979 = arith.constant 0 : index
    %c0_980 = arith.constant 0 : index
    %817 = vector.load %arg14[%c3_977, %c0_978, %c0_979, %c0_980] : memref<4x8x8x4xf32, #tpu.memory_space<vmem>>, vector<1x8x8x4xf32>
    %818 = vector.shape_cast %817 : vector<1x8x8x4xf32> to vector<8x8x4xf32>
    %819 = arith.addf %816, %818 : vector<8x8x4xf32>
    %c0_981 = arith.constant 0 : index
    %c0_982 = arith.constant 0 : index
    %c0_983 = arith.constant 0 : index
    %c0_984 = arith.constant 0 : index
    %820 = vector.load %arg9[%c0_981, %c0_982, %c0_983, %c0_984] : memref<1x8x8x4xf32, #tpu.memory_space<vmem>>, vector<1x8x8x4xf32>
    %821 = vector.shape_cast %820 : vector<1x8x8x4xf32> to vector<8x8x4xf32>
    %822 = vector.shape_cast %819 : vector<8x8x4xf32> to vector<1x8x8x4xf32>
    tpu.vector_store %arg9[%c0_981, %c0_982, %c0_983, %c0_984], %822 {strides = array<i32>} : memref<1x8x8x4xf32, #tpu.memory_space<vmem>>, vector<1x8x8x4xf32>,
    %c0_985 = arith.constant 0 : index
    %c1_986 = arith.constant 1 : index
    %c1_987 = arith.constant 1 : index
    %c0_988 = arith.constant 0 : index
    %823 = vector.load %arg3[%c0_985, %c1_986, %c1_987, %c0_988] : memref<1x12x12x4xf32, #tpu.memory_space<vmem>>, vector<1x8x8x4xf32>
    %824 = vector.shape_cast %823 : vector<1x8x8x4xf32> to vector<8x8x4xf32>
    %825 = vector.broadcast %657 : vector<1x1x4xf32> to vector<8x8x4xf32>
    %826 = arith.mulf %824, %825 : vector<8x8x4xf32>
    %c0_989 = arith.constant 0 : index
    %c1_990 = arith.constant 1 : index
    %c2_991 = arith.constant 2 : index
    %c0_992 = arith.constant 0 : index
    %827 = vector.load %arg2[%c0_989, %c1_990, %c2_991, %c0_992] : memref<1x12x12x4xf32, #tpu.memory_space<vmem>>, vector<1x8x8x4xf32>
    %828 = vector.shape_cast %827 : vector<1x8x8x4xf32> to vector<8x8x4xf32>
    %829 = vector.broadcast %658 : vector<1x1x4xf32> to vector<8x8x4xf32>
    %830 = arith.mulf %828, %829 : vector<8x8x4xf32>
    %831 = arith.addf %826, %830 : vector<8x8x4xf32>
    %c0_993 = arith.constant 0 : index
    %c1_994 = arith.constant 1 : index
    %c2_995 = arith.constant 2 : index
    %c0_996 = arith.constant 0 : index
    %832 = vector.load %arg3[%c0_993, %c1_994, %c2_995, %c0_996] : memref<1x12x12x4xf32, #tpu.memory_space<vmem>>, vector<1x8x8x4xf32>
    %833 = vector.shape_cast %832 : vector<1x8x8x4xf32> to vector<8x8x4xf32>
    %834 = vector.broadcast %659 : vector<1x1x4xf32> to vector<8x8x4xf32>
    %835 = arith.mulf %833, %834 : vector<8x8x4xf32>
    %836 = arith.addf %831, %835 : vector<8x8x4xf32>
    %c0_997 = arith.constant 0 : index
    %c1_998 = arith.constant 1 : index
    %c3_999 = arith.constant 3 : index
    %c0_1000 = arith.constant 0 : index
    %837 = vector.load %arg2[%c0_997, %c1_998, %c3_999, %c0_1000] : memref<1x12x12x4xf32, #tpu.memory_space<vmem>>, vector<1x8x8x4xf32>
    %838 = vector.shape_cast %837 : vector<1x8x8x4xf32> to vector<8x8x4xf32>
    %839 = vector.broadcast %660 : vector<1x1x4xf32> to vector<8x8x4xf32>
    %840 = arith.mulf %838, %839 : vector<8x8x4xf32>
    %841 = arith.addf %836, %840 : vector<8x8x4xf32>
    %c0_1001 = arith.constant 0 : index
    %c1_1002 = arith.constant 1 : index
    %c3_1003 = arith.constant 3 : index
    %c0_1004 = arith.constant 0 : index
    %842 = vector.load %arg3[%c0_1001, %c1_1002, %c3_1003, %c0_1004] : memref<1x12x12x4xf32, #tpu.memory_space<vmem>>, vector<1x8x8x4xf32>
    %843 = vector.shape_cast %842 : vector<1x8x8x4xf32> to vector<8x8x4xf32>
    %844 = vector.broadcast %661 : vector<1x1x4xf32> to vector<8x8x4xf32>
    %845 = arith.mulf %843, %844 : vector<8x8x4xf32>
    %846 = arith.addf %841, %845 : vector<8x8x4xf32>
    %c0_1005 = arith.constant 0 : index
    %c1_1006 = arith.constant 1 : index
    %c1_1007 = arith.constant 1 : index
    %c0_1008 = arith.constant 0 : index
    %847 = vector.load %arg5[%c0_1005, %c1_1006, %c1_1007, %c0_1008] : memref<1x12x12x4xf32, #tpu.memory_space<vmem>>, vector<1x8x8x4xf32>
    %848 = vector.shape_cast %847 : vector<1x8x8x4xf32> to vector<8x8x4xf32>
    %849 = vector.broadcast %662 : vector<1x1x4xf32> to vector<8x8x4xf32>
    %850 = arith.mulf %848, %849 : vector<8x8x4xf32>
    %851 = arith.addf %846, %850 : vector<8x8x4xf32>
    %c0_1009 = arith.constant 0 : index
    %c1_1010 = arith.constant 1 : index
    %c2_1011 = arith.constant 2 : index
    %c0_1012 = arith.constant 0 : index
    %852 = vector.load %arg4[%c0_1009, %c1_1010, %c2_1011, %c0_1012] : memref<1x12x12x4xf32, #tpu.memory_space<vmem>>, vector<1x8x8x4xf32>
    %853 = vector.shape_cast %852 : vector<1x8x8x4xf32> to vector<8x8x4xf32>
    %854 = vector.broadcast %663 : vector<1x1x4xf32> to vector<8x8x4xf32>
    %855 = arith.mulf %853, %854 : vector<8x8x4xf32>
    %856 = arith.addf %851, %855 : vector<8x8x4xf32>
    %c0_1013 = arith.constant 0 : index
    %c1_1014 = arith.constant 1 : index
    %c2_1015 = arith.constant 2 : index
    %c0_1016 = arith.constant 0 : index
    %857 = vector.load %arg5[%c0_1013, %c1_1014, %c2_1015, %c0_1016] : memref<1x12x12x4xf32, #tpu.memory_space<vmem>>, vector<1x8x8x4xf32>
    %858 = vector.shape_cast %857 : vector<1x8x8x4xf32> to vector<8x8x4xf32>
    %859 = vector.broadcast %664 : vector<1x1x4xf32> to vector<8x8x4xf32>
    %860 = arith.mulf %858, %859 : vector<8x8x4xf32>
    %861 = arith.addf %856, %860 : vector<8x8x4xf32>
    %c0_1017 = arith.constant 0 : index
    %c1_1018 = arith.constant 1 : index
    %c3_1019 = arith.constant 3 : index
    %c0_1020 = arith.constant 0 : index
    %862 = vector.load %arg4[%c0_1017, %c1_1018, %c3_1019, %c0_1020] : memref<1x12x12x4xf32, #tpu.memory_space<vmem>>, vector<1x8x8x4xf32>
    %863 = vector.shape_cast %862 : vector<1x8x8x4xf32> to vector<8x8x4xf32>
    %864 = vector.broadcast %665 : vector<1x1x4xf32> to vector<8x8x4xf32>
    %865 = arith.mulf %863, %864 : vector<8x8x4xf32>
    %866 = arith.addf %861, %865 : vector<8x8x4xf32>
    %c0_1021 = arith.constant 0 : index
    %c1_1022 = arith.constant 1 : index
    %c3_1023 = arith.constant 3 : index
    %c0_1024 = arith.constant 0 : index
    %867 = vector.load %arg5[%c0_1021, %c1_1022, %c3_1023, %c0_1024] : memref<1x12x12x4xf32, #tpu.memory_space<vmem>>, vector<1x8x8x4xf32>
    %868 = vector.shape_cast %867 : vector<1x8x8x4xf32> to vector<8x8x4xf32>
    %869 = vector.broadcast %666 : vector<1x1x4xf32> to vector<8x8x4xf32>
    %870 = arith.mulf %868, %869 : vector<8x8x4xf32>
    %871 = arith.addf %866, %870 : vector<8x8x4xf32>
    %c0_1025 = arith.constant 0 : index
    %c2_1026 = arith.constant 2 : index
    %c1_1027 = arith.constant 1 : index
    %c0_1028 = arith.constant 0 : index
    %872 = vector.load %arg3[%c0_1025, %c2_1026, %c1_1027, %c0_1028] : memref<1x12x12x4xf32, #tpu.memory_space<vmem>>, vector<1x8x8x4xf32>
    %873 = vector.shape_cast %872 : vector<1x8x8x4xf32> to vector<8x8x4xf32>
    %874 = vector.broadcast %667 : vector<1x1x4xf32> to vector<8x8x4xf32>
    %875 = arith.mulf %873, %874 : vector<8x8x4xf32>
    %876 = arith.addf %871, %875 : vector<8x8x4xf32>
    %c0_1029 = arith.constant 0 : index
    %c2_1030 = arith.constant 2 : index
    %c2_1031 = arith.constant 2 : index
    %c0_1032 = arith.constant 0 : index
    %877 = vector.load %arg2[%c0_1029, %c2_1030, %c2_1031, %c0_1032] : memref<1x12x12x4xf32, #tpu.memory_space<vmem>>, vector<1x8x8x4xf32>
    %878 = vector.shape_cast %877 : vector<1x8x8x4xf32> to vector<8x8x4xf32>
    %879 = vector.broadcast %668 : vector<1x1x4xf32> to vector<8x8x4xf32>
    %880 = arith.mulf %878, %879 : vector<8x8x4xf32>
    %881 = arith.addf %876, %880 : vector<8x8x4xf32>
    %c0_1033 = arith.constant 0 : index
    %c2_1034 = arith.constant 2 : index
    %c2_1035 = arith.constant 2 : index
    %c0_1036 = arith.constant 0 : index
    %882 = vector.load %arg3[%c0_1033, %c2_1034, %c2_1035, %c0_1036] : memref<1x12x12x4xf32, #tpu.memory_space<vmem>>, vector<1x8x8x4xf32>
    %883 = vector.shape_cast %882 : vector<1x8x8x4xf32> to vector<8x8x4xf32>
    %884 = vector.broadcast %669 : vector<1x1x4xf32> to vector<8x8x4xf32>
    %885 = arith.mulf %883, %884 : vector<8x8x4xf32>
    %886 = arith.addf %881, %885 : vector<8x8x4xf32>
    %c0_1037 = arith.constant 0 : index
    %c2_1038 = arith.constant 2 : index
    %c3_1039 = arith.constant 3 : index
    %c0_1040 = arith.constant 0 : index
    %887 = vector.load %arg2[%c0_1037, %c2_1038, %c3_1039, %c0_1040] : memref<1x12x12x4xf32, #tpu.memory_space<vmem>>, vector<1x8x8x4xf32>
    %888 = vector.shape_cast %887 : vector<1x8x8x4xf32> to vector<8x8x4xf32>
    %889 = vector.broadcast %670 : vector<1x1x4xf32> to vector<8x8x4xf32>
    %890 = arith.mulf %888, %889 : vector<8x8x4xf32>
    %891 = arith.addf %886, %890 : vector<8x8x4xf32>
    %c0_1041 = arith.constant 0 : index
    %c2_1042 = arith.constant 2 : index
    %c3_1043 = arith.constant 3 : index
    %c0_1044 = arith.constant 0 : index
    %892 = vector.load %arg3[%c0_1041, %c2_1042, %c3_1043, %c0_1044] : memref<1x12x12x4xf32, #tpu.memory_space<vmem>>, vector<1x8x8x4xf32>
    %893 = vector.shape_cast %892 : vector<1x8x8x4xf32> to vector<8x8x4xf32>
    %894 = vector.broadcast %671 : vector<1x1x4xf32> to vector<8x8x4xf32>
    %895 = arith.mulf %893, %894 : vector<8x8x4xf32>
    %896 = arith.addf %891, %895 : vector<8x8x4xf32>
    %c0_1045 = arith.constant 0 : index
    %c2_1046 = arith.constant 2 : index
    %c1_1047 = arith.constant 1 : index
    %c0_1048 = arith.constant 0 : index
    %897 = vector.load %arg5[%c0_1045, %c2_1046, %c1_1047, %c0_1048] : memref<1x12x12x4xf32, #tpu.memory_space<vmem>>, vector<1x8x8x4xf32>
    %898 = vector.shape_cast %897 : vector<1x8x8x4xf32> to vector<8x8x4xf32>
    %899 = vector.broadcast %672 : vector<1x1x4xf32> to vector<8x8x4xf32>
    %900 = arith.mulf %898, %899 : vector<8x8x4xf32>
    %901 = arith.addf %896, %900 : vector<8x8x4xf32>
    %c0_1049 = arith.constant 0 : index
    %c2_1050 = arith.constant 2 : index
    %c2_1051 = arith.constant 2 : index
    %c0_1052 = arith.constant 0 : index
    %902 = vector.load %arg4[%c0_1049, %c2_1050, %c2_1051, %c0_1052] : memref<1x12x12x4xf32, #tpu.memory_space<vmem>>, vector<1x8x8x4xf32>
    %903 = vector.shape_cast %902 : vector<1x8x8x4xf32> to vector<8x8x4xf32>
    %904 = vector.broadcast %673 : vector<1x1x4xf32> to vector<8x8x4xf32>
    %905 = arith.mulf %903, %904 : vector<8x8x4xf32>
    %906 = arith.addf %901, %905 : vector<8x8x4xf32>
    %c0_1053 = arith.constant 0 : index
    %c2_1054 = arith.constant 2 : index
    %c2_1055 = arith.constant 2 : index
    %c0_1056 = arith.constant 0 : index
    %907 = vector.load %arg5[%c0_1053, %c2_1054, %c2_1055, %c0_1056] : memref<1x12x12x4xf32, #tpu.memory_space<vmem>>, vector<1x8x8x4xf32>
    %908 = vector.shape_cast %907 : vector<1x8x8x4xf32> to vector<8x8x4xf32>
    %909 = vector.broadcast %674 : vector<1x1x4xf32> to vector<8x8x4xf32>
    %910 = arith.mulf %908, %909 : vector<8x8x4xf32>
    %911 = arith.addf %906, %910 : vector<8x8x4xf32>
    %c0_1057 = arith.constant 0 : index
    %c2_1058 = arith.constant 2 : index
    %c3_1059 = arith.constant 3 : index
    %c0_1060 = arith.constant 0 : index
    %912 = vector.load %arg4[%c0_1057, %c2_1058, %c3_1059, %c0_1060] : memref<1x12x12x4xf32, #tpu.memory_space<vmem>>, vector<1x8x8x4xf32>
    %913 = vector.shape_cast %912 : vector<1x8x8x4xf32> to vector<8x8x4xf32>
    %914 = vector.broadcast %675 : vector<1x1x4xf32> to vector<8x8x4xf32>
    %915 = arith.mulf %913, %914 : vector<8x8x4xf32>
    %916 = arith.addf %911, %915 : vector<8x8x4xf32>
    %c0_1061 = arith.constant 0 : index
    %c2_1062 = arith.constant 2 : index
    %c3_1063 = arith.constant 3 : index
    %c0_1064 = arith.constant 0 : index
    %917 = vector.load %arg5[%c0_1061, %c2_1062, %c3_1063, %c0_1064] : memref<1x12x12x4xf32, #tpu.memory_space<vmem>>, vector<1x8x8x4xf32>
    %918 = vector.shape_cast %917 : vector<1x8x8x4xf32> to vector<8x8x4xf32>
    %919 = vector.broadcast %676 : vector<1x1x4xf32> to vector<8x8x4xf32>
    %920 = arith.mulf %918, %919 : vector<8x8x4xf32>
    %921 = arith.addf %916, %920 : vector<8x8x4xf32>
    %c0_1065 = arith.constant 0 : index
    %c3_1066 = arith.constant 3 : index
    %c1_1067 = arith.constant 1 : index
    %c0_1068 = arith.constant 0 : index
    %922 = vector.load %arg3[%c0_1065, %c3_1066, %c1_1067, %c0_1068] : memref<1x12x12x4xf32, #tpu.memory_space<vmem>>, vector<1x8x8x4xf32>
    %923 = vector.shape_cast %922 : vector<1x8x8x4xf32> to vector<8x8x4xf32>
    %924 = vector.broadcast %677 : vector<1x1x4xf32> to vector<8x8x4xf32>
    %925 = arith.mulf %923, %924 : vector<8x8x4xf32>
    %926 = arith.addf %921, %925 : vector<8x8x4xf32>
    %c0_1069 = arith.constant 0 : index
    %c3_1070 = arith.constant 3 : index
    %c2_1071 = arith.constant 2 : index
    %c0_1072 = arith.constant 0 : index
    %927 = vector.load %arg2[%c0_1069, %c3_1070, %c2_1071, %c0_1072] : memref<1x12x12x4xf32, #tpu.memory_space<vmem>>, vector<1x8x8x4xf32>
    %928 = vector.shape_cast %927 : vector<1x8x8x4xf32> to vector<8x8x4xf32>
    %929 = vector.broadcast %678 : vector<1x1x4xf32> to vector<8x8x4xf32>
    %930 = arith.mulf %928, %929 : vector<8x8x4xf32>
    %931 = arith.addf %926, %930 : vector<8x8x4xf32>
    %c0_1073 = arith.constant 0 : index
    %c3_1074 = arith.constant 3 : index
    %c2_1075 = arith.constant 2 : index
    %c0_1076 = arith.constant 0 : index
    %932 = vector.load %arg3[%c0_1073, %c3_1074, %c2_1075, %c0_1076] : memref<1x12x12x4xf32, #tpu.memory_space<vmem>>, vector<1x8x8x4xf32>
    %933 = vector.shape_cast %932 : vector<1x8x8x4xf32> to vector<8x8x4xf32>
    %934 = vector.broadcast %679 : vector<1x1x4xf32> to vector<8x8x4xf32>
    %935 = arith.mulf %933, %934 : vector<8x8x4xf32>
    %936 = arith.addf %931, %935 : vector<8x8x4xf32>
    %c0_1077 = arith.constant 0 : index
    %c3_1078 = arith.constant 3 : index
    %c3_1079 = arith.constant 3 : index
    %c0_1080 = arith.constant 0 : index
    %937 = vector.load %arg2[%c0_1077, %c3_1078, %c3_1079, %c0_1080] : memref<1x12x12x4xf32, #tpu.memory_space<vmem>>, vector<1x8x8x4xf32>
    %938 = vector.shape_cast %937 : vector<1x8x8x4xf32> to vector<8x8x4xf32>
    %939 = vector.broadcast %680 : vector<1x1x4xf32> to vector<8x8x4xf32>
    %940 = arith.mulf %938, %939 : vector<8x8x4xf32>
    %941 = arith.addf %936, %940 : vector<8x8x4xf32>
    %c0_1081 = arith.constant 0 : index
    %c3_1082 = arith.constant 3 : index
    %c3_1083 = arith.constant 3 : index
    %c0_1084 = arith.constant 0 : index
    %942 = vector.load %arg3[%c0_1081, %c3_1082, %c3_1083, %c0_1084] : memref<1x12x12x4xf32, #tpu.memory_space<vmem>>, vector<1x8x8x4xf32>
    %943 = vector.shape_cast %942 : vector<1x8x8x4xf32> to vector<8x8x4xf32>
    %944 = vector.broadcast %681 : vector<1x1x4xf32> to vector<8x8x4xf32>
    %945 = arith.mulf %943, %944 : vector<8x8x4xf32>
    %946 = arith.addf %941, %945 : vector<8x8x4xf32>
    %947 = vector.broadcast %656 : vector<1x1x4xf32> to vector<8x8x4xf32>
    %948 = arith.addf %946, %947 : vector<8x8x4xf32>
    %c0_1085 = arith.constant 0 : index
    %c0_1086 = arith.constant 0 : index
    %c0_1087 = arith.constant 0 : index
    %c0_1088 = arith.constant 0 : index
    %949 = vector.load %arg14[%c0_1085, %c0_1086, %c0_1087, %c0_1088] : memref<4x8x8x4xf32, #tpu.memory_space<vmem>>, vector<1x8x8x4xf32>
    %950 = vector.shape_cast %949 : vector<1x8x8x4xf32> to vector<8x8x4xf32>
    %951 = arith.addf %948, %950 : vector<8x8x4xf32>
    %c1_1089 = arith.constant 1 : index
    %c0_1090 = arith.constant 0 : index
    %c0_1091 = arith.constant 0 : index
    %c0_1092 = arith.constant 0 : index
    %952 = vector.load %arg14[%c1_1089, %c0_1090, %c0_1091, %c0_1092] : memref<4x8x8x4xf32, #tpu.memory_space<vmem>>, vector<1x8x8x4xf32>
    %953 = vector.shape_cast %952 : vector<1x8x8x4xf32> to vector<8x8x4xf32>
    %954 = arith.addf %951, %953 : vector<8x8x4xf32>
    %c2_1093 = arith.constant 2 : index
    %c0_1094 = arith.constant 0 : index
    %c0_1095 = arith.constant 0 : index
    %c0_1096 = arith.constant 0 : index
    %955 = vector.load %arg14[%c2_1093, %c0_1094, %c0_1095, %c0_1096] : memref<4x8x8x4xf32, #tpu.memory_space<vmem>>, vector<1x8x8x4xf32>
    %956 = vector.shape_cast %955 : vector<1x8x8x4xf32> to vector<8x8x4xf32>
    %957 = arith.subf %954, %956 : vector<8x8x4xf32>
    %c3_1097 = arith.constant 3 : index
    %c0_1098 = arith.constant 0 : index
    %c0_1099 = arith.constant 0 : index
    %c0_1100 = arith.constant 0 : index
    %958 = vector.load %arg14[%c3_1097, %c0_1098, %c0_1099, %c0_1100] : memref<4x8x8x4xf32, #tpu.memory_space<vmem>>, vector<1x8x8x4xf32>
    %959 = vector.shape_cast %958 : vector<1x8x8x4xf32> to vector<8x8x4xf32>
    %960 = arith.subf %957, %959 : vector<8x8x4xf32>
    %c0_1101 = arith.constant 0 : index
    %c0_1102 = arith.constant 0 : index
    %c0_1103 = arith.constant 0 : index
    %c0_1104 = arith.constant 0 : index
    %961 = vector.load %arg10[%c0_1101, %c0_1102, %c0_1103, %c0_1104] : memref<1x8x8x4xf32, #tpu.memory_space<vmem>>, vector<1x8x8x4xf32>
    %962 = vector.shape_cast %961 : vector<1x8x8x4xf32> to vector<8x8x4xf32>
    %963 = vector.shape_cast %960 : vector<8x8x4xf32> to vector<1x8x8x4xf32>
    tpu.vector_store %arg10[%c0_1101, %c0_1102, %c0_1103, %c0_1104], %963 {strides = array<i32>} : memref<1x8x8x4xf32, #tpu.memory_space<vmem>>, vector<1x8x8x4xf32>,
    %c0_1105 = arith.constant 0 : index
    %c1_1106 = arith.constant 1 : index
    %c1_1107 = arith.constant 1 : index
    %c0_1108 = arith.constant 0 : index
    %964 = vector.load %arg4[%c0_1105, %c1_1106, %c1_1107, %c0_1108] : memref<1x12x12x4xf32, #tpu.memory_space<vmem>>, vector<1x8x8x4xf32>
    %965 = vector.shape_cast %964 : vector<1x8x8x4xf32> to vector<8x8x4xf32>
    %966 = vector.broadcast %657 : vector<1x1x4xf32> to vector<8x8x4xf32>
    %967 = arith.mulf %965, %966 : vector<8x8x4xf32>
    %c0_1109 = arith.constant 0 : index
    %c1_1110 = arith.constant 1 : index
    %c1_1111 = arith.constant 1 : index
    %c0_1112 = arith.constant 0 : index
    %968 = vector.load %arg5[%c0_1109, %c1_1110, %c1_1111, %c0_1112] : memref<1x12x12x4xf32, #tpu.memory_space<vmem>>, vector<1x8x8x4xf32>
    %969 = vector.shape_cast %968 : vector<1x8x8x4xf32> to vector<8x8x4xf32>
    %970 = vector.broadcast %658 : vector<1x1x4xf32> to vector<8x8x4xf32>
    %971 = arith.mulf %969, %970 : vector<8x8x4xf32>
    %972 = arith.addf %967, %971 : vector<8x8x4xf32>
    %c0_1113 = arith.constant 0 : index
    %c1_1114 = arith.constant 1 : index
    %c2_1115 = arith.constant 2 : index
    %c0_1116 = arith.constant 0 : index
    %973 = vector.load %arg4[%c0_1113, %c1_1114, %c2_1115, %c0_1116] : memref<1x12x12x4xf32, #tpu.memory_space<vmem>>, vector<1x8x8x4xf32>
    %974 = vector.shape_cast %973 : vector<1x8x8x4xf32> to vector<8x8x4xf32>
    %975 = vector.broadcast %659 : vector<1x1x4xf32> to vector<8x8x4xf32>
    %976 = arith.mulf %974, %975 : vector<8x8x4xf32>
    %977 = arith.addf %972, %976 : vector<8x8x4xf32>
    %c0_1117 = arith.constant 0 : index
    %c1_1118 = arith.constant 1 : index
    %c2_1119 = arith.constant 2 : index
    %c0_1120 = arith.constant 0 : index
    %978 = vector.load %arg5[%c0_1117, %c1_1118, %c2_1119, %c0_1120] : memref<1x12x12x4xf32, #tpu.memory_space<vmem>>, vector<1x8x8x4xf32>
    %979 = vector.shape_cast %978 : vector<1x8x8x4xf32> to vector<8x8x4xf32>
    %980 = vector.broadcast %660 : vector<1x1x4xf32> to vector<8x8x4xf32>
    %981 = arith.mulf %979, %980 : vector<8x8x4xf32>
    %982 = arith.addf %977, %981 : vector<8x8x4xf32>
    %c0_1121 = arith.constant 0 : index
    %c1_1122 = arith.constant 1 : index
    %c3_1123 = arith.constant 3 : index
    %c0_1124 = arith.constant 0 : index
    %983 = vector.load %arg4[%c0_1121, %c1_1122, %c3_1123, %c0_1124] : memref<1x12x12x4xf32, #tpu.memory_space<vmem>>, vector<1x8x8x4xf32>
    %984 = vector.shape_cast %983 : vector<1x8x8x4xf32> to vector<8x8x4xf32>
    %985 = vector.broadcast %661 : vector<1x1x4xf32> to vector<8x8x4xf32>
    %986 = arith.mulf %984, %985 : vector<8x8x4xf32>
    %987 = arith.addf %982, %986 : vector<8x8x4xf32>
    %c0_1125 = arith.constant 0 : index
    %c2_1126 = arith.constant 2 : index
    %c1_1127 = arith.constant 1 : index
    %c0_1128 = arith.constant 0 : index
    %988 = vector.load %arg2[%c0_1125, %c2_1126, %c1_1127, %c0_1128] : memref<1x12x12x4xf32, #tpu.memory_space<vmem>>, vector<1x8x8x4xf32>
    %989 = vector.shape_cast %988 : vector<1x8x8x4xf32> to vector<8x8x4xf32>
    %990 = vector.broadcast %662 : vector<1x1x4xf32> to vector<8x8x4xf32>
    %991 = arith.mulf %989, %990 : vector<8x8x4xf32>
    %992 = arith.addf %987, %991 : vector<8x8x4xf32>
    %c0_1129 = arith.constant 0 : index
    %c2_1130 = arith.constant 2 : index
    %c1_1131 = arith.constant 1 : index
    %c0_1132 = arith.constant 0 : index
    %993 = vector.load %arg3[%c0_1129, %c2_1130, %c1_1131, %c0_1132] : memref<1x12x12x4xf32, #tpu.memory_space<vmem>>, vector<1x8x8x4xf32>
    %994 = vector.shape_cast %993 : vector<1x8x8x4xf32> to vector<8x8x4xf32>
    %995 = vector.broadcast %663 : vector<1x1x4xf32> to vector<8x8x4xf32>
    %996 = arith.mulf %994, %995 : vector<8x8x4xf32>
    %997 = arith.addf %992, %996 : vector<8x8x4xf32>
    %c0_1133 = arith.constant 0 : index
    %c2_1134 = arith.constant 2 : index
    %c2_1135 = arith.constant 2 : index
    %c0_1136 = arith.constant 0 : index
    %998 = vector.load %arg2[%c0_1133, %c2_1134, %c2_1135, %c0_1136] : memref<1x12x12x4xf32, #tpu.memory_space<vmem>>, vector<1x8x8x4xf32>
    %999 = vector.shape_cast %998 : vector<1x8x8x4xf32> to vector<8x8x4xf32>
    %1000 = vector.broadcast %664 : vector<1x1x4xf32> to vector<8x8x4xf32>
    %1001 = arith.mulf %999, %1000 : vector<8x8x4xf32>
    %1002 = arith.addf %997, %1001 : vector<8x8x4xf32>
    %c0_1137 = arith.constant 0 : index
    %c2_1138 = arith.constant 2 : index
    %c2_1139 = arith.constant 2 : index
    %c0_1140 = arith.constant 0 : index
    %1003 = vector.load %arg3[%c0_1137, %c2_1138, %c2_1139, %c0_1140] : memref<1x12x12x4xf32, #tpu.memory_space<vmem>>, vector<1x8x8x4xf32>
    %1004 = vector.shape_cast %1003 : vector<1x8x8x4xf32> to vector<8x8x4xf32>
    %1005 = vector.broadcast %665 : vector<1x1x4xf32> to vector<8x8x4xf32>
    %1006 = arith.mulf %1004, %1005 : vector<8x8x4xf32>
    %1007 = arith.addf %1002, %1006 : vector<8x8x4xf32>
    %c0_1141 = arith.constant 0 : index
    %c2_1142 = arith.constant 2 : index
    %c3_1143 = arith.constant 3 : index
    %c0_1144 = arith.constant 0 : index
    %1008 = vector.load %arg2[%c0_1141, %c2_1142, %c3_1143, %c0_1144] : memref<1x12x12x4xf32, #tpu.memory_space<vmem>>, vector<1x8x8x4xf32>
    %1009 = vector.shape_cast %1008 : vector<1x8x8x4xf32> to vector<8x8x4xf32>
    %1010 = vector.broadcast %666 : vector<1x1x4xf32> to vector<8x8x4xf32>
    %1011 = arith.mulf %1009, %1010 : vector<8x8x4xf32>
    %1012 = arith.addf %1007, %1011 : vector<8x8x4xf32>
    %c0_1145 = arith.constant 0 : index
    %c2_1146 = arith.constant 2 : index
    %c1_1147 = arith.constant 1 : index
    %c0_1148 = arith.constant 0 : index
    %1013 = vector.load %arg4[%c0_1145, %c2_1146, %c1_1147, %c0_1148] : memref<1x12x12x4xf32, #tpu.memory_space<vmem>>, vector<1x8x8x4xf32>
    %1014 = vector.shape_cast %1013 : vector<1x8x8x4xf32> to vector<8x8x4xf32>
    %1015 = vector.broadcast %667 : vector<1x1x4xf32> to vector<8x8x4xf32>
    %1016 = arith.mulf %1014, %1015 : vector<8x8x4xf32>
    %1017 = arith.addf %1012, %1016 : vector<8x8x4xf32>
    %c0_1149 = arith.constant 0 : index
    %c2_1150 = arith.constant 2 : index
    %c1_1151 = arith.constant 1 : index
    %c0_1152 = arith.constant 0 : index
    %1018 = vector.load %arg5[%c0_1149, %c2_1150, %c1_1151, %c0_1152] : memref<1x12x12x4xf32, #tpu.memory_space<vmem>>, vector<1x8x8x4xf32>
    %1019 = vector.shape_cast %1018 : vector<1x8x8x4xf32> to vector<8x8x4xf32>
    %1020 = vector.broadcast %668 : vector<1x1x4xf32> to vector<8x8x4xf32>
    %1021 = arith.mulf %1019, %1020 : vector<8x8x4xf32>
    %1022 = arith.addf %1017, %1021 : vector<8x8x4xf32>
    %c0_1153 = arith.constant 0 : index
    %c2_1154 = arith.constant 2 : index
    %c2_1155 = arith.constant 2 : index
    %c0_1156 = arith.constant 0 : index
    %1023 = vector.load %arg4[%c0_1153, %c2_1154, %c2_1155, %c0_1156] : memref<1x12x12x4xf32, #tpu.memory_space<vmem>>, vector<1x8x8x4xf32>
    %1024 = vector.shape_cast %1023 : vector<1x8x8x4xf32> to vector<8x8x4xf32>
    %1025 = vector.broadcast %669 : vector<1x1x4xf32> to vector<8x8x4xf32>
    %1026 = arith.mulf %1024, %1025 : vector<8x8x4xf32>
    %1027 = arith.addf %1022, %1026 : vector<8x8x4xf32>
    %c0_1157 = arith.constant 0 : index
    %c2_1158 = arith.constant 2 : index
    %c2_1159 = arith.constant 2 : index
    %c0_1160 = arith.constant 0 : index
    %1028 = vector.load %arg5[%c0_1157, %c2_1158, %c2_1159, %c0_1160] : memref<1x12x12x4xf32, #tpu.memory_space<vmem>>, vector<1x8x8x4xf32>
    %1029 = vector.shape_cast %1028 : vector<1x8x8x4xf32> to vector<8x8x4xf32>
    %1030 = vector.broadcast %670 : vector<1x1x4xf32> to vector<8x8x4xf32>
    %1031 = arith.mulf %1029, %1030 : vector<8x8x4xf32>
    %1032 = arith.addf %1027, %1031 : vector<8x8x4xf32>
    %c0_1161 = arith.constant 0 : index
    %c2_1162 = arith.constant 2 : index
    %c3_1163 = arith.constant 3 : index
    %c0_1164 = arith.constant 0 : index
    %1033 = vector.load %arg4[%c0_1161, %c2_1162, %c3_1163, %c0_1164] : memref<1x12x12x4xf32, #tpu.memory_space<vmem>>, vector<1x8x8x4xf32>
    %1034 = vector.shape_cast %1033 : vector<1x8x8x4xf32> to vector<8x8x4xf32>
    %1035 = vector.broadcast %671 : vector<1x1x4xf32> to vector<8x8x4xf32>
    %1036 = arith.mulf %1034, %1035 : vector<8x8x4xf32>
    %1037 = arith.addf %1032, %1036 : vector<8x8x4xf32>
    %c0_1165 = arith.constant 0 : index
    %c3_1166 = arith.constant 3 : index
    %c1_1167 = arith.constant 1 : index
    %c0_1168 = arith.constant 0 : index
    %1038 = vector.load %arg2[%c0_1165, %c3_1166, %c1_1167, %c0_1168] : memref<1x12x12x4xf32, #tpu.memory_space<vmem>>, vector<1x8x8x4xf32>
    %1039 = vector.shape_cast %1038 : vector<1x8x8x4xf32> to vector<8x8x4xf32>
    %1040 = vector.broadcast %672 : vector<1x1x4xf32> to vector<8x8x4xf32>
    %1041 = arith.mulf %1039, %1040 : vector<8x8x4xf32>
    %1042 = arith.addf %1037, %1041 : vector<8x8x4xf32>
    %c0_1169 = arith.constant 0 : index
    %c3_1170 = arith.constant 3 : index
    %c1_1171 = arith.constant 1 : index
    %c0_1172 = arith.constant 0 : index
    %1043 = vector.load %arg3[%c0_1169, %c3_1170, %c1_1171, %c0_1172] : memref<1x12x12x4xf32, #tpu.memory_space<vmem>>, vector<1x8x8x4xf32>
    %1044 = vector.shape_cast %1043 : vector<1x8x8x4xf32> to vector<8x8x4xf32>
    %1045 = vector.broadcast %673 : vector<1x1x4xf32> to vector<8x8x4xf32>
    %1046 = arith.mulf %1044, %1045 : vector<8x8x4xf32>
    %1047 = arith.addf %1042, %1046 : vector<8x8x4xf32>
    %c0_1173 = arith.constant 0 : index
    %c3_1174 = arith.constant 3 : index
    %c2_1175 = arith.constant 2 : index
    %c0_1176 = arith.constant 0 : index
    %1048 = vector.load %arg2[%c0_1173, %c3_1174, %c2_1175, %c0_1176] : memref<1x12x12x4xf32, #tpu.memory_space<vmem>>, vector<1x8x8x4xf32>
    %1049 = vector.shape_cast %1048 : vector<1x8x8x4xf32> to vector<8x8x4xf32>
    %1050 = vector.broadcast %674 : vector<1x1x4xf32> to vector<8x8x4xf32>
    %1051 = arith.mulf %1049, %1050 : vector<8x8x4xf32>
    %1052 = arith.addf %1047, %1051 : vector<8x8x4xf32>
    %c0_1177 = arith.constant 0 : index
    %c3_1178 = arith.constant 3 : index
    %c2_1179 = arith.constant 2 : index
    %c0_1180 = arith.constant 0 : index
    %1053 = vector.load %arg3[%c0_1177, %c3_1178, %c2_1179, %c0_1180] : memref<1x12x12x4xf32, #tpu.memory_space<vmem>>, vector<1x8x8x4xf32>
    %1054 = vector.shape_cast %1053 : vector<1x8x8x4xf32> to vector<8x8x4xf32>
    %1055 = vector.broadcast %675 : vector<1x1x4xf32> to vector<8x8x4xf32>
    %1056 = arith.mulf %1054, %1055 : vector<8x8x4xf32>
    %1057 = arith.addf %1052, %1056 : vector<8x8x4xf32>
    %c0_1181 = arith.constant 0 : index
    %c3_1182 = arith.constant 3 : index
    %c3_1183 = arith.constant 3 : index
    %c0_1184 = arith.constant 0 : index
    %1058 = vector.load %arg2[%c0_1181, %c3_1182, %c3_1183, %c0_1184] : memref<1x12x12x4xf32, #tpu.memory_space<vmem>>, vector<1x8x8x4xf32>
    %1059 = vector.shape_cast %1058 : vector<1x8x8x4xf32> to vector<8x8x4xf32>
    %1060 = vector.broadcast %676 : vector<1x1x4xf32> to vector<8x8x4xf32>
    %1061 = arith.mulf %1059, %1060 : vector<8x8x4xf32>
    %1062 = arith.addf %1057, %1061 : vector<8x8x4xf32>
    %c0_1185 = arith.constant 0 : index
    %c3_1186 = arith.constant 3 : index
    %c1_1187 = arith.constant 1 : index
    %c0_1188 = arith.constant 0 : index
    %1063 = vector.load %arg4[%c0_1185, %c3_1186, %c1_1187, %c0_1188] : memref<1x12x12x4xf32, #tpu.memory_space<vmem>>, vector<1x8x8x4xf32>
    %1064 = vector.shape_cast %1063 : vector<1x8x8x4xf32> to vector<8x8x4xf32>
    %1065 = vector.broadcast %677 : vector<1x1x4xf32> to vector<8x8x4xf32>
    %1066 = arith.mulf %1064, %1065 : vector<8x8x4xf32>
    %1067 = arith.addf %1062, %1066 : vector<8x8x4xf32>
    %c0_1189 = arith.constant 0 : index
    %c3_1190 = arith.constant 3 : index
    %c1_1191 = arith.constant 1 : index
    %c0_1192 = arith.constant 0 : index
    %1068 = vector.load %arg5[%c0_1189, %c3_1190, %c1_1191, %c0_1192] : memref<1x12x12x4xf32, #tpu.memory_space<vmem>>, vector<1x8x8x4xf32>
    %1069 = vector.shape_cast %1068 : vector<1x8x8x4xf32> to vector<8x8x4xf32>
    %1070 = vector.broadcast %678 : vector<1x1x4xf32> to vector<8x8x4xf32>
    %1071 = arith.mulf %1069, %1070 : vector<8x8x4xf32>
    %1072 = arith.addf %1067, %1071 : vector<8x8x4xf32>
    %c0_1193 = arith.constant 0 : index
    %c3_1194 = arith.constant 3 : index
    %c2_1195 = arith.constant 2 : index
    %c0_1196 = arith.constant 0 : index
    %1073 = vector.load %arg4[%c0_1193, %c3_1194, %c2_1195, %c0_1196] : memref<1x12x12x4xf32, #tpu.memory_space<vmem>>, vector<1x8x8x4xf32>
    %1074 = vector.shape_cast %1073 : vector<1x8x8x4xf32> to vector<8x8x4xf32>
    %1075 = vector.broadcast %679 : vector<1x1x4xf32> to vector<8x8x4xf32>
    %1076 = arith.mulf %1074, %1075 : vector<8x8x4xf32>
    %1077 = arith.addf %1072, %1076 : vector<8x8x4xf32>
    %c0_1197 = arith.constant 0 : index
    %c3_1198 = arith.constant 3 : index
    %c2_1199 = arith.constant 2 : index
    %c0_1200 = arith.constant 0 : index
    %1078 = vector.load %arg5[%c0_1197, %c3_1198, %c2_1199, %c0_1200] : memref<1x12x12x4xf32, #tpu.memory_space<vmem>>, vector<1x8x8x4xf32>
    %1079 = vector.shape_cast %1078 : vector<1x8x8x4xf32> to vector<8x8x4xf32>
    %1080 = vector.broadcast %680 : vector<1x1x4xf32> to vector<8x8x4xf32>
    %1081 = arith.mulf %1079, %1080 : vector<8x8x4xf32>
    %1082 = arith.addf %1077, %1081 : vector<8x8x4xf32>
    %c0_1201 = arith.constant 0 : index
    %c3_1202 = arith.constant 3 : index
    %c3_1203 = arith.constant 3 : index
    %c0_1204 = arith.constant 0 : index
    %1083 = vector.load %arg4[%c0_1201, %c3_1202, %c3_1203, %c0_1204] : memref<1x12x12x4xf32, #tpu.memory_space<vmem>>, vector<1x8x8x4xf32>
    %1084 = vector.shape_cast %1083 : vector<1x8x8x4xf32> to vector<8x8x4xf32>
    %1085 = vector.broadcast %681 : vector<1x1x4xf32> to vector<8x8x4xf32>
    %1086 = arith.mulf %1084, %1085 : vector<8x8x4xf32>
    %1087 = arith.addf %1082, %1086 : vector<8x8x4xf32>
    %1088 = vector.broadcast %656 : vector<1x1x4xf32> to vector<8x8x4xf32>
    %1089 = arith.addf %1087, %1088 : vector<8x8x4xf32>
    %c0_1205 = arith.constant 0 : index
    %c0_1206 = arith.constant 0 : index
    %c0_1207 = arith.constant 0 : index
    %c0_1208 = arith.constant 0 : index
    %1090 = vector.load %arg14[%c0_1205, %c0_1206, %c0_1207, %c0_1208] : memref<4x8x8x4xf32, #tpu.memory_space<vmem>>, vector<1x8x8x4xf32>
    %1091 = vector.shape_cast %1090 : vector<1x8x8x4xf32> to vector<8x8x4xf32>
    %1092 = arith.addf %1089, %1091 : vector<8x8x4xf32>
    %c1_1209 = arith.constant 1 : index
    %c0_1210 = arith.constant 0 : index
    %c0_1211 = arith.constant 0 : index
    %c0_1212 = arith.constant 0 : index
    %1093 = vector.load %arg14[%c1_1209, %c0_1210, %c0_1211, %c0_1212] : memref<4x8x8x4xf32, #tpu.memory_space<vmem>>, vector<1x8x8x4xf32>
    %1094 = vector.shape_cast %1093 : vector<1x8x8x4xf32> to vector<8x8x4xf32>
    %1095 = arith.subf %1092, %1094 : vector<8x8x4xf32>
    %c2_1213 = arith.constant 2 : index
    %c0_1214 = arith.constant 0 : index
    %c0_1215 = arith.constant 0 : index
    %c0_1216 = arith.constant 0 : index
    %1096 = vector.load %arg14[%c2_1213, %c0_1214, %c0_1215, %c0_1216] : memref<4x8x8x4xf32, #tpu.memory_space<vmem>>, vector<1x8x8x4xf32>
    %1097 = vector.shape_cast %1096 : vector<1x8x8x4xf32> to vector<8x8x4xf32>
    %1098 = arith.addf %1095, %1097 : vector<8x8x4xf32>
    %c3_1217 = arith.constant 3 : index
    %c0_1218 = arith.constant 0 : index
    %c0_1219 = arith.constant 0 : index
    %c0_1220 = arith.constant 0 : index
    %1099 = vector.load %arg14[%c3_1217, %c0_1218, %c0_1219, %c0_1220] : memref<4x8x8x4xf32, #tpu.memory_space<vmem>>, vector<1x8x8x4xf32>
    %1100 = vector.shape_cast %1099 : vector<1x8x8x4xf32> to vector<8x8x4xf32>
    %1101 = arith.subf %1098, %1100 : vector<8x8x4xf32>
    %c0_1221 = arith.constant 0 : index
    %c0_1222 = arith.constant 0 : index
    %c0_1223 = arith.constant 0 : index
    %c0_1224 = arith.constant 0 : index
    %1102 = vector.load %arg11[%c0_1221, %c0_1222, %c0_1223, %c0_1224] : memref<1x8x8x4xf32, #tpu.memory_space<vmem>>, vector<1x8x8x4xf32>
    %1103 = vector.shape_cast %1102 : vector<1x8x8x4xf32> to vector<8x8x4xf32>
    %1104 = vector.shape_cast %1101 : vector<8x8x4xf32> to vector<1x8x8x4xf32>
    tpu.vector_store %arg11[%c0_1221, %c0_1222, %c0_1223, %c0_1224], %1104 {strides = array<i32>} : memref<1x8x8x4xf32, #tpu.memory_space<vmem>>, vector<1x8x8x4xf32>,
    %c0_1225 = arith.constant 0 : index
    %c1_1226 = arith.constant 1 : index
    %c1_1227 = arith.constant 1 : index
    %c0_1228 = arith.constant 0 : index
    %1105 = vector.load %arg5[%c0_1225, %c1_1226, %c1_1227, %c0_1228] : memref<1x12x12x4xf32, #tpu.memory_space<vmem>>, vector<1x8x8x4xf32>
    %1106 = vector.shape_cast %1105 : vector<1x8x8x4xf32> to vector<8x8x4xf32>
    %1107 = vector.broadcast %657 : vector<1x1x4xf32> to vector<8x8x4xf32>
    %1108 = arith.mulf %1106, %1107 : vector<8x8x4xf32>
    %c0_1229 = arith.constant 0 : index
    %c1_1230 = arith.constant 1 : index
    %c2_1231 = arith.constant 2 : index
    %c0_1232 = arith.constant 0 : index
    %1109 = vector.load %arg4[%c0_1229, %c1_1230, %c2_1231, %c0_1232] : memref<1x12x12x4xf32, #tpu.memory_space<vmem>>, vector<1x8x8x4xf32>
    %1110 = vector.shape_cast %1109 : vector<1x8x8x4xf32> to vector<8x8x4xf32>
    %1111 = vector.broadcast %658 : vector<1x1x4xf32> to vector<8x8x4xf32>
    %1112 = arith.mulf %1110, %1111 : vector<8x8x4xf32>
    %1113 = arith.addf %1108, %1112 : vector<8x8x4xf32>
    %c0_1233 = arith.constant 0 : index
    %c1_1234 = arith.constant 1 : index
    %c2_1235 = arith.constant 2 : index
    %c0_1236 = arith.constant 0 : index
    %1114 = vector.load %arg5[%c0_1233, %c1_1234, %c2_1235, %c0_1236] : memref<1x12x12x4xf32, #tpu.memory_space<vmem>>, vector<1x8x8x4xf32>
    %1115 = vector.shape_cast %1114 : vector<1x8x8x4xf32> to vector<8x8x4xf32>
    %1116 = vector.broadcast %659 : vector<1x1x4xf32> to vector<8x8x4xf32>
    %1117 = arith.mulf %1115, %1116 : vector<8x8x4xf32>
    %1118 = arith.addf %1113, %1117 : vector<8x8x4xf32>
    %c0_1237 = arith.constant 0 : index
    %c1_1238 = arith.constant 1 : index
    %c3_1239 = arith.constant 3 : index
    %c0_1240 = arith.constant 0 : index
    %1119 = vector.load %arg4[%c0_1237, %c1_1238, %c3_1239, %c0_1240] : memref<1x12x12x4xf32, #tpu.memory_space<vmem>>, vector<1x8x8x4xf32>
    %1120 = vector.shape_cast %1119 : vector<1x8x8x4xf32> to vector<8x8x4xf32>
    %1121 = vector.broadcast %660 : vector<1x1x4xf32> to vector<8x8x4xf32>
    %1122 = arith.mulf %1120, %1121 : vector<8x8x4xf32>
    %1123 = arith.addf %1118, %1122 : vector<8x8x4xf32>
    %c0_1241 = arith.constant 0 : index
    %c1_1242 = arith.constant 1 : index
    %c3_1243 = arith.constant 3 : index
    %c0_1244 = arith.constant 0 : index
    %1124 = vector.load %arg5[%c0_1241, %c1_1242, %c3_1243, %c0_1244] : memref<1x12x12x4xf32, #tpu.memory_space<vmem>>, vector<1x8x8x4xf32>
    %1125 = vector.shape_cast %1124 : vector<1x8x8x4xf32> to vector<8x8x4xf32>
    %1126 = vector.broadcast %661 : vector<1x1x4xf32> to vector<8x8x4xf32>
    %1127 = arith.mulf %1125, %1126 : vector<8x8x4xf32>
    %1128 = arith.addf %1123, %1127 : vector<8x8x4xf32>
    %c0_1245 = arith.constant 0 : index
    %c2_1246 = arith.constant 2 : index
    %c1_1247 = arith.constant 1 : index
    %c0_1248 = arith.constant 0 : index
    %1129 = vector.load %arg3[%c0_1245, %c2_1246, %c1_1247, %c0_1248] : memref<1x12x12x4xf32, #tpu.memory_space<vmem>>, vector<1x8x8x4xf32>
    %1130 = vector.shape_cast %1129 : vector<1x8x8x4xf32> to vector<8x8x4xf32>
    %1131 = vector.broadcast %662 : vector<1x1x4xf32> to vector<8x8x4xf32>
    %1132 = arith.mulf %1130, %1131 : vector<8x8x4xf32>
    %1133 = arith.addf %1128, %1132 : vector<8x8x4xf32>
    %c0_1249 = arith.constant 0 : index
    %c2_1250 = arith.constant 2 : index
    %c2_1251 = arith.constant 2 : index
    %c0_1252 = arith.constant 0 : index
    %1134 = vector.load %arg2[%c0_1249, %c2_1250, %c2_1251, %c0_1252] : memref<1x12x12x4xf32, #tpu.memory_space<vmem>>, vector<1x8x8x4xf32>
    %1135 = vector.shape_cast %1134 : vector<1x8x8x4xf32> to vector<8x8x4xf32>
    %1136 = vector.broadcast %663 : vector<1x1x4xf32> to vector<8x8x4xf32>
    %1137 = arith.mulf %1135, %1136 : vector<8x8x4xf32>
    %1138 = arith.addf %1133, %1137 : vector<8x8x4xf32>
    %c0_1253 = arith.constant 0 : index
    %c2_1254 = arith.constant 2 : index
    %c2_1255 = arith.constant 2 : index
    %c0_1256 = arith.constant 0 : index
    %1139 = vector.load %arg3[%c0_1253, %c2_1254, %c2_1255, %c0_1256] : memref<1x12x12x4xf32, #tpu.memory_space<vmem>>, vector<1x8x8x4xf32>
    %1140 = vector.shape_cast %1139 : vector<1x8x8x4xf32> to vector<8x8x4xf32>
    %1141 = vector.broadcast %664 : vector<1x1x4xf32> to vector<8x8x4xf32>
    %1142 = arith.mulf %1140, %1141 : vector<8x8x4xf32>
    %1143 = arith.addf %1138, %1142 : vector<8x8x4xf32>
    %c0_1257 = arith.constant 0 : index
    %c2_1258 = arith.constant 2 : index
    %c3_1259 = arith.constant 3 : index
    %c0_1260 = arith.constant 0 : index
    %1144 = vector.load %arg2[%c0_1257, %c2_1258, %c3_1259, %c0_1260] : memref<1x12x12x4xf32, #tpu.memory_space<vmem>>, vector<1x8x8x4xf32>
    %1145 = vector.shape_cast %1144 : vector<1x8x8x4xf32> to vector<8x8x4xf32>
    %1146 = vector.broadcast %665 : vector<1x1x4xf32> to vector<8x8x4xf32>
    %1147 = arith.mulf %1145, %1146 : vector<8x8x4xf32>
    %1148 = arith.addf %1143, %1147 : vector<8x8x4xf32>
    %c0_1261 = arith.constant 0 : index
    %c2_1262 = arith.constant 2 : index
    %c3_1263 = arith.constant 3 : index
    %c0_1264 = arith.constant 0 : index
    %1149 = vector.load %arg3[%c0_1261, %c2_1262, %c3_1263, %c0_1264] : memref<1x12x12x4xf32, #tpu.memory_space<vmem>>, vector<1x8x8x4xf32>
    %1150 = vector.shape_cast %1149 : vector<1x8x8x4xf32> to vector<8x8x4xf32>
    %1151 = vector.broadcast %666 : vector<1x1x4xf32> to vector<8x8x4xf32>
    %1152 = arith.mulf %1150, %1151 : vector<8x8x4xf32>
    %1153 = arith.addf %1148, %1152 : vector<8x8x4xf32>
    %c0_1265 = arith.constant 0 : index
    %c2_1266 = arith.constant 2 : index
    %c1_1267 = arith.constant 1 : index
    %c0_1268 = arith.constant 0 : index
    %1154 = vector.load %arg5[%c0_1265, %c2_1266, %c1_1267, %c0_1268] : memref<1x12x12x4xf32, #tpu.memory_space<vmem>>, vector<1x8x8x4xf32>
    %1155 = vector.shape_cast %1154 : vector<1x8x8x4xf32> to vector<8x8x4xf32>
    %1156 = vector.broadcast %667 : vector<1x1x4xf32> to vector<8x8x4xf32>
    %1157 = arith.mulf %1155, %1156 : vector<8x8x4xf32>
    %1158 = arith.addf %1153, %1157 : vector<8x8x4xf32>
    %c0_1269 = arith.constant 0 : index
    %c2_1270 = arith.constant 2 : index
    %c2_1271 = arith.constant 2 : index
    %c0_1272 = arith.constant 0 : index
    %1159 = vector.load %arg4[%c0_1269, %c2_1270, %c2_1271, %c0_1272] : memref<1x12x12x4xf32, #tpu.memory_space<vmem>>, vector<1x8x8x4xf32>
    %1160 = vector.shape_cast %1159 : vector<1x8x8x4xf32> to vector<8x8x4xf32>
    %1161 = vector.broadcast %668 : vector<1x1x4xf32> to vector<8x8x4xf32>
    %1162 = arith.mulf %1160, %1161 : vector<8x8x4xf32>
    %1163 = arith.addf %1158, %1162 : vector<8x8x4xf32>
    %c0_1273 = arith.constant 0 : index
    %c2_1274 = arith.constant 2 : index
    %c2_1275 = arith.constant 2 : index
    %c0_1276 = arith.constant 0 : index
    %1164 = vector.load %arg5[%c0_1273, %c2_1274, %c2_1275, %c0_1276] : memref<1x12x12x4xf32, #tpu.memory_space<vmem>>, vector<1x8x8x4xf32>
    %1165 = vector.shape_cast %1164 : vector<1x8x8x4xf32> to vector<8x8x4xf32>
    %1166 = vector.broadcast %669 : vector<1x1x4xf32> to vector<8x8x4xf32>
    %1167 = arith.mulf %1165, %1166 : vector<8x8x4xf32>
    %1168 = arith.addf %1163, %1167 : vector<8x8x4xf32>
    %c0_1277 = arith.constant 0 : index
    %c2_1278 = arith.constant 2 : index
    %c3_1279 = arith.constant 3 : index
    %c0_1280 = arith.constant 0 : index
    %1169 = vector.load %arg4[%c0_1277, %c2_1278, %c3_1279, %c0_1280] : memref<1x12x12x4xf32, #tpu.memory_space<vmem>>, vector<1x8x8x4xf32>
    %1170 = vector.shape_cast %1169 : vector<1x8x8x4xf32> to vector<8x8x4xf32>
    %1171 = vector.broadcast %670 : vector<1x1x4xf32> to vector<8x8x4xf32>
    %1172 = arith.mulf %1170, %1171 : vector<8x8x4xf32>
    %1173 = arith.addf %1168, %1172 : vector<8x8x4xf32>
    %c0_1281 = arith.constant 0 : index
    %c2_1282 = arith.constant 2 : index
    %c3_1283 = arith.constant 3 : index
    %c0_1284 = arith.constant 0 : index
    %1174 = vector.load %arg5[%c0_1281, %c2_1282, %c3_1283, %c0_1284] : memref<1x12x12x4xf32, #tpu.memory_space<vmem>>, vector<1x8x8x4xf32>
    %1175 = vector.shape_cast %1174 : vector<1x8x8x4xf32> to vector<8x8x4xf32>
    %1176 = vector.broadcast %671 : vector<1x1x4xf32> to vector<8x8x4xf32>
    %1177 = arith.mulf %1175, %1176 : vector<8x8x4xf32>
    %1178 = arith.addf %1173, %1177 : vector<8x8x4xf32>
    %c0_1285 = arith.constant 0 : index
    %c3_1286 = arith.constant 3 : index
    %c1_1287 = arith.constant 1 : index
    %c0_1288 = arith.constant 0 : index
    %1179 = vector.load %arg3[%c0_1285, %c3_1286, %c1_1287, %c0_1288] : memref<1x12x12x4xf32, #tpu.memory_space<vmem>>, vector<1x8x8x4xf32>
    %1180 = vector.shape_cast %1179 : vector<1x8x8x4xf32> to vector<8x8x4xf32>
    %1181 = vector.broadcast %672 : vector<1x1x4xf32> to vector<8x8x4xf32>
    %1182 = arith.mulf %1180, %1181 : vector<8x8x4xf32>
    %1183 = arith.addf %1178, %1182 : vector<8x8x4xf32>
    %c0_1289 = arith.constant 0 : index
    %c3_1290 = arith.constant 3 : index
    %c2_1291 = arith.constant 2 : index
    %c0_1292 = arith.constant 0 : index
    %1184 = vector.load %arg2[%c0_1289, %c3_1290, %c2_1291, %c0_1292] : memref<1x12x12x4xf32, #tpu.memory_space<vmem>>, vector<1x8x8x4xf32>
    %1185 = vector.shape_cast %1184 : vector<1x8x8x4xf32> to vector<8x8x4xf32>
    %1186 = vector.broadcast %673 : vector<1x1x4xf32> to vector<8x8x4xf32>
    %1187 = arith.mulf %1185, %1186 : vector<8x8x4xf32>
    %1188 = arith.addf %1183, %1187 : vector<8x8x4xf32>
    %c0_1293 = arith.constant 0 : index
    %c3_1294 = arith.constant 3 : index
    %c2_1295 = arith.constant 2 : index
    %c0_1296 = arith.constant 0 : index
    %1189 = vector.load %arg3[%c0_1293, %c3_1294, %c2_1295, %c0_1296] : memref<1x12x12x4xf32, #tpu.memory_space<vmem>>, vector<1x8x8x4xf32>
    %1190 = vector.shape_cast %1189 : vector<1x8x8x4xf32> to vector<8x8x4xf32>
    %1191 = vector.broadcast %674 : vector<1x1x4xf32> to vector<8x8x4xf32>
    %1192 = arith.mulf %1190, %1191 : vector<8x8x4xf32>
    %1193 = arith.addf %1188, %1192 : vector<8x8x4xf32>
    %c0_1297 = arith.constant 0 : index
    %c3_1298 = arith.constant 3 : index
    %c3_1299 = arith.constant 3 : index
    %c0_1300 = arith.constant 0 : index
    %1194 = vector.load %arg2[%c0_1297, %c3_1298, %c3_1299, %c0_1300] : memref<1x12x12x4xf32, #tpu.memory_space<vmem>>, vector<1x8x8x4xf32>
    %1195 = vector.shape_cast %1194 : vector<1x8x8x4xf32> to vector<8x8x4xf32>
    %1196 = vector.broadcast %675 : vector<1x1x4xf32> to vector<8x8x4xf32>
    %1197 = arith.mulf %1195, %1196 : vector<8x8x4xf32>
    %1198 = arith.addf %1193, %1197 : vector<8x8x4xf32>
    %c0_1301 = arith.constant 0 : index
    %c3_1302 = arith.constant 3 : index
    %c3_1303 = arith.constant 3 : index
    %c0_1304 = arith.constant 0 : index
    %1199 = vector.load %arg3[%c0_1301, %c3_1302, %c3_1303, %c0_1304] : memref<1x12x12x4xf32, #tpu.memory_space<vmem>>, vector<1x8x8x4xf32>
    %1200 = vector.shape_cast %1199 : vector<1x8x8x4xf32> to vector<8x8x4xf32>
    %1201 = vector.broadcast %676 : vector<1x1x4xf32> to vector<8x8x4xf32>
    %1202 = arith.mulf %1200, %1201 : vector<8x8x4xf32>
    %1203 = arith.addf %1198, %1202 : vector<8x8x4xf32>
    %c0_1305 = arith.constant 0 : index
    %c3_1306 = arith.constant 3 : index
    %c1_1307 = arith.constant 1 : index
    %c0_1308 = arith.constant 0 : index
    %1204 = vector.load %arg5[%c0_1305, %c3_1306, %c1_1307, %c0_1308] : memref<1x12x12x4xf32, #tpu.memory_space<vmem>>, vector<1x8x8x4xf32>
    %1205 = vector.shape_cast %1204 : vector<1x8x8x4xf32> to vector<8x8x4xf32>
    %1206 = vector.broadcast %677 : vector<1x1x4xf32> to vector<8x8x4xf32>
    %1207 = arith.mulf %1205, %1206 : vector<8x8x4xf32>
    %1208 = arith.addf %1203, %1207 : vector<8x8x4xf32>
    %c0_1309 = arith.constant 0 : index
    %c3_1310 = arith.constant 3 : index
    %c2_1311 = arith.constant 2 : index
    %c0_1312 = arith.constant 0 : index
    %1209 = vector.load %arg4[%c0_1309, %c3_1310, %c2_1311, %c0_1312] : memref<1x12x12x4xf32, #tpu.memory_space<vmem>>, vector<1x8x8x4xf32>
    %1210 = vector.shape_cast %1209 : vector<1x8x8x4xf32> to vector<8x8x4xf32>
    %1211 = vector.broadcast %678 : vector<1x1x4xf32> to vector<8x8x4xf32>
    %1212 = arith.mulf %1210, %1211 : vector<8x8x4xf32>
    %1213 = arith.addf %1208, %1212 : vector<8x8x4xf32>
    %c0_1313 = arith.constant 0 : index
    %c3_1314 = arith.constant 3 : index
    %c2_1315 = arith.constant 2 : index
    %c0_1316 = arith.constant 0 : index
    %1214 = vector.load %arg5[%c0_1313, %c3_1314, %c2_1315, %c0_1316] : memref<1x12x12x4xf32, #tpu.memory_space<vmem>>, vector<1x8x8x4xf32>
    %1215 = vector.shape_cast %1214 : vector<1x8x8x4xf32> to vector<8x8x4xf32>
    %1216 = vector.broadcast %679 : vector<1x1x4xf32> to vector<8x8x4xf32>
    %1217 = arith.mulf %1215, %1216 : vector<8x8x4xf32>
    %1218 = arith.addf %1213, %1217 : vector<8x8x4xf32>
    %c0_1317 = arith.constant 0 : index
    %c3_1318 = arith.constant 3 : index
    %c3_1319 = arith.constant 3 : index
    %c0_1320 = arith.constant 0 : index
    %1219 = vector.load %arg4[%c0_1317, %c3_1318, %c3_1319, %c0_1320] : memref<1x12x12x4xf32, #tpu.memory_space<vmem>>, vector<1x8x8x4xf32>
    %1220 = vector.shape_cast %1219 : vector<1x8x8x4xf32> to vector<8x8x4xf32>
    %1221 = vector.broadcast %680 : vector<1x1x4xf32> to vector<8x8x4xf32>
    %1222 = arith.mulf %1220, %1221 : vector<8x8x4xf32>
    %1223 = arith.addf %1218, %1222 : vector<8x8x4xf32>
    %c0_1321 = arith.constant 0 : index
    %c3_1322 = arith.constant 3 : index
    %c3_1323 = arith.constant 3 : index
    %c0_1324 = arith.constant 0 : index
    %1224 = vector.load %arg5[%c0_1321, %c3_1322, %c3_1323, %c0_1324] : memref<1x12x12x4xf32, #tpu.memory_space<vmem>>, vector<1x8x8x4xf32>
    %1225 = vector.shape_cast %1224 : vector<1x8x8x4xf32> to vector<8x8x4xf32>
    %1226 = vector.broadcast %681 : vector<1x1x4xf32> to vector<8x8x4xf32>
    %1227 = arith.mulf %1225, %1226 : vector<8x8x4xf32>
    %1228 = arith.addf %1223, %1227 : vector<8x8x4xf32>
    %1229 = vector.broadcast %656 : vector<1x1x4xf32> to vector<8x8x4xf32>
    %1230 = arith.addf %1228, %1229 : vector<8x8x4xf32>
    %c0_1325 = arith.constant 0 : index
    %c0_1326 = arith.constant 0 : index
    %c0_1327 = arith.constant 0 : index
    %c0_1328 = arith.constant 0 : index
    %1231 = vector.load %arg14[%c0_1325, %c0_1326, %c0_1327, %c0_1328] : memref<4x8x8x4xf32, #tpu.memory_space<vmem>>, vector<1x8x8x4xf32>
    %1232 = vector.shape_cast %1231 : vector<1x8x8x4xf32> to vector<8x8x4xf32>
    %1233 = arith.addf %1230, %1232 : vector<8x8x4xf32>
    %c1_1329 = arith.constant 1 : index
    %c0_1330 = arith.constant 0 : index
    %c0_1331 = arith.constant 0 : index
    %c0_1332 = arith.constant 0 : index
    %1234 = vector.load %arg14[%c1_1329, %c0_1330, %c0_1331, %c0_1332] : memref<4x8x8x4xf32, #tpu.memory_space<vmem>>, vector<1x8x8x4xf32>
    %1235 = vector.shape_cast %1234 : vector<1x8x8x4xf32> to vector<8x8x4xf32>
    %1236 = arith.subf %1233, %1235 : vector<8x8x4xf32>
    %c2_1333 = arith.constant 2 : index
    %c0_1334 = arith.constant 0 : index
    %c0_1335 = arith.constant 0 : index
    %c0_1336 = arith.constant 0 : index
    %1237 = vector.load %arg14[%c2_1333, %c0_1334, %c0_1335, %c0_1336] : memref<4x8x8x4xf32, #tpu.memory_space<vmem>>, vector<1x8x8x4xf32>
    %1238 = vector.shape_cast %1237 : vector<1x8x8x4xf32> to vector<8x8x4xf32>
    %1239 = arith.subf %1236, %1238 : vector<8x8x4xf32>
    %c3_1337 = arith.constant 3 : index
    %c0_1338 = arith.constant 0 : index
    %c0_1339 = arith.constant 0 : index
    %c0_1340 = arith.constant 0 : index
    %1240 = vector.load %arg14[%c3_1337, %c0_1338, %c0_1339, %c0_1340] : memref<4x8x8x4xf32, #tpu.memory_space<vmem>>, vector<1x8x8x4xf32>
    %1241 = vector.shape_cast %1240 : vector<1x8x8x4xf32> to vector<8x8x4xf32>
    %1242 = arith.addf %1239, %1241 : vector<8x8x4xf32>
    %c0_1341 = arith.constant 0 : index
    %c0_1342 = arith.constant 0 : index
    %c0_1343 = arith.constant 0 : index
    %c0_1344 = arith.constant 0 : index
    %1243 = vector.load %arg12[%c0_1341, %c0_1342, %c0_1343, %c0_1344] : memref<1x8x8x4xf32, #tpu.memory_space<vmem>>, vector<1x8x8x4xf32>
    %1244 = vector.shape_cast %1243 : vector<1x8x8x4xf32> to vector<8x8x4xf32>
    %1245 = vector.shape_cast %1242 : vector<8x8x4xf32> to vector<1x8x8x4xf32>
    tpu.vector_store %arg12[%c0_1341, %c0_1342, %c0_1343, %c0_1344], %1245 {strides = array<i32>} : memref<1x8x8x4xf32, #tpu.memory_space<vmem>>, vector<1x8x8x4xf32>,
    return
  }
  func.func @transform_0(%arg0: i32, %arg1: i32) -> (i32, i32, i32, i32) {
    %c0_i32 = arith.constant 0 : i32
    %c0_i32_0 = arith.constant 0 : i32
    %c0_i32_1 = arith.constant 0 : i32
    return %arg0, %c0_i32, %c0_i32_0, %arg1 : i32, i32, i32, i32
  }
  func.func @transform_1(%arg0: i32, %arg1: i32) -> (i32, i32, i32, i32) {
    %c0_i32 = arith.constant 0 : i32
    %c0_i32_0 = arith.constant 0 : i32
    %c0_i32_1 = arith.constant 0 : i32
    return %arg0, %c0_i32, %c0_i32_0, %arg1 : i32, i32, i32, i32
  }
  func.func @transform_2(%arg0: i32, %arg1: i32) -> (i32, i32, i32, i32) {
    %c0_i32 = arith.constant 0 : i32
    %c0_i32_0 = arith.constant 0 : i32
    %c0_i32_1 = arith.constant 0 : i32
    return %arg0, %c0_i32, %c0_i32_0, %arg1 : i32, i32, i32, i32
  }
  func.func @transform_3(%arg0: i32, %arg1: i32) -> (i32, i32, i32, i32) {
    %c0_i32 = arith.constant 0 : i32
    %c0_i32_0 = arith.constant 0 : i32
    %c0_i32_1 = arith.constant 0 : i32
    return %arg0, %c0_i32, %c0_i32_0, %arg1 : i32, i32, i32, i32
  }
  func.func @transform_4(%arg0: i32, %arg1: i32) -> (i32, i32, i32) {
    %c0_i32 = arith.constant 0 : i32
    %c0_i32_0 = arith.constant 0 : i32
    %c0_i32_1 = arith.constant 0 : i32
    return %c0_i32, %c0_i32_0, %arg1 : i32, i32, i32
  }
  func.func @transform_5(%arg0: i32, %arg1: i32) -> (i32, i32, i32) {
    %c0_i32 = arith.constant 0 : i32
    %c0_i32_0 = arith.constant 0 : i32
    %c0_i32_1 = arith.constant 0 : i32
    return %c0_i32, %c0_i32_0, %arg1 : i32, i32, i32
  }
  func.func @transform_6(%arg0: i32, %arg1: i32) -> (i32, i32, i32, i32) {
    %c0_i32 = arith.constant 0 : i32
    %c0_i32_0 = arith.constant 0 : i32
    %c0_i32_1 = arith.constant 0 : i32
    %c0_i32_2 = arith.constant 0 : i32
    return %c0_i32, %c0_i32_0, %c0_i32_1, %arg1 : i32, i32, i32, i32
  }
  func.func @transform_7(%arg0: i32, %arg1: i32) -> (i32, i32, i32, i32) {
    %c0_i32 = arith.constant 0 : i32
    %c0_i32_0 = arith.constant 0 : i32
    %c0_i32_1 = arith.constant 0 : i32
    return %arg0, %c0_i32, %c0_i32_0, %arg1 : i32, i32, i32, i32
  }
  func.func @transform_8(%arg0: i32, %arg1: i32) -> (i32, i32, i32, i32) {
    %c0_i32 = arith.constant 0 : i32
    %c0_i32_0 = arith.constant 0 : i32
    %c0_i32_1 = arith.constant 0 : i32
    return %arg0, %c0_i32, %c0_i32_0, %arg1 : i32, i32, i32, i32
  }
  func.func @transform_9(%arg0: i32, %arg1: i32) -> (i32, i32, i32, i32) {
    %c0_i32 = arith.constant 0 : i32
    %c0_i32_0 = arith.constant 0 : i32
    %c0_i32_1 = arith.constant 0 : i32
    return %arg0, %c0_i32, %c0_i32_0, %arg1 : i32, i32, i32, i32
  }
  func.func @transform_10(%arg0: i32, %arg1: i32) -> (i32, i32, i32, i32) {
    %c0_i32 = arith.constant 0 : i32
    %c0_i32_0 = arith.constant 0 : i32
    %c0_i32_1 = arith.constant 0 : i32
    return %arg0, %c0_i32, %c0_i32_0, %arg1 : i32, i32, i32, i32
  }
}

</mosaic_0001>

<llo_original>
// kernel: tpu_custom_call.1
$region0: #{tpu_custom_call.1}
  #allocation0 [shape = 'u32[]', space=smem, size = 0x4, offset = 0x4, fixed_abs, tag = 'smem constant byte address 0x4 - core index']
  #allocation1 [shape = 'u32[144,128]{1,0:T(1,128)}', space=vmem, size = 0x12000, scoped, tag = 'internal scratch']
  #allocation2 [shape = 'f32[12,12,4]{2,1,0:T(8,128)}', space=vmem, size = 0x18000, scoped, tag = 'scratch operand']
  #allocation3 [shape = 'f32[4,8,8,4]{3,2,1,0:T(8,128)}', space=vmem, size = 0x20000, scoped, tag = 'scratch operand']
  %s0 = inlined_call_operand.vmem [shape: f32[2,12,12,4], index: 0, kind: input, shape index: {}]
  %s1 = inlined_call_operand.vmem [shape: f32[2,12,12,4], index: 1, kind: input, shape index: {}]
  %s2 = inlined_call_operand.vmem [shape: f32[2,12,12,4], index: 2, kind: input, shape index: {}]
  %s3 = inlined_call_operand.vmem [shape: f32[2,12,12,4], index: 3, kind: input, shape index: {}]
  %s4 = inlined_call_operand.vmem [shape: f32[5,5,4], index: 4, kind: input, shape index: {}]
  %s5 = inlined_call_operand.vmem [shape: f32[1,1,4], index: 5, kind: input, shape index: {}]
  %s6 = inlined_call_operand.vmem [shape: f32[4,5,5,4], index: 6, kind: input, shape index: {}]
  %s7 = inlined_call_operand.vmem [shape: f32[2,8,8,4], index: 7, kind: output, shape index: {0}]
  %s8 = inlined_call_operand.vmem [shape: f32[2,8,8,4], index: 8, kind: output, shape index: {1}]
  %s9 = inlined_call_operand.vmem [shape: f32[2,8,8,4], index: 9, kind: output, shape index: {2}]
  %s10 = inlined_call_operand.vmem [shape: f32[2,8,8,4], index: 10, kind: output, shape index: {3}]
  %11 = xla_tuple %s7, %s8, %s9, %s10
  %s12 = sld [smem:[#allocation0]]
  $region85: #{tpu_custom_call.1} parent=0
    _
  %s14 = ssub.s32 1, %s12
  %s15 = scalar_select 0, %s14, %s12
  loop: start=0, step=1, limit=4
  $region2: #{tpu_custom_call.1} parent=0 // loop_pre_header
    _
  $region3: #{tpu_custom_call.1} parent=0 // loop_header
    %s17 = sphi 0, %s21
    %p18 = scmp.ge.s32.totalorder %s17, 4
    %s24 = sphi 0, %s36
    %s25 = sphi 0, %s32
    %s26 = sphi 0, %s24
    %s27 = sphi 0, %s25
    %s28 = sphi 0, %s26
    %s29 = sphi 0, %s27
    %s41 = sphi 0, %s43
    %s44 = sphi 0, %s41
    %s45 = sphi 0, %s44
    %s61 = sphi 0, %s45
    %s69 = sphi 0, %s71
    %s72 = sphi 0, %s69
    %s73 = sphi 0, %s72
    %s89 = sphi 0, %s73
    %s97 = sphi 0, %s99
    %s100 = sphi 0, %s97
    %s101 = sphi 0, %s100
    %s117 = sphi 0, %s101
    %s125 = sphi 0, %s127
    %s128 = sphi 0, %s125
    %s129 = sphi 0, %s128
    %s145 = sphi 0, %s129
    %s151 = sphi 0, %s153
    %s154 = sphi 0, %s151
    %s155 = sphi 0, %s154
    %s171 = sphi 0, %s155
    %s177 = sphi 0, %s179
    %s180 = sphi 0, %s177
    %s181 = sphi 0, %s180
    %s197 = sphi 0, %s181
    %s203 = sphi 0, %s205
    %s206 = sphi 0, %s203
    %s207 = sphi 0, %s206
    %s223 = sphi 0, %s207
    %s231 = sphi 0, %s233
    %s234 = sphi 0, %s231
    %s235 = sphi 0, %s234
    %s251 = sphi 0, %s235
    %s259 = sphi 0, %s261
    %s262 = sphi 0, %s259
    %s263 = sphi 0, %s262
    %s279 = sphi 0, %s263
    %s287 = sphi 0, %s289
    %s290 = sphi 0, %s287
    %s291 = sphi 0, %s290
    %s307 = sphi 0, %s291
    %s315 = sphi 0, %s317
    %s318 = sphi 0, %s315
    %s319 = sphi 0, %s318
    %s335 = sphi 0, %s319
  $region4: #{tpu_custom_call.1} parent=0 // loop_header_branch
    %20 = sbr.rel (%p18) target = $region8
  $region5: #{tpu_custom_call.1} parent=0 // loop_body
    %s22 = ssub.s32 %s17, 1
    %s23 = ssub.s32 %s17, 2
    %s30 = sadd.s32 1, %s25
    %p31 = scmp.ge.s32.totalorder %s30, 1
    %s32 = scalar_select %p31, 0, %s30
    %s33 = sadd.s32 1, %s24
    %s34 = scalar_select %p31, %s33, %s24
    %p35 = scmp.ge.s32.totalorder %s34, 2
    %s36 = scalar_select %p35, 0, %s34
    %s37 = ssub.s32 %s24, %s36
    %s38 = ssub.s32 %s25, %s32
    %s39 = sor.u32 %s37, %s38
    %p40 = scmp.eq.s32.totalorder %s39, 0
    %s42 = sadd.s32 %s41, 1
    %s43 = scalar_select %p40, %s41, %s42
    %p46 = pneg %p40
    %p47 = scmp.eq.s32.totalorder %s17, 1
    %p48 = por %p46, %p47
    %p49 = scmp.ne.s32.totalorder %s41, %s44
    %p50 = scmp.eq.s32.totalorder %s17, 0
    %p51 = por %p49, %p50
    %p52 = scmp.ne.s32.totalorder %s41, %s44
    %p53 = scmp.eq.s32.totalorder %s22, 1
    %p54 = por %p52, %p53
    %p55 = scmp.ne.s32.totalorder %s44, %s45
    %p56 = scmp.eq.s32.totalorder %s22, 0
    %p57 = por %p55, %p56
    %p58 = scmp.ne.s32.totalorder %s44, %s45
    %p59 = scmp.eq.s32.totalorder %s23, 1
    %p60 = por %p58, %p59
    %p62 = scmp.ne.s32.totalorder %s45, %s61
    %p63 = scmp.eq.s32.totalorder %s23, 0
    %p64 = por %p62, %p63
    %s65 = ssub.s32 %s24, %s36
    %s66 = ssub.s32 %s25, %s32
    %s67 = sor.u32 %s65, %s66
    %p68 = scmp.eq.s32.totalorder %s67, 0
    %s70 = sadd.s32 %s69, 1
    %s71 = scalar_select %p68, %s69, %s70
    %p74 = pneg %p68
    %p75 = scmp.eq.s32.totalorder %s17, 1
    %p76 = por %p74, %p75
    %p77 = scmp.ne.s32.totalorder %s69, %s72
    %p78 = scmp.eq.s32.totalorder %s17, 0
    %p79 = por %p77, %p78
    %p80 = scmp.ne.s32.totalorder %s69, %s72
    %p81 = scmp.eq.s32.totalorder %s22, 1
    %p82 = por %p80, %p81
    %p83 = scmp.ne.s32.totalorder %s72, %s73
    %p84 = scmp.eq.s32.totalorder %s22, 0
    %p85 = por %p83, %p84
    %p86 = scmp.ne.s32.totalorder %s72, %s73
    %p87 = scmp.eq.s32.totalorder %s23, 1
    %p88 = por %p86, %p87
    %p90 = scmp.ne.s32.totalorder %s73, %s89
    %p91 = scmp.eq.s32.totalorder %s23, 0
    %p92 = por %p90, %p91
    %s93 = ssub.s32 %s24, %s36
    %s94 = ssub.s32 %s25, %s32
    %s95 = sor.u32 %s93, %s94
    %p96 = scmp.eq.s32.totalorder %s95, 0
    %s98 = sadd.s32 %s97, 1
    %s99 = scalar_select %p96, %s97, %s98
    %p102 = pneg %p96
    %p103 = scmp.eq.s32.totalorder %s17, 1
    %p104 = por %p102, %p103
    %p105 = scmp.ne.s32.totalorder %s97, %s100
    %p106 = scmp.eq.s32.totalorder %s17, 0
    %p107 = por %p105, %p106
    %p108 = scmp.ne.s32.totalorder %s97, %s100
    %p109 = scmp.eq.s32.totalorder %s22, 1
    %p110 = por %p108, %p109
    %p111 = scmp.ne.s32.totalorder %s100, %s101
    %p112 = scmp.eq.s32.totalorder %s22, 0
    %p113 = por %p111, %p112
    %p114 = scmp.ne.s32.totalorder %s100, %s101
    %p115 = scmp.eq.s32.totalorder %s23, 1
    %p116 = por %p114, %p115
    %p118 = scmp.ne.s32.totalorder %s101, %s117
    %p119 = scmp.eq.s32.totalorder %s23, 0
    %p120 = por %p118, %p119
    %s121 = ssub.s32 %s24, %s36
    %s122 = ssub.s32 %s25, %s32
    %s123 = sor.u32 %s121, %s122
    %p124 = scmp.eq.s32.totalorder %s123, 0
    %s126 = sadd.s32 %s125, 1
    %s127 = scalar_select %p124, %s125, %s126
    %p130 = pneg %p124
    %p131 = scmp.eq.s32.totalorder %s17, 1
    %p132 = por %p130, %p131
    %p133 = scmp.ne.s32.totalorder %s125, %s128
    %p134 = scmp.eq.s32.totalorder %s17, 0
    %p135 = por %p133, %p134
    %p136 = scmp.ne.s32.totalorder %s125, %s128
    %p137 = scmp.eq.s32.totalorder %s22, 1
    %p138 = por %p136, %p137
    %p139 = scmp.ne.s32.totalorder %s128, %s129
    %p140 = scmp.eq.s32.totalorder %s22, 0
    %p141 = por %p139, %p140
    %p142 = scmp.ne.s32.totalorder %s128, %s129
    %p143 = scmp.eq.s32.totalorder %s23, 1
    %p144 = por %p142, %p143
    %p146 = scmp.ne.s32.totalorder %s129, %s145
    %p147 = scmp.eq.s32.totalorder %s23, 0
    %p148 = por %p146, %p147
    %s149 = ssub.s32 %s25, %s32
    %p150 = scmp.eq.s32.totalorder %s149, 0
    %s152 = sadd.s32 %s151, 1
    %s153 = scalar_select %p150, %s151, %s152
    %p156 = pneg %p150
    %p157 = scmp.eq.s32.totalorder %s17, 1
    %p158 = por %p156, %p157
    %p159 = scmp.ne.s32.totalorder %s151, %s154
    %p160 = scmp.eq.s32.totalorder %s17, 0
    %p161 = por %p159, %p160
    %p162 = scmp.ne.s32.totalorder %s151, %s154
    %p163 = scmp.eq.s32.totalorder %s22, 1
    %p164 = por %p162, %p163
    %p165 = scmp.ne.s32.totalorder %s154, %s155
    %p166 = scmp.eq.s32.totalorder %s22, 0
    %p167 = por %p165, %p166
    %p168 = scmp.ne.s32.totalorder %s154, %s155
    %p169 = scmp.eq.s32.totalorder %s23, 1
    %p170 = por %p168, %p169
    %p172 = scmp.ne.s32.totalorder %s155, %s171
    %p173 = scmp.eq.s32.totalorder %s23, 0
    %p174 = por %p172, %p173
    %s175 = ssub.s32 %s25, %s32
    %p176 = scmp.eq.s32.totalorder %s175, 0
    %s178 = sadd.s32 %s177, 1
    %s179 = scalar_select %p176, %s177, %s178
    %p182 = pneg %p176
    %p183 = scmp.eq.s32.totalorder %s17, 1
    %p184 = por %p182, %p183
    %p185 = scmp.ne.s32.totalorder %s177, %s180
    %p186 = scmp.eq.s32.totalorder %s17, 0
    %p187 = por %p185, %p186
    %p188 = scmp.ne.s32.totalorder %s177, %s180
    %p189 = scmp.eq.s32.totalorder %s22, 1
    %p190 = por %p188, %p189
    %p191 = scmp.ne.s32.totalorder %s180, %s181
    %p192 = scmp.eq.s32.totalorder %s22, 0
    %p193 = por %p191, %p192
    %p194 = scmp.ne.s32.totalorder %s180, %s181
    %p195 = scmp.eq.s32.totalorder %s23, 1
    %p196 = por %p194, %p195
    %p198 = scmp.ne.s32.totalorder %s181, %s197
    %p199 = scmp.eq.s32.totalorder %s23, 0
    %p200 = por %p198, %p199
    %s201 = ssub.s32 %s25, %s32
    %p202 = scmp.eq.s32.totalorder %s201, 0
    %s204 = sadd.s32 %s203, 1
    %s205 = scalar_select %p202, %s203, %s204
    %p208 = pneg %p202
    %p209 = scmp.eq.s32.totalorder %s17, 1
    %p210 = por %p208, %p209
    %p211 = scmp.ne.s32.totalorder %s203, %s206
    %p212 = scmp.eq.s32.totalorder %s17, 0
    %p213 = por %p211, %p212
    %p214 = scmp.ne.s32.totalorder %s203, %s206
    %p215 = scmp.eq.s32.totalorder %s22, 1
    %p216 = por %p214, %p215
    %p217 = scmp.ne.s32.totalorder %s206, %s207
    %p218 = scmp.eq.s32.totalorder %s22, 0
    %p219 = por %p217, %p218
    %p220 = scmp.ne.s32.totalorder %s206, %s207
    %p221 = scmp.eq.s32.totalorder %s23, 1
    %p222 = por %p220, %p221
    %p224 = scmp.ne.s32.totalorder %s207, %s223
    %p225 = scmp.eq.s32.totalorder %s23, 0
    %p226 = por %p224, %p225
    %s227 = ssub.s32 %s24, %s36
    %s228 = ssub.s32 %s25, %s32
    %s229 = sor.u32 %s227, %s228
    %p230 = scmp.eq.s32.totalorder %s229, 0
    %s232 = sadd.s32 %s231, 1
    %s233 = scalar_select %p230, %s231, %s232
    %p236 = pneg %p230
    %p237 = scmp.eq.s32.totalorder %s17, 1
    %p238 = por %p236, %p237
    %p239 = scmp.ne.s32.totalorder %s231, %s234
    %p240 = scmp.eq.s32.totalorder %s17, 0
    %p241 = por %p239, %p240
    %p242 = scmp.ne.s32.totalorder %s231, %s234
    %p243 = scmp.eq.s32.totalorder %s22, 1
    %p244 = por %p242, %p243
    %p245 = scmp.ne.s32.totalorder %s234, %s235
    %p246 = scmp.eq.s32.totalorder %s22, 0
    %p247 = por %p245, %p246
    %p248 = scmp.ne.s32.totalorder %s234, %s235
    %p249 = scmp.eq.s32.totalorder %s23, 1
    %p250 = por %p248, %p249
    %p252 = scmp.ne.s32.totalorder %s235, %s251
    %p253 = scmp.eq.s32.totalorder %s23, 0
    %p254 = por %p252, %p253
    %s255 = ssub.s32 %s24, %s36
    %s256 = ssub.s32 %s25, %s32
    %s257 = sor.u32 %s255, %s256
    %p258 = scmp.eq.s32.totalorder %s257, 0
    %s260 = sadd.s32 %s259, 1
    %s261 = scalar_select %p258, %s259, %s260
    %p264 = pneg %p258
    %p265 = scmp.eq.s32.totalorder %s17, 1
    %p266 = por %p264, %p265
    %p267 = scmp.ne.s32.totalorder %s259, %s262
    %p268 = scmp.eq.s32.totalorder %s17, 0
    %p269 = por %p267, %p268
    %p270 = scmp.ne.s32.totalorder %s259, %s262
    %p271 = scmp.eq.s32.totalorder %s22, 1
    %p272 = por %p270, %p271
    %p273 = scmp.ne.s32.totalorder %s262, %s263
    %p274 = scmp.eq.s32.totalorder %s22, 0
    %p275 = por %p273, %p274
    %p276 = scmp.ne.s32.totalorder %s262, %s263
    %p277 = scmp.eq.s32.totalorder %s23, 1
    %p278 = por %p276, %p277
    %p280 = scmp.ne.s32.totalorder %s263, %s279
    %p281 = scmp.eq.s32.totalorder %s23, 0
    %p282 = por %p280, %p281
    %s283 = ssub.s32 %s24, %s36
    %s284 = ssub.s32 %s25, %s32
    %s285 = sor.u32 %s283, %s284
    %p286 = scmp.eq.s32.totalorder %s285, 0
    %s288 = sadd.s32 %s287, 1
    %s289 = scalar_select %p286, %s287, %s288
    %p292 = pneg %p286
    %p293 = scmp.eq.s32.totalorder %s17, 1
    %p294 = por %p292, %p293
    %p295 = scmp.ne.s32.totalorder %s287, %s290
    %p296 = scmp.eq.s32.totalorder %s17, 0
    %p297 = por %p295, %p296
    %p298 = scmp.ne.s32.totalorder %s287, %s290
    %p299 = scmp.eq.s32.totalorder %s22, 1
    %p300 = por %p298, %p299
    %p301 = scmp.ne.s32.totalorder %s290, %s291
    %p302 = scmp.eq.s32.totalorder %s22, 0
    %p303 = por %p301, %p302
    %p304 = scmp.ne.s32.totalorder %s290, %s291
    %p305 = scmp.eq.s32.totalorder %s23, 1
    %p306 = por %p304, %p305
    %p308 = scmp.ne.s32.totalorder %s291, %s307
    %p309 = scmp.eq.s32.totalorder %s23, 0
    %p310 = por %p308, %p309
    %s311 = ssub.s32 %s24, %s36
    %s312 = ssub.s32 %s25, %s32
    %s313 = sor.u32 %s311, %s312
    %p314 = scmp.eq.s32.totalorder %s313, 0
    %s316 = sadd.s32 %s315, 1
    %s317 = scalar_select %p314, %s315, %s316
    %p320 = pneg %p314
    %p321 = scmp.eq.s32.totalorder %s17, 1
    %p322 = por %p320, %p321
    %p323 = scmp.ne.s32.totalorder %s315, %s318
    %p324 = scmp.eq.s32.totalorder %s17, 0
    %p325 = por %p323, %p324
    %p326 = scmp.ne.s32.totalorder %s315, %s318
    %p327 = scmp.eq.s32.totalorder %s22, 1
    %p328 = por %p326, %p327
    %p329 = scmp.ne.s32.totalorder %s318, %s319
    %p330 = scmp.eq.s32.totalorder %s22, 0
    %p331 = por %p329, %p330
    %p332 = scmp.ne.s32.totalorder %s318, %s319
    %p333 = scmp.eq.s32.totalorder %s23, 1
    %p334 = por %p332, %p333
    %p336 = scmp.ne.s32.totalorder %s319, %s335
    %p337 = scmp.eq.s32.totalorder %s23, 0
    %p338 = por %p336, %p337
    %p339 = scmp.le.s32.totalorder 1, %s17
    %p340 = scmp.lt.s32.totalorder %s17, 3
    %p341 = pnand %p339, %p340
    %p342 = pneg %p341
    // Predicated region
    $region9: #{tpu_custom_call.1} parent=5 // pred_check
      _
    $region10: #{tpu_custom_call.1} parent=5 // pred_check_branch
      %344 = sbr.rel (%p341) target = $region12
    $region11: #{tpu_custom_call.1} parent=5 // pred_region
      %s345 = ssub.s32 %s17, 1
      // Predicated region
      $region13: #{tpu_custom_call.1} parent=11 // pred_check
        %p346 = pneg %p167
      $region14: #{tpu_custom_call.1} parent=11 // pred_check_branch
        %348 = sbr.rel (%p346) target = $region16
      $region15: #{tpu_custom_call.1} parent=11 // pred_region
        %p349 = scmp.lt.s32.totalorder %s27, 0
        %s350 = scalar_select %p349, %s27, 0
        %s351 = smul.addr %s350, 8
        %s352 = scalar_lea.vmem %s4, %s351
      $region16: #{tpu_custom_call.1} parent=11 // pred_fallthru
        _
      // Predicated region
      $region17: #{tpu_custom_call.1} parent=11 // pred_check
        %p353 = pneg %p193
      $region18: #{tpu_custom_call.1} parent=11 // pred_check_branch
        %355 = sbr.rel (%p353) target = $region20
      $region19: #{tpu_custom_call.1} parent=11 // pred_region
        %p356 = scmp.lt.s32.totalorder %s27, 0
        %s357 = scalar_select %p356, %s27, 0
        %s358 = scalar_lea.vmem %s5, %s357
      $region20: #{tpu_custom_call.1} parent=11 // pred_fallthru
        _
      // Predicated region
      $region21: #{tpu_custom_call.1} parent=11 // pred_check
        %p359 = pneg %p219
      $region22: #{tpu_custom_call.1} parent=11 // pred_check_branch
        %361 = sbr.rel (%p359) target = $region24
      $region23: #{tpu_custom_call.1} parent=11 // pred_region
        %p362 = scmp.lt.s32.totalorder %s27, 0
        %s363 = scalar_select %p362, %s27, 0
        %s364 = smul.addr %s363, 8
        %s365 = scalar_lea.vmem %s6, %s364
      $region24: #{tpu_custom_call.1} parent=11 // pred_fallthru
        _
    $region12: #{tpu_custom_call.1} parent=5 // pred_fallthru
      _
    %p366 = scmp.lt.s32.totalorder %s17, 2
    // Predicated region
    $region25: #{tpu_custom_call.1} parent=5 // pred_check
      %p367 = pneg %p366
    $region26: #{tpu_custom_call.1} parent=5 // pred_check_branch
      %369 = sbr.rel (%p367) target = $region28
    $region27: #{tpu_custom_call.1} parent=5 // pred_region
      // Predicated region
      $region29: #{tpu_custom_call.1} parent=27 // pred_check
        %p370 = pneg %p51
      $region30: #{tpu_custom_call.1} parent=27 // pred_check_branch
        %372 = sbr.rel (%p370) target = $region32
      $region31: #{tpu_custom_call.1} parent=27 // pred_region
        %p373 = scmp.lt.s32.totalorder %s24, 1
        %s374 = scalar_select %p373, %s24, 1
        %p375 = scmp.lt.s32.totalorder %s25, 0
        %s376 = scalar_select %p375, %s25, 0
        %s377 = smul.addr %s374, 24
        %s378 = sadd.s32 %s376, %s377
        %s379 = smul.addr %s378, 8
        %s380 = scalar_lea.vmem %s0, %s379
      $region32: #{tpu_custom_call.1} parent=27 // pred_fallthru
        _
      // Predicated region
      $region33: #{tpu_custom_call.1} parent=27 // pred_check
        %p381 = pneg %p79
      $region34: #{tpu_custom_call.1} parent=27 // pred_check_branch
        %383 = sbr.rel (%p381) target = $region36
      $region35: #{tpu_custom_call.1} parent=27 // pred_region
        %p384 = scmp.lt.s32.totalorder %s24, 1
        %s385 = scalar_select %p384, %s24, 1
        %p386 = scmp.lt.s32.totalorder %s25, 0
        %s387 = scalar_select %p386, %s25, 0
        %s388 = smul.addr %s385, 24
        %s389 = sadd.s32 %s387, %s388
        %s390 = smul.addr %s389, 8
        %s391 = scalar_lea.vmem %s1, %s390
      $region36: #{tpu_custom_call.1} parent=27 // pred_fallthru
        _
      // Predicated region
      $region37: #{tpu_custom_call.1} parent=27 // pred_check
        %p392 = pneg %p107
      $region38: #{tpu_custom_call.1} parent=27 // pred_check_branch
        %394 = sbr.rel (%p392) target = $region40
      $region39: #{tpu_custom_call.1} parent=27 // pred_region
        %p395 = scmp.lt.s32.totalorder %s24, 1
        %s396 = scalar_select %p395, %s24, 1
        %p397 = scmp.lt.s32.totalorder %s25, 0
        %s398 = scalar_select %p397, %s25, 0
        %s399 = smul.addr %s396, 24
        %s400 = sadd.s32 %s398, %s399
        %s401 = smul.addr %s400, 8
        %s402 = scalar_lea.vmem %s2, %s401
      $region40: #{tpu_custom_call.1} parent=27 // pred_fallthru
        _
      // Predicated region
      $region41: #{tpu_custom_call.1} parent=27 // pred_check
        %p403 = pneg %p135
      $region42: #{tpu_custom_call.1} parent=27 // pred_check_branch
        %405 = sbr.rel (%p403) target = $region44
      $region43: #{tpu_custom_call.1} parent=27 // pred_region
        %p406 = scmp.lt.s32.totalorder %s24, 1
        %s407 = scalar_select %p406, %s24, 1
        %p408 = scmp.lt.s32.totalorder %s25, 0
        %s409 = scalar_select %p408, %s25, 0
        %s410 = smul.addr %s407, 24
        %s411 = sadd.s32 %s409, %s410
        %s412 = smul.addr %s411, 8
        %s413 = scalar_lea.vmem %s3, %s412
      $region44: #{tpu_custom_call.1} parent=27 // pred_fallthru
        _
    $region28: #{tpu_custom_call.1} parent=5 // pred_fallthru
      _
    %p414 = scmp.le.s32.totalorder 1, %s17
    %p415 = scmp.lt.s32.totalorder %s17, 3
    %p416 = pnand %p414, %p415
    %p417 = pneg %p416
    // Predicated region
    $region45: #{tpu_custom_call.1} parent=5 // pred_check
      _
    $region46: #{tpu_custom_call.1} parent=5 // pred_check_branch
      %419 = sbr.rel (%p416) target = $region48
    $region47: #{tpu_custom_call.1} parent=5 // pred_region
      %s420 = ssub.s32 %s17, 1
      %p421 = scmp.lt.s32.totalorder %s26, 1
      %s422 = scalar_select %p421, %s26, 1
      %p423 = scmp.lt.s32.totalorder %s27, 0
      %s424 = scalar_select %p423, %s27, 0
      %s425 = smul.addr %s422, 24
      %s426 = sadd.s32 %s424, %s425
      %s427 = smul.addr %s426, 8
      %s428 = scalar_lea.vmem %s0, %s427
      %p429 = pneg %p57
      %p430 = pneg %p54
      %p431 = scmp.lt.s32.totalorder %s26, 1
      %s432 = scalar_select %p431, %s26, 1
      %p433 = scmp.lt.s32.totalorder %s27, 0
      %s434 = scalar_select %p433, %s27, 0
      %s435 = smul.addr %s432, 24
      %s436 = sadd.s32 %s434, %s435
      %s437 = smul.addr %s436, 8
      %s438 = scalar_lea.vmem %s1, %s437
      %p439 = pneg %p85
      %p440 = pneg %p82
      %p441 = scmp.lt.s32.totalorder %s26, 1
      %s442 = scalar_select %p441, %s26, 1
      %p443 = scmp.lt.s32.totalorder %s27, 0
      %s444 = scalar_select %p443, %s27, 0
      %s445 = smul.addr %s442, 24
      %s446 = sadd.s32 %s444, %s445
      %s447 = smul.addr %s446, 8
      %s448 = scalar_lea.vmem %s2, %s447
      %p449 = pneg %p113
      %p450 = pneg %p110
      %p451 = scmp.lt.s32.totalorder %s26, 1
      %s452 = scalar_select %p451, %s26, 1
      %p453 = scmp.lt.s32.totalorder %s27, 0
      %s454 = scalar_select %p453, %s27, 0
      %s455 = smul.addr %s452, 24
      %s456 = sadd.s32 %s454, %s455
      %s457 = smul.addr %s456, 8
      %s458 = scalar_lea.vmem %s3, %s457
      %p459 = pneg %p141
      %p460 = pneg %p138
      %p461 = scmp.lt.s32.totalorder %s27, 0
      %s462 = scalar_select %p461, %s27, 0
      %s463 = smul.addr %s462, 8
      %s464 = scalar_lea.vmem %s4, %s463
      %p465 = pneg %p167
      %p466 = pneg %p164
      %p467 = scmp.lt.s32.totalorder %s27, 0
      %s468 = scalar_select %p467, %s27, 0
      %s469 = scalar_lea.vmem %s5, %s468
      %p470 = pneg %p193
      %p471 = pneg %p190
      %p472 = scmp.lt.s32.totalorder %s27, 0
      %s473 = scalar_select %p472, %s27, 0
      %s474 = smul.addr %s473, 8
      %s475 = scalar_lea.vmem %s6, %s474
      %p476 = pneg %p219
      %p477 = pneg %p216
      %p478 = pneg %p247
      %p479 = pneg %p244
      %p480 = scmp.lt.s32.totalorder %s26, 1
      %s481 = scalar_select %p480, %s26, 1
      %p482 = scmp.lt.s32.totalorder %s27, 0
      %s483 = scalar_select %p482, %s27, 0
      %s484 = smul.addr %s481, 8
      %s485 = sadd.s32 %s483, %s484
      %s486 = smul.addr %s485, 8
      %s487 = scalar_lea.vmem %s7, %s486
      %p488 = pneg %p275
      %p489 = pneg %p272
      %p490 = scmp.lt.s32.totalorder %s26, 1
      %s491 = scalar_select %p490, %s26, 1
      %p492 = scmp.lt.s32.totalorder %s27, 0
      %s493 = scalar_select %p492, %s27, 0
      %s494 = smul.addr %s491, 8
      %s495 = sadd.s32 %s493, %s494
      %s496 = smul.addr %s495, 8
      %s497 = scalar_lea.vmem %s8, %s496
      %p498 = pneg %p303
      %p499 = pneg %p300
      %p500 = scmp.lt.s32.totalorder %s26, 1
      %s501 = scalar_select %p500, %s26, 1
      %p502 = scmp.lt.s32.totalorder %s27, 0
      %s503 = scalar_select %p502, %s27, 0
      %s504 = smul.addr %s501, 8
      %s505 = sadd.s32 %s503, %s504
      %s506 = smul.addr %s505, 8
      %s507 = scalar_lea.vmem %s9, %s506
      %p508 = pneg %p331
      %p509 = pneg %p328
      %p510 = scmp.lt.s32.totalorder %s26, 1
      %s511 = scalar_select %p510, %s26, 1
      %p512 = scmp.lt.s32.totalorder %s27, 0
      %s513 = scalar_select %p512, %s27, 0
      %s514 = smul.addr %s511, 8
      %s515 = sadd.s32 %s513, %s514
      %s516 = smul.addr %s515, 8
      %s517 = scalar_lea.vmem %s10, %s516
      %p518 = scmp.lt.s32.totalorder %s26, 1
      %s519 = scalar_select %p518, %s26, 1
      %p520 = scmp.lt.s32.totalorder %s27, 0
      %s521 = scalar_select %p520, %s27, 0
      %s522 = smul.addr %s519, 24
      %s523 = sadd.s32 %s521, %s522
      %s524 = smul.addr %s523, 8
      %s525 = scalar_lea.vmem %s0, %s524
      %p526 = scmp.lt.s32.totalorder %s26, 1
      %s527 = scalar_select %p526, %s26, 1
      %p528 = scmp.lt.s32.totalorder %s27, 0
      %s529 = scalar_select %p528, %s27, 0
      %s530 = smul.addr %s527, 24
      %s531 = sadd.s32 %s529, %s530
      %s532 = smul.addr %s531, 8
      %s533 = scalar_lea.vmem %s1, %s532
      %p534 = scmp.lt.s32.totalorder %s26, 1
      %s535 = scalar_select %p534, %s26, 1
      %p536 = scmp.lt.s32.totalorder %s27, 0
      %s537 = scalar_select %p536, %s27, 0
      %s538 = smul.addr %s535, 24
      %s539 = sadd.s32 %s537, %s538
      %s540 = smul.addr %s539, 8
      %s541 = scalar_lea.vmem %s2, %s540
      %p542 = scmp.lt.s32.totalorder %s26, 1
      %s543 = scalar_select %p542, %s26, 1
      %p544 = scmp.lt.s32.totalorder %s27, 0
      %s545 = scalar_select %p544, %s27, 0
      %s546 = smul.addr %s543, 24
      %s547 = sadd.s32 %s545, %s546
      %s548 = smul.addr %s547, 8
      %s549 = scalar_lea.vmem %s3, %s548
      %p550 = scmp.lt.s32.totalorder %s27, 0
      %s551 = scalar_select %p550, %s27, 0
      %s552 = smul.addr %s551, 8
      %s553 = scalar_lea.vmem %s4, %s552
      %p554 = scmp.lt.s32.totalorder %s27, 0
      %s555 = scalar_select %p554, %s27, 0
      %s556 = scalar_lea.vmem %s5, %s555
      %p557 = scmp.lt.s32.totalorder %s27, 0
      %s558 = scalar_select %p557, %s27, 0
      %s559 = smul.addr %s558, 8
      %s560 = scalar_lea.vmem %s6, %s559
      %p561 = scmp.lt.s32.totalorder %s26, 1
      %s562 = scalar_select %p561, %s26, 1
      %p563 = scmp.lt.s32.totalorder %s27, 0
      %s564 = scalar_select %p563, %s27, 0
      %s565 = smul.addr %s562, 8
      %s566 = sadd.s32 %s564, %s565
      %s567 = smul.addr %s566, 8
      %s568 = scalar_lea.vmem %s7, %s567
      %p569 = scmp.lt.s32.totalorder %s26, 1
      %s570 = scalar_select %p569, %s26, 1
      %p571 = scmp.lt.s32.totalorder %s27, 0
      %s572 = scalar_select %p571, %s27, 0
      %s573 = smul.addr %s570, 8
      %s574 = sadd.s32 %s572, %s573
      %s575 = smul.addr %s574, 8
      %s576 = scalar_lea.vmem %s8, %s575
      %p577 = scmp.lt.s32.totalorder %s26, 1
      %s578 = scalar_select %p577, %s26, 1
      %p579 = scmp.lt.s32.totalorder %s27, 0
      %s580 = scalar_select %p579, %s27, 0
      %s581 = smul.addr %s578, 8
      %s582 = sadd.s32 %s580, %s581
      %s583 = smul.addr %s582, 8
      %s584 = scalar_lea.vmem %s9, %s583
      %p585 = scmp.lt.s32.totalorder %s26, 1
      %s586 = scalar_select %p585, %s26, 1
      %p587 = scmp.lt.s32.totalorder %s27, 0
      %s588 = scalar_select %p587, %s27, 0
      %s589 = smul.addr %s586, 8
      %s590 = sadd.s32 %s588, %s589
      %s591 = smul.addr %s590, 8
      %s592 = scalar_lea.vmem %s10, %s591
      %v593 = vld [vmem:[%s525] sm:$0xff]
      %v594 = vld [vmem:[%s525 + $0x8] sm:$0xf]
      %v595 = vld [vmem:[%s525 + $0x10] sm:$0xff]
      %v596 = vld [vmem:[%s525 + $0x18] sm:$0xf]
      %v597 = vld [vmem:[%s525 + $0x20] sm:$0xff]
      %v598 = vld [vmem:[%s525 + $0x28] sm:$0xf]
      %v599 = vld [vmem:[%s525 + $0x30] sm:$0xff]
      %v600 = vld [vmem:[%s525 + $0x38] sm:$0xf]
      %v601 = vld [vmem:[%s525 + $0x40] sm:$0xff]
      %v602 = vld [vmem:[%s525 + $0x48] sm:$0xf]
      %v603 = vld [vmem:[%s525 + $0x50] sm:$0xff]
      %v604 = vld [vmem:[%s525 + $0x58] sm:$0xf]
      %v605 = vld [vmem:[%s525 + $0x60] sm:$0xff]
      %v606 = vld [vmem:[%s525 + $0x68] sm:$0xf]
      %v607 = vld [vmem:[%s525 + $0x70] sm:$0xff]
      %v608 = vld [vmem:[%s525 + $0x78] sm:$0xf]
      %v609 = vld [vmem:[%s525 + $0x80] sm:$0xff]
      %v610 = vld [vmem:[%s525 + $0x88] sm:$0xf]
      %v611 = vld [vmem:[%s525 + $0x90] sm:$0xff]
      %v612 = vld [vmem:[%s525 + $0x98] sm:$0xf]
      %v613 = vld [vmem:[%s525 + $0xa0] sm:$0xff]
      %v614 = vld [vmem:[%s525 + $0xa8] sm:$0xf]
      %v615 = vld [vmem:[%s525 + $0xb0] sm:$0xff]
      %v616 = vld [vmem:[%s525 + $0xb8] sm:$0xf]
      %v617 = vld [vmem:[%s533] sm:$0xff]
      %v618 = vld [vmem:[%s533 + $0x8] sm:$0xf]
      %v619 = vld [vmem:[%s533 + $0x10] sm:$0xff]
      %v620 = vld [vmem:[%s533 + $0x18] sm:$0xf]
      %v621 = vld [vmem:[%s533 + $0x20] sm:$0xff]
      %v622 = vld [vmem:[%s533 + $0x28] sm:$0xf]
      %v623 = vld [vmem:[%s533 + $0x30] sm:$0xff]
      %v624 = vld [vmem:[%s533 + $0x38] sm:$0xf]
      %v625 = vld [vmem:[%s533 + $0x40] sm:$0xff]
      %v626 = vld [vmem:[%s533 + $0x48] sm:$0xf]
      %v627 = vld [vmem:[%s533 + $0x50] sm:$0xff]
      %v628 = vld [vmem:[%s533 + $0x58] sm:$0xf]
      %v629 = vld [vmem:[%s533 + $0x60] sm:$0xff]
      %v630 = vld [vmem:[%s533 + $0x68] sm:$0xf]
      %v631 = vld [vmem:[%s533 + $0x70] sm:$0xff]
      %v632 = vld [vmem:[%s533 + $0x78] sm:$0xf]
      %v633 = vld [vmem:[%s533 + $0x80] sm:$0xff]
      %v634 = vld [vmem:[%s533 + $0x88] sm:$0xf]
      %v635 = vld [vmem:[%s533 + $0x90] sm:$0xff]
      %v636 = vld [vmem:[%s533 + $0x98] sm:$0xf]
      %v637 = vld [vmem:[%s533 + $0xa0] sm:$0xff]
      %v638 = vld [vmem:[%s533 + $0xa8] sm:$0xf]
      %v639 = vld [vmem:[%s533 + $0xb0] sm:$0xff]
      %v640 = vld [vmem:[%s533 + $0xb8] sm:$0xf]
      %v641 = vadd.f32 %v593, %v617
      %v642 = vadd.f32 %v594, %v618
      %v643 = vadd.f32 %v595, %v619
      %v644 = vadd.f32 %v596, %v620
      %v645 = vadd.f32 %v597, %v621
      %v646 = vadd.f32 %v598, %v622
      %v647 = vadd.f32 %v599, %v623
      %v648 = vadd.f32 %v600, %v624
      %v649 = vadd.f32 %v601, %v625
      %v650 = vadd.f32 %v602, %v626
      %v651 = vadd.f32 %v603, %v627
      %v652 = vadd.f32 %v604, %v628
      %v653 = vadd.f32 %v605, %v629
      %v654 = vadd.f32 %v606, %v630
      %v655 = vadd.f32 %v607, %v631
      %v656 = vadd.f32 %v608, %v632
      %v657 = vadd.f32 %v609, %v633
      %v658 = vadd.f32 %v610, %v634
      %v659 = vadd.f32 %v611, %v635
      %v660 = vadd.f32 %v612, %v636
      %v661 = vadd.f32 %v613, %v637
      %v662 = vadd.f32 %v614, %v638
      %v663 = vadd.f32 %v615, %v639
      %v664 = vadd.f32 %v616, %v640
      %v665 = vld [vmem:[%s541] sm:$0xff]
      %v666 = vld [vmem:[%s541 + $0x8] sm:$0xf]
      %v667 = vld [vmem:[%s541 + $0x10] sm:$0xff]
      %v668 = vld [vmem:[%s541 + $0x18] sm:$0xf]
      %v669 = vld [vmem:[%s541 + $0x20] sm:$0xff]
      %v670 = vld [vmem:[%s541 + $0x28] sm:$0xf]
      %v671 = vld [vmem:[%s541 + $0x30] sm:$0xff]
      %v672 = vld [vmem:[%s541 + $0x38] sm:$0xf]
      %v673 = vld [vmem:[%s541 + $0x40] sm:$0xff]
      %v674 = vld [vmem:[%s541 + $0x48] sm:$0xf]
      %v675 = vld [vmem:[%s541 + $0x50] sm:$0xff]
      %v676 = vld [vmem:[%s541 + $0x58] sm:$0xf]
      %v677 = vld [vmem:[%s541 + $0x60] sm:$0xff]
      %v678 = vld [vmem:[%s541 + $0x68] sm:$0xf]
      %v679 = vld [vmem:[%s541 + $0x70] sm:$0xff]
      %v680 = vld [vmem:[%s541 + $0x78] sm:$0xf]
      %v681 = vld [vmem:[%s541 + $0x80] sm:$0xff]
      %v682 = vld [vmem:[%s541 + $0x88] sm:$0xf]
      %v683 = vld [vmem:[%s541 + $0x90] sm:$0xff]
      %v684 = vld [vmem:[%s541 + $0x98] sm:$0xf]
      %v685 = vld [vmem:[%s541 + $0xa0] sm:$0xff]
      %v686 = vld [vmem:[%s541 + $0xa8] sm:$0xf]
      %v687 = vld [vmem:[%s541 + $0xb0] sm:$0xff]
      %v688 = vld [vmem:[%s541 + $0xb8] sm:$0xf]
      %v689 = vadd.f32 %v641, %v665
      %v690 = vadd.f32 %v642, %v666
      %v691 = vadd.f32 %v643, %v667
      %v692 = vadd.f32 %v644, %v668
      %v693 = vadd.f32 %v645, %v669
      %v694 = vadd.f32 %v646, %v670
      %v695 = vadd.f32 %v647, %v671
      %v696 = vadd.f32 %v648, %v672
      %v697 = vadd.f32 %v649, %v673
      %v698 = vadd.f32 %v650, %v674
      %v699 = vadd.f32 %v651, %v675
      %v700 = vadd.f32 %v652, %v676
      %v701 = vadd.f32 %v653, %v677
      %v702 = vadd.f32 %v654, %v678
      %v703 = vadd.f32 %v655, %v679
      %v704 = vadd.f32 %v656, %v680
      %v705 = vadd.f32 %v657, %v681
      %v706 = vadd.f32 %v658, %v682
      %v707 = vadd.f32 %v659, %v683
      %v708 = vadd.f32 %v660, %v684
      %v709 = vadd.f32 %v661, %v685
      %v710 = vadd.f32 %v662, %v686
      %v711 = vadd.f32 %v663, %v687
      %v712 = vadd.f32 %v664, %v688
      %v713 = vld [vmem:[%s549] sm:$0xff]
      %v714 = vld [vmem:[%s549 + $0x8] sm:$0xf]
      %v715 = vld [vmem:[%s549 + $0x10] sm:$0xff]
      %v716 = vld [vmem:[%s549 + $0x18] sm:$0xf]
      %v717 = vld [vmem:[%s549 + $0x20] sm:$0xff]
      %v718 = vld [vmem:[%s549 + $0x28] sm:$0xf]
      %v719 = vld [vmem:[%s549 + $0x30] sm:$0xff]
      %v720 = vld [vmem:[%s549 + $0x38] sm:$0xf]
      %v721 = vld [vmem:[%s549 + $0x40] sm:$0xff]
      %v722 = vld [vmem:[%s549 + $0x48] sm:$0xf]
      %v723 = vld [vmem:[%s549 + $0x50] sm:$0xff]
      %v724 = vld [vmem:[%s549 + $0x58] sm:$0xf]
      %v725 = vld [vmem:[%s549 + $0x60] sm:$0xff]
      %v726 = vld [vmem:[%s549 + $0x68] sm:$0xf]
      %v727 = vld [vmem:[%s549 + $0x70] sm:$0xff]
      %v728 = vld [vmem:[%s549 + $0x78] sm:$0xf]
      %v729 = vld [vmem:[%s549 + $0x80] sm:$0xff]
      %v730 = vld [vmem:[%s549 + $0x88] sm:$0xf]
      %v731 = vld [vmem:[%s549 + $0x90] sm:$0xff]
      %v732 = vld [vmem:[%s549 + $0x98] sm:$0xf]
      %v733 = vld [vmem:[%s549 + $0xa0] sm:$0xff]
      %v734 = vld [vmem:[%s549 + $0xa8] sm:$0xf]
      %v735 = vld [vmem:[%s549 + $0xb0] sm:$0xff]
      %v736 = vld [vmem:[%s549 + $0xb8] sm:$0xf]
      %v737 = vadd.f32 %v689, %v713
      %v738 = vadd.f32 %v690, %v714
      %v739 = vadd.f32 %v691, %v715
      %v740 = vadd.f32 %v692, %v716
      %v741 = vadd.f32 %v693, %v717
      %v742 = vadd.f32 %v694, %v718
      %v743 = vadd.f32 %v695, %v719
      %v744 = vadd.f32 %v696, %v720
      %v745 = vadd.f32 %v697, %v721
      %v746 = vadd.f32 %v698, %v722
      %v747 = vadd.f32 %v699, %v723
      %v748 = vadd.f32 %v700, %v724
      %v749 = vadd.f32 %v701, %v725
      %v750 = vadd.f32 %v702, %v726
      %v751 = vadd.f32 %v703, %v727
      %v752 = vadd.f32 %v704, %v728
      %v753 = vadd.f32 %v705, %v729
      %v754 = vadd.f32 %v706, %v730
      %v755 = vadd.f32 %v707, %v731
      %v756 = vadd.f32 %v708, %v732
      %v757 = vadd.f32 %v709, %v733
      %v758 = vadd.f32 %v710, %v734
      %v759 = vadd.f32 %v711, %v735
      %v760 = vadd.f32 %v712, %v736
      %vm761 = vcmask 31744
      %762 = vst.msk [vmem:[#allocation2] sm:$0xff] %vm761, %v737
      %vm763 = vcmask 27648
      %764 = vst.msk [vmem:[#allocation2 + $0x8] sm:$0xf] %vm763, %v738
      %765 = vst.msk [vmem:[#allocation2 + $0x10] sm:$0xff] %vm761, %v739
      %766 = vst.msk [vmem:[#allocation2 + $0x18] sm:$0xf] %vm763, %v740
      %767 = vst.msk [vmem:[#allocation2 + $0x20] sm:$0xff] %vm761, %v741
      %768 = vst.msk [vmem:[#allocation2 + $0x28] sm:$0xf] %vm763, %v742
      %769 = vst.msk [vmem:[#allocation2 + $0x30] sm:$0xff] %vm761, %v743
      %770 = vst.msk [vmem:[#allocation2 + $0x38] sm:$0xf] %vm763, %v744
      %771 = vst.msk [vmem:[#allocation2 + $0x40] sm:$0xff] %vm761, %v745
      %772 = vst.msk [vmem:[#allocation2 + $0x48] sm:$0xf] %vm763, %v746
      %773 = vst.msk [vmem:[#allocation2 + $0x50] sm:$0xff] %vm761, %v747
      %774 = vst.msk [vmem:[#allocation2 + $0x58] sm:$0xf] %vm763, %v748
      %775 = vst.msk [vmem:[#allocation2 + $0x60] sm:$0xff] %vm761, %v749
      %776 = vst.msk [vmem:[#allocation2 + $0x68] sm:$0xf] %vm763, %v750
      %777 = vst.msk [vmem:[#allocation2 + $0x70] sm:$0xff] %vm761, %v751
      %778 = vst.msk [vmem:[#allocation2 + $0x78] sm:$0xf] %vm763, %v752
      %779 = vst.msk [vmem:[#allocation2 + $0x80] sm:$0xff] %vm761, %v753
      %780 = vst.msk [vmem:[#allocation2 + $0x88] sm:$0xf] %vm763, %v754
      %781 = vst.msk [vmem:[#allocation2 + $0x90] sm:$0xff] %vm761, %v755
      %782 = vst.msk [vmem:[#allocation2 + $0x98] sm:$0xf] %vm763, %v756
      %783 = vst.msk [vmem:[#allocation2 + $0xa0] sm:$0xff] %vm761, %v757
      %784 = vst.msk [vmem:[#allocation2 + $0xa8] sm:$0xf] %vm763, %v758
      %785 = vst.msk [vmem:[#allocation2 + $0xb0] sm:$0xff] %vm761, %v759
      %786 = vst.msk [vmem:[#allocation2 + $0xb8] sm:$0xf] %vm763, %v760
      %v787 = vld [vmem:[%s560] sm:$0x1]
      %v788 = vld [vmem:[#allocation2] sm:$0xff]
      %v789 = vld [vmem:[#allocation2 + $0x10] sm:$0xff]
      %v790 = vld [vmem:[#allocation2 + $0x20] sm:$0xff]
      %v791 = vld [vmem:[#allocation2 + $0x30] sm:$0xff]
      %v792 = vld [vmem:[#allocation2 + $0x40] sm:$0xff]
      %v793 = vld [vmem:[#allocation2 + $0x50] sm:$0xff]
      %v794 = vld [vmem:[#allocation2 + $0x60] sm:$0xff]
      %v795 = vld [vmem:[#allocation2 + $0x70] sm:$0xff]
      %v796 = vlaneseq
      %v797 = vshrl.u32 %v796, 7
      %v798 = vsub.s32 0, %v797
      %v799 = vrot.slane %v787, %v798
      %v800 = vmul.f32 %v788, %v799
      %v801 = vmul.f32 %v789, %v799
      %v802 = vmul.f32 %v790, %v799
      %v803 = vmul.f32 %v791, %v799
      %v804 = vmul.f32 %v792, %v799
      %v805 = vmul.f32 %v793, %v799
      %v806 = vmul.f32 %v794, %v799
      %v807 = vmul.f32 %v795, %v799
      %v808 = vld [vmem:[%s560 + $0x1] sm:$0x1]
      %v809 = vld [vmem:[#allocation2 + $0x1] sm:$0xff]
      %v810 = vld [vmem:[#allocation2 + $0x11] sm:$0xff]
      %v811 = vld [vmem:[#allocation2 + $0x21] sm:$0xff]
      %v812 = vld [vmem:[#allocation2 + $0x31] sm:$0xff]
      %v813 = vld [vmem:[#allocation2 + $0x41] sm:$0xff]
      %v814 = vld [vmem:[#allocation2 + $0x51] sm:$0xff]
      %v815 = vld [vmem:[#allocation2 + $0x61] sm:$0xff]
      %v816 = vld [vmem:[#allocation2 + $0x71] sm:$0xff]
      %v817 = vlaneseq
      %v818 = vshrl.u32 %v817, 7
      %v819 = vsub.s32 0, %v818
      %v820 = vrot.slane %v808, %v819
      %v821 = vmul.f32 %v809, %v820
      %v822 = vmul.f32 %v810, %v820
      %v823 = vmul.f32 %v811, %v820
      %v824 = vmul.f32 %v812, %v820
      %v825 = vmul.f32 %v813, %v820
      %v826 = vmul.f32 %v814, %v820
      %v827 = vmul.f32 %v815, %v820
      %v828 = vmul.f32 %v816, %v820
      %v829 = vadd.f32 %v800, %v821
      %v830 = vadd.f32 %v801, %v822
      %v831 = vadd.f32 %v802, %v823
      %v832 = vadd.f32 %v803, %v824
      %v833 = vadd.f32 %v804, %v825
      %v834 = vadd.f32 %v805, %v826
      %v835 = vadd.f32 %v806, %v827
      %v836 = vadd.f32 %v807, %v828
      %v837 = vld [vmem:[%s560 + $0x2] sm:$0x1]
      %v838 = vld [vmem:[#allocation2 + $0x2] sm:$0xff]
      %v839 = vld [vmem:[#allocation2 + $0x12] sm:$0xff]
      %v840 = vld [vmem:[#allocation2 + $0x22] sm:$0xff]
      %v841 = vld [vmem:[#allocation2 + $0x32] sm:$0xff]
      %v842 = vld [vmem:[#allocation2 + $0x42] sm:$0xff]
      %v843 = vld [vmem:[#allocation2 + $0x52] sm:$0xff]
      %v844 = vld [vmem:[#allocation2 + $0x62] sm:$0xff]
      %v845 = vld [vmem:[#allocation2 + $0x72] sm:$0xff]
      %v846 = vlaneseq
      %v847 = vshrl.u32 %v846, 7
      %v848 = vsub.s32 0, %v847
      %v849 = vrot.slane %v837, %v848
      %v850 = vmul.f32 %v838, %v849
      %v851 = vmul.f32 %v839, %v849
      %v852 = vmul.f32 %v840, %v849
      %v853 = vmul.f32 %v841, %v849
      %v854 = vmul.f32 %v842, %v849
      %v855 = vmul.f32 %v843, %v849
      %v856 = vmul.f32 %v844, %v849
      %v857 = vmul.f32 %v845, %v849
      %v858 = vadd.f32 %v829, %v850
      %v859 = vadd.f32 %v830, %v851
      %v860 = vadd.f32 %v831, %v852
      %v861 = vadd.f32 %v832, %v853
      %v862 = vadd.f32 %v833, %v854
      %v863 = vadd.f32 %v834, %v855
      %v864 = vadd.f32 %v835, %v856
      %v865 = vadd.f32 %v836, %v857
      %v866 = vld [vmem:[%s560 + $0x3] sm:$0x1]
      %v867 = vld [vmem:[#allocation2 + $0x3] sm:$0xff]
      %v868 = vld [vmem:[#allocation2 + $0x13] sm:$0xff]
      %v869 = vld [vmem:[#allocation2 + $0x23] sm:$0xff]
      %v870 = vld [vmem:[#allocation2 + $0x33] sm:$0xff]
      %v871 = vld [vmem:[#allocation2 + $0x43] sm:$0xff]
      %v872 = vld [vmem:[#allocation2 + $0x53] sm:$0xff]
      %v873 = vld [vmem:[#allocation2 + $0x63] sm:$0xff]
      %v874 = vld [vmem:[#allocation2 + $0x73] sm:$0xff]
      %v875 = vlaneseq
      %v876 = vshrl.u32 %v875, 7
      %v877 = vsub.s32 0, %v876
      %v878 = vrot.slane %v866, %v877
      %v879 = vmul.f32 %v867, %v878
      %v880 = vmul.f32 %v868, %v878
      %v881 = vmul.f32 %v869, %v878
      %v882 = vmul.f32 %v870, %v878
      %v883 = vmul.f32 %v871, %v878
      %v884 = vmul.f32 %v872, %v878
      %v885 = vmul.f32 %v873, %v878
      %v886 = vmul.f32 %v874, %v878
      %v887 = vadd.f32 %v858, %v879
      %v888 = vadd.f32 %v859, %v880
      %v889 = vadd.f32 %v860, %v881
      %v890 = vadd.f32 %v861, %v882
      %v891 = vadd.f32 %v862, %v883
      %v892 = vadd.f32 %v863, %v884
      %v893 = vadd.f32 %v864, %v885
      %v894 = vadd.f32 %v865, %v886
      %v895 = vld [vmem:[%s560 + $0x4] sm:$0x1]
      %v896 = vld [vmem:[#allocation2 + $0x4] sm:$0xff]
      %v897 = vld [vmem:[#allocation2 + $0x14] sm:$0xff]
      %v898 = vld [vmem:[#allocation2 + $0x24] sm:$0xff]
      %v899 = vld [vmem:[#allocation2 + $0x34] sm:$0xff]
      %v900 = vld [vmem:[#allocation2 + $0x44] sm:$0xff]
      %v901 = vld [vmem:[#allocation2 + $0x54] sm:$0xff]
      %v902 = vld [vmem:[#allocation2 + $0x64] sm:$0xff]
      %v903 = vld [vmem:[#allocation2 + $0x74] sm:$0xff]
      %v904 = vlaneseq
      %v905 = vshrl.u32 %v904, 7
      %v906 = vsub.s32 0, %v905
      %v907 = vrot.slane %v895, %v906
      %v908 = vmul.f32 %v896, %v907
      %v909 = vmul.f32 %v897, %v907
      %v910 = vmul.f32 %v898, %v907
      %v911 = vmul.f32 %v899, %v907
      %v912 = vmul.f32 %v900, %v907
      %v913 = vmul.f32 %v901, %v907
      %v914 = vmul.f32 %v902, %v907
      %v915 = vmul.f32 %v903, %v907
      %v916 = vadd.f32 %v887, %v908
      %v917 = vadd.f32 %v888, %v909
      %v918 = vadd.f32 %v889, %v910
      %v919 = vadd.f32 %v890, %v911
      %v920 = vadd.f32 %v891, %v912
      %v921 = vadd.f32 %v892, %v913
      %v922 = vadd.f32 %v893, %v914
      %v923 = vadd.f32 %v894, %v915
      %s924 = scalar_lea.vmem %s560, 8
      %v925 = vld [vmem:[%s924] sm:$0x1]
      %s926 = scalar_lea.vmem [#allocation2], 16
      %v927 = vld [vmem:[%s926] sm:$0xff]
      %v928 = vld [vmem:[%s926 + $0x10] sm:$0xff]
      %v929 = vld [vmem:[%s926 + $0x20] sm:$0xff]
      %v930 = vld [vmem:[%s926 + $0x30] sm:$0xff]
      %v931 = vld [vmem:[%s926 + $0x40] sm:$0xff]
      %v932 = vld [vmem:[%s926 + $0x50] sm:$0xff]
      %v933 = vld [vmem:[%s926 + $0x60] sm:$0xff]
      %v934 = vld [vmem:[%s926 + $0x70] sm:$0xff]
      %v935 = vlaneseq
      %v936 = vshrl.u32 %v935, 7
      %v937 = vsub.s32 0, %v936
      %v938 = vrot.slane %v925, %v937
      %v939 = vmul.f32 %v927, %v938
      %v940 = vmul.f32 %v928, %v938
      %v941 = vmul.f32 %v929, %v938
      %v942 = vmul.f32 %v930, %v938
      %v943 = vmul.f32 %v931, %v938
      %v944 = vmul.f32 %v932, %v938
      %v945 = vmul.f32 %v933, %v938
      %v946 = vmul.f32 %v934, %v938
      %v947 = vadd.f32 %v916, %v939
      %v948 = vadd.f32 %v917, %v940
      %v949 = vadd.f32 %v918, %v941
      %v950 = vadd.f32 %v919, %v942
      %v951 = vadd.f32 %v920, %v943
      %v952 = vadd.f32 %v921, %v944
      %v953 = vadd.f32 %v922, %v945
      %v954 = vadd.f32 %v923, %v946
      %v955 = vld [vmem:[%s924 + $0x1] sm:$0x1]
      %v956 = vld [vmem:[%s926 + $0x1] sm:$0xff]
      %v957 = vld [vmem:[%s926 + $0x11] sm:$0xff]
      %v958 = vld [vmem:[%s926 + $0x21] sm:$0xff]
      %v959 = vld [vmem:[%s926 + $0x31] sm:$0xff]
      %v960 = vld [vmem:[%s926 + $0x41] sm:$0xff]
      %v961 = vld [vmem:[%s926 + $0x51] sm:$0xff]
      %v962 = vld [vmem:[%s926 + $0x61] sm:$0xff]
      %v963 = vld [vmem:[%s926 + $0x71] sm:$0xff]
      %v964 = vlaneseq
      %v965 = vshrl.u32 %v964, 7
      %v966 = vsub.s32 0, %v965
      %v967 = vrot.slane %v955, %v966
      %v968 = vmul.f32 %v956, %v967
      %v969 = vmul.f32 %v957, %v967
      %v970 = vmul.f32 %v958, %v967
      %v971 = vmul.f32 %v959, %v967
      %v972 = vmul.f32 %v960, %v967
      %v973 = vmul.f32 %v961, %v967
      %v974 = vmul.f32 %v962, %v967
      %v975 = vmul.f32 %v963, %v967
      %v976 = vadd.f32 %v947, %v968
      %v977 = vadd.f32 %v948, %v969
      %v978 = vadd.f32 %v949, %v970
      %v979 = vadd.f32 %v950, %v971
      %v980 = vadd.f32 %v951, %v972
      %v981 = vadd.f32 %v952, %v973
      %v982 = vadd.f32 %v953, %v974
      %v983 = vadd.f32 %v954, %v975
      %v984 = vld [vmem:[%s924 + $0x2] sm:$0x1]
      %v985 = vld [vmem:[%s926 + $0x2] sm:$0xff]
      %v986 = vld [vmem:[%s926 + $0x12] sm:$0xff]
      %v987 = vld [vmem:[%s926 + $0x22] sm:$0xff]
      %v988 = vld [vmem:[%s926 + $0x32] sm:$0xff]
      %v989 = vld [vmem:[%s926 + $0x42] sm:$0xff]
      %v990 = vld [vmem:[%s926 + $0x52] sm:$0xff]
      %v991 = vld [vmem:[%s926 + $0x62] sm:$0xff]
      %v992 = vld [vmem:[%s926 + $0x72] sm:$0xff]
      %v993 = vlaneseq
      %v994 = vshrl.u32 %v993, 7
      %v995 = vsub.s32 0, %v994
      %v996 = vrot.slane %v984, %v995
      %v997 = vmul.f32 %v985, %v996
      %v998 = vmul.f32 %v986, %v996
      %v999 = vmul.f32 %v987, %v996
      %v1000 = vmul.f32 %v988, %v996
      %v1001 = vmul.f32 %v989, %v996
      %v1002 = vmul.f32 %v990, %v996
      %v1003 = vmul.f32 %v991, %v996
      %v1004 = vmul.f32 %v992, %v996
      %v1005 = vadd.f32 %v976, %v997
      %v1006 = vadd.f32 %v977, %v998
      %v1007 = vadd.f32 %v978, %v999
      %v1008 = vadd.f32 %v979, %v1000
      %v1009 = vadd.f32 %v980, %v1001
      %v1010 = vadd.f32 %v981, %v1002
      %v1011 = vadd.f32 %v982, %v1003
      %v1012 = vadd.f32 %v983, %v1004
      %v1013 = vld [vmem:[%s924 + $0x3] sm:$0x1]
      %v1014 = vld [vmem:[%s926 + $0x3] sm:$0xff]
      %v1015 = vld [vmem:[%s926 + $0x13] sm:$0xff]
      %v1016 = vld [vmem:[%s926 + $0x23] sm:$0xff]
      %v1017 = vld [vmem:[%s926 + $0x33] sm:$0xff]
      %v1018 = vld [vmem:[%s926 + $0x43] sm:$0xff]
      %v1019 = vld [vmem:[%s926 + $0x53] sm:$0xff]
      %v1020 = vld [vmem:[%s926 + $0x63] sm:$0xff]
      %v1021 = vld [vmem:[%s926 + $0x73] sm:$0xff]
      %v1022 = vlaneseq
      %v1023 = vshrl.u32 %v1022, 7
      %v1024 = vsub.s32 0, %v1023
      %v1025 = vrot.slane %v1013, %v1024
      %v1026 = vmul.f32 %v1014, %v1025
      %v1027 = vmul.f32 %v1015, %v1025
      %v1028 = vmul.f32 %v1016, %v1025
      %v1029 = vmul.f32 %v1017, %v1025
      %v1030 = vmul.f32 %v1018, %v1025
      %v1031 = vmul.f32 %v1019, %v1025
      %v1032 = vmul.f32 %v1020, %v1025
      %v1033 = vmul.f32 %v1021, %v1025
      %v1034 = vadd.f32 %v1005, %v1026
      %v1035 = vadd.f32 %v1006, %v1027
      %v1036 = vadd.f32 %v1007, %v1028
      %v1037 = vadd.f32 %v1008, %v1029
      %v1038 = vadd.f32 %v1009, %v1030
      %v1039 = vadd.f32 %v1010, %v1031
      %v1040 = vadd.f32 %v1011, %v1032
      %v1041 = vadd.f32 %v1012, %v1033
      %v1042 = vld [vmem:[%s924 + $0x4] sm:$0x1]
      %v1043 = vld [vmem:[%s926 + $0x4] sm:$0xff]
      %v1044 = vld [vmem:[%s926 + $0x14] sm:$0xff]
      %v1045 = vld [vmem:[%s926 + $0x24] sm:$0xff]
      %v1046 = vld [vmem:[%s926 + $0x34] sm:$0xff]
      %v1047 = vld [vmem:[%s926 + $0x44] sm:$0xff]
      %v1048 = vld [vmem:[%s926 + $0x54] sm:$0xff]
      %v1049 = vld [vmem:[%s926 + $0x64] sm:$0xff]
      %v1050 = vld [vmem:[%s926 + $0x74] sm:$0xff]
      %v1051 = vlaneseq
      %v1052 = vshrl.u32 %v1051, 7
      %v1053 = vsub.s32 0, %v1052
      %v1054 = vrot.slane %v1042, %v1053
      %v1055 = vmul.f32 %v1043, %v1054
      %v1056 = vmul.f32 %v1044, %v1054
      %v1057 = vmul.f32 %v1045, %v1054
      %v1058 = vmul.f32 %v1046, %v1054
      %v1059 = vmul.f32 %v1047, %v1054
      %v1060 = vmul.f32 %v1048, %v1054
      %v1061 = vmul.f32 %v1049, %v1054
      %v1062 = vmul.f32 %v1050, %v1054
      %v1063 = vadd.f32 %v1034, %v1055
      %v1064 = vadd.f32 %v1035, %v1056
      %v1065 = vadd.f32 %v1036, %v1057
      %v1066 = vadd.f32 %v1037, %v1058
      %v1067 = vadd.f32 %v1038, %v1059
      %v1068 = vadd.f32 %v1039, %v1060
      %v1069 = vadd.f32 %v1040, %v1061
      %v1070 = vadd.f32 %v1041, %v1062
      %s1071 = scalar_lea.vmem %s560, 16
      %v1072 = vld [vmem:[%s1071] sm:$0x1]
      %s1073 = scalar_lea.vmem [#allocation2], 32
      %v1074 = vld [vmem:[%s1073] sm:$0xff]
      %v1075 = vld [vmem:[%s1073 + $0x10] sm:$0xff]
      %v1076 = vld [vmem:[%s1073 + $0x20] sm:$0xff]
      %v1077 = vld [vmem:[%s1073 + $0x30] sm:$0xff]
      %v1078 = vld [vmem:[%s1073 + $0x40] sm:$0xff]
      %v1079 = vld [vmem:[%s1073 + $0x50] sm:$0xff]
      %v1080 = vld [vmem:[%s1073 + $0x60] sm:$0xff]
      %v1081 = vld [vmem:[%s1073 + $0x70] sm:$0xff]
      %v1082 = vlaneseq
      %v1083 = vshrl.u32 %v1082, 7
      %v1084 = vsub.s32 0, %v1083
      %v1085 = vrot.slane %v1072, %v1084
      %v1086 = vmul.f32 %v1074, %v1085
      %v1087 = vmul.f32 %v1075, %v1085
      %v1088 = vmul.f32 %v1076, %v1085
      %v1089 = vmul.f32 %v1077, %v1085
      %v1090 = vmul.f32 %v1078, %v1085
      %v1091 = vmul.f32 %v1079, %v1085
      %v1092 = vmul.f32 %v1080, %v1085
      %v1093 = vmul.f32 %v1081, %v1085
      %v1094 = vadd.f32 %v1063, %v1086
      %v1095 = vadd.f32 %v1064, %v1087
      %v1096 = vadd.f32 %v1065, %v1088
      %v1097 = vadd.f32 %v1066, %v1089
      %v1098 = vadd.f32 %v1067, %v1090
      %v1099 = vadd.f32 %v1068, %v1091
      %v1100 = vadd.f32 %v1069, %v1092
      %v1101 = vadd.f32 %v1070, %v1093
      %v1102 = vld [vmem:[%s1071 + $0x1] sm:$0x1]
      %v1103 = vld [vmem:[%s1073 + $0x1] sm:$0xff]
      %v1104 = vld [vmem:[%s1073 + $0x11] sm:$0xff]
      %v1105 = vld [vmem:[%s1073 + $0x21] sm:$0xff]
      %v1106 = vld [vmem:[%s1073 + $0x31] sm:$0xff]
      %v1107 = vld [vmem:[%s1073 + $0x41] sm:$0xff]
      %v1108 = vld [vmem:[%s1073 + $0x51] sm:$0xff]
      %v1109 = vld [vmem:[%s1073 + $0x61] sm:$0xff]
      %v1110 = vld [vmem:[%s1073 + $0x71] sm:$0xff]
      %v1111 = vlaneseq
      %v1112 = vshrl.u32 %v1111, 7
      %v1113 = vsub.s32 0, %v1112
      %v1114 = vrot.slane %v1102, %v1113
      %v1115 = vmul.f32 %v1103, %v1114
      %v1116 = vmul.f32 %v1104, %v1114
      %v1117 = vmul.f32 %v1105, %v1114
      %v1118 = vmul.f32 %v1106, %v1114
      %v1119 = vmul.f32 %v1107, %v1114
      %v1120 = vmul.f32 %v1108, %v1114
      %v1121 = vmul.f32 %v1109, %v1114
      %v1122 = vmul.f32 %v1110, %v1114
      %v1123 = vadd.f32 %v1094, %v1115
      %v1124 = vadd.f32 %v1095, %v1116
      %v1125 = vadd.f32 %v1096, %v1117
      %v1126 = vadd.f32 %v1097, %v1118
      %v1127 = vadd.f32 %v1098, %v1119
      %v1128 = vadd.f32 %v1099, %v1120
      %v1129 = vadd.f32 %v1100, %v1121
      %v1130 = vadd.f32 %v1101, %v1122
      %v1131 = vld [vmem:[%s1071 + $0x2] sm:$0x1]
      %v1132 = vld [vmem:[%s1073 + $0x2] sm:$0xff]
      %v1133 = vld [vmem:[%s1073 + $0x12] sm:$0xff]
      %v1134 = vld [vmem:[%s1073 + $0x22] sm:$0xff]
      %v1135 = vld [vmem:[%s1073 + $0x32] sm:$0xff]
      %v1136 = vld [vmem:[%s1073 + $0x42] sm:$0xff]
      %v1137 = vld [vmem:[%s1073 + $0x52] sm:$0xff]
      %v1138 = vld [vmem:[%s1073 + $0x62] sm:$0xff]
      %v1139 = vld [vmem:[%s1073 + $0x72] sm:$0xff]
      %v1140 = vlaneseq
      %v1141 = vshrl.u32 %v1140, 7
      %v1142 = vsub.s32 0, %v1141
      %v1143 = vrot.slane %v1131, %v1142
      %v1144 = vmul.f32 %v1132, %v1143
      %v1145 = vmul.f32 %v1133, %v1143
      %v1146 = vmul.f32 %v1134, %v1143
      %v1147 = vmul.f32 %v1135, %v1143
      %v1148 = vmul.f32 %v1136, %v1143
      %v1149 = vmul.f32 %v1137, %v1143
      %v1150 = vmul.f32 %v1138, %v1143
      %v1151 = vmul.f32 %v1139, %v1143
      %v1152 = vadd.f32 %v1123, %v1144
      %v1153 = vadd.f32 %v1124, %v1145
      %v1154 = vadd.f32 %v1125, %v1146
      %v1155 = vadd.f32 %v1126, %v1147
      %v1156 = vadd.f32 %v1127, %v1148
      %v1157 = vadd.f32 %v1128, %v1149
      %v1158 = vadd.f32 %v1129, %v1150
      %v1159 = vadd.f32 %v1130, %v1151
      %v1160 = vld [vmem:[%s1071 + $0x3] sm:$0x1]
      %v1161 = vld [vmem:[%s1073 + $0x3] sm:$0xff]
      %v1162 = vld [vmem:[%s1073 + $0x13] sm:$0xff]
      %v1163 = vld [vmem:[%s1073 + $0x23] sm:$0xff]
      %v1164 = vld [vmem:[%s1073 + $0x33] sm:$0xff]
      %v1165 = vld [vmem:[%s1073 + $0x43] sm:$0xff]
      %v1166 = vld [vmem:[%s1073 + $0x53] sm:$0xff]
      %v1167 = vld [vmem:[%s1073 + $0x63] sm:$0xff]
      %v1168 = vld [vmem:[%s1073 + $0x73] sm:$0xff]
      %v1169 = vlaneseq
      %v1170 = vshrl.u32 %v1169, 7
      %v1171 = vsub.s32 0, %v1170
      %v1172 = vrot.slane %v1160, %v1171
      %v1173 = vmul.f32 %v1161, %v1172
      %v1174 = vmul.f32 %v1162, %v1172
      %v1175 = vmul.f32 %v1163, %v1172
      %v1176 = vmul.f32 %v1164, %v1172
      %v1177 = vmul.f32 %v1165, %v1172
      %v1178 = vmul.f32 %v1166, %v1172
      %v1179 = vmul.f32 %v1167, %v1172
      %v1180 = vmul.f32 %v1168, %v1172
      %v1181 = vadd.f32 %v1152, %v1173
      %v1182 = vadd.f32 %v1153, %v1174
      %v1183 = vadd.f32 %v1154, %v1175
      %v1184 = vadd.f32 %v1155, %v1176
      %v1185 = vadd.f32 %v1156, %v1177
      %v1186 = vadd.f32 %v1157, %v1178
      %v1187 = vadd.f32 %v1158, %v1179
      %v1188 = vadd.f32 %v1159, %v1180
      %v1189 = vld [vmem:[%s1071 + $0x4] sm:$0x1]
      %v1190 = vld [vmem:[%s1073 + $0x4] sm:$0xff]
      %v1191 = vld [vmem:[%s1073 + $0x14] sm:$0xff]
      %v1192 = vld [vmem:[%s1073 + $0x24] sm:$0xff]
      %v1193 = vld [vmem:[%s1073 + $0x34] sm:$0xff]
      %v1194 = vld [vmem:[%s1073 + $0x44] sm:$0xff]
      %v1195 = vld [vmem:[%s1073 + $0x54] sm:$0xff]
      %v1196 = vld [vmem:[%s1073 + $0x64] sm:$0xff]
      %v1197 = vld [vmem:[%s1073 + $0x74] sm:$0xff]
      %v1198 = vlaneseq
      %v1199 = vshrl.u32 %v1198, 7
      %v1200 = vsub.s32 0, %v1199
      %v1201 = vrot.slane %v1189, %v1200
      %v1202 = vmul.f32 %v1190, %v1201
      %v1203 = vmul.f32 %v1191, %v1201
      %v1204 = vmul.f32 %v1192, %v1201
      %v1205 = vmul.f32 %v1193, %v1201
      %v1206 = vmul.f32 %v1194, %v1201
      %v1207 = vmul.f32 %v1195, %v1201
      %v1208 = vmul.f32 %v1196, %v1201
      %v1209 = vmul.f32 %v1197, %v1201
      %v1210 = vadd.f32 %v1181, %v1202
      %v1211 = vadd.f32 %v1182, %v1203
      %v1212 = vadd.f32 %v1183, %v1204
      %v1213 = vadd.f32 %v1184, %v1205
      %v1214 = vadd.f32 %v1185, %v1206
      %v1215 = vadd.f32 %v1186, %v1207
      %v1216 = vadd.f32 %v1187, %v1208
      %v1217 = vadd.f32 %v1188, %v1209
      %s1218 = scalar_lea.vmem %s560, 24
      %v1219 = vld [vmem:[%s1218] sm:$0x1]
      %s1220 = scalar_lea.vmem [#allocation2], 48
      %v1221 = vld [vmem:[%s1220] sm:$0xff]
      %v1222 = vld [vmem:[%s1220 + $0x10] sm:$0xff]
      %v1223 = vld [vmem:[%s1220 + $0x20] sm:$0xff]
      %v1224 = vld [vmem:[%s1220 + $0x30] sm:$0xff]
      %v1225 = vld [vmem:[%s1220 + $0x40] sm:$0xff]
      %v1226 = vld [vmem:[%s1220 + $0x50] sm:$0xff]
      %v1227 = vld [vmem:[%s1220 + $0x60] sm:$0xff]
      %v1228 = vld [vmem:[%s1220 + $0x70] sm:$0xff]
      %v1229 = vlaneseq
      %v1230 = vshrl.u32 %v1229, 7
      %v1231 = vsub.s32 0, %v1230
      %v1232 = vrot.slane %v1219, %v1231
      %v1233 = vmul.f32 %v1221, %v1232
      %v1234 = vmul.f32 %v1222, %v1232
      %v1235 = vmul.f32 %v1223, %v1232
      %v1236 = vmul.f32 %v1224, %v1232
      %v1237 = vmul.f32 %v1225, %v1232
      %v1238 = vmul.f32 %v1226, %v1232
      %v1239 = vmul.f32 %v1227, %v1232
      %v1240 = vmul.f32 %v1228, %v1232
      %v1241 = vadd.f32 %v1210, %v1233
      %v1242 = vadd.f32 %v1211, %v1234
      %v1243 = vadd.f32 %v1212, %v1235
      %v1244 = vadd.f32 %v1213, %v1236
      %v1245 = vadd.f32 %v1214, %v1237
      %v1246 = vadd.f32 %v1215, %v1238
      %v1247 = vadd.f32 %v1216, %v1239
      %v1248 = vadd.f32 %v1217, %v1240
      %v1249 = vld [vmem:[%s1218 + $0x1] sm:$0x1]
      %v1250 = vld [vmem:[%s1220 + $0x1] sm:$0xff]
      %v1251 = vld [vmem:[%s1220 + $0x11] sm:$0xff]
      %v1252 = vld [vmem:[%s1220 + $0x21] sm:$0xff]
      %v1253 = vld [vmem:[%s1220 + $0x31] sm:$0xff]
      %v1254 = vld [vmem:[%s1220 + $0x41] sm:$0xff]
      %v1255 = vld [vmem:[%s1220 + $0x51] sm:$0xff]
      %v1256 = vld [vmem:[%s1220 + $0x61] sm:$0xff]
      %v1257 = vld [vmem:[%s1220 + $0x71] sm:$0xff]
      %v1258 = vlaneseq
      %v1259 = vshrl.u32 %v1258, 7
      %v1260 = vsub.s32 0, %v1259
      %v1261 = vrot.slane %v1249, %v1260
      %v1262 = vmul.f32 %v1250, %v1261
      %v1263 = vmul.f32 %v1251, %v1261
      %v1264 = vmul.f32 %v1252, %v1261
      %v1265 = vmul.f32 %v1253, %v1261
      %v1266 = vmul.f32 %v1254, %v1261
      %v1267 = vmul.f32 %v1255, %v1261
      %v1268 = vmul.f32 %v1256, %v1261
      %v1269 = vmul.f32 %v1257, %v1261
      %v1270 = vadd.f32 %v1241, %v1262
      %v1271 = vadd.f32 %v1242, %v1263
      %v1272 = vadd.f32 %v1243, %v1264
      %v1273 = vadd.f32 %v1244, %v1265
      %v1274 = vadd.f32 %v1245, %v1266
      %v1275 = vadd.f32 %v1246, %v1267
      %v1276 = vadd.f32 %v1247, %v1268
      %v1277 = vadd.f32 %v1248, %v1269
      %v1278 = vld [vmem:[%s1218 + $0x2] sm:$0x1]
      %v1279 = vld [vmem:[%s1220 + $0x2] sm:$0xff]
      %v1280 = vld [vmem:[%s1220 + $0x12] sm:$0xff]
      %v1281 = vld [vmem:[%s1220 + $0x22] sm:$0xff]
      %v1282 = vld [vmem:[%s1220 + $0x32] sm:$0xff]
      %v1283 = vld [vmem:[%s1220 + $0x42] sm:$0xff]
      %v1284 = vld [vmem:[%s1220 + $0x52] sm:$0xff]
      %v1285 = vld [vmem:[%s1220 + $0x62] sm:$0xff]
      %v1286 = vld [vmem:[%s1220 + $0x72] sm:$0xff]
      %v1287 = vlaneseq
      %v1288 = vshrl.u32 %v1287, 7
      %v1289 = vsub.s32 0, %v1288
      %v1290 = vrot.slane %v1278, %v1289
      %v1291 = vmul.f32 %v1279, %v1290
      %v1292 = vmul.f32 %v1280, %v1290
      %v1293 = vmul.f32 %v1281, %v1290
      %v1294 = vmul.f32 %v1282, %v1290
      %v1295 = vmul.f32 %v1283, %v1290
      %v1296 = vmul.f32 %v1284, %v1290
      %v1297 = vmul.f32 %v1285, %v1290
      %v1298 = vmul.f32 %v1286, %v1290
      %v1299 = vadd.f32 %v1270, %v1291
      %v1300 = vadd.f32 %v1271, %v1292
      %v1301 = vadd.f32 %v1272, %v1293
      %v1302 = vadd.f32 %v1273, %v1294
      %v1303 = vadd.f32 %v1274, %v1295
      %v1304 = vadd.f32 %v1275, %v1296
      %v1305 = vadd.f32 %v1276, %v1297
      %v1306 = vadd.f32 %v1277, %v1298
      %v1307 = vld [vmem:[%s1218 + $0x3] sm:$0x1]
      %v1308 = vld [vmem:[%s1220 + $0x3] sm:$0xff]
      %v1309 = vld [vmem:[%s1220 + $0x13] sm:$0xff]
      %v1310 = vld [vmem:[%s1220 + $0x23] sm:$0xff]
      %v1311 = vld [vmem:[%s1220 + $0x33] sm:$0xff]
      %v1312 = vld [vmem:[%s1220 + $0x43] sm:$0xff]
      %v1313 = vld [vmem:[%s1220 + $0x53] sm:$0xff]
      %v1314 = vld [vmem:[%s1220 + $0x63] sm:$0xff]
      %v1315 = vld [vmem:[%s1220 + $0x73] sm:$0xff]
      %v1316 = vlaneseq
      %v1317 = vshrl.u32 %v1316, 7
      %v1318 = vsub.s32 0, %v1317
      %v1319 = vrot.slane %v1307, %v1318
      %v1320 = vmul.f32 %v1308, %v1319
      %v1321 = vmul.f32 %v1309, %v1319
      %v1322 = vmul.f32 %v1310, %v1319
      %v1323 = vmul.f32 %v1311, %v1319
      %v1324 = vmul.f32 %v1312, %v1319
      %v1325 = vmul.f32 %v1313, %v1319
      %v1326 = vmul.f32 %v1314, %v1319
      %v1327 = vmul.f32 %v1315, %v1319
      %v1328 = vadd.f32 %v1299, %v1320
      %v1329 = vadd.f32 %v1300, %v1321
      %v1330 = vadd.f32 %v1301, %v1322
      %v1331 = vadd.f32 %v1302, %v1323
      %v1332 = vadd.f32 %v1303, %v1324
      %v1333 = vadd.f32 %v1304, %v1325
      %v1334 = vadd.f32 %v1305, %v1326
      %v1335 = vadd.f32 %v1306, %v1327
      %v1336 = vld [vmem:[%s1218 + $0x4] sm:$0x1]
      %v1337 = vld [vmem:[%s1220 + $0x4] sm:$0xff]
      %v1338 = vld [vmem:[%s1220 + $0x14] sm:$0xff]
      %v1339 = vld [vmem:[%s1220 + $0x24] sm:$0xff]
      %v1340 = vld [vmem:[%s1220 + $0x34] sm:$0xff]
      %v1341 = vld [vmem:[%s1220 + $0x44] sm:$0xff]
      %v1342 = vld [vmem:[%s1220 + $0x54] sm:$0xff]
      %v1343 = vld [vmem:[%s1220 + $0x64] sm:$0xff]
      %v1344 = vld [vmem:[%s1220 + $0x74] sm:$0xff]
      %v1345 = vlaneseq
      %v1346 = vshrl.u32 %v1345, 7
      %v1347 = vsub.s32 0, %v1346
      %v1348 = vrot.slane %v1336, %v1347
      %v1349 = vmul.f32 %v1337, %v1348
      %v1350 = vmul.f32 %v1338, %v1348
      %v1351 = vmul.f32 %v1339, %v1348
      %v1352 = vmul.f32 %v1340, %v1348
      %v1353 = vmul.f32 %v1341, %v1348
      %v1354 = vmul.f32 %v1342, %v1348
      %v1355 = vmul.f32 %v1343, %v1348
      %v1356 = vmul.f32 %v1344, %v1348
      %v1357 = vadd.f32 %v1328, %v1349
      %v1358 = vadd.f32 %v1329, %v1350
      %v1359 = vadd.f32 %v1330, %v1351
      %v1360 = vadd.f32 %v1331, %v1352
      %v1361 = vadd.f32 %v1332, %v1353
      %v1362 = vadd.f32 %v1333, %v1354
      %v1363 = vadd.f32 %v1334, %v1355
      %v1364 = vadd.f32 %v1335, %v1356
      %s1365 = scalar_lea.vmem %s560, 32
      %v1366 = vld [vmem:[%s1365] sm:$0x1]
      %s1367 = scalar_lea.vmem [#allocation2], 64
      %v1368 = vld [vmem:[%s1367] sm:$0xff]
      %v1369 = vld [vmem:[%s1367 + $0x10] sm:$0xff]
      %v1370 = vld [vmem:[%s1367 + $0x20] sm:$0xff]
      %v1371 = vld [vmem:[%s1367 + $0x30] sm:$0xff]
      %v1372 = vld [vmem:[%s1367 + $0x40] sm:$0xff]
      %v1373 = vld [vmem:[%s1367 + $0x50] sm:$0xff]
      %v1374 = vld [vmem:[%s1367 + $0x60] sm:$0xff]
      %v1375 = vld [vmem:[%s1367 + $0x70] sm:$0xff]
      %v1376 = vlaneseq
      %v1377 = vshrl.u32 %v1376, 7
      %v1378 = vsub.s32 0, %v1377
      %v1379 = vrot.slane %v1366, %v1378
      %v1380 = vmul.f32 %v1368, %v1379
      %v1381 = vmul.f32 %v1369, %v1379
      %v1382 = vmul.f32 %v1370, %v1379
      %v1383 = vmul.f32 %v1371, %v1379
      %v1384 = vmul.f32 %v1372, %v1379
      %v1385 = vmul.f32 %v1373, %v1379
      %v1386 = vmul.f32 %v1374, %v1379
      %v1387 = vmul.f32 %v1375, %v1379
      %v1388 = vadd.f32 %v1357, %v1380
      %v1389 = vadd.f32 %v1358, %v1381
      %v1390 = vadd.f32 %v1359, %v1382
      %v1391 = vadd.f32 %v1360, %v1383
      %v1392 = vadd.f32 %v1361, %v1384
      %v1393 = vadd.f32 %v1362, %v1385
      %v1394 = vadd.f32 %v1363, %v1386
      %v1395 = vadd.f32 %v1364, %v1387
      %v1396 = vld [vmem:[%s1365 + $0x1] sm:$0x1]
      %v1397 = vld [vmem:[%s1367 + $0x1] sm:$0xff]
      %v1398 = vld [vmem:[%s1367 + $0x11] sm:$0xff]
      %v1399 = vld [vmem:[%s1367 + $0x21] sm:$0xff]
      %v1400 = vld [vmem:[%s1367 + $0x31] sm:$0xff]
      %v1401 = vld [vmem:[%s1367 + $0x41] sm:$0xff]
      %v1402 = vld [vmem:[%s1367 + $0x51] sm:$0xff]
      %v1403 = vld [vmem:[%s1367 + $0x61] sm:$0xff]
      %v1404 = vld [vmem:[%s1367 + $0x71] sm:$0xff]
      %v1405 = vlaneseq
      %v1406 = vshrl.u32 %v1405, 7
      %v1407 = vsub.s32 0, %v1406
      %v1408 = vrot.slane %v1396, %v1407
      %v1409 = vmul.f32 %v1397, %v1408
      %v1410 = vmul.f32 %v1398, %v1408
      %v1411 = vmul.f32 %v1399, %v1408
      %v1412 = vmul.f32 %v1400, %v1408
      %v1413 = vmul.f32 %v1401, %v1408
      %v1414 = vmul.f32 %v1402, %v1408
      %v1415 = vmul.f32 %v1403, %v1408
      %v1416 = vmul.f32 %v1404, %v1408
      %v1417 = vadd.f32 %v1388, %v1409
      %v1418 = vadd.f32 %v1389, %v1410
      %v1419 = vadd.f32 %v1390, %v1411
      %v1420 = vadd.f32 %v1391, %v1412
      %v1421 = vadd.f32 %v1392, %v1413
      %v1422 = vadd.f32 %v1393, %v1414
      %v1423 = vadd.f32 %v1394, %v1415
      %v1424 = vadd.f32 %v1395, %v1416
      %v1425 = vld [vmem:[%s1365 + $0x2] sm:$0x1]
      %v1426 = vld [vmem:[%s1367 + $0x2] sm:$0xff]
      %v1427 = vld [vmem:[%s1367 + $0x12] sm:$0xff]
      %v1428 = vld [vmem:[%s1367 + $0x22] sm:$0xff]
      %v1429 = vld [vmem:[%s1367 + $0x32] sm:$0xff]
      %v1430 = vld [vmem:[%s1367 + $0x42] sm:$0xff]
      %v1431 = vld [vmem:[%s1367 + $0x52] sm:$0xff]
      %v1432 = vld [vmem:[%s1367 + $0x62] sm:$0xff]
      %v1433 = vld [vmem:[%s1367 + $0x72] sm:$0xff]
      %v1434 = vlaneseq
      %v1435 = vshrl.u32 %v1434, 7
      %v1436 = vsub.s32 0, %v1435
      %v1437 = vrot.slane %v1425, %v1436
      %v1438 = vmul.f32 %v1426, %v1437
      %v1439 = vmul.f32 %v1427, %v1437
      %v1440 = vmul.f32 %v1428, %v1437
      %v1441 = vmul.f32 %v1429, %v1437
      %v1442 = vmul.f32 %v1430, %v1437
      %v1443 = vmul.f32 %v1431, %v1437
      %v1444 = vmul.f32 %v1432, %v1437
      %v1445 = vmul.f32 %v1433, %v1437
      %v1446 = vadd.f32 %v1417, %v1438
      %v1447 = vadd.f32 %v1418, %v1439
      %v1448 = vadd.f32 %v1419, %v1440
      %v1449 = vadd.f32 %v1420, %v1441
      %v1450 = vadd.f32 %v1421, %v1442
      %v1451 = vadd.f32 %v1422, %v1443
      %v1452 = vadd.f32 %v1423, %v1444
      %v1453 = vadd.f32 %v1424, %v1445
      %v1454 = vld [vmem:[%s1365 + $0x3] sm:$0x1]
      %v1455 = vld [vmem:[%s1367 + $0x3] sm:$0xff]
      %v1456 = vld [vmem:[%s1367 + $0x13] sm:$0xff]
      %v1457 = vld [vmem:[%s1367 + $0x23] sm:$0xff]
      %v1458 = vld [vmem:[%s1367 + $0x33] sm:$0xff]
      %v1459 = vld [vmem:[%s1367 + $0x43] sm:$0xff]
      %v1460 = vld [vmem:[%s1367 + $0x53] sm:$0xff]
      %v1461 = vld [vmem:[%s1367 + $0x63] sm:$0xff]
      %v1462 = vld [vmem:[%s1367 + $0x73] sm:$0xff]
      %v1463 = vlaneseq
      %v1464 = vshrl.u32 %v1463, 7
      %v1465 = vsub.s32 0, %v1464
      %v1466 = vrot.slane %v1454, %v1465
      %v1467 = vmul.f32 %v1455, %v1466
      %v1468 = vmul.f32 %v1456, %v1466
      %v1469 = vmul.f32 %v1457, %v1466
      %v1470 = vmul.f32 %v1458, %v1466
      %v1471 = vmul.f32 %v1459, %v1466
      %v1472 = vmul.f32 %v1460, %v1466
      %v1473 = vmul.f32 %v1461, %v1466
      %v1474 = vmul.f32 %v1462, %v1466
      %v1475 = vadd.f32 %v1446, %v1467
      %v1476 = vadd.f32 %v1447, %v1468
      %v1477 = vadd.f32 %v1448, %v1469
      %v1478 = vadd.f32 %v1449, %v1470
      %v1479 = vadd.f32 %v1450, %v1471
      %v1480 = vadd.f32 %v1451, %v1472
      %v1481 = vadd.f32 %v1452, %v1473
      %v1482 = vadd.f32 %v1453, %v1474
      %v1483 = vld [vmem:[%s1365 + $0x4] sm:$0x1]
      %v1484 = vld [vmem:[%s1367 + $0x4] sm:$0xff]
      %v1485 = vld [vmem:[%s1367 + $0x14] sm:$0xff]
      %v1486 = vld [vmem:[%s1367 + $0x24] sm:$0xff]
      %v1487 = vld [vmem:[%s1367 + $0x34] sm:$0xff]
      %v1488 = vld [vmem:[%s1367 + $0x44] sm:$0xff]
      %v1489 = vld [vmem:[%s1367 + $0x54] sm:$0xff]
      %v1490 = vld [vmem:[%s1367 + $0x64] sm:$0xff]
      %v1491 = vld [vmem:[%s1367 + $0x74] sm:$0xff]
      %v1492 = vlaneseq
      %v1493 = vshrl.u32 %v1492, 7
      %v1494 = vsub.s32 0, %v1493
      %v1495 = vrot.slane %v1483, %v1494
      %v1496 = vmul.f32 %v1484, %v1495
      %v1497 = vmul.f32 %v1485, %v1495
      %v1498 = vmul.f32 %v1486, %v1495
      %v1499 = vmul.f32 %v1487, %v1495
      %v1500 = vmul.f32 %v1488, %v1495
      %v1501 = vmul.f32 %v1489, %v1495
      %v1502 = vmul.f32 %v1490, %v1495
      %v1503 = vmul.f32 %v1491, %v1495
      %v1504 = vadd.f32 %v1475, %v1496
      %v1505 = vadd.f32 %v1476, %v1497
      %v1506 = vadd.f32 %v1477, %v1498
      %v1507 = vadd.f32 %v1478, %v1499
      %v1508 = vadd.f32 %v1479, %v1500
      %v1509 = vadd.f32 %v1480, %v1501
      %v1510 = vadd.f32 %v1481, %v1502
      %v1511 = vadd.f32 %v1482, %v1503
      %1512 = vst.msk [vmem:[#allocation3] sm:$0xff] %vm761, %v1504
      %1513 = vst.msk [vmem:[#allocation3 + $0x8] sm:$0xff] %vm761, %v1505
      %1514 = vst.msk [vmem:[#allocation3 + $0x10] sm:$0xff] %vm761, %v1506
      %1515 = vst.msk [vmem:[#allocation3 + $0x18] sm:$0xff] %vm761, %v1507
      %1516 = vst.msk [vmem:[#allocation3 + $0x20] sm:$0xff] %vm761, %v1508
      %1517 = vst.msk [vmem:[#allocation3 + $0x28] sm:$0xff] %vm761, %v1509
      %1518 = vst.msk [vmem:[#allocation3 + $0x30] sm:$0xff] %vm761, %v1510
      %1519 = vst.msk [vmem:[#allocation3 + $0x38] sm:$0xff] %vm761, %v1511
      %v1520 = vld [vmem:[%s525] sm:$0xff]
      %v1521 = vld [vmem:[%s525 + $0x8] sm:$0xf]
      %v1522 = vld [vmem:[%s525 + $0x10] sm:$0xff]
      %v1523 = vld [vmem:[%s525 + $0x18] sm:$0xf]
      %v1524 = vld [vmem:[%s525 + $0x20] sm:$0xff]
      %v1525 = vld [vmem:[%s525 + $0x28] sm:$0xf]
      %v1526 = vld [vmem:[%s525 + $0x30] sm:$0xff]
      %v1527 = vld [vmem:[%s525 + $0x38] sm:$0xf]
      %v1528 = vld [vmem:[%s525 + $0x40] sm:$0xff]
      %v1529 = vld [vmem:[%s525 + $0x48] sm:$0xf]
      %v1530 = vld [vmem:[%s525 + $0x50] sm:$0xff]
      %v1531 = vld [vmem:[%s525 + $0x58] sm:$0xf]
      %v1532 = vld [vmem:[%s525 + $0x60] sm:$0xff]
      %v1533 = vld [vmem:[%s525 + $0x68] sm:$0xf]
      %v1534 = vld [vmem:[%s525 + $0x70] sm:$0xff]
      %v1535 = vld [vmem:[%s525 + $0x78] sm:$0xf]
      %v1536 = vld [vmem:[%s525 + $0x80] sm:$0xff]
      %v1537 = vld [vmem:[%s525 + $0x88] sm:$0xf]
      %v1538 = vld [vmem:[%s525 + $0x90] sm:$0xff]
      %v1539 = vld [vmem:[%s525 + $0x98] sm:$0xf]
      %v1540 = vld [vmem:[%s525 + $0xa0] sm:$0xff]
      %v1541 = vld [vmem:[%s525 + $0xa8] sm:$0xf]
      %v1542 = vld [vmem:[%s525 + $0xb0] sm:$0xff]
      %v1543 = vld [vmem:[%s525 + $0xb8] sm:$0xf]
      %v1544 = vld [vmem:[%s533] sm:$0xff]
      %v1545 = vld [vmem:[%s533 + $0x8] sm:$0xf]
      %v1546 = vld [vmem:[%s533 + $0x10] sm:$0xff]
      %v1547 = vld [vmem:[%s533 + $0x18] sm:$0xf]
      %v1548 = vld [vmem:[%s533 + $0x20] sm:$0xff]
      %v1549 = vld [vmem:[%s533 + $0x28] sm:$0xf]
      %v1550 = vld [vmem:[%s533 + $0x30] sm:$0xff]
      %v1551 = vld [vmem:[%s533 + $0x38] sm:$0xf]
      %v1552 = vld [vmem:[%s533 + $0x40] sm:$0xff]
      %v1553 = vld [vmem:[%s533 + $0x48] sm:$0xf]
      %v1554 = vld [vmem:[%s533 + $0x50] sm:$0xff]
      %v1555 = vld [vmem:[%s533 + $0x58] sm:$0xf]
      %v1556 = vld [vmem:[%s533 + $0x60] sm:$0xff]
      %v1557 = vld [vmem:[%s533 + $0x68] sm:$0xf]
      %v1558 = vld [vmem:[%s533 + $0x70] sm:$0xff]
      %v1559 = vld [vmem:[%s533 + $0x78] sm:$0xf]
      %v1560 = vld [vmem:[%s533 + $0x80] sm:$0xff]
      %v1561 = vld [vmem:[%s533 + $0x88] sm:$0xf]
      %v1562 = vld [vmem:[%s533 + $0x90] sm:$0xff]
      %v1563 = vld [vmem:[%s533 + $0x98] sm:$0xf]
      %v1564 = vld [vmem:[%s533 + $0xa0] sm:$0xff]
      %v1565 = vld [vmem:[%s533 + $0xa8] sm:$0xf]
      %v1566 = vld [vmem:[%s533 + $0xb0] sm:$0xff]
      %v1567 = vld [vmem:[%s533 + $0xb8] sm:$0xf]
      %v1568 = vadd.f32 %v1520, %v1544
      %v1569 = vadd.f32 %v1521, %v1545
      %v1570 = vadd.f32 %v1522, %v1546
      %v1571 = vadd.f32 %v1523, %v1547
      %v1572 = vadd.f32 %v1524, %v1548
      %v1573 = vadd.f32 %v1525, %v1549
      %v1574 = vadd.f32 %v1526, %v1550
      %v1575 = vadd.f32 %v1527, %v1551
      %v1576 = vadd.f32 %v1528, %v1552
      %v1577 = vadd.f32 %v1529, %v1553
      %v1578 = vadd.f32 %v1530, %v1554
      %v1579 = vadd.f32 %v1531, %v1555
      %v1580 = vadd.f32 %v1532, %v1556
      %v1581 = vadd.f32 %v1533, %v1557
      %v1582 = vadd.f32 %v1534, %v1558
      %v1583 = vadd.f32 %v1535, %v1559
      %v1584 = vadd.f32 %v1536, %v1560
      %v1585 = vadd.f32 %v1537, %v1561
      %v1586 = vadd.f32 %v1538, %v1562
      %v1587 = vadd.f32 %v1539, %v1563
      %v1588 = vadd.f32 %v1540, %v1564
      %v1589 = vadd.f32 %v1541, %v1565
      %v1590 = vadd.f32 %v1542, %v1566
      %v1591 = vadd.f32 %v1543, %v1567
      %v1592 = vld [vmem:[%s541] sm:$0xff]
      %v1593 = vld [vmem:[%s541 + $0x8] sm:$0xf]
      %v1594 = vld [vmem:[%s541 + $0x10] sm:$0xff]
      %v1595 = vld [vmem:[%s541 + $0x18] sm:$0xf]
      %v1596 = vld [vmem:[%s541 + $0x20] sm:$0xff]
      %v1597 = vld [vmem:[%s541 + $0x28] sm:$0xf]
      %v1598 = vld [vmem:[%s541 + $0x30] sm:$0xff]
      %v1599 = vld [vmem:[%s541 + $0x38] sm:$0xf]
      %v1600 = vld [vmem:[%s541 + $0x40] sm:$0xff]
      %v1601 = vld [vmem:[%s541 + $0x48] sm:$0xf]
      %v1602 = vld [vmem:[%s541 + $0x50] sm:$0xff]
      %v1603 = vld [vmem:[%s541 + $0x58] sm:$0xf]
      %v1604 = vld [vmem:[%s541 + $0x60] sm:$0xff]
      %v1605 = vld [vmem:[%s541 + $0x68] sm:$0xf]
      %v1606 = vld [vmem:[%s541 + $0x70] sm:$0xff]
      %v1607 = vld [vmem:[%s541 + $0x78] sm:$0xf]
      %v1608 = vld [vmem:[%s541 + $0x80] sm:$0xff]
      %v1609 = vld [vmem:[%s541 + $0x88] sm:$0xf]
      %v1610 = vld [vmem:[%s541 + $0x90] sm:$0xff]
      %v1611 = vld [vmem:[%s541 + $0x98] sm:$0xf]
      %v1612 = vld [vmem:[%s541 + $0xa0] sm:$0xff]
      %v1613 = vld [vmem:[%s541 + $0xa8] sm:$0xf]
      %v1614 = vld [vmem:[%s541 + $0xb0] sm:$0xff]
      %v1615 = vld [vmem:[%s541 + $0xb8] sm:$0xf]
      %v1616 = vsub.f32 %v1568, %v1592
      %v1617 = vsub.f32 %v1569, %v1593
      %v1618 = vsub.f32 %v1570, %v1594
      %v1619 = vsub.f32 %v1571, %v1595
      %v1620 = vsub.f32 %v1572, %v1596
      %v1621 = vsub.f32 %v1573, %v1597
      %v1622 = vsub.f32 %v1574, %v1598
      %v1623 = vsub.f32 %v1575, %v1599
      %v1624 = vsub.f32 %v1576, %v1600
      %v1625 = vsub.f32 %v1577, %v1601
      %v1626 = vsub.f32 %v1578, %v1602
      %v1627 = vsub.f32 %v1579, %v1603
      %v1628 = vsub.f32 %v1580, %v1604
      %v1629 = vsub.f32 %v1581, %v1605
      %v1630 = vsub.f32 %v1582, %v1606
      %v1631 = vsub.f32 %v1583, %v1607
      %v1632 = vsub.f32 %v1584, %v1608
      %v1633 = vsub.f32 %v1585, %v1609
      %v1634 = vsub.f32 %v1586, %v1610
      %v1635 = vsub.f32 %v1587, %v1611
      %v1636 = vsub.f32 %v1588, %v1612
      %v1637 = vsub.f32 %v1589, %v1613
      %v1638 = vsub.f32 %v1590, %v1614
      %v1639 = vsub.f32 %v1591, %v1615
      %v1640 = vld [vmem:[%s549] sm:$0xff]
      %v1641 = vld [vmem:[%s549 + $0x8] sm:$0xf]
      %v1642 = vld [vmem:[%s549 + $0x10] sm:$0xff]
      %v1643 = vld [vmem:[%s549 + $0x18] sm:$0xf]
      %v1644 = vld [vmem:[%s549 + $0x20] sm:$0xff]
      %v1645 = vld [vmem:[%s549 + $0x28] sm:$0xf]
      %v1646 = vld [vmem:[%s549 + $0x30] sm:$0xff]
      %v1647 = vld [vmem:[%s549 + $0x38] sm:$0xf]
      %v1648 = vld [vmem:[%s549 + $0x40] sm:$0xff]
      %v1649 = vld [vmem:[%s549 + $0x48] sm:$0xf]
      %v1650 = vld [vmem:[%s549 + $0x50] sm:$0xff]
      %v1651 = vld [vmem:[%s549 + $0x58] sm:$0xf]
      %v1652 = vld [vmem:[%s549 + $0x60] sm:$0xff]
      %v1653 = vld [vmem:[%s549 + $0x68] sm:$0xf]
      %v1654 = vld [vmem:[%s549 + $0x70] sm:$0xff]
      %v1655 = vld [vmem:[%s549 + $0x78] sm:$0xf]
      %v1656 = vld [vmem:[%s549 + $0x80] sm:$0xff]
      %v1657 = vld [vmem:[%s549 + $0x88] sm:$0xf]
      %v1658 = vld [vmem:[%s549 + $0x90] sm:$0xff]
      %v1659 = vld [vmem:[%s549 + $0x98] sm:$0xf]
      %v1660 = vld [vmem:[%s549 + $0xa0] sm:$0xff]
      %v1661 = vld [vmem:[%s549 + $0xa8] sm:$0xf]
      %v1662 = vld [vmem:[%s549 + $0xb0] sm:$0xff]
      %v1663 = vld [vmem:[%s549 + $0xb8] sm:$0xf]
      %v1664 = vsub.f32 %v1616, %v1640
      %v1665 = vsub.f32 %v1617, %v1641
      %v1666 = vsub.f32 %v1618, %v1642
      %v1667 = vsub.f32 %v1619, %v1643
      %v1668 = vsub.f32 %v1620, %v1644
      %v1669 = vsub.f32 %v1621, %v1645
      %v1670 = vsub.f32 %v1622, %v1646
      %v1671 = vsub.f32 %v1623, %v1647
      %v1672 = vsub.f32 %v1624, %v1648
      %v1673 = vsub.f32 %v1625, %v1649
      %v1674 = vsub.f32 %v1626, %v1650
      %v1675 = vsub.f32 %v1627, %v1651
      %v1676 = vsub.f32 %v1628, %v1652
      %v1677 = vsub.f32 %v1629, %v1653
      %v1678 = vsub.f32 %v1630, %v1654
      %v1679 = vsub.f32 %v1631, %v1655
      %v1680 = vsub.f32 %v1632, %v1656
      %v1681 = vsub.f32 %v1633, %v1657
      %v1682 = vsub.f32 %v1634, %v1658
      %v1683 = vsub.f32 %v1635, %v1659
      %v1684 = vsub.f32 %v1636, %v1660
      %v1685 = vsub.f32 %v1637, %v1661
      %v1686 = vsub.f32 %v1638, %v1662
      %v1687 = vsub.f32 %v1639, %v1663
      %1688 = vst.msk [vmem:[#allocation2] sm:$0xff] %vm761, %v1664
      %1689 = vst.msk [vmem:[#allocation2 + $0x8] sm:$0xf] %vm763, %v1665
      %1690 = vst.msk [vmem:[#allocation2 + $0x10] sm:$0xff] %vm761, %v1666
      %1691 = vst.msk [vmem:[#allocation2 + $0x18] sm:$0xf] %vm763, %v1667
      %1692 = vst.msk [vmem:[#allocation2 + $0x20] sm:$0xff] %vm761, %v1668
      %1693 = vst.msk [vmem:[#allocation2 + $0x28] sm:$0xf] %vm763, %v1669
      %1694 = vst.msk [vmem:[#allocation2 + $0x30] sm:$0xff] %vm761, %v1670
      %1695 = vst.msk [vmem:[#allocation2 + $0x38] sm:$0xf] %vm763, %v1671
      %1696 = vst.msk [vmem:[#allocation2 + $0x40] sm:$0xff] %vm761, %v1672
      %1697 = vst.msk [vmem:[#allocation2 + $0x48] sm:$0xf] %vm763, %v1673
      %1698 = vst.msk [vmem:[#allocation2 + $0x50] sm:$0xff] %vm761, %v1674
      %1699 = vst.msk [vmem:[#allocation2 + $0x58] sm:$0xf] %vm763, %v1675
      %1700 = vst.msk [vmem:[#allocation2 + $0x60] sm:$0xff] %vm761, %v1676
      %1701 = vst.msk [vmem:[#allocation2 + $0x68] sm:$0xf] %vm763, %v1677
      %1702 = vst.msk [vmem:[#allocation2 + $0x70] sm:$0xff] %vm761, %v1678
      %1703 = vst.msk [vmem:[#allocation2 + $0x78] sm:$0xf] %vm763, %v1679
      %1704 = vst.msk [vmem:[#allocation2 + $0x80] sm:$0xff] %vm761, %v1680
      %1705 = vst.msk [vmem:[#allocation2 + $0x88] sm:$0xf] %vm763, %v1681
      %1706 = vst.msk [vmem:[#allocation2 + $0x90] sm:$0xff] %vm761, %v1682
      %1707 = vst.msk [vmem:[#allocation2 + $0x98] sm:$0xf] %vm763, %v1683
      %1708 = vst.msk [vmem:[#allocation2 + $0xa0] sm:$0xff] %vm761, %v1684
      %1709 = vst.msk [vmem:[#allocation2 + $0xa8] sm:$0xf] %vm763, %v1685
      %1710 = vst.msk [vmem:[#allocation2 + $0xb0] sm:$0xff] %vm761, %v1686
      %1711 = vst.msk [vmem:[#allocation2 + $0xb8] sm:$0xf] %vm763, %v1687
      %s1712 = scalar_lea.vmem %s560, 40
      %v1713 = vld [vmem:[%s1712] sm:$0x1]
      %v1714 = vld [vmem:[#allocation2] sm:$0xff]
      %v1715 = vld [vmem:[#allocation2 + $0x10] sm:$0xff]
      %v1716 = vld [vmem:[#allocation2 + $0x20] sm:$0xff]
      %v1717 = vld [vmem:[#allocation2 + $0x30] sm:$0xff]
      %v1718 = vld [vmem:[#allocation2 + $0x40] sm:$0xff]
      %v1719 = vld [vmem:[#allocation2 + $0x50] sm:$0xff]
      %v1720 = vld [vmem:[#allocation2 + $0x60] sm:$0xff]
      %v1721 = vld [vmem:[#allocation2 + $0x70] sm:$0xff]
      %v1722 = vlaneseq
      %v1723 = vshrl.u32 %v1722, 7
      %v1724 = vsub.s32 0, %v1723
      %v1725 = vrot.slane %v1713, %v1724
      %v1726 = vmul.f32 %v1714, %v1725
      %v1727 = vmul.f32 %v1715, %v1725
      %v1728 = vmul.f32 %v1716, %v1725
      %v1729 = vmul.f32 %v1717, %v1725
      %v1730 = vmul.f32 %v1718, %v1725
      %v1731 = vmul.f32 %v1719, %v1725
      %v1732 = vmul.f32 %v1720, %v1725
      %v1733 = vmul.f32 %v1721, %v1725
      %v1734 = vld [vmem:[%s1712 + $0x1] sm:$0x1]
      %v1735 = vld [vmem:[#allocation2 + $0x1] sm:$0xff]
      %v1736 = vld [vmem:[#allocation2 + $0x11] sm:$0xff]
      %v1737 = vld [vmem:[#allocation2 + $0x21] sm:$0xff]
      %v1738 = vld [vmem:[#allocation2 + $0x31] sm:$0xff]
      %v1739 = vld [vmem:[#allocation2 + $0x41] sm:$0xff]
      %v1740 = vld [vmem:[#allocation2 + $0x51] sm:$0xff]
      %v1741 = vld [vmem:[#allocation2 + $0x61] sm:$0xff]
      %v1742 = vld [vmem:[#allocation2 + $0x71] sm:$0xff]
      %v1743 = vlaneseq
      %v1744 = vshrl.u32 %v1743, 7
      %v1745 = vsub.s32 0, %v1744
      %v1746 = vrot.slane %v1734, %v1745
      %v1747 = vmul.f32 %v1735, %v1746
      %v1748 = vmul.f32 %v1736, %v1746
      %v1749 = vmul.f32 %v1737, %v1746
      %v1750 = vmul.f32 %v1738, %v1746
      %v1751 = vmul.f32 %v1739, %v1746
      %v1752 = vmul.f32 %v1740, %v1746
      %v1753 = vmul.f32 %v1741, %v1746
      %v1754 = vmul.f32 %v1742, %v1746
      %v1755 = vadd.f32 %v1726, %v1747
      %v1756 = vadd.f32 %v1727, %v1748
      %v1757 = vadd.f32 %v1728, %v1749
      %v1758 = vadd.f32 %v1729, %v1750
      %v1759 = vadd.f32 %v1730, %v1751
      %v1760 = vadd.f32 %v1731, %v1752
      %v1761 = vadd.f32 %v1732, %v1753
      %v1762 = vadd.f32 %v1733, %v1754
      %v1763 = vld [vmem:[%s1712 + $0x2] sm:$0x1]
      %v1764 = vld [vmem:[#allocation2 + $0x2] sm:$0xff]
      %v1765 = vld [vmem:[#allocation2 + $0x12] sm:$0xff]
      %v1766 = vld [vmem:[#allocation2 + $0x22] sm:$0xff]
      %v1767 = vld [vmem:[#allocation2 + $0x32] sm:$0xff]
      %v1768 = vld [vmem:[#allocation2 + $0x42] sm:$0xff]
      %v1769 = vld [vmem:[#allocation2 + $0x52] sm:$0xff]
      %v1770 = vld [vmem:[#allocation2 + $0x62] sm:$0xff]
      %v1771 = vld [vmem:[#allocation2 + $0x72] sm:$0xff]
      %v1772 = vlaneseq
      %v1773 = vshrl.u32 %v1772, 7
      %v1774 = vsub.s32 0, %v1773
      %v1775 = vrot.slane %v1763, %v1774
      %v1776 = vmul.f32 %v1764, %v1775
      %v1777 = vmul.f32 %v1765, %v1775
      %v1778 = vmul.f32 %v1766, %v1775
      %v1779 = vmul.f32 %v1767, %v1775
      %v1780 = vmul.f32 %v1768, %v1775
      %v1781 = vmul.f32 %v1769, %v1775
      %v1782 = vmul.f32 %v1770, %v1775
      %v1783 = vmul.f32 %v1771, %v1775
      %v1784 = vadd.f32 %v1755, %v1776
      %v1785 = vadd.f32 %v1756, %v1777
      %v1786 = vadd.f32 %v1757, %v1778
      %v1787 = vadd.f32 %v1758, %v1779
      %v1788 = vadd.f32 %v1759, %v1780
      %v1789 = vadd.f32 %v1760, %v1781
      %v1790 = vadd.f32 %v1761, %v1782
      %v1791 = vadd.f32 %v1762, %v1783
      %v1792 = vld [vmem:[%s1712 + $0x3] sm:$0x1]
      %v1793 = vld [vmem:[#allocation2 + $0x3] sm:$0xff]
      %v1794 = vld [vmem:[#allocation2 + $0x13] sm:$0xff]
      %v1795 = vld [vmem:[#allocation2 + $0x23] sm:$0xff]
      %v1796 = vld [vmem:[#allocation2 + $0x33] sm:$0xff]
      %v1797 = vld [vmem:[#allocation2 + $0x43] sm:$0xff]
      %v1798 = vld [vmem:[#allocation2 + $0x53] sm:$0xff]
      %v1799 = vld [vmem:[#allocation2 + $0x63] sm:$0xff]
      %v1800 = vld [vmem:[#allocation2 + $0x73] sm:$0xff]
      %v1801 = vlaneseq
      %v1802 = vshrl.u32 %v1801, 7
      %v1803 = vsub.s32 0, %v1802
      %v1804 = vrot.slane %v1792, %v1803
      %v1805 = vmul.f32 %v1793, %v1804
      %v1806 = vmul.f32 %v1794, %v1804
      %v1807 = vmul.f32 %v1795, %v1804
      %v1808 = vmul.f32 %v1796, %v1804
      %v1809 = vmul.f32 %v1797, %v1804
      %v1810 = vmul.f32 %v1798, %v1804
      %v1811 = vmul.f32 %v1799, %v1804
      %v1812 = vmul.f32 %v1800, %v1804
      %v1813 = vadd.f32 %v1784, %v1805
      %v1814 = vadd.f32 %v1785, %v1806
      %v1815 = vadd.f32 %v1786, %v1807
      %v1816 = vadd.f32 %v1787, %v1808
      %v1817 = vadd.f32 %v1788, %v1809
      %v1818 = vadd.f32 %v1789, %v1810
      %v1819 = vadd.f32 %v1790, %v1811
      %v1820 = vadd.f32 %v1791, %v1812
      %v1821 = vld [vmem:[%s1712 + $0x4] sm:$0x1]
      %v1822 = vld [vmem:[#allocation2 + $0x4] sm:$0xff]
      %v1823 = vld [vmem:[#allocation2 + $0x14] sm:$0xff]
      %v1824 = vld [vmem:[#allocation2 + $0x24] sm:$0xff]
      %v1825 = vld [vmem:[#allocation2 + $0x34] sm:$0xff]
      %v1826 = vld [vmem:[#allocation2 + $0x44] sm:$0xff]
      %v1827 = vld [vmem:[#allocation2 + $0x54] sm:$0xff]
      %v1828 = vld [vmem:[#allocation2 + $0x64] sm:$0xff]
      %v1829 = vld [vmem:[#allocation2 + $0x74] sm:$0xff]
      %v1830 = vlaneseq
      %v1831 = vshrl.u32 %v1830, 7
      %v1832 = vsub.s32 0, %v1831
      %v1833 = vrot.slane %v1821, %v1832
      %v1834 = vmul.f32 %v1822, %v1833
      %v1835 = vmul.f32 %v1823, %v1833
      %v1836 = vmul.f32 %v1824, %v1833
      %v1837 = vmul.f32 %v1825, %v1833
      %v1838 = vmul.f32 %v1826, %v1833
      %v1839 = vmul.f32 %v1827, %v1833
      %v1840 = vmul.f32 %v1828, %v1833
      %v1841 = vmul.f32 %v1829, %v1833
      %v1842 = vadd.f32 %v1813, %v1834
      %v1843 = vadd.f32 %v1814, %v1835
      %v1844 = vadd.f32 %v1815, %v1836
      %v1845 = vadd.f32 %v1816, %v1837
      %v1846 = vadd.f32 %v1817, %v1838
      %v1847 = vadd.f32 %v1818, %v1839
      %v1848 = vadd.f32 %v1819, %v1840
      %v1849 = vadd.f32 %v1820, %v1841
      %s1850 = scalar_lea.vmem %s560, 48
      %v1851 = vld [vmem:[%s1850] sm:$0x1]
      %v1852 = vld [vmem:[%s926] sm:$0xff]
      %v1853 = vld [vmem:[%s926 + $0x10] sm:$0xff]
      %v1854 = vld [vmem:[%s926 + $0x20] sm:$0xff]
      %v1855 = vld [vmem:[%s926 + $0x30] sm:$0xff]
      %v1856 = vld [vmem:[%s926 + $0x40] sm:$0xff]
      %v1857 = vld [vmem:[%s926 + $0x50] sm:$0xff]
      %v1858 = vld [vmem:[%s926 + $0x60] sm:$0xff]
      %v1859 = vld [vmem:[%s926 + $0x70] sm:$0xff]
      %v1860 = vlaneseq
      %v1861 = vshrl.u32 %v1860, 7
      %v1862 = vsub.s32 0, %v1861
      %v1863 = vrot.slane %v1851, %v1862
      %v1864 = vmul.f32 %v1852, %v1863
      %v1865 = vmul.f32 %v1853, %v1863
      %v1866 = vmul.f32 %v1854, %v1863
      %v1867 = vmul.f32 %v1855, %v1863
      %v1868 = vmul.f32 %v1856, %v1863
      %v1869 = vmul.f32 %v1857, %v1863
      %v1870 = vmul.f32 %v1858, %v1863
      %v1871 = vmul.f32 %v1859, %v1863
      %v1872 = vadd.f32 %v1842, %v1864
      %v1873 = vadd.f32 %v1843, %v1865
      %v1874 = vadd.f32 %v1844, %v1866
      %v1875 = vadd.f32 %v1845, %v1867
      %v1876 = vadd.f32 %v1846, %v1868
      %v1877 = vadd.f32 %v1847, %v1869
      %v1878 = vadd.f32 %v1848, %v1870
      %v1879 = vadd.f32 %v1849, %v1871
      %v1880 = vld [vmem:[%s1850 + $0x1] sm:$0x1]
      %v1881 = vld [vmem:[%s926 + $0x1] sm:$0xff]
      %v1882 = vld [vmem:[%s926 + $0x11] sm:$0xff]
      %v1883 = vld [vmem:[%s926 + $0x21] sm:$0xff]
      %v1884 = vld [vmem:[%s926 + $0x31] sm:$0xff]
      %v1885 = vld [vmem:[%s926 + $0x41] sm:$0xff]
      %v1886 = vld [vmem:[%s926 + $0x51] sm:$0xff]
      %v1887 = vld [vmem:[%s926 + $0x61] sm:$0xff]
      %v1888 = vld [vmem:[%s926 + $0x71] sm:$0xff]
      %v1889 = vlaneseq
      %v1890 = vshrl.u32 %v1889, 7
      %v1891 = vsub.s32 0, %v1890
      %v1892 = vrot.slane %v1880, %v1891
      %v1893 = vmul.f32 %v1881, %v1892
      %v1894 = vmul.f32 %v1882, %v1892
      %v1895 = vmul.f32 %v1883, %v1892
      %v1896 = vmul.f32 %v1884, %v1892
      %v1897 = vmul.f32 %v1885, %v1892
      %v1898 = vmul.f32 %v1886, %v1892
      %v1899 = vmul.f32 %v1887, %v1892
      %v1900 = vmul.f32 %v1888, %v1892
      %v1901 = vadd.f32 %v1872, %v1893
      %v1902 = vadd.f32 %v1873, %v1894
      %v1903 = vadd.f32 %v1874, %v1895
      %v1904 = vadd.f32 %v1875, %v1896
      %v1905 = vadd.f32 %v1876, %v1897
      %v1906 = vadd.f32 %v1877, %v1898
      %v1907 = vadd.f32 %v1878, %v1899
      %v1908 = vadd.f32 %v1879, %v1900
      %v1909 = vld [vmem:[%s1850 + $0x2] sm:$0x1]
      %v1910 = vld [vmem:[%s926 + $0x2] sm:$0xff]
      %v1911 = vld [vmem:[%s926 + $0x12] sm:$0xff]
      %v1912 = vld [vmem:[%s926 + $0x22] sm:$0xff]
      %v1913 = vld [vmem:[%s926 + $0x32] sm:$0xff]
      %v1914 = vld [vmem:[%s926 + $0x42] sm:$0xff]
      %v1915 = vld [vmem:[%s926 + $0x52] sm:$0xff]
      %v1916 = vld [vmem:[%s926 + $0x62] sm:$0xff]
      %v1917 = vld [vmem:[%s926 + $0x72] sm:$0xff]
      %v1918 = vlaneseq
      %v1919 = vshrl.u32 %v1918, 7
      %v1920 = vsub.s32 0, %v1919
      %v1921 = vrot.slane %v1909, %v1920
      %v1922 = vmul.f32 %v1910, %v1921
      %v1923 = vmul.f32 %v1911, %v1921
      %v1924 = vmul.f32 %v1912, %v1921
      %v1925 = vmul.f32 %v1913, %v1921
      %v1926 = vmul.f32 %v1914, %v1921
      %v1927 = vmul.f32 %v1915, %v1921
      %v1928 = vmul.f32 %v1916, %v1921
      %v1929 = vmul.f32 %v1917, %v1921
      %v1930 = vadd.f32 %v1901, %v1922
      %v1931 = vadd.f32 %v1902, %v1923
      %v1932 = vadd.f32 %v1903, %v1924
      %v1933 = vadd.f32 %v1904, %v1925
      %v1934 = vadd.f32 %v1905, %v1926
      %v1935 = vadd.f32 %v1906, %v1927
      %v1936 = vadd.f32 %v1907, %v1928
      %v1937 = vadd.f32 %v1908, %v1929
      %v1938 = vld [vmem:[%s1850 + $0x3] sm:$0x1]
      %v1939 = vld [vmem:[%s926 + $0x3] sm:$0xff]
      %v1940 = vld [vmem:[%s926 + $0x13] sm:$0xff]
      %v1941 = vld [vmem:[%s926 + $0x23] sm:$0xff]
      %v1942 = vld [vmem:[%s926 + $0x33] sm:$0xff]
      %v1943 = vld [vmem:[%s926 + $0x43] sm:$0xff]
      %v1944 = vld [vmem:[%s926 + $0x53] sm:$0xff]
      %v1945 = vld [vmem:[%s926 + $0x63] sm:$0xff]
      %v1946 = vld [vmem:[%s926 + $0x73] sm:$0xff]
      %v1947 = vlaneseq
      %v1948 = vshrl.u32 %v1947, 7
      %v1949 = vsub.s32 0, %v1948
      %v1950 = vrot.slane %v1938, %v1949
      %v1951 = vmul.f32 %v1939, %v1950
      %v1952 = vmul.f32 %v1940, %v1950
      %v1953 = vmul.f32 %v1941, %v1950
      %v1954 = vmul.f32 %v1942, %v1950
      %v1955 = vmul.f32 %v1943, %v1950
      %v1956 = vmul.f32 %v1944, %v1950
      %v1957 = vmul.f32 %v1945, %v1950
      %v1958 = vmul.f32 %v1946, %v1950
      %v1959 = vadd.f32 %v1930, %v1951
      %v1960 = vadd.f32 %v1931, %v1952
      %v1961 = vadd.f32 %v1932, %v1953
      %v1962 = vadd.f32 %v1933, %v1954
      %v1963 = vadd.f32 %v1934, %v1955
      %v1964 = vadd.f32 %v1935, %v1956
      %v1965 = vadd.f32 %v1936, %v1957
      %v1966 = vadd.f32 %v1937, %v1958
      %v1967 = vld [vmem:[%s1850 + $0x4] sm:$0x1]
      %v1968 = vld [vmem:[%s926 + $0x4] sm:$0xff]
      %v1969 = vld [vmem:[%s926 + $0x14] sm:$0xff]
      %v1970 = vld [vmem:[%s926 + $0x24] sm:$0xff]
      %v1971 = vld [vmem:[%s926 + $0x34] sm:$0xff]
      %v1972 = vld [vmem:[%s926 + $0x44] sm:$0xff]
      %v1973 = vld [vmem:[%s926 + $0x54] sm:$0xff]
      %v1974 = vld [vmem:[%s926 + $0x64] sm:$0xff]
      %v1975 = vld [vmem:[%s926 + $0x74] sm:$0xff]
      %v1976 = vlaneseq
      %v1977 = vshrl.u32 %v1976, 7
      %v1978 = vsub.s32 0, %v1977
      %v1979 = vrot.slane %v1967, %v1978
      %v1980 = vmul.f32 %v1968, %v1979
      %v1981 = vmul.f32 %v1969, %v1979
      %v1982 = vmul.f32 %v1970, %v1979
      %v1983 = vmul.f32 %v1971, %v1979
      %v1984 = vmul.f32 %v1972, %v1979
      %v1985 = vmul.f32 %v1973, %v1979
      %v1986 = vmul.f32 %v1974, %v1979
      %v1987 = vmul.f32 %v1975, %v1979
      %v1988 = vadd.f32 %v1959, %v1980
      %v1989 = vadd.f32 %v1960, %v1981
      %v1990 = vadd.f32 %v1961, %v1982
      %v1991 = vadd.f32 %v1962, %v1983
      %v1992 = vadd.f32 %v1963, %v1984
      %v1993 = vadd.f32 %v1964, %v1985
      %v1994 = vadd.f32 %v1965, %v1986
      %v1995 = vadd.f32 %v1966, %v1987
      %s1996 = scalar_lea.vmem %s560, 56
      %v1997 = vld [vmem:[%s1996] sm:$0x1]
      %v1998 = vld [vmem:[%s1073] sm:$0xff]
      %v1999 = vld [vmem:[%s1073 + $0x10] sm:$0xff]
      %v2000 = vld [vmem:[%s1073 + $0x20] sm:$0xff]
      %v2001 = vld [vmem:[%s1073 + $0x30] sm:$0xff]
      %v2002 = vld [vmem:[%s1073 + $0x40] sm:$0xff]
      %v2003 = vld [vmem:[%s1073 + $0x50] sm:$0xff]
      %v2004 = vld [vmem:[%s1073 + $0x60] sm:$0xff]
      %v2005 = vld [vmem:[%s1073 + $0x70] sm:$0xff]
      %v2006 = vlaneseq
      %v2007 = vshrl.u32 %v2006, 7
      %v2008 = vsub.s32 0, %v2007
      %v2009 = vrot.slane %v1997, %v2008
      %v2010 = vmul.f32 %v1998, %v2009
      %v2011 = vmul.f32 %v1999, %v2009
      %v2012 = vmul.f32 %v2000, %v2009
      %v2013 = vmul.f32 %v2001, %v2009
      %v2014 = vmul.f32 %v2002, %v2009
      %v2015 = vmul.f32 %v2003, %v2009
      %v2016 = vmul.f32 %v2004, %v2009
      %v2017 = vmul.f32 %v2005, %v2009
      %v2018 = vadd.f32 %v1988, %v2010
      %v2019 = vadd.f32 %v1989, %v2011
      %v2020 = vadd.f32 %v1990, %v2012
      %v2021 = vadd.f32 %v1991, %v2013
      %v2022 = vadd.f32 %v1992, %v2014
      %v2023 = vadd.f32 %v1993, %v2015
      %v2024 = vadd.f32 %v1994, %v2016
      %v2025 = vadd.f32 %v1995, %v2017
      %v2026 = vld [vmem:[%s1996 + $0x1] sm:$0x1]
      %v2027 = vld [vmem:[%s1073 + $0x1] sm:$0xff]
      %v2028 = vld [vmem:[%s1073 + $0x11] sm:$0xff]
      %v2029 = vld [vmem:[%s1073 + $0x21] sm:$0xff]
      %v2030 = vld [vmem:[%s1073 + $0x31] sm:$0xff]
      %v2031 = vld [vmem:[%s1073 + $0x41] sm:$0xff]
      %v2032 = vld [vmem:[%s1073 + $0x51] sm:$0xff]
      %v2033 = vld [vmem:[%s1073 + $0x61] sm:$0xff]
      %v2034 = vld [vmem:[%s1073 + $0x71] sm:$0xff]
      %v2035 = vlaneseq
      %v2036 = vshrl.u32 %v2035, 7
      %v2037 = vsub.s32 0, %v2036
      %v2038 = vrot.slane %v2026, %v2037
      %v2039 = vmul.f32 %v2027, %v2038
      %v2040 = vmul.f32 %v2028, %v2038
      %v2041 = vmul.f32 %v2029, %v2038
      %v2042 = vmul.f32 %v2030, %v2038
      %v2043 = vmul.f32 %v2031, %v2038
      %v2044 = vmul.f32 %v2032, %v2038
      %v2045 = vmul.f32 %v2033, %v2038
      %v2046 = vmul.f32 %v2034, %v2038
      %v2047 = vadd.f32 %v2018, %v2039
      %v2048 = vadd.f32 %v2019, %v2040
      %v2049 = vadd.f32 %v2020, %v2041
      %v2050 = vadd.f32 %v2021, %v2042
      %v2051 = vadd.f32 %v2022, %v2043
      %v2052 = vadd.f32 %v2023, %v2044
      %v2053 = vadd.f32 %v2024, %v2045
      %v2054 = vadd.f32 %v2025, %v2046
      %v2055 = vld [vmem:[%s1996 + $0x2] sm:$0x1]
      %v2056 = vld [vmem:[%s1073 + $0x2] sm:$0xff]
      %v2057 = vld [vmem:[%s1073 + $0x12] sm:$0xff]
      %v2058 = vld [vmem:[%s1073 + $0x22] sm:$0xff]
      %v2059 = vld [vmem:[%s1073 + $0x32] sm:$0xff]
      %v2060 = vld [vmem:[%s1073 + $0x42] sm:$0xff]
      %v2061 = vld [vmem:[%s1073 + $0x52] sm:$0xff]
      %v2062 = vld [vmem:[%s1073 + $0x62] sm:$0xff]
      %v2063 = vld [vmem:[%s1073 + $0x72] sm:$0xff]
      %v2064 = vlaneseq
      %v2065 = vshrl.u32 %v2064, 7
      %v2066 = vsub.s32 0, %v2065
      %v2067 = vrot.slane %v2055, %v2066
      %v2068 = vmul.f32 %v2056, %v2067
      %v2069 = vmul.f32 %v2057, %v2067
      %v2070 = vmul.f32 %v2058, %v2067
      %v2071 = vmul.f32 %v2059, %v2067
      %v2072 = vmul.f32 %v2060, %v2067
      %v2073 = vmul.f32 %v2061, %v2067
      %v2074 = vmul.f32 %v2062, %v2067
      %v2075 = vmul.f32 %v2063, %v2067
      %v2076 = vadd.f32 %v2047, %v2068
      %v2077 = vadd.f32 %v2048, %v2069
      %v2078 = vadd.f32 %v2049, %v2070
      %v2079 = vadd.f32 %v2050, %v2071
      %v2080 = vadd.f32 %v2051, %v2072
      %v2081 = vadd.f32 %v2052, %v2073
      %v2082 = vadd.f32 %v2053, %v2074
      %v2083 = vadd.f32 %v2054, %v2075
      %v2084 = vld [vmem:[%s1996 + $0x3] sm:$0x1]
      %v2085 = vld [vmem:[%s1073 + $0x3] sm:$0xff]
      %v2086 = vld [vmem:[%s1073 + $0x13] sm:$0xff]
      %v2087 = vld [vmem:[%s1073 + $0x23] sm:$0xff]
      %v2088 = vld [vmem:[%s1073 + $0x33] sm:$0xff]
      %v2089 = vld [vmem:[%s1073 + $0x43] sm:$0xff]
      %v2090 = vld [vmem:[%s1073 + $0x53] sm:$0xff]
      %v2091 = vld [vmem:[%s1073 + $0x63] sm:$0xff]
      %v2092 = vld [vmem:[%s1073 + $0x73] sm:$0xff]
      %v2093 = vlaneseq
      %v2094 = vshrl.u32 %v2093, 7
      %v2095 = vsub.s32 0, %v2094
      %v2096 = vrot.slane %v2084, %v2095
      %v2097 = vmul.f32 %v2085, %v2096
      %v2098 = vmul.f32 %v2086, %v2096
      %v2099 = vmul.f32 %v2087, %v2096
      %v2100 = vmul.f32 %v2088, %v2096
      %v2101 = vmul.f32 %v2089, %v2096
      %v2102 = vmul.f32 %v2090, %v2096
      %v2103 = vmul.f32 %v2091, %v2096
      %v2104 = vmul.f32 %v2092, %v2096
      %v2105 = vadd.f32 %v2076, %v2097
      %v2106 = vadd.f32 %v2077, %v2098
      %v2107 = vadd.f32 %v2078, %v2099
      %v2108 = vadd.f32 %v2079, %v2100
      %v2109 = vadd.f32 %v2080, %v2101
      %v2110 = vadd.f32 %v2081, %v2102
      %v2111 = vadd.f32 %v2082, %v2103
      %v2112 = vadd.f32 %v2083, %v2104
      %v2113 = vld [vmem:[%s1996 + $0x4] sm:$0x1]
      %v2114 = vld [vmem:[%s1073 + $0x4] sm:$0xff]
      %v2115 = vld [vmem:[%s1073 + $0x14] sm:$0xff]
      %v2116 = vld [vmem:[%s1073 + $0x24] sm:$0xff]
      %v2117 = vld [vmem:[%s1073 + $0x34] sm:$0xff]
      %v2118 = vld [vmem:[%s1073 + $0x44] sm:$0xff]
      %v2119 = vld [vmem:[%s1073 + $0x54] sm:$0xff]
      %v2120 = vld [vmem:[%s1073 + $0x64] sm:$0xff]
      %v2121 = vld [vmem:[%s1073 + $0x74] sm:$0xff]
      %v2122 = vlaneseq
      %v2123 = vshrl.u32 %v2122, 7
      %v2124 = vsub.s32 0, %v2123
      %v2125 = vrot.slane %v2113, %v2124
      %v2126 = vmul.f32 %v2114, %v2125
      %v2127 = vmul.f32 %v2115, %v2125
      %v2128 = vmul.f32 %v2116, %v2125
      %v2129 = vmul.f32 %v2117, %v2125
      %v2130 = vmul.f32 %v2118, %v2125
      %v2131 = vmul.f32 %v2119, %v2125
      %v2132 = vmul.f32 %v2120, %v2125
      %v2133 = vmul.f32 %v2121, %v2125
      %v2134 = vadd.f32 %v2105, %v2126
      %v2135 = vadd.f32 %v2106, %v2127
      %v2136 = vadd.f32 %v2107, %v2128
      %v2137 = vadd.f32 %v2108, %v2129
      %v2138 = vadd.f32 %v2109, %v2130
      %v2139 = vadd.f32 %v2110, %v2131
      %v2140 = vadd.f32 %v2111, %v2132
      %v2141 = vadd.f32 %v2112, %v2133
      %s2142 = scalar_lea.vmem %s560, 64
      %v2143 = vld [vmem:[%s2142] sm:$0x1]
      %v2144 = vld [vmem:[%s1220] sm:$0xff]
      %v2145 = vld [vmem:[%s1220 + $0x10] sm:$0xff]
      %v2146 = vld [vmem:[%s1220 + $0x20] sm:$0xff]
      %v2147 = vld [vmem:[%s1220 + $0x30] sm:$0xff]
      %v2148 = vld [vmem:[%s1220 + $0x40] sm:$0xff]
      %v2149 = vld [vmem:[%s1220 + $0x50] sm:$0xff]
      %v2150 = vld [vmem:[%s1220 + $0x60] sm:$0xff]
      %v2151 = vld [vmem:[%s1220 + $0x70] sm:$0xff]
      %v2152 = vlaneseq
      %v2153 = vshrl.u32 %v2152, 7
      %v2154 = vsub.s32 0, %v2153
      %v2155 = vrot.slane %v2143, %v2154
      %v2156 = vmul.f32 %v2144, %v2155
      %v2157 = vmul.f32 %v2145, %v2155
      %v2158 = vmul.f32 %v2146, %v2155
      %v2159 = vmul.f32 %v2147, %v2155
      %v2160 = vmul.f32 %v2148, %v2155
      %v2161 = vmul.f32 %v2149, %v2155
      %v2162 = vmul.f32 %v2150, %v2155
      %v2163 = vmul.f32 %v2151, %v2155
      %v2164 = vadd.f32 %v2134, %v2156
      %v2165 = vadd.f32 %v2135, %v2157
      %v2166 = vadd.f32 %v2136, %v2158
      %v2167 = vadd.f32 %v2137, %v2159
      %v2168 = vadd.f32 %v2138, %v2160
      %v2169 = vadd.f32 %v2139, %v2161
      %v2170 = vadd.f32 %v2140, %v2162
      %v2171 = vadd.f32 %v2141, %v2163
      %v2172 = vld [vmem:[%s2142 + $0x1] sm:$0x1]
      %v2173 = vld [vmem:[%s1220 + $0x1] sm:$0xff]
      %v2174 = vld [vmem:[%s1220 + $0x11] sm:$0xff]
      %v2175 = vld [vmem:[%s1220 + $0x21] sm:$0xff]
      %v2176 = vld [vmem:[%s1220 + $0x31] sm:$0xff]
      %v2177 = vld [vmem:[%s1220 + $0x41] sm:$0xff]
      %v2178 = vld [vmem:[%s1220 + $0x51] sm:$0xff]
      %v2179 = vld [vmem:[%s1220 + $0x61] sm:$0xff]
      %v2180 = vld [vmem:[%s1220 + $0x71] sm:$0xff]
      %v2181 = vlaneseq
      %v2182 = vshrl.u32 %v2181, 7
      %v2183 = vsub.s32 0, %v2182
      %v2184 = vrot.slane %v2172, %v2183
      %v2185 = vmul.f32 %v2173, %v2184
      %v2186 = vmul.f32 %v2174, %v2184
      %v2187 = vmul.f32 %v2175, %v2184
      %v2188 = vmul.f32 %v2176, %v2184
      %v2189 = vmul.f32 %v2177, %v2184
      %v2190 = vmul.f32 %v2178, %v2184
      %v2191 = vmul.f32 %v2179, %v2184
      %v2192 = vmul.f32 %v2180, %v2184
      %v2193 = vadd.f32 %v2164, %v2185
      %v2194 = vadd.f32 %v2165, %v2186
      %v2195 = vadd.f32 %v2166, %v2187
      %v2196 = vadd.f32 %v2167, %v2188
      %v2197 = vadd.f32 %v2168, %v2189
      %v2198 = vadd.f32 %v2169, %v2190
      %v2199 = vadd.f32 %v2170, %v2191
      %v2200 = vadd.f32 %v2171, %v2192
      %v2201 = vld [vmem:[%s2142 + $0x2] sm:$0x1]
      %v2202 = vld [vmem:[%s1220 + $0x2] sm:$0xff]
      %v2203 = vld [vmem:[%s1220 + $0x12] sm:$0xff]
      %v2204 = vld [vmem:[%s1220 + $0x22] sm:$0xff]
      %v2205 = vld [vmem:[%s1220 + $0x32] sm:$0xff]
      %v2206 = vld [vmem:[%s1220 + $0x42] sm:$0xff]
      %v2207 = vld [vmem:[%s1220 + $0x52] sm:$0xff]
      %v2208 = vld [vmem:[%s1220 + $0x62] sm:$0xff]
      %v2209 = vld [vmem:[%s1220 + $0x72] sm:$0xff]
      %v2210 = vlaneseq
      %v2211 = vshrl.u32 %v2210, 7
      %v2212 = vsub.s32 0, %v2211
      %v2213 = vrot.slane %v2201, %v2212
      %v2214 = vmul.f32 %v2202, %v2213
      %v2215 = vmul.f32 %v2203, %v2213
      %v2216 = vmul.f32 %v2204, %v2213
      %v2217 = vmul.f32 %v2205, %v2213
      %v2218 = vmul.f32 %v2206, %v2213
      %v2219 = vmul.f32 %v2207, %v2213
      %v2220 = vmul.f32 %v2208, %v2213
      %v2221 = vmul.f32 %v2209, %v2213
      %v2222 = vadd.f32 %v2193, %v2214
      %v2223 = vadd.f32 %v2194, %v2215
      %v2224 = vadd.f32 %v2195, %v2216
      %v2225 = vadd.f32 %v2196, %v2217
      %v2226 = vadd.f32 %v2197, %v2218
      %v2227 = vadd.f32 %v2198, %v2219
      %v2228 = vadd.f32 %v2199, %v2220
      %v2229 = vadd.f32 %v2200, %v2221
      %v2230 = vld [vmem:[%s2142 + $0x3] sm:$0x1]
      %v2231 = vld [vmem:[%s1220 + $0x3] sm:$0xff]
      %v2232 = vld [vmem:[%s1220 + $0x13] sm:$0xff]
      %v2233 = vld [vmem:[%s1220 + $0x23] sm:$0xff]
      %v2234 = vld [vmem:[%s1220 + $0x33] sm:$0xff]
      %v2235 = vld [vmem:[%s1220 + $0x43] sm:$0xff]
      %v2236 = vld [vmem:[%s1220 + $0x53] sm:$0xff]
      %v2237 = vld [vmem:[%s1220 + $0x63] sm:$0xff]
      %v2238 = vld [vmem:[%s1220 + $0x73] sm:$0xff]
      %v2239 = vlaneseq
      %v2240 = vshrl.u32 %v2239, 7
      %v2241 = vsub.s32 0, %v2240
      %v2242 = vrot.slane %v2230, %v2241
      %v2243 = vmul.f32 %v2231, %v2242
      %v2244 = vmul.f32 %v2232, %v2242
      %v2245 = vmul.f32 %v2233, %v2242
      %v2246 = vmul.f32 %v2234, %v2242
      %v2247 = vmul.f32 %v2235, %v2242
      %v2248 = vmul.f32 %v2236, %v2242
      %v2249 = vmul.f32 %v2237, %v2242
      %v2250 = vmul.f32 %v2238, %v2242
      %v2251 = vadd.f32 %v2222, %v2243
      %v2252 = vadd.f32 %v2223, %v2244
      %v2253 = vadd.f32 %v2224, %v2245
      %v2254 = vadd.f32 %v2225, %v2246
      %v2255 = vadd.f32 %v2226, %v2247
      %v2256 = vadd.f32 %v2227, %v2248
      %v2257 = vadd.f32 %v2228, %v2249
      %v2258 = vadd.f32 %v2229, %v2250
      %v2259 = vld [vmem:[%s2142 + $0x4] sm:$0x1]
      %v2260 = vld [vmem:[%s1220 + $0x4] sm:$0xff]
      %v2261 = vld [vmem:[%s1220 + $0x14] sm:$0xff]
      %v2262 = vld [vmem:[%s1220 + $0x24] sm:$0xff]
      %v2263 = vld [vmem:[%s1220 + $0x34] sm:$0xff]
      %v2264 = vld [vmem:[%s1220 + $0x44] sm:$0xff]
      %v2265 = vld [vmem:[%s1220 + $0x54] sm:$0xff]
      %v2266 = vld [vmem:[%s1220 + $0x64] sm:$0xff]
      %v2267 = vld [vmem:[%s1220 + $0x74] sm:$0xff]
      %v2268 = vlaneseq
      %v2269 = vshrl.u32 %v2268, 7
      %v2270 = vsub.s32 0, %v2269
      %v2271 = vrot.slane %v2259, %v2270
      %v2272 = vmul.f32 %v2260, %v2271
      %v2273 = vmul.f32 %v2261, %v2271
      %v2274 = vmul.f32 %v2262, %v2271
      %v2275 = vmul.f32 %v2263, %v2271
      %v2276 = vmul.f32 %v2264, %v2271
      %v2277 = vmul.f32 %v2265, %v2271
      %v2278 = vmul.f32 %v2266, %v2271
      %v2279 = vmul.f32 %v2267, %v2271
      %v2280 = vadd.f32 %v2251, %v2272
      %v2281 = vadd.f32 %v2252, %v2273
      %v2282 = vadd.f32 %v2253, %v2274
      %v2283 = vadd.f32 %v2254, %v2275
      %v2284 = vadd.f32 %v2255, %v2276
      %v2285 = vadd.f32 %v2256, %v2277
      %v2286 = vadd.f32 %v2257, %v2278
      %v2287 = vadd.f32 %v2258, %v2279
      %s2288 = scalar_lea.vmem %s560, 72
      %v2289 = vld [vmem:[%s2288] sm:$0x1]
      %v2290 = vld [vmem:[%s1367] sm:$0xff]
      %v2291 = vld [vmem:[%s1367 + $0x10] sm:$0xff]
      %v2292 = vld [vmem:[%s1367 + $0x20] sm:$0xff]
      %v2293 = vld [vmem:[%s1367 + $0x30] sm:$0xff]
      %v2294 = vld [vmem:[%s1367 + $0x40] sm:$0xff]
      %v2295 = vld [vmem:[%s1367 + $0x50] sm:$0xff]
      %v2296 = vld [vmem:[%s1367 + $0x60] sm:$0xff]
      %v2297 = vld [vmem:[%s1367 + $0x70] sm:$0xff]
      %v2298 = vlaneseq
      %v2299 = vshrl.u32 %v2298, 7
      %v2300 = vsub.s32 0, %v2299
      %v2301 = vrot.slane %v2289, %v2300
      %v2302 = vmul.f32 %v2290, %v2301
      %v2303 = vmul.f32 %v2291, %v2301
      %v2304 = vmul.f32 %v2292, %v2301
      %v2305 = vmul.f32 %v2293, %v2301
      %v2306 = vmul.f32 %v2294, %v2301
      %v2307 = vmul.f32 %v2295, %v2301
      %v2308 = vmul.f32 %v2296, %v2301
      %v2309 = vmul.f32 %v2297, %v2301
      %v2310 = vadd.f32 %v2280, %v2302
      %v2311 = vadd.f32 %v2281, %v2303
      %v2312 = vadd.f32 %v2282, %v2304
      %v2313 = vadd.f32 %v2283, %v2305
      %v2314 = vadd.f32 %v2284, %v2306
      %v2315 = vadd.f32 %v2285, %v2307
      %v2316 = vadd.f32 %v2286, %v2308
      %v2317 = vadd.f32 %v2287, %v2309
      %v2318 = vld [vmem:[%s2288 + $0x1] sm:$0x1]
      %v2319 = vld [vmem:[%s1367 + $0x1] sm:$0xff]
      %v2320 = vld [vmem:[%s1367 + $0x11] sm:$0xff]
      %v2321 = vld [vmem:[%s1367 + $0x21] sm:$0xff]
      %v2322 = vld [vmem:[%s1367 + $0x31] sm:$0xff]
      %v2323 = vld [vmem:[%s1367 + $0x41] sm:$0xff]
      %v2324 = vld [vmem:[%s1367 + $0x51] sm:$0xff]
      %v2325 = vld [vmem:[%s1367 + $0x61] sm:$0xff]
      %v2326 = vld [vmem:[%s1367 + $0x71] sm:$0xff]
      %v2327 = vlaneseq
      %v2328 = vshrl.u32 %v2327, 7
      %v2329 = vsub.s32 0, %v2328
      %v2330 = vrot.slane %v2318, %v2329
      %v2331 = vmul.f32 %v2319, %v2330
      %v2332 = vmul.f32 %v2320, %v2330
      %v2333 = vmul.f32 %v2321, %v2330
      %v2334 = vmul.f32 %v2322, %v2330
      %v2335 = vmul.f32 %v2323, %v2330
      %v2336 = vmul.f32 %v2324, %v2330
      %v2337 = vmul.f32 %v2325, %v2330
      %v2338 = vmul.f32 %v2326, %v2330
      %v2339 = vadd.f32 %v2310, %v2331
      %v2340 = vadd.f32 %v2311, %v2332
      %v2341 = vadd.f32 %v2312, %v2333
      %v2342 = vadd.f32 %v2313, %v2334
      %v2343 = vadd.f32 %v2314, %v2335
      %v2344 = vadd.f32 %v2315, %v2336
      %v2345 = vadd.f32 %v2316, %v2337
      %v2346 = vadd.f32 %v2317, %v2338
      %v2347 = vld [vmem:[%s2288 + $0x2] sm:$0x1]
      %v2348 = vld [vmem:[%s1367 + $0x2] sm:$0xff]
      %v2349 = vld [vmem:[%s1367 + $0x12] sm:$0xff]
      %v2350 = vld [vmem:[%s1367 + $0x22] sm:$0xff]
      %v2351 = vld [vmem:[%s1367 + $0x32] sm:$0xff]
      %v2352 = vld [vmem:[%s1367 + $0x42] sm:$0xff]
      %v2353 = vld [vmem:[%s1367 + $0x52] sm:$0xff]
      %v2354 = vld [vmem:[%s1367 + $0x62] sm:$0xff]
      %v2355 = vld [vmem:[%s1367 + $0x72] sm:$0xff]
      %v2356 = vlaneseq
      %v2357 = vshrl.u32 %v2356, 7
      %v2358 = vsub.s32 0, %v2357
      %v2359 = vrot.slane %v2347, %v2358
      %v2360 = vmul.f32 %v2348, %v2359
      %v2361 = vmul.f32 %v2349, %v2359
      %v2362 = vmul.f32 %v2350, %v2359
      %v2363 = vmul.f32 %v2351, %v2359
      %v2364 = vmul.f32 %v2352, %v2359
      %v2365 = vmul.f32 %v2353, %v2359
      %v2366 = vmul.f32 %v2354, %v2359
      %v2367 = vmul.f32 %v2355, %v2359
      %v2368 = vadd.f32 %v2339, %v2360
      %v2369 = vadd.f32 %v2340, %v2361
      %v2370 = vadd.f32 %v2341, %v2362
      %v2371 = vadd.f32 %v2342, %v2363
      %v2372 = vadd.f32 %v2343, %v2364
      %v2373 = vadd.f32 %v2344, %v2365
      %v2374 = vadd.f32 %v2345, %v2366
      %v2375 = vadd.f32 %v2346, %v2367
      %v2376 = vld [vmem:[%s2288 + $0x3] sm:$0x1]
      %v2377 = vld [vmem:[%s1367 + $0x3] sm:$0xff]
      %v2378 = vld [vmem:[%s1367 + $0x13] sm:$0xff]
      %v2379 = vld [vmem:[%s1367 + $0x23] sm:$0xff]
      %v2380 = vld [vmem:[%s1367 + $0x33] sm:$0xff]
      %v2381 = vld [vmem:[%s1367 + $0x43] sm:$0xff]
      %v2382 = vld [vmem:[%s1367 + $0x53] sm:$0xff]
      %v2383 = vld [vmem:[%s1367 + $0x63] sm:$0xff]
      %v2384 = vld [vmem:[%s1367 + $0x73] sm:$0xff]
      %v2385 = vlaneseq
      %v2386 = vshrl.u32 %v2385, 7
      %v2387 = vsub.s32 0, %v2386
      %v2388 = vrot.slane %v2376, %v2387
      %v2389 = vmul.f32 %v2377, %v2388
      %v2390 = vmul.f32 %v2378, %v2388
      %v2391 = vmul.f32 %v2379, %v2388
      %v2392 = vmul.f32 %v2380, %v2388
      %v2393 = vmul.f32 %v2381, %v2388
      %v2394 = vmul.f32 %v2382, %v2388
      %v2395 = vmul.f32 %v2383, %v2388
      %v2396 = vmul.f32 %v2384, %v2388
      %v2397 = vadd.f32 %v2368, %v2389
      %v2398 = vadd.f32 %v2369, %v2390
      %v2399 = vadd.f32 %v2370, %v2391
      %v2400 = vadd.f32 %v2371, %v2392
      %v2401 = vadd.f32 %v2372, %v2393
      %v2402 = vadd.f32 %v2373, %v2394
      %v2403 = vadd.f32 %v2374, %v2395
      %v2404 = vadd.f32 %v2375, %v2396
      %v2405 = vld [vmem:[%s2288 + $0x4] sm:$0x1]
      %v2406 = vld [vmem:[%s1367 + $0x4] sm:$0xff]
      %v2407 = vld [vmem:[%s1367 + $0x14] sm:$0xff]
      %v2408 = vld [vmem:[%s1367 + $0x24] sm:$0xff]
      %v2409 = vld [vmem:[%s1367 + $0x34] sm:$0xff]
      %v2410 = vld [vmem:[%s1367 + $0x44] sm:$0xff]
      %v2411 = vld [vmem:[%s1367 + $0x54] sm:$0xff]
      %v2412 = vld [vmem:[%s1367 + $0x64] sm:$0xff]
      %v2413 = vld [vmem:[%s1367 + $0x74] sm:$0xff]
      %v2414 = vlaneseq
      %v2415 = vshrl.u32 %v2414, 7
      %v2416 = vsub.s32 0, %v2415
      %v2417 = vrot.slane %v2405, %v2416
      %v2418 = vmul.f32 %v2406, %v2417
      %v2419 = vmul.f32 %v2407, %v2417
      %v2420 = vmul.f32 %v2408, %v2417
      %v2421 = vmul.f32 %v2409, %v2417
      %v2422 = vmul.f32 %v2410, %v2417
      %v2423 = vmul.f32 %v2411, %v2417
      %v2424 = vmul.f32 %v2412, %v2417
      %v2425 = vmul.f32 %v2413, %v2417
      %v2426 = vadd.f32 %v2397, %v2418
      %v2427 = vadd.f32 %v2398, %v2419
      %v2428 = vadd.f32 %v2399, %v2420
      %v2429 = vadd.f32 %v2400, %v2421
      %v2430 = vadd.f32 %v2401, %v2422
      %v2431 = vadd.f32 %v2402, %v2423
      %v2432 = vadd.f32 %v2403, %v2424
      %v2433 = vadd.f32 %v2404, %v2425
      %s2434 = scalar_lea.vmem [#allocation3], 64
      %2435 = vst.msk [vmem:[%s2434] sm:$0xff] %vm761, %v2426
      %2436 = vst.msk [vmem:[%s2434 + $0x8] sm:$0xff] %vm761, %v2427
      %2437 = vst.msk [vmem:[%s2434 + $0x10] sm:$0xff] %vm761, %v2428
      %2438 = vst.msk [vmem:[%s2434 + $0x18] sm:$0xff] %vm761, %v2429
      %2439 = vst.msk [vmem:[%s2434 + $0x20] sm:$0xff] %vm761, %v2430
      %2440 = vst.msk [vmem:[%s2434 + $0x28] sm:$0xff] %vm761, %v2431
      %2441 = vst.msk [vmem:[%s2434 + $0x30] sm:$0xff] %vm761, %v2432
      %2442 = vst.msk [vmem:[%s2434 + $0x38] sm:$0xff] %vm761, %v2433
      %v2443 = vld [vmem:[%s525] sm:$0xff]
      %v2444 = vld [vmem:[%s525 + $0x8] sm:$0xf]
      %v2445 = vld [vmem:[%s525 + $0x10] sm:$0xff]
      %v2446 = vld [vmem:[%s525 + $0x18] sm:$0xf]
      %v2447 = vld [vmem:[%s525 + $0x20] sm:$0xff]
      %v2448 = vld [vmem:[%s525 + $0x28] sm:$0xf]
      %v2449 = vld [vmem:[%s525 + $0x30] sm:$0xff]
      %v2450 = vld [vmem:[%s525 + $0x38] sm:$0xf]
      %v2451 = vld [vmem:[%s525 + $0x40] sm:$0xff]
      %v2452 = vld [vmem:[%s525 + $0x48] sm:$0xf]
      %v2453 = vld [vmem:[%s525 + $0x50] sm:$0xff]
      %v2454 = vld [vmem:[%s525 + $0x58] sm:$0xf]
      %v2455 = vld [vmem:[%s525 + $0x60] sm:$0xff]
      %v2456 = vld [vmem:[%s525 + $0x68] sm:$0xf]
      %v2457 = vld [vmem:[%s525 + $0x70] sm:$0xff]
      %v2458 = vld [vmem:[%s525 + $0x78] sm:$0xf]
      %v2459 = vld [vmem:[%s525 + $0x80] sm:$0xff]
      %v2460 = vld [vmem:[%s525 + $0x88] sm:$0xf]
      %v2461 = vld [vmem:[%s525 + $0x90] sm:$0xff]
      %v2462 = vld [vmem:[%s525 + $0x98] sm:$0xf]
      %v2463 = vld [vmem:[%s525 + $0xa0] sm:$0xff]
      %v2464 = vld [vmem:[%s525 + $0xa8] sm:$0xf]
      %v2465 = vld [vmem:[%s525 + $0xb0] sm:$0xff]
      %v2466 = vld [vmem:[%s525 + $0xb8] sm:$0xf]
      %v2467 = vld [vmem:[%s533] sm:$0xff]
      %v2468 = vld [vmem:[%s533 + $0x8] sm:$0xf]
      %v2469 = vld [vmem:[%s533 + $0x10] sm:$0xff]
      %v2470 = vld [vmem:[%s533 + $0x18] sm:$0xf]
      %v2471 = vld [vmem:[%s533 + $0x20] sm:$0xff]
      %v2472 = vld [vmem:[%s533 + $0x28] sm:$0xf]
      %v2473 = vld [vmem:[%s533 + $0x30] sm:$0xff]
      %v2474 = vld [vmem:[%s533 + $0x38] sm:$0xf]
      %v2475 = vld [vmem:[%s533 + $0x40] sm:$0xff]
      %v2476 = vld [vmem:[%s533 + $0x48] sm:$0xf]
      %v2477 = vld [vmem:[%s533 + $0x50] sm:$0xff]
      %v2478 = vld [vmem:[%s533 + $0x58] sm:$0xf]
      %v2479 = vld [vmem:[%s533 + $0x60] sm:$0xff]
      %v2480 = vld [vmem:[%s533 + $0x68] sm:$0xf]
      %v2481 = vld [vmem:[%s533 + $0x70] sm:$0xff]
      %v2482 = vld [vmem:[%s533 + $0x78] sm:$0xf]
      %v2483 = vld [vmem:[%s533 + $0x80] sm:$0xff]
      %v2484 = vld [vmem:[%s533 + $0x88] sm:$0xf]
      %v2485 = vld [vmem:[%s533 + $0x90] sm:$0xff]
      %v2486 = vld [vmem:[%s533 + $0x98] sm:$0xf]
      %v2487 = vld [vmem:[%s533 + $0xa0] sm:$0xff]
      %v2488 = vld [vmem:[%s533 + $0xa8] sm:$0xf]
      %v2489 = vld [vmem:[%s533 + $0xb0] sm:$0xff]
      %v2490 = vld [vmem:[%s533 + $0xb8] sm:$0xf]
      %v2491 = vsub.f32 %v2443, %v2467
      %v2492 = vsub.f32 %v2444, %v2468
      %v2493 = vsub.f32 %v2445, %v2469
      %v2494 = vsub.f32 %v2446, %v2470
      %v2495 = vsub.f32 %v2447, %v2471
      %v2496 = vsub.f32 %v2448, %v2472
      %v2497 = vsub.f32 %v2449, %v2473
      %v2498 = vsub.f32 %v2450, %v2474
      %v2499 = vsub.f32 %v2451, %v2475
      %v2500 = vsub.f32 %v2452, %v2476
      %v2501 = vsub.f32 %v2453, %v2477
      %v2502 = vsub.f32 %v2454, %v2478
      %v2503 = vsub.f32 %v2455, %v2479
      %v2504 = vsub.f32 %v2456, %v2480
      %v2505 = vsub.f32 %v2457, %v2481
      %v2506 = vsub.f32 %v2458, %v2482
      %v2507 = vsub.f32 %v2459, %v2483
      %v2508 = vsub.f32 %v2460, %v2484
      %v2509 = vsub.f32 %v2461, %v2485
      %v2510 = vsub.f32 %v2462, %v2486
      %v2511 = vsub.f32 %v2463, %v2487
      %v2512 = vsub.f32 %v2464, %v2488
      %v2513 = vsub.f32 %v2465, %v2489
      %v2514 = vsub.f32 %v2466, %v2490
      %v2515 = vld [vmem:[%s541] sm:$0xff]
      %v2516 = vld [vmem:[%s541 + $0x8] sm:$0xf]
      %v2517 = vld [vmem:[%s541 + $0x10] sm:$0xff]
      %v2518 = vld [vmem:[%s541 + $0x18] sm:$0xf]
      %v2519 = vld [vmem:[%s541 + $0x20] sm:$0xff]
      %v2520 = vld [vmem:[%s541 + $0x28] sm:$0xf]
      %v2521 = vld [vmem:[%s541 + $0x30] sm:$0xff]
      %v2522 = vld [vmem:[%s541 + $0x38] sm:$0xf]
      %v2523 = vld [vmem:[%s541 + $0x40] sm:$0xff]
      %v2524 = vld [vmem:[%s541 + $0x48] sm:$0xf]
      %v2525 = vld [vmem:[%s541 + $0x50] sm:$0xff]
      %v2526 = vld [vmem:[%s541 + $0x58] sm:$0xf]
      %v2527 = vld [vmem:[%s541 + $0x60] sm:$0xff]
      %v2528 = vld [vmem:[%s541 + $0x68] sm:$0xf]
      %v2529 = vld [vmem:[%s541 + $0x70] sm:$0xff]
      %v2530 = vld [vmem:[%s541 + $0x78] sm:$0xf]
      %v2531 = vld [vmem:[%s541 + $0x80] sm:$0xff]
      %v2532 = vld [vmem:[%s541 + $0x88] sm:$0xf]
      %v2533 = vld [vmem:[%s541 + $0x90] sm:$0xff]
      %v2534 = vld [vmem:[%s541 + $0x98] sm:$0xf]
      %v2535 = vld [vmem:[%s541 + $0xa0] sm:$0xff]
      %v2536 = vld [vmem:[%s541 + $0xa8] sm:$0xf]
      %v2537 = vld [vmem:[%s541 + $0xb0] sm:$0xff]
      %v2538 = vld [vmem:[%s541 + $0xb8] sm:$0xf]
      %v2539 = vadd.f32 %v2491, %v2515
      %v2540 = vadd.f32 %v2492, %v2516
      %v2541 = vadd.f32 %v2493, %v2517
      %v2542 = vadd.f32 %v2494, %v2518
      %v2543 = vadd.f32 %v2495, %v2519
      %v2544 = vadd.f32 %v2496, %v2520
      %v2545 = vadd.f32 %v2497, %v2521
      %v2546 = vadd.f32 %v2498, %v2522
      %v2547 = vadd.f32 %v2499, %v2523
      %v2548 = vadd.f32 %v2500, %v2524
      %v2549 = vadd.f32 %v2501, %v2525
      %v2550 = vadd.f32 %v2502, %v2526
      %v2551 = vadd.f32 %v2503, %v2527
      %v2552 = vadd.f32 %v2504, %v2528
      %v2553 = vadd.f32 %v2505, %v2529
      %v2554 = vadd.f32 %v2506, %v2530
      %v2555 = vadd.f32 %v2507, %v2531
      %v2556 = vadd.f32 %v2508, %v2532
      %v2557 = vadd.f32 %v2509, %v2533
      %v2558 = vadd.f32 %v2510, %v2534
      %v2559 = vadd.f32 %v2511, %v2535
      %v2560 = vadd.f32 %v2512, %v2536
      %v2561 = vadd.f32 %v2513, %v2537
      %v2562 = vadd.f32 %v2514, %v2538
      %v2563 = vld [vmem:[%s549] sm:$0xff]
      %v2564 = vld [vmem:[%s549 + $0x8] sm:$0xf]
      %v2565 = vld [vmem:[%s549 + $0x10] sm:$0xff]
      %v2566 = vld [vmem:[%s549 + $0x18] sm:$0xf]
      %v2567 = vld [vmem:[%s549 + $0x20] sm:$0xff]
      %v2568 = vld [vmem:[%s549 + $0x28] sm:$0xf]
      %v2569 = vld [vmem:[%s549 + $0x30] sm:$0xff]
      %v2570 = vld [vmem:[%s549 + $0x38] sm:$0xf]
      %v2571 = vld [vmem:[%s549 + $0x40] sm:$0xff]
      %v2572 = vld [vmem:[%s549 + $0x48] sm:$0xf]
      %v2573 = vld [vmem:[%s549 + $0x50] sm:$0xff]
      %v2574 = vld [vmem:[%s549 + $0x58] sm:$0xf]
      %v2575 = vld [vmem:[%s549 + $0x60] sm:$0xff]
      %v2576 = vld [vmem:[%s549 + $0x68] sm:$0xf]
      %v2577 = vld [vmem:[%s549 + $0x70] sm:$0xff]
      %v2578 = vld [vmem:[%s549 + $0x78] sm:$0xf]
      %v2579 = vld [vmem:[%s549 + $0x80] sm:$0xff]
      %v2580 = vld [vmem:[%s549 + $0x88] sm:$0xf]
      %v2581 = vld [vmem:[%s549 + $0x90] sm:$0xff]
      %v2582 = vld [vmem:[%s549 + $0x98] sm:$0xf]
      %v2583 = vld [vmem:[%s549 + $0xa0] sm:$0xff]
      %v2584 = vld [vmem:[%s549 + $0xa8] sm:$0xf]
      %v2585 = vld [vmem:[%s549 + $0xb0] sm:$0xff]
      %v2586 = vld [vmem:[%s549 + $0xb8] sm:$0xf]
      %v2587 = vsub.f32 %v2539, %v2563
      %v2588 = vsub.f32 %v2540, %v2564
      %v2589 = vsub.f32 %v2541, %v2565
      %v2590 = vsub.f32 %v2542, %v2566
      %v2591 = vsub.f32 %v2543, %v2567
      %v2592 = vsub.f32 %v2544, %v2568
      %v2593 = vsub.f32 %v2545, %v2569
      %v2594 = vsub.f32 %v2546, %v2570
      %v2595 = vsub.f32 %v2547, %v2571
      %v2596 = vsub.f32 %v2548, %v2572
      %v2597 = vsub.f32 %v2549, %v2573
      %v2598 = vsub.f32 %v2550, %v2574
      %v2599 = vsub.f32 %v2551, %v2575
      %v2600 = vsub.f32 %v2552, %v2576
      %v2601 = vsub.f32 %v2553, %v2577
      %v2602 = vsub.f32 %v2554, %v2578
      %v2603 = vsub.f32 %v2555, %v2579
      %v2604 = vsub.f32 %v2556, %v2580
      %v2605 = vsub.f32 %v2557, %v2581
      %v2606 = vsub.f32 %v2558, %v2582
      %v2607 = vsub.f32 %v2559, %v2583
      %v2608 = vsub.f32 %v2560, %v2584
      %v2609 = vsub.f32 %v2561, %v2585
      %v2610 = vsub.f32 %v2562, %v2586
      %2611 = vst.msk [vmem:[#allocation2] sm:$0xff] %vm761, %v2587
      %2612 = vst.msk [vmem:[#allocation2 + $0x8] sm:$0xf] %vm763, %v2588
      %2613 = vst.msk [vmem:[#allocation2 + $0x10] sm:$0xff] %vm761, %v2589
      %2614 = vst.msk [vmem:[#allocation2 + $0x18] sm:$0xf] %vm763, %v2590
      %2615 = vst.msk [vmem:[#allocation2 + $0x20] sm:$0xff] %vm761, %v2591
      %2616 = vst.msk [vmem:[#allocation2 + $0x28] sm:$0xf] %vm763, %v2592
      %2617 = vst.msk [vmem:[#allocation2 + $0x30] sm:$0xff] %vm761, %v2593
      %2618 = vst.msk [vmem:[#allocation2 + $0x38] sm:$0xf] %vm763, %v2594
      %2619 = vst.msk [vmem:[#allocation2 + $0x40] sm:$0xff] %vm761, %v2595
      %2620 = vst.msk [vmem:[#allocation2 + $0x48] sm:$0xf] %vm763, %v2596
      %2621 = vst.msk [vmem:[#allocation2 + $0x50] sm:$0xff] %vm761, %v2597
      %2622 = vst.msk [vmem:[#allocation2 + $0x58] sm:$0xf] %vm763, %v2598
      %2623 = vst.msk [vmem:[#allocation2 + $0x60] sm:$0xff] %vm761, %v2599
      %2624 = vst.msk [vmem:[#allocation2 + $0x68] sm:$0xf] %vm763, %v2600
      %2625 = vst.msk [vmem:[#allocation2 + $0x70] sm:$0xff] %vm761, %v2601
      %2626 = vst.msk [vmem:[#allocation2 + $0x78] sm:$0xf] %vm763, %v2602
      %2627 = vst.msk [vmem:[#allocation2 + $0x80] sm:$0xff] %vm761, %v2603
      %2628 = vst.msk [vmem:[#allocation2 + $0x88] sm:$0xf] %vm763, %v2604
      %2629 = vst.msk [vmem:[#allocation2 + $0x90] sm:$0xff] %vm761, %v2605
      %2630 = vst.msk [vmem:[#allocation2 + $0x98] sm:$0xf] %vm763, %v2606
      %2631 = vst.msk [vmem:[#allocation2 + $0xa0] sm:$0xff] %vm761, %v2607
      %2632 = vst.msk [vmem:[#allocation2 + $0xa8] sm:$0xf] %vm763, %v2608
      %2633 = vst.msk [vmem:[#allocation2 + $0xb0] sm:$0xff] %vm761, %v2609
      %2634 = vst.msk [vmem:[#allocation2 + $0xb8] sm:$0xf] %vm763, %v2610
      %s2635 = scalar_lea.vmem %s560, 80
      %v2636 = vld [vmem:[%s2635] sm:$0x1]
      %v2637 = vld [vmem:[#allocation2] sm:$0xff]
      %v2638 = vld [vmem:[#allocation2 + $0x10] sm:$0xff]
      %v2639 = vld [vmem:[#allocation2 + $0x20] sm:$0xff]
      %v2640 = vld [vmem:[#allocation2 + $0x30] sm:$0xff]
      %v2641 = vld [vmem:[#allocation2 + $0x40] sm:$0xff]
      %v2642 = vld [vmem:[#allocation2 + $0x50] sm:$0xff]
      %v2643 = vld [vmem:[#allocation2 + $0x60] sm:$0xff]
      %v2644 = vld [vmem:[#allocation2 + $0x70] sm:$0xff]
      %v2645 = vlaneseq
      %v2646 = vshrl.u32 %v2645, 7
      %v2647 = vsub.s32 0, %v2646
      %v2648 = vrot.slane %v2636, %v2647
      %v2649 = vmul.f32 %v2637, %v2648
      %v2650 = vmul.f32 %v2638, %v2648
      %v2651 = vmul.f32 %v2639, %v2648
      %v2652 = vmul.f32 %v2640, %v2648
      %v2653 = vmul.f32 %v2641, %v2648
      %v2654 = vmul.f32 %v2642, %v2648
      %v2655 = vmul.f32 %v2643, %v2648
      %v2656 = vmul.f32 %v2644, %v2648
      %v2657 = vld [vmem:[%s2635 + $0x1] sm:$0x1]
      %v2658 = vld [vmem:[#allocation2 + $0x1] sm:$0xff]
      %v2659 = vld [vmem:[#allocation2 + $0x11] sm:$0xff]
      %v2660 = vld [vmem:[#allocation2 + $0x21] sm:$0xff]
      %v2661 = vld [vmem:[#allocation2 + $0x31] sm:$0xff]
      %v2662 = vld [vmem:[#allocation2 + $0x41] sm:$0xff]
      %v2663 = vld [vmem:[#allocation2 + $0x51] sm:$0xff]
      %v2664 = vld [vmem:[#allocation2 + $0x61] sm:$0xff]
      %v2665 = vld [vmem:[#allocation2 + $0x71] sm:$0xff]
      %v2666 = vlaneseq
      %v2667 = vshrl.u32 %v2666, 7
      %v2668 = vsub.s32 0, %v2667
      %v2669 = vrot.slane %v2657, %v2668
      %v2670 = vmul.f32 %v2658, %v2669
      %v2671 = vmul.f32 %v2659, %v2669
      %v2672 = vmul.f32 %v2660, %v2669
      %v2673 = vmul.f32 %v2661, %v2669
      %v2674 = vmul.f32 %v2662, %v2669
      %v2675 = vmul.f32 %v2663, %v2669
      %v2676 = vmul.f32 %v2664, %v2669
      %v2677 = vmul.f32 %v2665, %v2669
      %v2678 = vadd.f32 %v2649, %v2670
      %v2679 = vadd.f32 %v2650, %v2671
      %v2680 = vadd.f32 %v2651, %v2672
      %v2681 = vadd.f32 %v2652, %v2673
      %v2682 = vadd.f32 %v2653, %v2674
      %v2683 = vadd.f32 %v2654, %v2675
      %v2684 = vadd.f32 %v2655, %v2676
      %v2685 = vadd.f32 %v2656, %v2677
      %v2686 = vld [vmem:[%s2635 + $0x2] sm:$0x1]
      %v2687 = vld [vmem:[#allocation2 + $0x2] sm:$0xff]
      %v2688 = vld [vmem:[#allocation2 + $0x12] sm:$0xff]
      %v2689 = vld [vmem:[#allocation2 + $0x22] sm:$0xff]
      %v2690 = vld [vmem:[#allocation2 + $0x32] sm:$0xff]
      %v2691 = vld [vmem:[#allocation2 + $0x42] sm:$0xff]
      %v2692 = vld [vmem:[#allocation2 + $0x52] sm:$0xff]
      %v2693 = vld [vmem:[#allocation2 + $0x62] sm:$0xff]
      %v2694 = vld [vmem:[#allocation2 + $0x72] sm:$0xff]
      %v2695 = vlaneseq
      %v2696 = vshrl.u32 %v2695, 7
      %v2697 = vsub.s32 0, %v2696
      %v2698 = vrot.slane %v2686, %v2697
      %v2699 = vmul.f32 %v2687, %v2698
      %v2700 = vmul.f32 %v2688, %v2698
      %v2701 = vmul.f32 %v2689, %v2698
      %v2702 = vmul.f32 %v2690, %v2698
      %v2703 = vmul.f32 %v2691, %v2698
      %v2704 = vmul.f32 %v2692, %v2698
      %v2705 = vmul.f32 %v2693, %v2698
      %v2706 = vmul.f32 %v2694, %v2698
      %v2707 = vadd.f32 %v2678, %v2699
      %v2708 = vadd.f32 %v2679, %v2700
      %v2709 = vadd.f32 %v2680, %v2701
      %v2710 = vadd.f32 %v2681, %v2702
      %v2711 = vadd.f32 %v2682, %v2703
      %v2712 = vadd.f32 %v2683, %v2704
      %v2713 = vadd.f32 %v2684, %v2705
      %v2714 = vadd.f32 %v2685, %v2706
      %v2715 = vld [vmem:[%s2635 + $0x3] sm:$0x1]
      %v2716 = vld [vmem:[#allocation2 + $0x3] sm:$0xff]
      %v2717 = vld [vmem:[#allocation2 + $0x13] sm:$0xff]
      %v2718 = vld [vmem:[#allocation2 + $0x23] sm:$0xff]
      %v2719 = vld [vmem:[#allocation2 + $0x33] sm:$0xff]
      %v2720 = vld [vmem:[#allocation2 + $0x43] sm:$0xff]
      %v2721 = vld [vmem:[#allocation2 + $0x53] sm:$0xff]
      %v2722 = vld [vmem:[#allocation2 + $0x63] sm:$0xff]
      %v2723 = vld [vmem:[#allocation2 + $0x73] sm:$0xff]
      %v2724 = vlaneseq
      %v2725 = vshrl.u32 %v2724, 7
      %v2726 = vsub.s32 0, %v2725
      %v2727 = vrot.slane %v2715, %v2726
      %v2728 = vmul.f32 %v2716, %v2727
      %v2729 = vmul.f32 %v2717, %v2727
      %v2730 = vmul.f32 %v2718, %v2727
      %v2731 = vmul.f32 %v2719, %v2727
      %v2732 = vmul.f32 %v2720, %v2727
      %v2733 = vmul.f32 %v2721, %v2727
      %v2734 = vmul.f32 %v2722, %v2727
      %v2735 = vmul.f32 %v2723, %v2727
      %v2736 = vadd.f32 %v2707, %v2728
      %v2737 = vadd.f32 %v2708, %v2729
      %v2738 = vadd.f32 %v2709, %v2730
      %v2739 = vadd.f32 %v2710, %v2731
      %v2740 = vadd.f32 %v2711, %v2732
      %v2741 = vadd.f32 %v2712, %v2733
      %v2742 = vadd.f32 %v2713, %v2734
      %v2743 = vadd.f32 %v2714, %v2735
      %v2744 = vld [vmem:[%s2635 + $0x4] sm:$0x1]
      %v2745 = vld [vmem:[#allocation2 + $0x4] sm:$0xff]
      %v2746 = vld [vmem:[#allocation2 + $0x14] sm:$0xff]
      %v2747 = vld [vmem:[#allocation2 + $0x24] sm:$0xff]
      %v2748 = vld [vmem:[#allocation2 + $0x34] sm:$0xff]
      %v2749 = vld [vmem:[#allocation2 + $0x44] sm:$0xff]
      %v2750 = vld [vmem:[#allocation2 + $0x54] sm:$0xff]
      %v2751 = vld [vmem:[#allocation2 + $0x64] sm:$0xff]
      %v2752 = vld [vmem:[#allocation2 + $0x74] sm:$0xff]
      %v2753 = vlaneseq
      %v2754 = vshrl.u32 %v2753, 7
      %v2755 = vsub.s32 0, %v2754
      %v2756 = vrot.slane %v2744, %v2755
      %v2757 = vmul.f32 %v2745, %v2756
      %v2758 = vmul.f32 %v2746, %v2756
      %v2759 = vmul.f32 %v2747, %v2756
      %v2760 = vmul.f32 %v2748, %v2756
      %v2761 = vmul.f32 %v2749, %v2756
      %v2762 = vmul.f32 %v2750, %v2756
      %v2763 = vmul.f32 %v2751, %v2756
      %v2764 = vmul.f32 %v2752, %v2756
      %v2765 = vadd.f32 %v2736, %v2757
      %v2766 = vadd.f32 %v2737, %v2758
      %v2767 = vadd.f32 %v2738, %v2759
      %v2768 = vadd.f32 %v2739, %v2760
      %v2769 = vadd.f32 %v2740, %v2761
      %v2770 = vadd.f32 %v2741, %v2762
      %v2771 = vadd.f32 %v2742, %v2763
      %v2772 = vadd.f32 %v2743, %v2764
      %s2773 = scalar_lea.vmem %s560, 88
      %v2774 = vld [vmem:[%s2773] sm:$0x1]
      %v2775 = vld [vmem:[%s926] sm:$0xff]
      %v2776 = vld [vmem:[%s926 + $0x10] sm:$0xff]
      %v2777 = vld [vmem:[%s926 + $0x20] sm:$0xff]
      %v2778 = vld [vmem:[%s926 + $0x30] sm:$0xff]
      %v2779 = vld [vmem:[%s926 + $0x40] sm:$0xff]
      %v2780 = vld [vmem:[%s926 + $0x50] sm:$0xff]
      %v2781 = vld [vmem:[%s926 + $0x60] sm:$0xff]
      %v2782 = vld [vmem:[%s926 + $0x70] sm:$0xff]
      %v2783 = vlaneseq
      %v2784 = vshrl.u32 %v2783, 7
      %v2785 = vsub.s32 0, %v2784
      %v2786 = vrot.slane %v2774, %v2785
      %v2787 = vmul.f32 %v2775, %v2786
      %v2788 = vmul.f32 %v2776, %v2786
      %v2789 = vmul.f32 %v2777, %v2786
      %v2790 = vmul.f32 %v2778, %v2786
      %v2791 = vmul.f32 %v2779, %v2786
      %v2792 = vmul.f32 %v2780, %v2786
      %v2793 = vmul.f32 %v2781, %v2786
      %v2794 = vmul.f32 %v2782, %v2786
      %v2795 = vadd.f32 %v2765, %v2787
      %v2796 = vadd.f32 %v2766, %v2788
      %v2797 = vadd.f32 %v2767, %v2789
      %v2798 = vadd.f32 %v2768, %v2790
      %v2799 = vadd.f32 %v2769, %v2791
      %v2800 = vadd.f32 %v2770, %v2792
      %v2801 = vadd.f32 %v2771, %v2793
      %v2802 = vadd.f32 %v2772, %v2794
      %v2803 = vld [vmem:[%s2773 + $0x1] sm:$0x1]
      %v2804 = vld [vmem:[%s926 + $0x1] sm:$0xff]
      %v2805 = vld [vmem:[%s926 + $0x11] sm:$0xff]
      %v2806 = vld [vmem:[%s926 + $0x21] sm:$0xff]
      %v2807 = vld [vmem:[%s926 + $0x31] sm:$0xff]
      %v2808 = vld [vmem:[%s926 + $0x41] sm:$0xff]
      %v2809 = vld [vmem:[%s926 + $0x51] sm:$0xff]
      %v2810 = vld [vmem:[%s926 + $0x61] sm:$0xff]
      %v2811 = vld [vmem:[%s926 + $0x71] sm:$0xff]
      %v2812 = vlaneseq
      %v2813 = vshrl.u32 %v2812, 7
      %v2814 = vsub.s32 0, %v2813
      %v2815 = vrot.slane %v2803, %v2814
      %v2816 = vmul.f32 %v2804, %v2815
      %v2817 = vmul.f32 %v2805, %v2815
      %v2818 = vmul.f32 %v2806, %v2815
      %v2819 = vmul.f32 %v2807, %v2815
      %v2820 = vmul.f32 %v2808, %v2815
      %v2821 = vmul.f32 %v2809, %v2815
      %v2822 = vmul.f32 %v2810, %v2815
      %v2823 = vmul.f32 %v2811, %v2815
      %v2824 = vadd.f32 %v2795, %v2816
      %v2825 = vadd.f32 %v2796, %v2817
      %v2826 = vadd.f32 %v2797, %v2818
      %v2827 = vadd.f32 %v2798, %v2819
      %v2828 = vadd.f32 %v2799, %v2820
      %v2829 = vadd.f32 %v2800, %v2821
      %v2830 = vadd.f32 %v2801, %v2822
      %v2831 = vadd.f32 %v2802, %v2823
      %v2832 = vld [vmem:[%s2773 + $0x2] sm:$0x1]
      %v2833 = vld [vmem:[%s926 + $0x2] sm:$0xff]
      %v2834 = vld [vmem:[%s926 + $0x12] sm:$0xff]
      %v2835 = vld [vmem:[%s926 + $0x22] sm:$0xff]
      %v2836 = vld [vmem:[%s926 + $0x32] sm:$0xff]
      %v2837 = vld [vmem:[%s926 + $0x42] sm:$0xff]
      %v2838 = vld [vmem:[%s926 + $0x52] sm:$0xff]
      %v2839 = vld [vmem:[%s926 + $0x62] sm:$0xff]
      %v2840 = vld [vmem:[%s926 + $0x72] sm:$0xff]
      %v2841 = vlaneseq
      %v2842 = vshrl.u32 %v2841, 7
      %v2843 = vsub.s32 0, %v2842
      %v2844 = vrot.slane %v2832, %v2843
      %v2845 = vmul.f32 %v2833, %v2844
      %v2846 = vmul.f32 %v2834, %v2844
      %v2847 = vmul.f32 %v2835, %v2844
      %v2848 = vmul.f32 %v2836, %v2844
      %v2849 = vmul.f32 %v2837, %v2844
      %v2850 = vmul.f32 %v2838, %v2844
      %v2851 = vmul.f32 %v2839, %v2844
      %v2852 = vmul.f32 %v2840, %v2844
      %v2853 = vadd.f32 %v2824, %v2845
      %v2854 = vadd.f32 %v2825, %v2846
      %v2855 = vadd.f32 %v2826, %v2847
      %v2856 = vadd.f32 %v2827, %v2848
      %v2857 = vadd.f32 %v2828, %v2849
      %v2858 = vadd.f32 %v2829, %v2850
      %v2859 = vadd.f32 %v2830, %v2851
      %v2860 = vadd.f32 %v2831, %v2852
      %v2861 = vld [vmem:[%s2773 + $0x3] sm:$0x1]
      %v2862 = vld [vmem:[%s926 + $0x3] sm:$0xff]
      %v2863 = vld [vmem:[%s926 + $0x13] sm:$0xff]
      %v2864 = vld [vmem:[%s926 + $0x23] sm:$0xff]
      %v2865 = vld [vmem:[%s926 + $0x33] sm:$0xff]
      %v2866 = vld [vmem:[%s926 + $0x43] sm:$0xff]
      %v2867 = vld [vmem:[%s926 + $0x53] sm:$0xff]
      %v2868 = vld [vmem:[%s926 + $0x63] sm:$0xff]
      %v2869 = vld [vmem:[%s926 + $0x73] sm:$0xff]
      %v2870 = vlaneseq
      %v2871 = vshrl.u32 %v2870, 7
      %v2872 = vsub.s32 0, %v2871
      %v2873 = vrot.slane %v2861, %v2872
      %v2874 = vmul.f32 %v2862, %v2873
      %v2875 = vmul.f32 %v2863, %v2873
      %v2876 = vmul.f32 %v2864, %v2873
      %v2877 = vmul.f32 %v2865, %v2873
      %v2878 = vmul.f32 %v2866, %v2873
      %v2879 = vmul.f32 %v2867, %v2873
      %v2880 = vmul.f32 %v2868, %v2873
      %v2881 = vmul.f32 %v2869, %v2873
      %v2882 = vadd.f32 %v2853, %v2874
      %v2883 = vadd.f32 %v2854, %v2875
      %v2884 = vadd.f32 %v2855, %v2876
      %v2885 = vadd.f32 %v2856, %v2877
      %v2886 = vadd.f32 %v2857, %v2878
      %v2887 = vadd.f32 %v2858, %v2879
      %v2888 = vadd.f32 %v2859, %v2880
      %v2889 = vadd.f32 %v2860, %v2881
      %v2890 = vld [vmem:[%s2773 + $0x4] sm:$0x1]
      %v2891 = vld [vmem:[%s926 + $0x4] sm:$0xff]
      %v2892 = vld [vmem:[%s926 + $0x14] sm:$0xff]
      %v2893 = vld [vmem:[%s926 + $0x24] sm:$0xff]
      %v2894 = vld [vmem:[%s926 + $0x34] sm:$0xff]
      %v2895 = vld [vmem:[%s926 + $0x44] sm:$0xff]
      %v2896 = vld [vmem:[%s926 + $0x54] sm:$0xff]
      %v2897 = vld [vmem:[%s926 + $0x64] sm:$0xff]
      %v2898 = vld [vmem:[%s926 + $0x74] sm:$0xff]
      %v2899 = vlaneseq
      %v2900 = vshrl.u32 %v2899, 7
      %v2901 = vsub.s32 0, %v2900
      %v2902 = vrot.slane %v2890, %v2901
      %v2903 = vmul.f32 %v2891, %v2902
      %v2904 = vmul.f32 %v2892, %v2902
      %v2905 = vmul.f32 %v2893, %v2902
      %v2906 = vmul.f32 %v2894, %v2902
      %v2907 = vmul.f32 %v2895, %v2902
      %v2908 = vmul.f32 %v2896, %v2902
      %v2909 = vmul.f32 %v2897, %v2902
      %v2910 = vmul.f32 %v2898, %v2902
      %v2911 = vadd.f32 %v2882, %v2903
      %v2912 = vadd.f32 %v2883, %v2904
      %v2913 = vadd.f32 %v2884, %v2905
      %v2914 = vadd.f32 %v2885, %v2906
      %v2915 = vadd.f32 %v2886, %v2907
      %v2916 = vadd.f32 %v2887, %v2908
      %v2917 = vadd.f32 %v2888, %v2909
      %v2918 = vadd.f32 %v2889, %v2910
      %s2919 = scalar_lea.vmem %s560, 96
      %v2920 = vld [vmem:[%s2919] sm:$0x1]
      %v2921 = vld [vmem:[%s1073] sm:$0xff]
      %v2922 = vld [vmem:[%s1073 + $0x10] sm:$0xff]
      %v2923 = vld [vmem:[%s1073 + $0x20] sm:$0xff]
      %v2924 = vld [vmem:[%s1073 + $0x30] sm:$0xff]
      %v2925 = vld [vmem:[%s1073 + $0x40] sm:$0xff]
      %v2926 = vld [vmem:[%s1073 + $0x50] sm:$0xff]
      %v2927 = vld [vmem:[%s1073 + $0x60] sm:$0xff]
      %v2928 = vld [vmem:[%s1073 + $0x70] sm:$0xff]
      %v2929 = vlaneseq
      %v2930 = vshrl.u32 %v2929, 7
      %v2931 = vsub.s32 0, %v2930
      %v2932 = vrot.slane %v2920, %v2931
      %v2933 = vmul.f32 %v2921, %v2932
      %v2934 = vmul.f32 %v2922, %v2932
      %v2935 = vmul.f32 %v2923, %v2932
      %v2936 = vmul.f32 %v2924, %v2932
      %v2937 = vmul.f32 %v2925, %v2932
      %v2938 = vmul.f32 %v2926, %v2932
      %v2939 = vmul.f32 %v2927, %v2932
      %v2940 = vmul.f32 %v2928, %v2932
      %v2941 = vadd.f32 %v2911, %v2933
      %v2942 = vadd.f32 %v2912, %v2934
      %v2943 = vadd.f32 %v2913, %v2935
      %v2944 = vadd.f32 %v2914, %v2936
      %v2945 = vadd.f32 %v2915, %v2937
      %v2946 = vadd.f32 %v2916, %v2938
      %v2947 = vadd.f32 %v2917, %v2939
      %v2948 = vadd.f32 %v2918, %v2940
      %v2949 = vld [vmem:[%s2919 + $0x1] sm:$0x1]
      %v2950 = vld [vmem:[%s1073 + $0x1] sm:$0xff]
      %v2951 = vld [vmem:[%s1073 + $0x11] sm:$0xff]
      %v2952 = vld [vmem:[%s1073 + $0x21] sm:$0xff]
      %v2953 = vld [vmem:[%s1073 + $0x31] sm:$0xff]
      %v2954 = vld [vmem:[%s1073 + $0x41] sm:$0xff]
      %v2955 = vld [vmem:[%s1073 + $0x51] sm:$0xff]
      %v2956 = vld [vmem:[%s1073 + $0x61] sm:$0xff]
      %v2957 = vld [vmem:[%s1073 + $0x71] sm:$0xff]
      %v2958 = vlaneseq
      %v2959 = vshrl.u32 %v2958, 7
      %v2960 = vsub.s32 0, %v2959
      %v2961 = vrot.slane %v2949, %v2960
      %v2962 = vmul.f32 %v2950, %v2961
      %v2963 = vmul.f32 %v2951, %v2961
      %v2964 = vmul.f32 %v2952, %v2961
      %v2965 = vmul.f32 %v2953, %v2961
      %v2966 = vmul.f32 %v2954, %v2961
      %v2967 = vmul.f32 %v2955, %v2961
      %v2968 = vmul.f32 %v2956, %v2961
      %v2969 = vmul.f32 %v2957, %v2961
      %v2970 = vadd.f32 %v2941, %v2962
      %v2971 = vadd.f32 %v2942, %v2963
      %v2972 = vadd.f32 %v2943, %v2964
      %v2973 = vadd.f32 %v2944, %v2965
      %v2974 = vadd.f32 %v2945, %v2966
      %v2975 = vadd.f32 %v2946, %v2967
      %v2976 = vadd.f32 %v2947, %v2968
      %v2977 = vadd.f32 %v2948, %v2969
      %v2978 = vld [vmem:[%s2919 + $0x2] sm:$0x1]
      %v2979 = vld [vmem:[%s1073 + $0x2] sm:$0xff]
      %v2980 = vld [vmem:[%s1073 + $0x12] sm:$0xff]
      %v2981 = vld [vmem:[%s1073 + $0x22] sm:$0xff]
      %v2982 = vld [vmem:[%s1073 + $0x32] sm:$0xff]
      %v2983 = vld [vmem:[%s1073 + $0x42] sm:$0xff]
      %v2984 = vld [vmem:[%s1073 + $0x52] sm:$0xff]
      %v2985 = vld [vmem:[%s1073 + $0x62] sm:$0xff]
      %v2986 = vld [vmem:[%s1073 + $0x72] sm:$0xff]
      %v2987 = vlaneseq
      %v2988 = vshrl.u32 %v2987, 7
      %v2989 = vsub.s32 0, %v2988
      %v2990 = vrot.slane %v2978, %v2989
      %v2991 = vmul.f32 %v2979, %v2990
      %v2992 = vmul.f32 %v2980, %v2990
      %v2993 = vmul.f32 %v2981, %v2990
      %v2994 = vmul.f32 %v2982, %v2990
      %v2995 = vmul.f32 %v2983, %v2990
      %v2996 = vmul.f32 %v2984, %v2990
      %v2997 = vmul.f32 %v2985, %v2990
      %v2998 = vmul.f32 %v2986, %v2990
      %v2999 = vadd.f32 %v2970, %v2991
      %v3000 = vadd.f32 %v2971, %v2992
      %v3001 = vadd.f32 %v2972, %v2993
      %v3002 = vadd.f32 %v2973, %v2994
      %v3003 = vadd.f32 %v2974, %v2995
      %v3004 = vadd.f32 %v2975, %v2996
      %v3005 = vadd.f32 %v2976, %v2997
      %v3006 = vadd.f32 %v2977, %v2998
      %v3007 = vld [vmem:[%s2919 + $0x3] sm:$0x1]
      %v3008 = vld [vmem:[%s1073 + $0x3] sm:$0xff]
      %v3009 = vld [vmem:[%s1073 + $0x13] sm:$0xff]
      %v3010 = vld [vmem:[%s1073 + $0x23] sm:$0xff]
      %v3011 = vld [vmem:[%s1073 + $0x33] sm:$0xff]
      %v3012 = vld [vmem:[%s1073 + $0x43] sm:$0xff]
      %v3013 = vld [vmem:[%s1073 + $0x53] sm:$0xff]
      %v3014 = vld [vmem:[%s1073 + $0x63] sm:$0xff]
      %v3015 = vld [vmem:[%s1073 + $0x73] sm:$0xff]
      %v3016 = vlaneseq
      %v3017 = vshrl.u32 %v3016, 7
      %v3018 = vsub.s32 0, %v3017
      %v3019 = vrot.slane %v3007, %v3018
      %v3020 = vmul.f32 %v3008, %v3019
      %v3021 = vmul.f32 %v3009, %v3019
      %v3022 = vmul.f32 %v3010, %v3019
      %v3023 = vmul.f32 %v3011, %v3019
      %v3024 = vmul.f32 %v3012, %v3019
      %v3025 = vmul.f32 %v3013, %v3019
      %v3026 = vmul.f32 %v3014, %v3019
      %v3027 = vmul.f32 %v3015, %v3019
      %v3028 = vadd.f32 %v2999, %v3020
      %v3029 = vadd.f32 %v3000, %v3021
      %v3030 = vadd.f32 %v3001, %v3022
      %v3031 = vadd.f32 %v3002, %v3023
      %v3032 = vadd.f32 %v3003, %v3024
      %v3033 = vadd.f32 %v3004, %v3025
      %v3034 = vadd.f32 %v3005, %v3026
      %v3035 = vadd.f32 %v3006, %v3027
      %v3036 = vld [vmem:[%s2919 + $0x4] sm:$0x1]
      %v3037 = vld [vmem:[%s1073 + $0x4] sm:$0xff]
      %v3038 = vld [vmem:[%s1073 + $0x14] sm:$0xff]
      %v3039 = vld [vmem:[%s1073 + $0x24] sm:$0xff]
      %v3040 = vld [vmem:[%s1073 + $0x34] sm:$0xff]
      %v3041 = vld [vmem:[%s1073 + $0x44] sm:$0xff]
      %v3042 = vld [vmem:[%s1073 + $0x54] sm:$0xff]
      %v3043 = vld [vmem:[%s1073 + $0x64] sm:$0xff]
      %v3044 = vld [vmem:[%s1073 + $0x74] sm:$0xff]
      %v3045 = vlaneseq
      %v3046 = vshrl.u32 %v3045, 7
      %v3047 = vsub.s32 0, %v3046
      %v3048 = vrot.slane %v3036, %v3047
      %v3049 = vmul.f32 %v3037, %v3048
      %v3050 = vmul.f32 %v3038, %v3048
      %v3051 = vmul.f32 %v3039, %v3048
      %v3052 = vmul.f32 %v3040, %v3048
      %v3053 = vmul.f32 %v3041, %v3048
      %v3054 = vmul.f32 %v3042, %v3048
      %v3055 = vmul.f32 %v3043, %v3048
      %v3056 = vmul.f32 %v3044, %v3048
      %v3057 = vadd.f32 %v3028, %v3049
      %v3058 = vadd.f32 %v3029, %v3050
      %v3059 = vadd.f32 %v3030, %v3051
      %v3060 = vadd.f32 %v3031, %v3052
      %v3061 = vadd.f32 %v3032, %v3053
      %v3062 = vadd.f32 %v3033, %v3054
      %v3063 = vadd.f32 %v3034, %v3055
      %v3064 = vadd.f32 %v3035, %v3056
      %s3065 = scalar_lea.vmem %s560, 104
      %v3066 = vld [vmem:[%s3065] sm:$0x1]
      %v3067 = vld [vmem:[%s1220] sm:$0xff]
      %v3068 = vld [vmem:[%s1220 + $0x10] sm:$0xff]
      %v3069 = vld [vmem:[%s1220 + $0x20] sm:$0xff]
      %v3070 = vld [vmem:[%s1220 + $0x30] sm:$0xff]
      %v3071 = vld [vmem:[%s1220 + $0x40] sm:$0xff]
      %v3072 = vld [vmem:[%s1220 + $0x50] sm:$0xff]
      %v3073 = vld [vmem:[%s1220 + $0x60] sm:$0xff]
      %v3074 = vld [vmem:[%s1220 + $0x70] sm:$0xff]
      %v3075 = vlaneseq
      %v3076 = vshrl.u32 %v3075, 7
      %v3077 = vsub.s32 0, %v3076
      %v3078 = vrot.slane %v3066, %v3077
      %v3079 = vmul.f32 %v3067, %v3078
      %v3080 = vmul.f32 %v3068, %v3078
      %v3081 = vmul.f32 %v3069, %v3078
      %v3082 = vmul.f32 %v3070, %v3078
      %v3083 = vmul.f32 %v3071, %v3078
      %v3084 = vmul.f32 %v3072, %v3078
      %v3085 = vmul.f32 %v3073, %v3078
      %v3086 = vmul.f32 %v3074, %v3078
      %v3087 = vadd.f32 %v3057, %v3079
      %v3088 = vadd.f32 %v3058, %v3080
      %v3089 = vadd.f32 %v3059, %v3081
      %v3090 = vadd.f32 %v3060, %v3082
      %v3091 = vadd.f32 %v3061, %v3083
      %v3092 = vadd.f32 %v3062, %v3084
      %v3093 = vadd.f32 %v3063, %v3085
      %v3094 = vadd.f32 %v3064, %v3086
      %v3095 = vld [vmem:[%s3065 + $0x1] sm:$0x1]
      %v3096 = vld [vmem:[%s1220 + $0x1] sm:$0xff]
      %v3097 = vld [vmem:[%s1220 + $0x11] sm:$0xff]
      %v3098 = vld [vmem:[%s1220 + $0x21] sm:$0xff]
      %v3099 = vld [vmem:[%s1220 + $0x31] sm:$0xff]
      %v3100 = vld [vmem:[%s1220 + $0x41] sm:$0xff]
      %v3101 = vld [vmem:[%s1220 + $0x51] sm:$0xff]
      %v3102 = vld [vmem:[%s1220 + $0x61] sm:$0xff]
      %v3103 = vld [vmem:[%s1220 + $0x71] sm:$0xff]
      %v3104 = vlaneseq
      %v3105 = vshrl.u32 %v3104, 7
      %v3106 = vsub.s32 0, %v3105
      %v3107 = vrot.slane %v3095, %v3106
      %v3108 = vmul.f32 %v3096, %v3107
      %v3109 = vmul.f32 %v3097, %v3107
      %v3110 = vmul.f32 %v3098, %v3107
      %v3111 = vmul.f32 %v3099, %v3107
      %v3112 = vmul.f32 %v3100, %v3107
      %v3113 = vmul.f32 %v3101, %v3107
      %v3114 = vmul.f32 %v3102, %v3107
      %v3115 = vmul.f32 %v3103, %v3107
      %v3116 = vadd.f32 %v3087, %v3108
      %v3117 = vadd.f32 %v3088, %v3109
      %v3118 = vadd.f32 %v3089, %v3110
      %v3119 = vadd.f32 %v3090, %v3111
      %v3120 = vadd.f32 %v3091, %v3112
      %v3121 = vadd.f32 %v3092, %v3113
      %v3122 = vadd.f32 %v3093, %v3114
      %v3123 = vadd.f32 %v3094, %v3115
      %v3124 = vld [vmem:[%s3065 + $0x2] sm:$0x1]
      %v3125 = vld [vmem:[%s1220 + $0x2] sm:$0xff]
      %v3126 = vld [vmem:[%s1220 + $0x12] sm:$0xff]
      %v3127 = vld [vmem:[%s1220 + $0x22] sm:$0xff]
      %v3128 = vld [vmem:[%s1220 + $0x32] sm:$0xff]
      %v3129 = vld [vmem:[%s1220 + $0x42] sm:$0xff]
      %v3130 = vld [vmem:[%s1220 + $0x52] sm:$0xff]
      %v3131 = vld [vmem:[%s1220 + $0x62] sm:$0xff]
      %v3132 = vld [vmem:[%s1220 + $0x72] sm:$0xff]
      %v3133 = vlaneseq
      %v3134 = vshrl.u32 %v3133, 7
      %v3135 = vsub.s32 0, %v3134
      %v3136 = vrot.slane %v3124, %v3135
      %v3137 = vmul.f32 %v3125, %v3136
      %v3138 = vmul.f32 %v3126, %v3136
      %v3139 = vmul.f32 %v3127, %v3136
      %v3140 = vmul.f32 %v3128, %v3136
      %v3141 = vmul.f32 %v3129, %v3136
      %v3142 = vmul.f32 %v3130, %v3136
      %v3143 = vmul.f32 %v3131, %v3136
      %v3144 = vmul.f32 %v3132, %v3136
      %v3145 = vadd.f32 %v3116, %v3137
      %v3146 = vadd.f32 %v3117, %v3138
      %v3147 = vadd.f32 %v3118, %v3139
      %v3148 = vadd.f32 %v3119, %v3140
      %v3149 = vadd.f32 %v3120, %v3141
      %v3150 = vadd.f32 %v3121, %v3142
      %v3151 = vadd.f32 %v3122, %v3143
      %v3152 = vadd.f32 %v3123, %v3144
      %v3153 = vld [vmem:[%s3065 + $0x3] sm:$0x1]
      %v3154 = vld [vmem:[%s1220 + $0x3] sm:$0xff]
      %v3155 = vld [vmem:[%s1220 + $0x13] sm:$0xff]
      %v3156 = vld [vmem:[%s1220 + $0x23] sm:$0xff]
      %v3157 = vld [vmem:[%s1220 + $0x33] sm:$0xff]
      %v3158 = vld [vmem:[%s1220 + $0x43] sm:$0xff]
      %v3159 = vld [vmem:[%s1220 + $0x53] sm:$0xff]
      %v3160 = vld [vmem:[%s1220 + $0x63] sm:$0xff]
      %v3161 = vld [vmem:[%s1220 + $0x73] sm:$0xff]
      %v3162 = vlaneseq
      %v3163 = vshrl.u32 %v3162, 7
      %v3164 = vsub.s32 0, %v3163
      %v3165 = vrot.slane %v3153, %v3164
      %v3166 = vmul.f32 %v3154, %v3165
      %v3167 = vmul.f32 %v3155, %v3165
      %v3168 = vmul.f32 %v3156, %v3165
      %v3169 = vmul.f32 %v3157, %v3165
      %v3170 = vmul.f32 %v3158, %v3165
      %v3171 = vmul.f32 %v3159, %v3165
      %v3172 = vmul.f32 %v3160, %v3165
      %v3173 = vmul.f32 %v3161, %v3165
      %v3174 = vadd.f32 %v3145, %v3166
      %v3175 = vadd.f32 %v3146, %v3167
      %v3176 = vadd.f32 %v3147, %v3168
      %v3177 = vadd.f32 %v3148, %v3169
      %v3178 = vadd.f32 %v3149, %v3170
      %v3179 = vadd.f32 %v3150, %v3171
      %v3180 = vadd.f32 %v3151, %v3172
      %v3181 = vadd.f32 %v3152, %v3173
      %v3182 = vld [vmem:[%s3065 + $0x4] sm:$0x1]
      %v3183 = vld [vmem:[%s1220 + $0x4] sm:$0xff]
      %v3184 = vld [vmem:[%s1220 + $0x14] sm:$0xff]
      %v3185 = vld [vmem:[%s1220 + $0x24] sm:$0xff]
      %v3186 = vld [vmem:[%s1220 + $0x34] sm:$0xff]
      %v3187 = vld [vmem:[%s1220 + $0x44] sm:$0xff]
      %v3188 = vld [vmem:[%s1220 + $0x54] sm:$0xff]
      %v3189 = vld [vmem:[%s1220 + $0x64] sm:$0xff]
      %v3190 = vld [vmem:[%s1220 + $0x74] sm:$0xff]
      %v3191 = vlaneseq
      %v3192 = vshrl.u32 %v3191, 7
      %v3193 = vsub.s32 0, %v3192
      %v3194 = vrot.slane %v3182, %v3193
      %v3195 = vmul.f32 %v3183, %v3194
      %v3196 = vmul.f32 %v3184, %v3194
      %v3197 = vmul.f32 %v3185, %v3194
      %v3198 = vmul.f32 %v3186, %v3194
      %v3199 = vmul.f32 %v3187, %v3194
      %v3200 = vmul.f32 %v3188, %v3194
      %v3201 = vmul.f32 %v3189, %v3194
      %v3202 = vmul.f32 %v3190, %v3194
      %v3203 = vadd.f32 %v3174, %v3195
      %v3204 = vadd.f32 %v3175, %v3196
      %v3205 = vadd.f32 %v3176, %v3197
      %v3206 = vadd.f32 %v3177, %v3198
      %v3207 = vadd.f32 %v3178, %v3199
      %v3208 = vadd.f32 %v3179, %v3200
      %v3209 = vadd.f32 %v3180, %v3201
      %v3210 = vadd.f32 %v3181, %v3202
      %s3211 = scalar_lea.vmem %s560, 112
      %v3212 = vld [vmem:[%s3211] sm:$0x1]
      %v3213 = vld [vmem:[%s1367] sm:$0xff]
      %v3214 = vld [vmem:[%s1367 + $0x10] sm:$0xff]
      %v3215 = vld [vmem:[%s1367 + $0x20] sm:$0xff]
      %v3216 = vld [vmem:[%s1367 + $0x30] sm:$0xff]
      %v3217 = vld [vmem:[%s1367 + $0x40] sm:$0xff]
      %v3218 = vld [vmem:[%s1367 + $0x50] sm:$0xff]
      %v3219 = vld [vmem:[%s1367 + $0x60] sm:$0xff]
      %v3220 = vld [vmem:[%s1367 + $0x70] sm:$0xff]
      %v3221 = vlaneseq
      %v3222 = vshrl.u32 %v3221, 7
      %v3223 = vsub.s32 0, %v3222
      %v3224 = vrot.slane %v3212, %v3223
      %v3225 = vmul.f32 %v3213, %v3224
      %v3226 = vmul.f32 %v3214, %v3224
      %v3227 = vmul.f32 %v3215, %v3224
      %v3228 = vmul.f32 %v3216, %v3224
      %v3229 = vmul.f32 %v3217, %v3224
      %v3230 = vmul.f32 %v3218, %v3224
      %v3231 = vmul.f32 %v3219, %v3224
      %v3232 = vmul.f32 %v3220, %v3224
      %v3233 = vadd.f32 %v3203, %v3225
      %v3234 = vadd.f32 %v3204, %v3226
      %v3235 = vadd.f32 %v3205, %v3227
      %v3236 = vadd.f32 %v3206, %v3228
      %v3237 = vadd.f32 %v3207, %v3229
      %v3238 = vadd.f32 %v3208, %v3230
      %v3239 = vadd.f32 %v3209, %v3231
      %v3240 = vadd.f32 %v3210, %v3232
      %v3241 = vld [vmem:[%s3211 + $0x1] sm:$0x1]
      %v3242 = vld [vmem:[%s1367 + $0x1] sm:$0xff]
      %v3243 = vld [vmem:[%s1367 + $0x11] sm:$0xff]
      %v3244 = vld [vmem:[%s1367 + $0x21] sm:$0xff]
      %v3245 = vld [vmem:[%s1367 + $0x31] sm:$0xff]
      %v3246 = vld [vmem:[%s1367 + $0x41] sm:$0xff]
      %v3247 = vld [vmem:[%s1367 + $0x51] sm:$0xff]
      %v3248 = vld [vmem:[%s1367 + $0x61] sm:$0xff]
      %v3249 = vld [vmem:[%s1367 + $0x71] sm:$0xff]
      %v3250 = vlaneseq
      %v3251 = vshrl.u32 %v3250, 7
      %v3252 = vsub.s32 0, %v3251
      %v3253 = vrot.slane %v3241, %v3252
      %v3254 = vmul.f32 %v3242, %v3253
      %v3255 = vmul.f32 %v3243, %v3253
      %v3256 = vmul.f32 %v3244, %v3253
      %v3257 = vmul.f32 %v3245, %v3253
      %v3258 = vmul.f32 %v3246, %v3253
      %v3259 = vmul.f32 %v3247, %v3253
      %v3260 = vmul.f32 %v3248, %v3253
      %v3261 = vmul.f32 %v3249, %v3253
      %v3262 = vadd.f32 %v3233, %v3254
      %v3263 = vadd.f32 %v3234, %v3255
      %v3264 = vadd.f32 %v3235, %v3256
      %v3265 = vadd.f32 %v3236, %v3257
      %v3266 = vadd.f32 %v3237, %v3258
      %v3267 = vadd.f32 %v3238, %v3259
      %v3268 = vadd.f32 %v3239, %v3260
      %v3269 = vadd.f32 %v3240, %v3261
      %v3270 = vld [vmem:[%s3211 + $0x2] sm:$0x1]
      %v3271 = vld [vmem:[%s1367 + $0x2] sm:$0xff]
      %v3272 = vld [vmem:[%s1367 + $0x12] sm:$0xff]
      %v3273 = vld [vmem:[%s1367 + $0x22] sm:$0xff]
      %v3274 = vld [vmem:[%s1367 + $0x32] sm:$0xff]
      %v3275 = vld [vmem:[%s1367 + $0x42] sm:$0xff]
      %v3276 = vld [vmem:[%s1367 + $0x52] sm:$0xff]
      %v3277 = vld [vmem:[%s1367 + $0x62] sm:$0xff]
      %v3278 = vld [vmem:[%s1367 + $0x72] sm:$0xff]
      %v3279 = vlaneseq
      %v3280 = vshrl.u32 %v3279, 7
      %v3281 = vsub.s32 0, %v3280
      %v3282 = vrot.slane %v3270, %v3281
      %v3283 = vmul.f32 %v3271, %v3282
      %v3284 = vmul.f32 %v3272, %v3282
      %v3285 = vmul.f32 %v3273, %v3282
      %v3286 = vmul.f32 %v3274, %v3282
      %v3287 = vmul.f32 %v3275, %v3282
      %v3288 = vmul.f32 %v3276, %v3282
      %v3289 = vmul.f32 %v3277, %v3282
      %v3290 = vmul.f32 %v3278, %v3282
      %v3291 = vadd.f32 %v3262, %v3283
      %v3292 = vadd.f32 %v3263, %v3284
      %v3293 = vadd.f32 %v3264, %v3285
      %v3294 = vadd.f32 %v3265, %v3286
      %v3295 = vadd.f32 %v3266, %v3287
      %v3296 = vadd.f32 %v3267, %v3288
      %v3297 = vadd.f32 %v3268, %v3289
      %v3298 = vadd.f32 %v3269, %v3290
      %v3299 = vld [vmem:[%s3211 + $0x3] sm:$0x1]
      %v3300 = vld [vmem:[%s1367 + $0x3] sm:$0xff]
      %v3301 = vld [vmem:[%s1367 + $0x13] sm:$0xff]
      %v3302 = vld [vmem:[%s1367 + $0x23] sm:$0xff]
      %v3303 = vld [vmem:[%s1367 + $0x33] sm:$0xff]
      %v3304 = vld [vmem:[%s1367 + $0x43] sm:$0xff]
      %v3305 = vld [vmem:[%s1367 + $0x53] sm:$0xff]
      %v3306 = vld [vmem:[%s1367 + $0x63] sm:$0xff]
      %v3307 = vld [vmem:[%s1367 + $0x73] sm:$0xff]
      %v3308 = vlaneseq
      %v3309 = vshrl.u32 %v3308, 7
      %v3310 = vsub.s32 0, %v3309
      %v3311 = vrot.slane %v3299, %v3310
      %v3312 = vmul.f32 %v3300, %v3311
      %v3313 = vmul.f32 %v3301, %v3311
      %v3314 = vmul.f32 %v3302, %v3311
      %v3315 = vmul.f32 %v3303, %v3311
      %v3316 = vmul.f32 %v3304, %v3311
      %v3317 = vmul.f32 %v3305, %v3311
      %v3318 = vmul.f32 %v3306, %v3311
      %v3319 = vmul.f32 %v3307, %v3311
      %v3320 = vadd.f32 %v3291, %v3312
      %v3321 = vadd.f32 %v3292, %v3313
      %v3322 = vadd.f32 %v3293, %v3314
      %v3323 = vadd.f32 %v3294, %v3315
      %v3324 = vadd.f32 %v3295, %v3316
      %v3325 = vadd.f32 %v3296, %v3317
      %v3326 = vadd.f32 %v3297, %v3318
      %v3327 = vadd.f32 %v3298, %v3319
      %v3328 = vld [vmem:[%s3211 + $0x4] sm:$0x1]
      %v3329 = vld [vmem:[%s1367 + $0x4] sm:$0xff]
      %v3330 = vld [vmem:[%s1367 + $0x14] sm:$0xff]
      %v3331 = vld [vmem:[%s1367 + $0x24] sm:$0xff]
      %v3332 = vld [vmem:[%s1367 + $0x34] sm:$0xff]
      %v3333 = vld [vmem:[%s1367 + $0x44] sm:$0xff]
      %v3334 = vld [vmem:[%s1367 + $0x54] sm:$0xff]
      %v3335 = vld [vmem:[%s1367 + $0x64] sm:$0xff]
      %v3336 = vld [vmem:[%s1367 + $0x74] sm:$0xff]
      %v3337 = vlaneseq
      %v3338 = vshrl.u32 %v3337, 7
      %v3339 = vsub.s32 0, %v3338
      %v3340 = vrot.slane %v3328, %v3339
      %v3341 = vmul.f32 %v3329, %v3340
      %v3342 = vmul.f32 %v3330, %v3340
      %v3343 = vmul.f32 %v3331, %v3340
      %v3344 = vmul.f32 %v3332, %v3340
      %v3345 = vmul.f32 %v3333, %v3340
      %v3346 = vmul.f32 %v3334, %v3340
      %v3347 = vmul.f32 %v3335, %v3340
      %v3348 = vmul.f32 %v3336, %v3340
      %v3349 = vadd.f32 %v3320, %v3341
      %v3350 = vadd.f32 %v3321, %v3342
      %v3351 = vadd.f32 %v3322, %v3343
      %v3352 = vadd.f32 %v3323, %v3344
      %v3353 = vadd.f32 %v3324, %v3345
      %v3354 = vadd.f32 %v3325, %v3346
      %v3355 = vadd.f32 %v3326, %v3347
      %v3356 = vadd.f32 %v3327, %v3348
      %s3357 = scalar_lea.vmem [#allocation3], 128
      %3358 = vst.msk [vmem:[%s3357] sm:$0xff] %vm761, %v3349
      %3359 = vst.msk [vmem:[%s3357 + $0x8] sm:$0xff] %vm761, %v3350
      %3360 = vst.msk [vmem:[%s3357 + $0x10] sm:$0xff] %vm761, %v3351
      %3361 = vst.msk [vmem:[%s3357 + $0x18] sm:$0xff] %vm761, %v3352
      %3362 = vst.msk [vmem:[%s3357 + $0x20] sm:$0xff] %vm761, %v3353
      %3363 = vst.msk [vmem:[%s3357 + $0x28] sm:$0xff] %vm761, %v3354
      %3364 = vst.msk [vmem:[%s3357 + $0x30] sm:$0xff] %vm761, %v3355
      %3365 = vst.msk [vmem:[%s3357 + $0x38] sm:$0xff] %vm761, %v3356
      %v3366 = vld [vmem:[%s525] sm:$0xff]
      %v3367 = vld [vmem:[%s525 + $0x8] sm:$0xf]
      %v3368 = vld [vmem:[%s525 + $0x10] sm:$0xff]
      %v3369 = vld [vmem:[%s525 + $0x18] sm:$0xf]
      %v3370 = vld [vmem:[%s525 + $0x20] sm:$0xff]
      %v3371 = vld [vmem:[%s525 + $0x28] sm:$0xf]
      %v3372 = vld [vmem:[%s525 + $0x30] sm:$0xff]
      %v3373 = vld [vmem:[%s525 + $0x38] sm:$0xf]
      %v3374 = vld [vmem:[%s525 + $0x40] sm:$0xff]
      %v3375 = vld [vmem:[%s525 + $0x48] sm:$0xf]
      %v3376 = vld [vmem:[%s525 + $0x50] sm:$0xff]
      %v3377 = vld [vmem:[%s525 + $0x58] sm:$0xf]
      %v3378 = vld [vmem:[%s525 + $0x60] sm:$0xff]
      %v3379 = vld [vmem:[%s525 + $0x68] sm:$0xf]
      %v3380 = vld [vmem:[%s525 + $0x70] sm:$0xff]
      %v3381 = vld [vmem:[%s525 + $0x78] sm:$0xf]
      %v3382 = vld [vmem:[%s525 + $0x80] sm:$0xff]
      %v3383 = vld [vmem:[%s525 + $0x88] sm:$0xf]
      %v3384 = vld [vmem:[%s525 + $0x90] sm:$0xff]
      %v3385 = vld [vmem:[%s525 + $0x98] sm:$0xf]
      %v3386 = vld [vmem:[%s525 + $0xa0] sm:$0xff]
      %v3387 = vld [vmem:[%s525 + $0xa8] sm:$0xf]
      %v3388 = vld [vmem:[%s525 + $0xb0] sm:$0xff]
      %v3389 = vld [vmem:[%s525 + $0xb8] sm:$0xf]
      %v3390 = vld [vmem:[%s533] sm:$0xff]
      %v3391 = vld [vmem:[%s533 + $0x8] sm:$0xf]
      %v3392 = vld [vmem:[%s533 + $0x10] sm:$0xff]
      %v3393 = vld [vmem:[%s533 + $0x18] sm:$0xf]
      %v3394 = vld [vmem:[%s533 + $0x20] sm:$0xff]
      %v3395 = vld [vmem:[%s533 + $0x28] sm:$0xf]
      %v3396 = vld [vmem:[%s533 + $0x30] sm:$0xff]
      %v3397 = vld [vmem:[%s533 + $0x38] sm:$0xf]
      %v3398 = vld [vmem:[%s533 + $0x40] sm:$0xff]
      %v3399 = vld [vmem:[%s533 + $0x48] sm:$0xf]
      %v3400 = vld [vmem:[%s533 + $0x50] sm:$0xff]
      %v3401 = vld [vmem:[%s533 + $0x58] sm:$0xf]
      %v3402 = vld [vmem:[%s533 + $0x60] sm:$0xff]
      %v3403 = vld [vmem:[%s533 + $0x68] sm:$0xf]
      %v3404 = vld [vmem:[%s533 + $0x70] sm:$0xff]
      %v3405 = vld [vmem:[%s533 + $0x78] sm:$0xf]
      %v3406 = vld [vmem:[%s533 + $0x80] sm:$0xff]
      %v3407 = vld [vmem:[%s533 + $0x88] sm:$0xf]
      %v3408 = vld [vmem:[%s533 + $0x90] sm:$0xff]
      %v3409 = vld [vmem:[%s533 + $0x98] sm:$0xf]
      %v3410 = vld [vmem:[%s533 + $0xa0] sm:$0xff]
      %v3411 = vld [vmem:[%s533 + $0xa8] sm:$0xf]
      %v3412 = vld [vmem:[%s533 + $0xb0] sm:$0xff]
      %v3413 = vld [vmem:[%s533 + $0xb8] sm:$0xf]
      %v3414 = vsub.f32 %v3366, %v3390
      %v3415 = vsub.f32 %v3367, %v3391
      %v3416 = vsub.f32 %v3368, %v3392
      %v3417 = vsub.f32 %v3369, %v3393
      %v3418 = vsub.f32 %v3370, %v3394
      %v3419 = vsub.f32 %v3371, %v3395
      %v3420 = vsub.f32 %v3372, %v3396
      %v3421 = vsub.f32 %v3373, %v3397
      %v3422 = vsub.f32 %v3374, %v3398
      %v3423 = vsub.f32 %v3375, %v3399
      %v3424 = vsub.f32 %v3376, %v3400
      %v3425 = vsub.f32 %v3377, %v3401
      %v3426 = vsub.f32 %v3378, %v3402
      %v3427 = vsub.f32 %v3379, %v3403
      %v3428 = vsub.f32 %v3380, %v3404
      %v3429 = vsub.f32 %v3381, %v3405
      %v3430 = vsub.f32 %v3382, %v3406
      %v3431 = vsub.f32 %v3383, %v3407
      %v3432 = vsub.f32 %v3384, %v3408
      %v3433 = vsub.f32 %v3385, %v3409
      %v3434 = vsub.f32 %v3386, %v3410
      %v3435 = vsub.f32 %v3387, %v3411
      %v3436 = vsub.f32 %v3388, %v3412
      %v3437 = vsub.f32 %v3389, %v3413
      %v3438 = vld [vmem:[%s541] sm:$0xff]
      %v3439 = vld [vmem:[%s541 + $0x8] sm:$0xf]
      %v3440 = vld [vmem:[%s541 + $0x10] sm:$0xff]
      %v3441 = vld [vmem:[%s541 + $0x18] sm:$0xf]
      %v3442 = vld [vmem:[%s541 + $0x20] sm:$0xff]
      %v3443 = vld [vmem:[%s541 + $0x28] sm:$0xf]
      %v3444 = vld [vmem:[%s541 + $0x30] sm:$0xff]
      %v3445 = vld [vmem:[%s541 + $0x38] sm:$0xf]
      %v3446 = vld [vmem:[%s541 + $0x40] sm:$0xff]
      %v3447 = vld [vmem:[%s541 + $0x48] sm:$0xf]
      %v3448 = vld [vmem:[%s541 + $0x50] sm:$0xff]
      %v3449 = vld [vmem:[%s541 + $0x58] sm:$0xf]
      %v3450 = vld [vmem:[%s541 + $0x60] sm:$0xff]
      %v3451 = vld [vmem:[%s541 + $0x68] sm:$0xf]
      %v3452 = vld [vmem:[%s541 + $0x70] sm:$0xff]
      %v3453 = vld [vmem:[%s541 + $0x78] sm:$0xf]
      %v3454 = vld [vmem:[%s541 + $0x80] sm:$0xff]
      %v3455 = vld [vmem:[%s541 + $0x88] sm:$0xf]
      %v3456 = vld [vmem:[%s541 + $0x90] sm:$0xff]
      %v3457 = vld [vmem:[%s541 + $0x98] sm:$0xf]
      %v3458 = vld [vmem:[%s541 + $0xa0] sm:$0xff]
      %v3459 = vld [vmem:[%s541 + $0xa8] sm:$0xf]
      %v3460 = vld [vmem:[%s541 + $0xb0] sm:$0xff]
      %v3461 = vld [vmem:[%s541 + $0xb8] sm:$0xf]
      %v3462 = vsub.f32 %v3414, %v3438
      %v3463 = vsub.f32 %v3415, %v3439
      %v3464 = vsub.f32 %v3416, %v3440
      %v3465 = vsub.f32 %v3417, %v3441
      %v3466 = vsub.f32 %v3418, %v3442
      %v3467 = vsub.f32 %v3419, %v3443
      %v3468 = vsub.f32 %v3420, %v3444
      %v3469 = vsub.f32 %v3421, %v3445
      %v3470 = vsub.f32 %v3422, %v3446
      %v3471 = vsub.f32 %v3423, %v3447
      %v3472 = vsub.f32 %v3424, %v3448
      %v3473 = vsub.f32 %v3425, %v3449
      %v3474 = vsub.f32 %v3426, %v3450
      %v3475 = vsub.f32 %v3427, %v3451
      %v3476 = vsub.f32 %v3428, %v3452
      %v3477 = vsub.f32 %v3429, %v3453
      %v3478 = vsub.f32 %v3430, %v3454
      %v3479 = vsub.f32 %v3431, %v3455
      %v3480 = vsub.f32 %v3432, %v3456
      %v3481 = vsub.f32 %v3433, %v3457
      %v3482 = vsub.f32 %v3434, %v3458
      %v3483 = vsub.f32 %v3435, %v3459
      %v3484 = vsub.f32 %v3436, %v3460
      %v3485 = vsub.f32 %v3437, %v3461
      %v3486 = vld [vmem:[%s549] sm:$0xff]
      %v3487 = vld [vmem:[%s549 + $0x8] sm:$0xf]
      %v3488 = vld [vmem:[%s549 + $0x10] sm:$0xff]
      %v3489 = vld [vmem:[%s549 + $0x18] sm:$0xf]
      %v3490 = vld [vmem:[%s549 + $0x20] sm:$0xff]
      %v3491 = vld [vmem:[%s549 + $0x28] sm:$0xf]
      %v3492 = vld [vmem:[%s549 + $0x30] sm:$0xff]
      %v3493 = vld [vmem:[%s549 + $0x38] sm:$0xf]
      %v3494 = vld [vmem:[%s549 + $0x40] sm:$0xff]
      %v3495 = vld [vmem:[%s549 + $0x48] sm:$0xf]
      %v3496 = vld [vmem:[%s549 + $0x50] sm:$0xff]
      %v3497 = vld [vmem:[%s549 + $0x58] sm:$0xf]
      %v3498 = vld [vmem:[%s549 + $0x60] sm:$0xff]
      %v3499 = vld [vmem:[%s549 + $0x68] sm:$0xf]
      %v3500 = vld [vmem:[%s549 + $0x70] sm:$0xff]
      %v3501 = vld [vmem:[%s549 + $0x78] sm:$0xf]
      %v3502 = vld [vmem:[%s549 + $0x80] sm:$0xff]
      %v3503 = vld [vmem:[%s549 + $0x88] sm:$0xf]
      %v3504 = vld [vmem:[%s549 + $0x90] sm:$0xff]
      %v3505 = vld [vmem:[%s549 + $0x98] sm:$0xf]
      %v3506 = vld [vmem:[%s549 + $0xa0] sm:$0xff]
      %v3507 = vld [vmem:[%s549 + $0xa8] sm:$0xf]
      %v3508 = vld [vmem:[%s549 + $0xb0] sm:$0xff]
      %v3509 = vld [vmem:[%s549 + $0xb8] sm:$0xf]
      %v3510 = vadd.f32 %v3462, %v3486
      %v3511 = vadd.f32 %v3463, %v3487
      %v3512 = vadd.f32 %v3464, %v3488
      %v3513 = vadd.f32 %v3465, %v3489
      %v3514 = vadd.f32 %v3466, %v3490
      %v3515 = vadd.f32 %v3467, %v3491
      %v3516 = vadd.f32 %v3468, %v3492
      %v3517 = vadd.f32 %v3469, %v3493
      %v3518 = vadd.f32 %v3470, %v3494
      %v3519 = vadd.f32 %v3471, %v3495
      %v3520 = vadd.f32 %v3472, %v3496
      %v3521 = vadd.f32 %v3473, %v3497
      %v3522 = vadd.f32 %v3474, %v3498
      %v3523 = vadd.f32 %v3475, %v3499
      %v3524 = vadd.f32 %v3476, %v3500
      %v3525 = vadd.f32 %v3477, %v3501
      %v3526 = vadd.f32 %v3478, %v3502
      %v3527 = vadd.f32 %v3479, %v3503
      %v3528 = vadd.f32 %v3480, %v3504
      %v3529 = vadd.f32 %v3481, %v3505
      %v3530 = vadd.f32 %v3482, %v3506
      %v3531 = vadd.f32 %v3483, %v3507
      %v3532 = vadd.f32 %v3484, %v3508
      %v3533 = vadd.f32 %v3485, %v3509
      %3534 = vst.msk [vmem:[#allocation2] sm:$0xff] %vm761, %v3510
      %3535 = vst.msk [vmem:[#allocation2 + $0x8] sm:$0xf] %vm763, %v3511
      %3536 = vst.msk [vmem:[#allocation2 + $0x10] sm:$0xff] %vm761, %v3512
      %3537 = vst.msk [vmem:[#allocation2 + $0x18] sm:$0xf] %vm763, %v3513
      %3538 = vst.msk [vmem:[#allocation2 + $0x20] sm:$0xff] %vm761, %v3514
      %3539 = vst.msk [vmem:[#allocation2 + $0x28] sm:$0xf] %vm763, %v3515
      %3540 = vst.msk [vmem:[#allocation2 + $0x30] sm:$0xff] %vm761, %v3516
      %3541 = vst.msk [vmem:[#allocation2 + $0x38] sm:$0xf] %vm763, %v3517
      %3542 = vst.msk [vmem:[#allocation2 + $0x40] sm:$0xff] %vm761, %v3518
      %3543 = vst.msk [vmem:[#allocation2 + $0x48] sm:$0xf] %vm763, %v3519
      %3544 = vst.msk [vmem:[#allocation2 + $0x50] sm:$0xff] %vm761, %v3520
      %3545 = vst.msk [vmem:[#allocation2 + $0x58] sm:$0xf] %vm763, %v3521
      %3546 = vst.msk [vmem:[#allocation2 + $0x60] sm:$0xff] %vm761, %v3522
      %3547 = vst.msk [vmem:[#allocation2 + $0x68] sm:$0xf] %vm763, %v3523
      %3548 = vst.msk [vmem:[#allocation2 + $0x70] sm:$0xff] %vm761, %v3524
      %3549 = vst.msk [vmem:[#allocation2 + $0x78] sm:$0xf] %vm763, %v3525
      %3550 = vst.msk [vmem:[#allocation2 + $0x80] sm:$0xff] %vm761, %v3526
      %3551 = vst.msk [vmem:[#allocation2 + $0x88] sm:$0xf] %vm763, %v3527
      %3552 = vst.msk [vmem:[#allocation2 + $0x90] sm:$0xff] %vm761, %v3528
      %3553 = vst.msk [vmem:[#allocation2 + $0x98] sm:$0xf] %vm763, %v3529
      %3554 = vst.msk [vmem:[#allocation2 + $0xa0] sm:$0xff] %vm761, %v3530
      %3555 = vst.msk [vmem:[#allocation2 + $0xa8] sm:$0xf] %vm763, %v3531
      %3556 = vst.msk [vmem:[#allocation2 + $0xb0] sm:$0xff] %vm761, %v3532
      %3557 = vst.msk [vmem:[#allocation2 + $0xb8] sm:$0xf] %vm763, %v3533
      %s3558 = scalar_lea.vmem %s560, 120
      %v3559 = vld [vmem:[%s3558] sm:$0x1]
      %v3560 = vld [vmem:[#allocation2] sm:$0xff]
      %v3561 = vld [vmem:[#allocation2 + $0x10] sm:$0xff]
      %v3562 = vld [vmem:[#allocation2 + $0x20] sm:$0xff]
      %v3563 = vld [vmem:[#allocation2 + $0x30] sm:$0xff]
      %v3564 = vld [vmem:[#allocation2 + $0x40] sm:$0xff]
      %v3565 = vld [vmem:[#allocation2 + $0x50] sm:$0xff]
      %v3566 = vld [vmem:[#allocation2 + $0x60] sm:$0xff]
      %v3567 = vld [vmem:[#allocation2 + $0x70] sm:$0xff]
      %v3568 = vlaneseq
      %v3569 = vshrl.u32 %v3568, 7
      %v3570 = vsub.s32 0, %v3569
      %v3571 = vrot.slane %v3559, %v3570
      %v3572 = vmul.f32 %v3560, %v3571
      %v3573 = vmul.f32 %v3561, %v3571
      %v3574 = vmul.f32 %v3562, %v3571
      %v3575 = vmul.f32 %v3563, %v3571
      %v3576 = vmul.f32 %v3564, %v3571
      %v3577 = vmul.f32 %v3565, %v3571
      %v3578 = vmul.f32 %v3566, %v3571
      %v3579 = vmul.f32 %v3567, %v3571
      %v3580 = vld [vmem:[%s3558 + $0x1] sm:$0x1]
      %v3581 = vld [vmem:[#allocation2 + $0x1] sm:$0xff]
      %v3582 = vld [vmem:[#allocation2 + $0x11] sm:$0xff]
      %v3583 = vld [vmem:[#allocation2 + $0x21] sm:$0xff]
      %v3584 = vld [vmem:[#allocation2 + $0x31] sm:$0xff]
      %v3585 = vld [vmem:[#allocation2 + $0x41] sm:$0xff]
      %v3586 = vld [vmem:[#allocation2 + $0x51] sm:$0xff]
      %v3587 = vld [vmem:[#allocation2 + $0x61] sm:$0xff]
      %v3588 = vld [vmem:[#allocation2 + $0x71] sm:$0xff]
      %v3589 = vlaneseq
      %v3590 = vshrl.u32 %v3589, 7
      %v3591 = vsub.s32 0, %v3590
      %v3592 = vrot.slane %v3580, %v3591
      %v3593 = vmul.f32 %v3581, %v3592
      %v3594 = vmul.f32 %v3582, %v3592
      %v3595 = vmul.f32 %v3583, %v3592
      %v3596 = vmul.f32 %v3584, %v3592
      %v3597 = vmul.f32 %v3585, %v3592
      %v3598 = vmul.f32 %v3586, %v3592
      %v3599 = vmul.f32 %v3587, %v3592
      %v3600 = vmul.f32 %v3588, %v3592
      %v3601 = vadd.f32 %v3572, %v3593
      %v3602 = vadd.f32 %v3573, %v3594
      %v3603 = vadd.f32 %v3574, %v3595
      %v3604 = vadd.f32 %v3575, %v3596
      %v3605 = vadd.f32 %v3576, %v3597
      %v3606 = vadd.f32 %v3577, %v3598
      %v3607 = vadd.f32 %v3578, %v3599
      %v3608 = vadd.f32 %v3579, %v3600
      %v3609 = vld [vmem:[%s3558 + $0x2] sm:$0x1]
      %v3610 = vld [vmem:[#allocation2 + $0x2] sm:$0xff]
      %v3611 = vld [vmem:[#allocation2 + $0x12] sm:$0xff]
      %v3612 = vld [vmem:[#allocation2 + $0x22] sm:$0xff]
      %v3613 = vld [vmem:[#allocation2 + $0x32] sm:$0xff]
      %v3614 = vld [vmem:[#allocation2 + $0x42] sm:$0xff]
      %v3615 = vld [vmem:[#allocation2 + $0x52] sm:$0xff]
      %v3616 = vld [vmem:[#allocation2 + $0x62] sm:$0xff]
      %v3617 = vld [vmem:[#allocation2 + $0x72] sm:$0xff]
      %v3618 = vlaneseq
      %v3619 = vshrl.u32 %v3618, 7
      %v3620 = vsub.s32 0, %v3619
      %v3621 = vrot.slane %v3609, %v3620
      %v3622 = vmul.f32 %v3610, %v3621
      %v3623 = vmul.f32 %v3611, %v3621
      %v3624 = vmul.f32 %v3612, %v3621
      %v3625 = vmul.f32 %v3613, %v3621
      %v3626 = vmul.f32 %v3614, %v3621
      %v3627 = vmul.f32 %v3615, %v3621
      %v3628 = vmul.f32 %v3616, %v3621
      %v3629 = vmul.f32 %v3617, %v3621
      %v3630 = vadd.f32 %v3601, %v3622
      %v3631 = vadd.f32 %v3602, %v3623
      %v3632 = vadd.f32 %v3603, %v3624
      %v3633 = vadd.f32 %v3604, %v3625
      %v3634 = vadd.f32 %v3605, %v3626
      %v3635 = vadd.f32 %v3606, %v3627
      %v3636 = vadd.f32 %v3607, %v3628
      %v3637 = vadd.f32 %v3608, %v3629
      %v3638 = vld [vmem:[%s3558 + $0x3] sm:$0x1]
      %v3639 = vld [vmem:[#allocation2 + $0x3] sm:$0xff]
      %v3640 = vld [vmem:[#allocation2 + $0x13] sm:$0xff]
      %v3641 = vld [vmem:[#allocation2 + $0x23] sm:$0xff]
      %v3642 = vld [vmem:[#allocation2 + $0x33] sm:$0xff]
      %v3643 = vld [vmem:[#allocation2 + $0x43] sm:$0xff]
      %v3644 = vld [vmem:[#allocation2 + $0x53] sm:$0xff]
      %v3645 = vld [vmem:[#allocation2 + $0x63] sm:$0xff]
      %v3646 = vld [vmem:[#allocation2 + $0x73] sm:$0xff]
      %v3647 = vlaneseq
      %v3648 = vshrl.u32 %v3647, 7
      %v3649 = vsub.s32 0, %v3648
      %v3650 = vrot.slane %v3638, %v3649
      %v3651 = vmul.f32 %v3639, %v3650
      %v3652 = vmul.f32 %v3640, %v3650
      %v3653 = vmul.f32 %v3641, %v3650
      %v3654 = vmul.f32 %v3642, %v3650
      %v3655 = vmul.f32 %v3643, %v3650
      %v3656 = vmul.f32 %v3644, %v3650
      %v3657 = vmul.f32 %v3645, %v3650
      %v3658 = vmul.f32 %v3646, %v3650
      %v3659 = vadd.f32 %v3630, %v3651
      %v3660 = vadd.f32 %v3631, %v3652
      %v3661 = vadd.f32 %v3632, %v3653
      %v3662 = vadd.f32 %v3633, %v3654
      %v3663 = vadd.f32 %v3634, %v3655
      %v3664 = vadd.f32 %v3635, %v3656
      %v3665 = vadd.f32 %v3636, %v3657
      %v3666 = vadd.f32 %v3637, %v3658
      %v3667 = vld [vmem:[%s3558 + $0x4] sm:$0x1]
      %v3668 = vld [vmem:[#allocation2 + $0x4] sm:$0xff]
      %v3669 = vld [vmem:[#allocation2 + $0x14] sm:$0xff]
      %v3670 = vld [vmem:[#allocation2 + $0x24] sm:$0xff]
      %v3671 = vld [vmem:[#allocation2 + $0x34] sm:$0xff]
      %v3672 = vld [vmem:[#allocation2 + $0x44] sm:$0xff]
      %v3673 = vld [vmem:[#allocation2 + $0x54] sm:$0xff]
      %v3674 = vld [vmem:[#allocation2 + $0x64] sm:$0xff]
      %v3675 = vld [vmem:[#allocation2 + $0x74] sm:$0xff]
      %v3676 = vlaneseq
      %v3677 = vshrl.u32 %v3676, 7
      %v3678 = vsub.s32 0, %v3677
      %v3679 = vrot.slane %v3667, %v3678
      %v3680 = vmul.f32 %v3668, %v3679
      %v3681 = vmul.f32 %v3669, %v3679
      %v3682 = vmul.f32 %v3670, %v3679
      %v3683 = vmul.f32 %v3671, %v3679
      %v3684 = vmul.f32 %v3672, %v3679
      %v3685 = vmul.f32 %v3673, %v3679
      %v3686 = vmul.f32 %v3674, %v3679
      %v3687 = vmul.f32 %v3675, %v3679
      %v3688 = vadd.f32 %v3659, %v3680
      %v3689 = vadd.f32 %v3660, %v3681
      %v3690 = vadd.f32 %v3661, %v3682
      %v3691 = vadd.f32 %v3662, %v3683
      %v3692 = vadd.f32 %v3663, %v3684
      %v3693 = vadd.f32 %v3664, %v3685
      %v3694 = vadd.f32 %v3665, %v3686
      %v3695 = vadd.f32 %v3666, %v3687
      %s3696 = scalar_lea.vmem %s560, 128
      %v3697 = vld [vmem:[%s3696] sm:$0x1]
      %v3698 = vld [vmem:[%s926] sm:$0xff]
      %v3699 = vld [vmem:[%s926 + $0x10] sm:$0xff]
      %v3700 = vld [vmem:[%s926 + $0x20] sm:$0xff]
      %v3701 = vld [vmem:[%s926 + $0x30] sm:$0xff]
      %v3702 = vld [vmem:[%s926 + $0x40] sm:$0xff]
      %v3703 = vld [vmem:[%s926 + $0x50] sm:$0xff]
      %v3704 = vld [vmem:[%s926 + $0x60] sm:$0xff]
      %v3705 = vld [vmem:[%s926 + $0x70] sm:$0xff]
      %v3706 = vlaneseq
      %v3707 = vshrl.u32 %v3706, 7
      %v3708 = vsub.s32 0, %v3707
      %v3709 = vrot.slane %v3697, %v3708
      %v3710 = vmul.f32 %v3698, %v3709
      %v3711 = vmul.f32 %v3699, %v3709
      %v3712 = vmul.f32 %v3700, %v3709
      %v3713 = vmul.f32 %v3701, %v3709
      %v3714 = vmul.f32 %v3702, %v3709
      %v3715 = vmul.f32 %v3703, %v3709
      %v3716 = vmul.f32 %v3704, %v3709
      %v3717 = vmul.f32 %v3705, %v3709
      %v3718 = vadd.f32 %v3688, %v3710
      %v3719 = vadd.f32 %v3689, %v3711
      %v3720 = vadd.f32 %v3690, %v3712
      %v3721 = vadd.f32 %v3691, %v3713
      %v3722 = vadd.f32 %v3692, %v3714
      %v3723 = vadd.f32 %v3693, %v3715
      %v3724 = vadd.f32 %v3694, %v3716
      %v3725 = vadd.f32 %v3695, %v3717
      %v3726 = vld [vmem:[%s3696 + $0x1] sm:$0x1]
      %v3727 = vld [vmem:[%s926 + $0x1] sm:$0xff]
      %v3728 = vld [vmem:[%s926 + $0x11] sm:$0xff]
      %v3729 = vld [vmem:[%s926 + $0x21] sm:$0xff]
      %v3730 = vld [vmem:[%s926 + $0x31] sm:$0xff]
      %v3731 = vld [vmem:[%s926 + $0x41] sm:$0xff]
      %v3732 = vld [vmem:[%s926 + $0x51] sm:$0xff]
      %v3733 = vld [vmem:[%s926 + $0x61] sm:$0xff]
      %v3734 = vld [vmem:[%s926 + $0x71] sm:$0xff]
      %v3735 = vlaneseq
      %v3736 = vshrl.u32 %v3735, 7
      %v3737 = vsub.s32 0, %v3736
      %v3738 = vrot.slane %v3726, %v3737
      %v3739 = vmul.f32 %v3727, %v3738
      %v3740 = vmul.f32 %v3728, %v3738
      %v3741 = vmul.f32 %v3729, %v3738
      %v3742 = vmul.f32 %v3730, %v3738
      %v3743 = vmul.f32 %v3731, %v3738
      %v3744 = vmul.f32 %v3732, %v3738
      %v3745 = vmul.f32 %v3733, %v3738
      %v3746 = vmul.f32 %v3734, %v3738
      %v3747 = vadd.f32 %v3718, %v3739
      %v3748 = vadd.f32 %v3719, %v3740
      %v3749 = vadd.f32 %v3720, %v3741
      %v3750 = vadd.f32 %v3721, %v3742
      %v3751 = vadd.f32 %v3722, %v3743
      %v3752 = vadd.f32 %v3723, %v3744
      %v3753 = vadd.f32 %v3724, %v3745
      %v3754 = vadd.f32 %v3725, %v3746
      %v3755 = vld [vmem:[%s3696 + $0x2] sm:$0x1]
      %v3756 = vld [vmem:[%s926 + $0x2] sm:$0xff]
      %v3757 = vld [vmem:[%s926 + $0x12] sm:$0xff]
      %v3758 = vld [vmem:[%s926 + $0x22] sm:$0xff]
      %v3759 = vld [vmem:[%s926 + $0x32] sm:$0xff]
      %v3760 = vld [vmem:[%s926 + $0x42] sm:$0xff]
      %v3761 = vld [vmem:[%s926 + $0x52] sm:$0xff]
      %v3762 = vld [vmem:[%s926 + $0x62] sm:$0xff]
      %v3763 = vld [vmem:[%s926 + $0x72] sm:$0xff]
      %v3764 = vlaneseq
      %v3765 = vshrl.u32 %v3764, 7
      %v3766 = vsub.s32 0, %v3765
      %v3767 = vrot.slane %v3755, %v3766
      %v3768 = vmul.f32 %v3756, %v3767
      %v3769 = vmul.f32 %v3757, %v3767
      %v3770 = vmul.f32 %v3758, %v3767
      %v3771 = vmul.f32 %v3759, %v3767
      %v3772 = vmul.f32 %v3760, %v3767
      %v3773 = vmul.f32 %v3761, %v3767
      %v3774 = vmul.f32 %v3762, %v3767
      %v3775 = vmul.f32 %v3763, %v3767
      %v3776 = vadd.f32 %v3747, %v3768
      %v3777 = vadd.f32 %v3748, %v3769
      %v3778 = vadd.f32 %v3749, %v3770
      %v3779 = vadd.f32 %v3750, %v3771
      %v3780 = vadd.f32 %v3751, %v3772
      %v3781 = vadd.f32 %v3752, %v3773
      %v3782 = vadd.f32 %v3753, %v3774
      %v3783 = vadd.f32 %v3754, %v3775
      %v3784 = vld [vmem:[%s3696 + $0x3] sm:$0x1]
      %v3785 = vld [vmem:[%s926 + $0x3] sm:$0xff]
      %v3786 = vld [vmem:[%s926 + $0x13] sm:$0xff]
      %v3787 = vld [vmem:[%s926 + $0x23] sm:$0xff]
      %v3788 = vld [vmem:[%s926 + $0x33] sm:$0xff]
      %v3789 = vld [vmem:[%s926 + $0x43] sm:$0xff]
      %v3790 = vld [vmem:[%s926 + $0x53] sm:$0xff]
      %v3791 = vld [vmem:[%s926 + $0x63] sm:$0xff]
      %v3792 = vld [vmem:[%s926 + $0x73] sm:$0xff]
      %v3793 = vlaneseq
      %v3794 = vshrl.u32 %v3793, 7
      %v3795 = vsub.s32 0, %v3794
      %v3796 = vrot.slane %v3784, %v3795
      %v3797 = vmul.f32 %v3785, %v3796
      %v3798 = vmul.f32 %v3786, %v3796
      %v3799 = vmul.f32 %v3787, %v3796
      %v3800 = vmul.f32 %v3788, %v3796
      %v3801 = vmul.f32 %v3789, %v3796
      %v3802 = vmul.f32 %v3790, %v3796
      %v3803 = vmul.f32 %v3791, %v3796
      %v3804 = vmul.f32 %v3792, %v3796
      %v3805 = vadd.f32 %v3776, %v3797
      %v3806 = vadd.f32 %v3777, %v3798
      %v3807 = vadd.f32 %v3778, %v3799
      %v3808 = vadd.f32 %v3779, %v3800
      %v3809 = vadd.f32 %v3780, %v3801
      %v3810 = vadd.f32 %v3781, %v3802
      %v3811 = vadd.f32 %v3782, %v3803
      %v3812 = vadd.f32 %v3783, %v3804
      %v3813 = vld [vmem:[%s3696 + $0x4] sm:$0x1]
      %v3814 = vld [vmem:[%s926 + $0x4] sm:$0xff]
      %v3815 = vld [vmem:[%s926 + $0x14] sm:$0xff]
      %v3816 = vld [vmem:[%s926 + $0x24] sm:$0xff]
      %v3817 = vld [vmem:[%s926 + $0x34] sm:$0xff]
      %v3818 = vld [vmem:[%s926 + $0x44] sm:$0xff]
      %v3819 = vld [vmem:[%s926 + $0x54] sm:$0xff]
      %v3820 = vld [vmem:[%s926 + $0x64] sm:$0xff]
      %v3821 = vld [vmem:[%s926 + $0x74] sm:$0xff]
      %v3822 = vlaneseq
      %v3823 = vshrl.u32 %v3822, 7
      %v3824 = vsub.s32 0, %v3823
      %v3825 = vrot.slane %v3813, %v3824
      %v3826 = vmul.f32 %v3814, %v3825
      %v3827 = vmul.f32 %v3815, %v3825
      %v3828 = vmul.f32 %v3816, %v3825
      %v3829 = vmul.f32 %v3817, %v3825
      %v3830 = vmul.f32 %v3818, %v3825
      %v3831 = vmul.f32 %v3819, %v3825
      %v3832 = vmul.f32 %v3820, %v3825
      %v3833 = vmul.f32 %v3821, %v3825
      %v3834 = vadd.f32 %v3805, %v3826
      %v3835 = vadd.f32 %v3806, %v3827
      %v3836 = vadd.f32 %v3807, %v3828
      %v3837 = vadd.f32 %v3808, %v3829
      %v3838 = vadd.f32 %v3809, %v3830
      %v3839 = vadd.f32 %v3810, %v3831
      %v3840 = vadd.f32 %v3811, %v3832
      %v3841 = vadd.f32 %v3812, %v3833
      %s3842 = scalar_lea.vmem %s560, 136
      %v3843 = vld [vmem:[%s3842] sm:$0x1]
      %v3844 = vld [vmem:[%s1073] sm:$0xff]
      %v3845 = vld [vmem:[%s1073 + $0x10] sm:$0xff]
      %v3846 = vld [vmem:[%s1073 + $0x20] sm:$0xff]
      %v3847 = vld [vmem:[%s1073 + $0x30] sm:$0xff]
      %v3848 = vld [vmem:[%s1073 + $0x40] sm:$0xff]
      %v3849 = vld [vmem:[%s1073 + $0x50] sm:$0xff]
      %v3850 = vld [vmem:[%s1073 + $0x60] sm:$0xff]
      %v3851 = vld [vmem:[%s1073 + $0x70] sm:$0xff]
      %v3852 = vlaneseq
      %v3853 = vshrl.u32 %v3852, 7
      %v3854 = vsub.s32 0, %v3853
      %v3855 = vrot.slane %v3843, %v3854
      %v3856 = vmul.f32 %v3844, %v3855
      %v3857 = vmul.f32 %v3845, %v3855
      %v3858 = vmul.f32 %v3846, %v3855
      %v3859 = vmul.f32 %v3847, %v3855
      %v3860 = vmul.f32 %v3848, %v3855
      %v3861 = vmul.f32 %v3849, %v3855
      %v3862 = vmul.f32 %v3850, %v3855
      %v3863 = vmul.f32 %v3851, %v3855
      %v3864 = vadd.f32 %v3834, %v3856
      %v3865 = vadd.f32 %v3835, %v3857
      %v3866 = vadd.f32 %v3836, %v3858
      %v3867 = vadd.f32 %v3837, %v3859
      %v3868 = vadd.f32 %v3838, %v3860
      %v3869 = vadd.f32 %v3839, %v3861
      %v3870 = vadd.f32 %v3840, %v3862
      %v3871 = vadd.f32 %v3841, %v3863
      %v3872 = vld [vmem:[%s3842 + $0x1] sm:$0x1]
      %v3873 = vld [vmem:[%s1073 + $0x1] sm:$0xff]
      %v3874 = vld [vmem:[%s1073 + $0x11] sm:$0xff]
      %v3875 = vld [vmem:[%s1073 + $0x21] sm:$0xff]
      %v3876 = vld [vmem:[%s1073 + $0x31] sm:$0xff]
      %v3877 = vld [vmem:[%s1073 + $0x41] sm:$0xff]
      %v3878 = vld [vmem:[%s1073 + $0x51] sm:$0xff]
      %v3879 = vld [vmem:[%s1073 + $0x61] sm:$0xff]
      %v3880 = vld [vmem:[%s1073 + $0x71] sm:$0xff]
      %v3881 = vlaneseq
      %v3882 = vshrl.u32 %v3881, 7
      %v3883 = vsub.s32 0, %v3882
      %v3884 = vrot.slane %v3872, %v3883
      %v3885 = vmul.f32 %v3873, %v3884
      %v3886 = vmul.f32 %v3874, %v3884
      %v3887 = vmul.f32 %v3875, %v3884
      %v3888 = vmul.f32 %v3876, %v3884
      %v3889 = vmul.f32 %v3877, %v3884
      %v3890 = vmul.f32 %v3878, %v3884
      %v3891 = vmul.f32 %v3879, %v3884
      %v3892 = vmul.f32 %v3880, %v3884
      %v3893 = vadd.f32 %v3864, %v3885
      %v3894 = vadd.f32 %v3865, %v3886
      %v3895 = vadd.f32 %v3866, %v3887
      %v3896 = vadd.f32 %v3867, %v3888
      %v3897 = vadd.f32 %v3868, %v3889
      %v3898 = vadd.f32 %v3869, %v3890
      %v3899 = vadd.f32 %v3870, %v3891
      %v3900 = vadd.f32 %v3871, %v3892
      %v3901 = vld [vmem:[%s3842 + $0x2] sm:$0x1]
      %v3902 = vld [vmem:[%s1073 + $0x2] sm:$0xff]
      %v3903 = vld [vmem:[%s1073 + $0x12] sm:$0xff]
      %v3904 = vld [vmem:[%s1073 + $0x22] sm:$0xff]
      %v3905 = vld [vmem:[%s1073 + $0x32] sm:$0xff]
      %v3906 = vld [vmem:[%s1073 + $0x42] sm:$0xff]
      %v3907 = vld [vmem:[%s1073 + $0x52] sm:$0xff]
      %v3908 = vld [vmem:[%s1073 + $0x62] sm:$0xff]
      %v3909 = vld [vmem:[%s1073 + $0x72] sm:$0xff]
      %v3910 = vlaneseq
      %v3911 = vshrl.u32 %v3910, 7
      %v3912 = vsub.s32 0, %v3911
      %v3913 = vrot.slane %v3901, %v3912
      %v3914 = vmul.f32 %v3902, %v3913
      %v3915 = vmul.f32 %v3903, %v3913
      %v3916 = vmul.f32 %v3904, %v3913
      %v3917 = vmul.f32 %v3905, %v3913
      %v3918 = vmul.f32 %v3906, %v3913
      %v3919 = vmul.f32 %v3907, %v3913
      %v3920 = vmul.f32 %v3908, %v3913
      %v3921 = vmul.f32 %v3909, %v3913
      %v3922 = vadd.f32 %v3893, %v3914
      %v3923 = vadd.f32 %v3894, %v3915
      %v3924 = vadd.f32 %v3895, %v3916
      %v3925 = vadd.f32 %v3896, %v3917
      %v3926 = vadd.f32 %v3897, %v3918
      %v3927 = vadd.f32 %v3898, %v3919
      %v3928 = vadd.f32 %v3899, %v3920
      %v3929 = vadd.f32 %v3900, %v3921
      %v3930 = vld [vmem:[%s3842 + $0x3] sm:$0x1]
      %v3931 = vld [vmem:[%s1073 + $0x3] sm:$0xff]
      %v3932 = vld [vmem:[%s1073 + $0x13] sm:$0xff]
      %v3933 = vld [vmem:[%s1073 + $0x23] sm:$0xff]
      %v3934 = vld [vmem:[%s1073 + $0x33] sm:$0xff]
      %v3935 = vld [vmem:[%s1073 + $0x43] sm:$0xff]
      %v3936 = vld [vmem:[%s1073 + $0x53] sm:$0xff]
      %v3937 = vld [vmem:[%s1073 + $0x63] sm:$0xff]
      %v3938 = vld [vmem:[%s1073 + $0x73] sm:$0xff]
      %v3939 = vlaneseq
      %v3940 = vshrl.u32 %v3939, 7
      %v3941 = vsub.s32 0, %v3940
      %v3942 = vrot.slane %v3930, %v3941
      %v3943 = vmul.f32 %v3931, %v3942
      %v3944 = vmul.f32 %v3932, %v3942
      %v3945 = vmul.f32 %v3933, %v3942
      %v3946 = vmul.f32 %v3934, %v3942
      %v3947 = vmul.f32 %v3935, %v3942
      %v3948 = vmul.f32 %v3936, %v3942
      %v3949 = vmul.f32 %v3937, %v3942
      %v3950 = vmul.f32 %v3938, %v3942
      %v3951 = vadd.f32 %v3922, %v3943
      %v3952 = vadd.f32 %v3923, %v3944
      %v3953 = vadd.f32 %v3924, %v3945
      %v3954 = vadd.f32 %v3925, %v3946
      %v3955 = vadd.f32 %v3926, %v3947
      %v3956 = vadd.f32 %v3927, %v3948
      %v3957 = vadd.f32 %v3928, %v3949
      %v3958 = vadd.f32 %v3929, %v3950
      %v3959 = vld [vmem:[%s3842 + $0x4] sm:$0x1]
      %v3960 = vld [vmem:[%s1073 + $0x4] sm:$0xff]
      %v3961 = vld [vmem:[%s1073 + $0x14] sm:$0xff]
      %v3962 = vld [vmem:[%s1073 + $0x24] sm:$0xff]
      %v3963 = vld [vmem:[%s1073 + $0x34] sm:$0xff]
      %v3964 = vld [vmem:[%s1073 + $0x44] sm:$0xff]
      %v3965 = vld [vmem:[%s1073 + $0x54] sm:$0xff]
      %v3966 = vld [vmem:[%s1073 + $0x64] sm:$0xff]
      %v3967 = vld [vmem:[%s1073 + $0x74] sm:$0xff]
      %v3968 = vlaneseq
      %v3969 = vshrl.u32 %v3968, 7
      %v3970 = vsub.s32 0, %v3969
      %v3971 = vrot.slane %v3959, %v3970
      %v3972 = vmul.f32 %v3960, %v3971
      %v3973 = vmul.f32 %v3961, %v3971
      %v3974 = vmul.f32 %v3962, %v3971
      %v3975 = vmul.f32 %v3963, %v3971
      %v3976 = vmul.f32 %v3964, %v3971
      %v3977 = vmul.f32 %v3965, %v3971
      %v3978 = vmul.f32 %v3966, %v3971
      %v3979 = vmul.f32 %v3967, %v3971
      %v3980 = vadd.f32 %v3951, %v3972
      %v3981 = vadd.f32 %v3952, %v3973
      %v3982 = vadd.f32 %v3953, %v3974
      %v3983 = vadd.f32 %v3954, %v3975
      %v3984 = vadd.f32 %v3955, %v3976
      %v3985 = vadd.f32 %v3956, %v3977
      %v3986 = vadd.f32 %v3957, %v3978
      %v3987 = vadd.f32 %v3958, %v3979
      %s3988 = scalar_lea.vmem %s560, 144
      %v3989 = vld [vmem:[%s3988] sm:$0x1]
      %v3990 = vld [vmem:[%s1220] sm:$0xff]
      %v3991 = vld [vmem:[%s1220 + $0x10] sm:$0xff]
      %v3992 = vld [vmem:[%s1220 + $0x20] sm:$0xff]
      %v3993 = vld [vmem:[%s1220 + $0x30] sm:$0xff]
      %v3994 = vld [vmem:[%s1220 + $0x40] sm:$0xff]
      %v3995 = vld [vmem:[%s1220 + $0x50] sm:$0xff]
      %v3996 = vld [vmem:[%s1220 + $0x60] sm:$0xff]
      %v3997 = vld [vmem:[%s1220 + $0x70] sm:$0xff]
      %v3998 = vlaneseq
      %v3999 = vshrl.u32 %v3998, 7
      %v4000 = vsub.s32 0, %v3999
      %v4001 = vrot.slane %v3989, %v4000
      %v4002 = vmul.f32 %v3990, %v4001
      %v4003 = vmul.f32 %v3991, %v4001
      %v4004 = vmul.f32 %v3992, %v4001
      %v4005 = vmul.f32 %v3993, %v4001
      %v4006 = vmul.f32 %v3994, %v4001
      %v4007 = vmul.f32 %v3995, %v4001
      %v4008 = vmul.f32 %v3996, %v4001
      %v4009 = vmul.f32 %v3997, %v4001
      %v4010 = vadd.f32 %v3980, %v4002
      %v4011 = vadd.f32 %v3981, %v4003
      %v4012 = vadd.f32 %v3982, %v4004
      %v4013 = vadd.f32 %v3983, %v4005
      %v4014 = vadd.f32 %v3984, %v4006
      %v4015 = vadd.f32 %v3985, %v4007
      %v4016 = vadd.f32 %v3986, %v4008
      %v4017 = vadd.f32 %v3987, %v4009
      %v4018 = vld [vmem:[%s3988 + $0x1] sm:$0x1]
      %v4019 = vld [vmem:[%s1220 + $0x1] sm:$0xff]
      %v4020 = vld [vmem:[%s1220 + $0x11] sm:$0xff]
      %v4021 = vld [vmem:[%s1220 + $0x21] sm:$0xff]
      %v4022 = vld [vmem:[%s1220 + $0x31] sm:$0xff]
      %v4023 = vld [vmem:[%s1220 + $0x41] sm:$0xff]
      %v4024 = vld [vmem:[%s1220 + $0x51] sm:$0xff]
      %v4025 = vld [vmem:[%s1220 + $0x61] sm:$0xff]
      %v4026 = vld [vmem:[%s1220 + $0x71] sm:$0xff]
      %v4027 = vlaneseq
      %v4028 = vshrl.u32 %v4027, 7
      %v4029 = vsub.s32 0, %v4028
      %v4030 = vrot.slane %v4018, %v4029
      %v4031 = vmul.f32 %v4019, %v4030
      %v4032 = vmul.f32 %v4020, %v4030
      %v4033 = vmul.f32 %v4021, %v4030
      %v4034 = vmul.f32 %v4022, %v4030
      %v4035 = vmul.f32 %v4023, %v4030
      %v4036 = vmul.f32 %v4024, %v4030
      %v4037 = vmul.f32 %v4025, %v4030
      %v4038 = vmul.f32 %v4026, %v4030
      %v4039 = vadd.f32 %v4010, %v4031
      %v4040 = vadd.f32 %v4011, %v4032
      %v4041 = vadd.f32 %v4012, %v4033
      %v4042 = vadd.f32 %v4013, %v4034
      %v4043 = vadd.f32 %v4014, %v4035
      %v4044 = vadd.f32 %v4015, %v4036
      %v4045 = vadd.f32 %v4016, %v4037
      %v4046 = vadd.f32 %v4017, %v4038
      %v4047 = vld [vmem:[%s3988 + $0x2] sm:$0x1]
      %v4048 = vld [vmem:[%s1220 + $0x2] sm:$0xff]
      %v4049 = vld [vmem:[%s1220 + $0x12] sm:$0xff]
      %v4050 = vld [vmem:[%s1220 + $0x22] sm:$0xff]
      %v4051 = vld [vmem:[%s1220 + $0x32] sm:$0xff]
      %v4052 = vld [vmem:[%s1220 + $0x42] sm:$0xff]
      %v4053 = vld [vmem:[%s1220 + $0x52] sm:$0xff]
      %v4054 = vld [vmem:[%s1220 + $0x62] sm:$0xff]
      %v4055 = vld [vmem:[%s1220 + $0x72] sm:$0xff]
      %v4056 = vlaneseq
      %v4057 = vshrl.u32 %v4056, 7
      %v4058 = vsub.s32 0, %v4057
      %v4059 = vrot.slane %v4047, %v4058
      %v4060 = vmul.f32 %v4048, %v4059
      %v4061 = vmul.f32 %v4049, %v4059
      %v4062 = vmul.f32 %v4050, %v4059
      %v4063 = vmul.f32 %v4051, %v4059
      %v4064 = vmul.f32 %v4052, %v4059
      %v4065 = vmul.f32 %v4053, %v4059
      %v4066 = vmul.f32 %v4054, %v4059
      %v4067 = vmul.f32 %v4055, %v4059
      %v4068 = vadd.f32 %v4039, %v4060
      %v4069 = vadd.f32 %v4040, %v4061
      %v4070 = vadd.f32 %v4041, %v4062
      %v4071 = vadd.f32 %v4042, %v4063
      %v4072 = vadd.f32 %v4043, %v4064
      %v4073 = vadd.f32 %v4044, %v4065
      %v4074 = vadd.f32 %v4045, %v4066
      %v4075 = vadd.f32 %v4046, %v4067
      %v4076 = vld [vmem:[%s3988 + $0x3] sm:$0x1]
      %v4077 = vld [vmem:[%s1220 + $0x3] sm:$0xff]
      %v4078 = vld [vmem:[%s1220 + $0x13] sm:$0xff]
      %v4079 = vld [vmem:[%s1220 + $0x23] sm:$0xff]
      %v4080 = vld [vmem:[%s1220 + $0x33] sm:$0xff]
      %v4081 = vld [vmem:[%s1220 + $0x43] sm:$0xff]
      %v4082 = vld [vmem:[%s1220 + $0x53] sm:$0xff]
      %v4083 = vld [vmem:[%s1220 + $0x63] sm:$0xff]
      %v4084 = vld [vmem:[%s1220 + $0x73] sm:$0xff]
      %v4085 = vlaneseq
      %v4086 = vshrl.u32 %v4085, 7
      %v4087 = vsub.s32 0, %v4086
      %v4088 = vrot.slane %v4076, %v4087
      %v4089 = vmul.f32 %v4077, %v4088
      %v4090 = vmul.f32 %v4078, %v4088
      %v4091 = vmul.f32 %v4079, %v4088
      %v4092 = vmul.f32 %v4080, %v4088
      %v4093 = vmul.f32 %v4081, %v4088
      %v4094 = vmul.f32 %v4082, %v4088
      %v4095 = vmul.f32 %v4083, %v4088
      %v4096 = vmul.f32 %v4084, %v4088
      %v4097 = vadd.f32 %v4068, %v4089
      %v4098 = vadd.f32 %v4069, %v4090
      %v4099 = vadd.f32 %v4070, %v4091
      %v4100 = vadd.f32 %v4071, %v4092
      %v4101 = vadd.f32 %v4072, %v4093
      %v4102 = vadd.f32 %v4073, %v4094
      %v4103 = vadd.f32 %v4074, %v4095
      %v4104 = vadd.f32 %v4075, %v4096
      %v4105 = vld [vmem:[%s3988 + $0x4] sm:$0x1]
      %v4106 = vld [vmem:[%s1220 + $0x4] sm:$0xff]
      %v4107 = vld [vmem:[%s1220 + $0x14] sm:$0xff]
      %v4108 = vld [vmem:[%s1220 + $0x24] sm:$0xff]
      %v4109 = vld [vmem:[%s1220 + $0x34] sm:$0xff]
      %v4110 = vld [vmem:[%s1220 + $0x44] sm:$0xff]
      %v4111 = vld [vmem:[%s1220 + $0x54] sm:$0xff]
      %v4112 = vld [vmem:[%s1220 + $0x64] sm:$0xff]
      %v4113 = vld [vmem:[%s1220 + $0x74] sm:$0xff]
      %v4114 = vlaneseq
      %v4115 = vshrl.u32 %v4114, 7
      %v4116 = vsub.s32 0, %v4115
      %v4117 = vrot.slane %v4105, %v4116
      %v4118 = vmul.f32 %v4106, %v4117
      %v4119 = vmul.f32 %v4107, %v4117
      %v4120 = vmul.f32 %v4108, %v4117
      %v4121 = vmul.f32 %v4109, %v4117
      %v4122 = vmul.f32 %v4110, %v4117
      %v4123 = vmul.f32 %v4111, %v4117
      %v4124 = vmul.f32 %v4112, %v4117
      %v4125 = vmul.f32 %v4113, %v4117
      %v4126 = vadd.f32 %v4097, %v4118
      %v4127 = vadd.f32 %v4098, %v4119
      %v4128 = vadd.f32 %v4099, %v4120
      %v4129 = vadd.f32 %v4100, %v4121
      %v4130 = vadd.f32 %v4101, %v4122
      %v4131 = vadd.f32 %v4102, %v4123
      %v4132 = vadd.f32 %v4103, %v4124
      %v4133 = vadd.f32 %v4104, %v4125
      %s4134 = scalar_lea.vmem %s560, 152
      %v4135 = vld [vmem:[%s4134] sm:$0x1]
      %v4136 = vld [vmem:[%s1367] sm:$0xff]
      %v4137 = vld [vmem:[%s1367 + $0x10] sm:$0xff]
      %v4138 = vld [vmem:[%s1367 + $0x20] sm:$0xff]
      %v4139 = vld [vmem:[%s1367 + $0x30] sm:$0xff]
      %v4140 = vld [vmem:[%s1367 + $0x40] sm:$0xff]
      %v4141 = vld [vmem:[%s1367 + $0x50] sm:$0xff]
      %v4142 = vld [vmem:[%s1367 + $0x60] sm:$0xff]
      %v4143 = vld [vmem:[%s1367 + $0x70] sm:$0xff]
      %v4144 = vlaneseq
      %v4145 = vshrl.u32 %v4144, 7
      %v4146 = vsub.s32 0, %v4145
      %v4147 = vrot.slane %v4135, %v4146
      %v4148 = vmul.f32 %v4136, %v4147
      %v4149 = vmul.f32 %v4137, %v4147
      %v4150 = vmul.f32 %v4138, %v4147
      %v4151 = vmul.f32 %v4139, %v4147
      %v4152 = vmul.f32 %v4140, %v4147
      %v4153 = vmul.f32 %v4141, %v4147
      %v4154 = vmul.f32 %v4142, %v4147
      %v4155 = vmul.f32 %v4143, %v4147
      %v4156 = vadd.f32 %v4126, %v4148
      %v4157 = vadd.f32 %v4127, %v4149
      %v4158 = vadd.f32 %v4128, %v4150
      %v4159 = vadd.f32 %v4129, %v4151
      %v4160 = vadd.f32 %v4130, %v4152
      %v4161 = vadd.f32 %v4131, %v4153
      %v4162 = vadd.f32 %v4132, %v4154
      %v4163 = vadd.f32 %v4133, %v4155
      %v4164 = vld [vmem:[%s4134 + $0x1] sm:$0x1]
      %v4165 = vld [vmem:[%s1367 + $0x1] sm:$0xff]
      %v4166 = vld [vmem:[%s1367 + $0x11] sm:$0xff]
      %v4167 = vld [vmem:[%s1367 + $0x21] sm:$0xff]
      %v4168 = vld [vmem:[%s1367 + $0x31] sm:$0xff]
      %v4169 = vld [vmem:[%s1367 + $0x41] sm:$0xff]
      %v4170 = vld [vmem:[%s1367 + $0x51] sm:$0xff]
      %v4171 = vld [vmem:[%s1367 + $0x61] sm:$0xff]
      %v4172 = vld [vmem:[%s1367 + $0x71] sm:$0xff]
      %v4173 = vlaneseq
      %v4174 = vshrl.u32 %v4173, 7
      %v4175 = vsub.s32 0, %v4174
      %v4176 = vrot.slane %v4164, %v4175
      %v4177 = vmul.f32 %v4165, %v4176
      %v4178 = vmul.f32 %v4166, %v4176
      %v4179 = vmul.f32 %v4167, %v4176
      %v4180 = vmul.f32 %v4168, %v4176
      %v4181 = vmul.f32 %v4169, %v4176
      %v4182 = vmul.f32 %v4170, %v4176
      %v4183 = vmul.f32 %v4171, %v4176
      %v4184 = vmul.f32 %v4172, %v4176
      %v4185 = vadd.f32 %v4156, %v4177
      %v4186 = vadd.f32 %v4157, %v4178
      %v4187 = vadd.f32 %v4158, %v4179
      %v4188 = vadd.f32 %v4159, %v4180
      %v4189 = vadd.f32 %v4160, %v4181
      %v4190 = vadd.f32 %v4161, %v4182
      %v4191 = vadd.f32 %v4162, %v4183
      %v4192 = vadd.f32 %v4163, %v4184
      %v4193 = vld [vmem:[%s4134 + $0x2] sm:$0x1]
      %v4194 = vld [vmem:[%s1367 + $0x2] sm:$0xff]
      %v4195 = vld [vmem:[%s1367 + $0x12] sm:$0xff]
      %v4196 = vld [vmem:[%s1367 + $0x22] sm:$0xff]
      %v4197 = vld [vmem:[%s1367 + $0x32] sm:$0xff]
      %v4198 = vld [vmem:[%s1367 + $0x42] sm:$0xff]
      %v4199 = vld [vmem:[%s1367 + $0x52] sm:$0xff]
      %v4200 = vld [vmem:[%s1367 + $0x62] sm:$0xff]
      %v4201 = vld [vmem:[%s1367 + $0x72] sm:$0xff]
      %v4202 = vlaneseq
      %v4203 = vshrl.u32 %v4202, 7
      %v4204 = vsub.s32 0, %v4203
      %v4205 = vrot.slane %v4193, %v4204
      %v4206 = vmul.f32 %v4194, %v4205
      %v4207 = vmul.f32 %v4195, %v4205
      %v4208 = vmul.f32 %v4196, %v4205
      %v4209 = vmul.f32 %v4197, %v4205
      %v4210 = vmul.f32 %v4198, %v4205
      %v4211 = vmul.f32 %v4199, %v4205
      %v4212 = vmul.f32 %v4200, %v4205
      %v4213 = vmul.f32 %v4201, %v4205
      %v4214 = vadd.f32 %v4185, %v4206
      %v4215 = vadd.f32 %v4186, %v4207
      %v4216 = vadd.f32 %v4187, %v4208
      %v4217 = vadd.f32 %v4188, %v4209
      %v4218 = vadd.f32 %v4189, %v4210
      %v4219 = vadd.f32 %v4190, %v4211
      %v4220 = vadd.f32 %v4191, %v4212
      %v4221 = vadd.f32 %v4192, %v4213
      %v4222 = vld [vmem:[%s4134 + $0x3] sm:$0x1]
      %v4223 = vld [vmem:[%s1367 + $0x3] sm:$0xff]
      %v4224 = vld [vmem:[%s1367 + $0x13] sm:$0xff]
      %v4225 = vld [vmem:[%s1367 + $0x23] sm:$0xff]
      %v4226 = vld [vmem:[%s1367 + $0x33] sm:$0xff]
      %v4227 = vld [vmem:[%s1367 + $0x43] sm:$0xff]
      %v4228 = vld [vmem:[%s1367 + $0x53] sm:$0xff]
      %v4229 = vld [vmem:[%s1367 + $0x63] sm:$0xff]
      %v4230 = vld [vmem:[%s1367 + $0x73] sm:$0xff]
      %v4231 = vlaneseq
      %v4232 = vshrl.u32 %v4231, 7
      %v4233 = vsub.s32 0, %v4232
      %v4234 = vrot.slane %v4222, %v4233
      %v4235 = vmul.f32 %v4223, %v4234
      %v4236 = vmul.f32 %v4224, %v4234
      %v4237 = vmul.f32 %v4225, %v4234
      %v4238 = vmul.f32 %v4226, %v4234
      %v4239 = vmul.f32 %v4227, %v4234
      %v4240 = vmul.f32 %v4228, %v4234
      %v4241 = vmul.f32 %v4229, %v4234
      %v4242 = vmul.f32 %v4230, %v4234
      %v4243 = vadd.f32 %v4214, %v4235
      %v4244 = vadd.f32 %v4215, %v4236
      %v4245 = vadd.f32 %v4216, %v4237
      %v4246 = vadd.f32 %v4217, %v4238
      %v4247 = vadd.f32 %v4218, %v4239
      %v4248 = vadd.f32 %v4219, %v4240
      %v4249 = vadd.f32 %v4220, %v4241
      %v4250 = vadd.f32 %v4221, %v4242
      %v4251 = vld [vmem:[%s4134 + $0x4] sm:$0x1]
      %v4252 = vld [vmem:[%s1367 + $0x4] sm:$0xff]
      %v4253 = vld [vmem:[%s1367 + $0x14] sm:$0xff]
      %v4254 = vld [vmem:[%s1367 + $0x24] sm:$0xff]
      %v4255 = vld [vmem:[%s1367 + $0x34] sm:$0xff]
      %v4256 = vld [vmem:[%s1367 + $0x44] sm:$0xff]
      %v4257 = vld [vmem:[%s1367 + $0x54] sm:$0xff]
      %v4258 = vld [vmem:[%s1367 + $0x64] sm:$0xff]
      %v4259 = vld [vmem:[%s1367 + $0x74] sm:$0xff]
      %v4260 = vlaneseq
      %v4261 = vshrl.u32 %v4260, 7
      %v4262 = vsub.s32 0, %v4261
      %v4263 = vrot.slane %v4251, %v4262
      %v4264 = vmul.f32 %v4252, %v4263
      %v4265 = vmul.f32 %v4253, %v4263
      %v4266 = vmul.f32 %v4254, %v4263
      %v4267 = vmul.f32 %v4255, %v4263
      %v4268 = vmul.f32 %v4256, %v4263
      %v4269 = vmul.f32 %v4257, %v4263
      %v4270 = vmul.f32 %v4258, %v4263
      %v4271 = vmul.f32 %v4259, %v4263
      %v4272 = vadd.f32 %v4243, %v4264
      %v4273 = vadd.f32 %v4244, %v4265
      %v4274 = vadd.f32 %v4245, %v4266
      %v4275 = vadd.f32 %v4246, %v4267
      %v4276 = vadd.f32 %v4247, %v4268
      %v4277 = vadd.f32 %v4248, %v4269
      %v4278 = vadd.f32 %v4249, %v4270
      %v4279 = vadd.f32 %v4250, %v4271
      %s4280 = scalar_lea.vmem [#allocation3], 192
      %4281 = vst.msk [vmem:[%s4280] sm:$0xff] %vm761, %v4272
      %4282 = vst.msk [vmem:[%s4280 + $0x8] sm:$0xff] %vm761, %v4273
      %4283 = vst.msk [vmem:[%s4280 + $0x10] sm:$0xff] %vm761, %v4274
      %4284 = vst.msk [vmem:[%s4280 + $0x18] sm:$0xff] %vm761, %v4275
      %4285 = vst.msk [vmem:[%s4280 + $0x20] sm:$0xff] %vm761, %v4276
      %4286 = vst.msk [vmem:[%s4280 + $0x28] sm:$0xff] %vm761, %v4277
      %4287 = vst.msk [vmem:[%s4280 + $0x30] sm:$0xff] %vm761, %v4278
      %4288 = vst.msk [vmem:[%s4280 + $0x38] sm:$0xff] %vm761, %v4279
      %v4289 = vld [vmem:[%s556] sm:$0x1]
      %v4290 = vld [vmem:[%s553] sm:$0x1]
      %v4291 = vld [vmem:[%s553 + $0x1] sm:$0x1]
      %v4292 = vld [vmem:[%s553 + $0x2] sm:$0x1]
      %v4293 = vld [vmem:[%s553 + $0x3] sm:$0x1]
      %v4294 = vld [vmem:[%s553 + $0x4] sm:$0x1]
      %s4295 = scalar_lea.vmem %s553, 8
      %v4296 = vld [vmem:[%s4295] sm:$0x1]
      %v4297 = vld [vmem:[%s4295 + $0x1] sm:$0x1]
      %v4298 = vld [vmem:[%s4295 + $0x2] sm:$0x1]
      %v4299 = vld [vmem:[%s4295 + $0x3] sm:$0x1]
      %v4300 = vld [vmem:[%s4295 + $0x4] sm:$0x1]
      %s4301 = scalar_lea.vmem %s553, 16
      %v4302 = vld [vmem:[%s4301] sm:$0x1]
      %v4303 = vld [vmem:[%s4301 + $0x1] sm:$0x1]
      %v4304 = vld [vmem:[%s4301 + $0x2] sm:$0x1]
      %v4305 = vld [vmem:[%s4301 + $0x3] sm:$0x1]
      %v4306 = vld [vmem:[%s4301 + $0x4] sm:$0x1]
      %s4307 = scalar_lea.vmem %s553, 24
      %v4308 = vld [vmem:[%s4307] sm:$0x1]
      %v4309 = vld [vmem:[%s4307 + $0x1] sm:$0x1]
      %v4310 = vld [vmem:[%s4307 + $0x2] sm:$0x1]
      %v4311 = vld [vmem:[%s4307 + $0x3] sm:$0x1]
      %v4312 = vld [vmem:[%s4307 + $0x4] sm:$0x1]
      %s4313 = scalar_lea.vmem %s553, 32
      %v4314 = vld [vmem:[%s4313] sm:$0x1]
      %v4315 = vld [vmem:[%s4313 + $0x1] sm:$0x1]
      %v4316 = vld [vmem:[%s4313 + $0x2] sm:$0x1]
      %v4317 = vld [vmem:[%s4313 + $0x3] sm:$0x1]
      %v4318 = vld [vmem:[%s4313 + $0x4] sm:$0x1]
      %s4319 = scalar_lea.vmem %s525, 16
      %v4320 = vld [vmem:[%s4319 + $0x1] sm:$0xff]
      %v4321 = vld [vmem:[%s4319 + $0x11] sm:$0xff]
      %v4322 = vld [vmem:[%s4319 + $0x21] sm:$0xff]
      %v4323 = vld [vmem:[%s4319 + $0x31] sm:$0xff]
      %v4324 = vld [vmem:[%s4319 + $0x41] sm:$0xff]
      %v4325 = vld [vmem:[%s4319 + $0x51] sm:$0xff]
      %v4326 = vld [vmem:[%s4319 + $0x61] sm:$0xff]
      %v4327 = vld [vmem:[%s4319 + $0x71] sm:$0xff]
      %v4328 = vlaneseq
      %v4329 = vshrl.u32 %v4328, 7
      %v4330 = vsub.s32 0, %v4329
      %v4331 = vrot.slane %v4290, %v4330
      %v4332 = vmul.f32 %v4320, %v4331
      %v4333 = vmul.f32 %v4321, %v4331
      %v4334 = vmul.f32 %v4322, %v4331
      %v4335 = vmul.f32 %v4323, %v4331
      %v4336 = vmul.f32 %v4324, %v4331
      %v4337 = vmul.f32 %v4325, %v4331
      %v4338 = vmul.f32 %v4326, %v4331
      %v4339 = vmul.f32 %v4327, %v4331
      %s4340 = scalar_lea.vmem %s533, 16
      %v4341 = vld [vmem:[%s4340 + $0x1] sm:$0xff]
      %v4342 = vld [vmem:[%s4340 + $0x11] sm:$0xff]
      %v4343 = vld [vmem:[%s4340 + $0x21] sm:$0xff]
      %v4344 = vld [vmem:[%s4340 + $0x31] sm:$0xff]
      %v4345 = vld [vmem:[%s4340 + $0x41] sm:$0xff]
      %v4346 = vld [vmem:[%s4340 + $0x51] sm:$0xff]
      %v4347 = vld [vmem:[%s4340 + $0x61] sm:$0xff]
      %v4348 = vld [vmem:[%s4340 + $0x71] sm:$0xff]
      %v4349 = vlaneseq
      %v4350 = vshrl.u32 %v4349, 7
      %v4351 = vsub.s32 0, %v4350
      %v4352 = vrot.slane %v4291, %v4351
      %v4353 = vmul.f32 %v4341, %v4352
      %v4354 = vmul.f32 %v4342, %v4352
      %v4355 = vmul.f32 %v4343, %v4352
      %v4356 = vmul.f32 %v4344, %v4352
      %v4357 = vmul.f32 %v4345, %v4352
      %v4358 = vmul.f32 %v4346, %v4352
      %v4359 = vmul.f32 %v4347, %v4352
      %v4360 = vmul.f32 %v4348, %v4352
      %v4361 = vadd.f32 %v4332, %v4353
      %v4362 = vadd.f32 %v4333, %v4354
      %v4363 = vadd.f32 %v4334, %v4355
      %v4364 = vadd.f32 %v4335, %v4356
      %v4365 = vadd.f32 %v4336, %v4357
      %v4366 = vadd.f32 %v4337, %v4358
      %v4367 = vadd.f32 %v4338, %v4359
      %v4368 = vadd.f32 %v4339, %v4360
      %v4369 = vld [vmem:[%s4319 + $0x2] sm:$0xff]
      %v4370 = vld [vmem:[%s4319 + $0x12] sm:$0xff]
      %v4371 = vld [vmem:[%s4319 + $0x22] sm:$0xff]
      %v4372 = vld [vmem:[%s4319 + $0x32] sm:$0xff]
      %v4373 = vld [vmem:[%s4319 + $0x42] sm:$0xff]
      %v4374 = vld [vmem:[%s4319 + $0x52] sm:$0xff]
      %v4375 = vld [vmem:[%s4319 + $0x62] sm:$0xff]
      %v4376 = vld [vmem:[%s4319 + $0x72] sm:$0xff]
      %v4377 = vlaneseq
      %v4378 = vshrl.u32 %v4377, 7
      %v4379 = vsub.s32 0, %v4378
      %v4380 = vrot.slane %v4292, %v4379
      %v4381 = vmul.f32 %v4369, %v4380
      %v4382 = vmul.f32 %v4370, %v4380
      %v4383 = vmul.f32 %v4371, %v4380
      %v4384 = vmul.f32 %v4372, %v4380
      %v4385 = vmul.f32 %v4373, %v4380
      %v4386 = vmul.f32 %v4374, %v4380
      %v4387 = vmul.f32 %v4375, %v4380
      %v4388 = vmul.f32 %v4376, %v4380
      %v4389 = vadd.f32 %v4361, %v4381
      %v4390 = vadd.f32 %v4362, %v4382
      %v4391 = vadd.f32 %v4363, %v4383
      %v4392 = vadd.f32 %v4364, %v4384
      %v4393 = vadd.f32 %v4365, %v4385
      %v4394 = vadd.f32 %v4366, %v4386
      %v4395 = vadd.f32 %v4367, %v4387
      %v4396 = vadd.f32 %v4368, %v4388
      %v4397 = vld [vmem:[%s4340 + $0x2] sm:$0xff]
      %v4398 = vld [vmem:[%s4340 + $0x12] sm:$0xff]
      %v4399 = vld [vmem:[%s4340 + $0x22] sm:$0xff]
      %v4400 = vld [vmem:[%s4340 + $0x32] sm:$0xff]
      %v4401 = vld [vmem:[%s4340 + $0x42] sm:$0xff]
      %v4402 = vld [vmem:[%s4340 + $0x52] sm:$0xff]
      %v4403 = vld [vmem:[%s4340 + $0x62] sm:$0xff]
      %v4404 = vld [vmem:[%s4340 + $0x72] sm:$0xff]
      %v4405 = vlaneseq
      %v4406 = vshrl.u32 %v4405, 7
      %v4407 = vsub.s32 0, %v4406
      %v4408 = vrot.slane %v4293, %v4407
      %v4409 = vmul.f32 %v4397, %v4408
      %v4410 = vmul.f32 %v4398, %v4408
      %v4411 = vmul.f32 %v4399, %v4408
      %v4412 = vmul.f32 %v4400, %v4408
      %v4413 = vmul.f32 %v4401, %v4408
      %v4414 = vmul.f32 %v4402, %v4408
      %v4415 = vmul.f32 %v4403, %v4408
      %v4416 = vmul.f32 %v4404, %v4408
      %v4417 = vadd.f32 %v4389, %v4409
      %v4418 = vadd.f32 %v4390, %v4410
      %v4419 = vadd.f32 %v4391, %v4411
      %v4420 = vadd.f32 %v4392, %v4412
      %v4421 = vadd.f32 %v4393, %v4413
      %v4422 = vadd.f32 %v4394, %v4414
      %v4423 = vadd.f32 %v4395, %v4415
      %v4424 = vadd.f32 %v4396, %v4416
      %v4425 = vld [vmem:[%s4319 + $0x3] sm:$0xff]
      %v4426 = vld [vmem:[%s4319 + $0x13] sm:$0xff]
      %v4427 = vld [vmem:[%s4319 + $0x23] sm:$0xff]
      %v4428 = vld [vmem:[%s4319 + $0x33] sm:$0xff]
      %v4429 = vld [vmem:[%s4319 + $0x43] sm:$0xff]
      %v4430 = vld [vmem:[%s4319 + $0x53] sm:$0xff]
      %v4431 = vld [vmem:[%s4319 + $0x63] sm:$0xff]
      %v4432 = vld [vmem:[%s4319 + $0x73] sm:$0xff]
      %v4433 = vlaneseq
      %v4434 = vshrl.u32 %v4433, 7
      %v4435 = vsub.s32 0, %v4434
      %v4436 = vrot.slane %v4294, %v4435
      %v4437 = vmul.f32 %v4425, %v4436
      %v4438 = vmul.f32 %v4426, %v4436
      %v4439 = vmul.f32 %v4427, %v4436
      %v4440 = vmul.f32 %v4428, %v4436
      %v4441 = vmul.f32 %v4429, %v4436
      %v4442 = vmul.f32 %v4430, %v4436
      %v4443 = vmul.f32 %v4431, %v4436
      %v4444 = vmul.f32 %v4432, %v4436
      %v4445 = vadd.f32 %v4417, %v4437
      %v4446 = vadd.f32 %v4418, %v4438
      %v4447 = vadd.f32 %v4419, %v4439
      %v4448 = vadd.f32 %v4420, %v4440
      %v4449 = vadd.f32 %v4421, %v4441
      %v4450 = vadd.f32 %v4422, %v4442
      %v4451 = vadd.f32 %v4423, %v4443
      %v4452 = vadd.f32 %v4424, %v4444
      %s4453 = scalar_lea.vmem %s541, 16
      %v4454 = vld [vmem:[%s4453 + $0x1] sm:$0xff]
      %v4455 = vld [vmem:[%s4453 + $0x11] sm:$0xff]
      %v4456 = vld [vmem:[%s4453 + $0x21] sm:$0xff]
      %v4457 = vld [vmem:[%s4453 + $0x31] sm:$0xff]
      %v4458 = vld [vmem:[%s4453 + $0x41] sm:$0xff]
      %v4459 = vld [vmem:[%s4453 + $0x51] sm:$0xff]
      %v4460 = vld [vmem:[%s4453 + $0x61] sm:$0xff]
      %v4461 = vld [vmem:[%s4453 + $0x71] sm:$0xff]
      %v4462 = vlaneseq
      %v4463 = vshrl.u32 %v4462, 7
      %v4464 = vsub.s32 0, %v4463
      %v4465 = vrot.slane %v4296, %v4464
      %v4466 = vmul.f32 %v4454, %v4465
      %v4467 = vmul.f32 %v4455, %v4465
      %v4468 = vmul.f32 %v4456, %v4465
      %v4469 = vmul.f32 %v4457, %v4465
      %v4470 = vmul.f32 %v4458, %v4465
      %v4471 = vmul.f32 %v4459, %v4465
      %v4472 = vmul.f32 %v4460, %v4465
      %v4473 = vmul.f32 %v4461, %v4465
      %v4474 = vadd.f32 %v4445, %v4466
      %v4475 = vadd.f32 %v4446, %v4467
      %v4476 = vadd.f32 %v4447, %v4468
      %v4477 = vadd.f32 %v4448, %v4469
      %v4478 = vadd.f32 %v4449, %v4470
      %v4479 = vadd.f32 %v4450, %v4471
      %v4480 = vadd.f32 %v4451, %v4472
      %v4481 = vadd.f32 %v4452, %v4473
      %s4482 = scalar_lea.vmem %s549, 16
      %v4483 = vld [vmem:[%s4482 + $0x1] sm:$0xff]
      %v4484 = vld [vmem:[%s4482 + $0x11] sm:$0xff]
      %v4485 = vld [vmem:[%s4482 + $0x21] sm:$0xff]
      %v4486 = vld [vmem:[%s4482 + $0x31] sm:$0xff]
      %v4487 = vld [vmem:[%s4482 + $0x41] sm:$0xff]
      %v4488 = vld [vmem:[%s4482 + $0x51] sm:$0xff]
      %v4489 = vld [vmem:[%s4482 + $0x61] sm:$0xff]
      %v4490 = vld [vmem:[%s4482 + $0x71] sm:$0xff]
      %v4491 = vlaneseq
      %v4492 = vshrl.u32 %v4491, 7
      %v4493 = vsub.s32 0, %v4492
      %v4494 = vrot.slane %v4297, %v4493
      %v4495 = vmul.f32 %v4483, %v4494
      %v4496 = vmul.f32 %v4484, %v4494
      %v4497 = vmul.f32 %v4485, %v4494
      %v4498 = vmul.f32 %v4486, %v4494
      %v4499 = vmul.f32 %v4487, %v4494
      %v4500 = vmul.f32 %v4488, %v4494
      %v4501 = vmul.f32 %v4489, %v4494
      %v4502 = vmul.f32 %v4490, %v4494
      %v4503 = vadd.f32 %v4474, %v4495
      %v4504 = vadd.f32 %v4475, %v4496
      %v4505 = vadd.f32 %v4476, %v4497
      %v4506 = vadd.f32 %v4477, %v4498
      %v4507 = vadd.f32 %v4478, %v4499
      %v4508 = vadd.f32 %v4479, %v4500
      %v4509 = vadd.f32 %v4480, %v4501
      %v4510 = vadd.f32 %v4481, %v4502
      %v4511 = vld [vmem:[%s4453 + $0x2] sm:$0xff]
      %v4512 = vld [vmem:[%s4453 + $0x12] sm:$0xff]
      %v4513 = vld [vmem:[%s4453 + $0x22] sm:$0xff]
      %v4514 = vld [vmem:[%s4453 + $0x32] sm:$0xff]
      %v4515 = vld [vmem:[%s4453 + $0x42] sm:$0xff]
      %v4516 = vld [vmem:[%s4453 + $0x52] sm:$0xff]
      %v4517 = vld [vmem:[%s4453 + $0x62] sm:$0xff]
      %v4518 = vld [vmem:[%s4453 + $0x72] sm:$0xff]
      %v4519 = vlaneseq
      %v4520 = vshrl.u32 %v4519, 7
      %v4521 = vsub.s32 0, %v4520
      %v4522 = vrot.slane %v4298, %v4521
      %v4523 = vmul.f32 %v4511, %v4522
      %v4524 = vmul.f32 %v4512, %v4522
      %v4525 = vmul.f32 %v4513, %v4522
      %v4526 = vmul.f32 %v4514, %v4522
      %v4527 = vmul.f32 %v4515, %v4522
      %v4528 = vmul.f32 %v4516, %v4522
      %v4529 = vmul.f32 %v4517, %v4522
      %v4530 = vmul.f32 %v4518, %v4522
      %v4531 = vadd.f32 %v4503, %v4523
      %v4532 = vadd.f32 %v4504, %v4524
      %v4533 = vadd.f32 %v4505, %v4525
      %v4534 = vadd.f32 %v4506, %v4526
      %v4535 = vadd.f32 %v4507, %v4527
      %v4536 = vadd.f32 %v4508, %v4528
      %v4537 = vadd.f32 %v4509, %v4529
      %v4538 = vadd.f32 %v4510, %v4530
      %v4539 = vld [vmem:[%s4482 + $0x2] sm:$0xff]
      %v4540 = vld [vmem:[%s4482 + $0x12] sm:$0xff]
      %v4541 = vld [vmem:[%s4482 + $0x22] sm:$0xff]
      %v4542 = vld [vmem:[%s4482 + $0x32] sm:$0xff]
      %v4543 = vld [vmem:[%s4482 + $0x42] sm:$0xff]
      %v4544 = vld [vmem:[%s4482 + $0x52] sm:$0xff]
      %v4545 = vld [vmem:[%s4482 + $0x62] sm:$0xff]
      %v4546 = vld [vmem:[%s4482 + $0x72] sm:$0xff]
      %v4547 = vlaneseq
      %v4548 = vshrl.u32 %v4547, 7
      %v4549 = vsub.s32 0, %v4548
      %v4550 = vrot.slane %v4299, %v4549
      %v4551 = vmul.f32 %v4539, %v4550
      %v4552 = vmul.f32 %v4540, %v4550
      %v4553 = vmul.f32 %v4541, %v4550
      %v4554 = vmul.f32 %v4542, %v4550
      %v4555 = vmul.f32 %v4543, %v4550
      %v4556 = vmul.f32 %v4544, %v4550
      %v4557 = vmul.f32 %v4545, %v4550
      %v4558 = vmul.f32 %v4546, %v4550
      %v4559 = vadd.f32 %v4531, %v4551
      %v4560 = vadd.f32 %v4532, %v4552
      %v4561 = vadd.f32 %v4533, %v4553
      %v4562 = vadd.f32 %v4534, %v4554
      %v4563 = vadd.f32 %v4535, %v4555
      %v4564 = vadd.f32 %v4536, %v4556
      %v4565 = vadd.f32 %v4537, %v4557
      %v4566 = vadd.f32 %v4538, %v4558
      %v4567 = vld [vmem:[%s4453 + $0x3] sm:$0xff]
      %v4568 = vld [vmem:[%s4453 + $0x13] sm:$0xff]
      %v4569 = vld [vmem:[%s4453 + $0x23] sm:$0xff]
      %v4570 = vld [vmem:[%s4453 + $0x33] sm:$0xff]
      %v4571 = vld [vmem:[%s4453 + $0x43] sm:$0xff]
      %v4572 = vld [vmem:[%s4453 + $0x53] sm:$0xff]
      %v4573 = vld [vmem:[%s4453 + $0x63] sm:$0xff]
      %v4574 = vld [vmem:[%s4453 + $0x73] sm:$0xff]
      %v4575 = vlaneseq
      %v4576 = vshrl.u32 %v4575, 7
      %v4577 = vsub.s32 0, %v4576
      %v4578 = vrot.slane %v4300, %v4577
      %v4579 = vmul.f32 %v4567, %v4578
      %v4580 = vmul.f32 %v4568, %v4578
      %v4581 = vmul.f32 %v4569, %v4578
      %v4582 = vmul.f32 %v4570, %v4578
      %v4583 = vmul.f32 %v4571, %v4578
      %v4584 = vmul.f32 %v4572, %v4578
      %v4585 = vmul.f32 %v4573, %v4578
      %v4586 = vmul.f32 %v4574, %v4578
      %v4587 = vadd.f32 %v4559, %v4579
      %v4588 = vadd.f32 %v4560, %v4580
      %v4589 = vadd.f32 %v4561, %v4581
      %v4590 = vadd.f32 %v4562, %v4582
      %v4591 = vadd.f32 %v4563, %v4583
      %v4592 = vadd.f32 %v4564, %v4584
      %v4593 = vadd.f32 %v4565, %v4585
      %v4594 = vadd.f32 %v4566, %v4586
      %s4595 = scalar_lea.vmem %s525, 32
      %v4596 = vld [vmem:[%s4595 + $0x1] sm:$0xff]
      %v4597 = vld [vmem:[%s4595 + $0x11] sm:$0xff]
      %v4598 = vld [vmem:[%s4595 + $0x21] sm:$0xff]
      %v4599 = vld [vmem:[%s4595 + $0x31] sm:$0xff]
      %v4600 = vld [vmem:[%s4595 + $0x41] sm:$0xff]
      %v4601 = vld [vmem:[%s4595 + $0x51] sm:$0xff]
      %v4602 = vld [vmem:[%s4595 + $0x61] sm:$0xff]
      %v4603 = vld [vmem:[%s4595 + $0x71] sm:$0xff]
      %v4604 = vlaneseq
      %v4605 = vshrl.u32 %v4604, 7
      %v4606 = vsub.s32 0, %v4605
      %v4607 = vrot.slane %v4302, %v4606
      %v4608 = vmul.f32 %v4596, %v4607
      %v4609 = vmul.f32 %v4597, %v4607
      %v4610 = vmul.f32 %v4598, %v4607
      %v4611 = vmul.f32 %v4599, %v4607
      %v4612 = vmul.f32 %v4600, %v4607
      %v4613 = vmul.f32 %v4601, %v4607
      %v4614 = vmul.f32 %v4602, %v4607
      %v4615 = vmul.f32 %v4603, %v4607
      %v4616 = vadd.f32 %v4587, %v4608
      %v4617 = vadd.f32 %v4588, %v4609
      %v4618 = vadd.f32 %v4589, %v4610
      %v4619 = vadd.f32 %v4590, %v4611
      %v4620 = vadd.f32 %v4591, %v4612
      %v4621 = vadd.f32 %v4592, %v4613
      %v4622 = vadd.f32 %v4593, %v4614
      %v4623 = vadd.f32 %v4594, %v4615
      %s4624 = scalar_lea.vmem %s533, 32
      %v4625 = vld [vmem:[%s4624 + $0x1] sm:$0xff]
      %v4626 = vld [vmem:[%s4624 + $0x11] sm:$0xff]
      %v4627 = vld [vmem:[%s4624 + $0x21] sm:$0xff]
      %v4628 = vld [vmem:[%s4624 + $0x31] sm:$0xff]
      %v4629 = vld [vmem:[%s4624 + $0x41] sm:$0xff]
      %v4630 = vld [vmem:[%s4624 + $0x51] sm:$0xff]
      %v4631 = vld [vmem:[%s4624 + $0x61] sm:$0xff]
      %v4632 = vld [vmem:[%s4624 + $0x71] sm:$0xff]
      %v4633 = vlaneseq
      %v4634 = vshrl.u32 %v4633, 7
      %v4635 = vsub.s32 0, %v4634
      %v4636 = vrot.slane %v4303, %v4635
      %v4637 = vmul.f32 %v4625, %v4636
      %v4638 = vmul.f32 %v4626, %v4636
      %v4639 = vmul.f32 %v4627, %v4636
      %v4640 = vmul.f32 %v4628, %v4636
      %v4641 = vmul.f32 %v4629, %v4636
      %v4642 = vmul.f32 %v4630, %v4636
      %v4643 = vmul.f32 %v4631, %v4636
      %v4644 = vmul.f32 %v4632, %v4636
      %v4645 = vadd.f32 %v4616, %v4637
      %v4646 = vadd.f32 %v4617, %v4638
      %v4647 = vadd.f32 %v4618, %v4639
      %v4648 = vadd.f32 %v4619, %v4640
      %v4649 = vadd.f32 %v4620, %v4641
      %v4650 = vadd.f32 %v4621, %v4642
      %v4651 = vadd.f32 %v4622, %v4643
      %v4652 = vadd.f32 %v4623, %v4644
      %v4653 = vld [vmem:[%s4595 + $0x2] sm:$0xff]
      %v4654 = vld [vmem:[%s4595 + $0x12] sm:$0xff]
      %v4655 = vld [vmem:[%s4595 + $0x22] sm:$0xff]
      %v4656 = vld [vmem:[%s4595 + $0x32] sm:$0xff]
      %v4657 = vld [vmem:[%s4595 + $0x42] sm:$0xff]
      %v4658 = vld [vmem:[%s4595 + $0x52] sm:$0xff]
      %v4659 = vld [vmem:[%s4595 + $0x62] sm:$0xff]
      %v4660 = vld [vmem:[%s4595 + $0x72] sm:$0xff]
      %v4661 = vlaneseq
      %v4662 = vshrl.u32 %v4661, 7
      %v4663 = vsub.s32 0, %v4662
      %v4664 = vrot.slane %v4304, %v4663
      %v4665 = vmul.f32 %v4653, %v4664
      %v4666 = vmul.f32 %v4654, %v4664
      %v4667 = vmul.f32 %v4655, %v4664
      %v4668 = vmul.f32 %v4656, %v4664
      %v4669 = vmul.f32 %v4657, %v4664
      %v4670 = vmul.f32 %v4658, %v4664
      %v4671 = vmul.f32 %v4659, %v4664
      %v4672 = vmul.f32 %v4660, %v4664
      %v4673 = vadd.f32 %v4645, %v4665
      %v4674 = vadd.f32 %v4646, %v4666
      %v4675 = vadd.f32 %v4647, %v4667
      %v4676 = vadd.f32 %v4648, %v4668
      %v4677 = vadd.f32 %v4649, %v4669
      %v4678 = vadd.f32 %v4650, %v4670
      %v4679 = vadd.f32 %v4651, %v4671
      %v4680 = vadd.f32 %v4652, %v4672
      %v4681 = vld [vmem:[%s4624 + $0x2] sm:$0xff]
      %v4682 = vld [vmem:[%s4624 + $0x12] sm:$0xff]
      %v4683 = vld [vmem:[%s4624 + $0x22] sm:$0xff]
      %v4684 = vld [vmem:[%s4624 + $0x32] sm:$0xff]
      %v4685 = vld [vmem:[%s4624 + $0x42] sm:$0xff]
      %v4686 = vld [vmem:[%s4624 + $0x52] sm:$0xff]
      %v4687 = vld [vmem:[%s4624 + $0x62] sm:$0xff]
      %v4688 = vld [vmem:[%s4624 + $0x72] sm:$0xff]
      %v4689 = vlaneseq
      %v4690 = vshrl.u32 %v4689, 7
      %v4691 = vsub.s32 0, %v4690
      %v4692 = vrot.slane %v4305, %v4691
      %v4693 = vmul.f32 %v4681, %v4692
      %v4694 = vmul.f32 %v4682, %v4692
      %v4695 = vmul.f32 %v4683, %v4692
      %v4696 = vmul.f32 %v4684, %v4692
      %v4697 = vmul.f32 %v4685, %v4692
      %v4698 = vmul.f32 %v4686, %v4692
      %v4699 = vmul.f32 %v4687, %v4692
      %v4700 = vmul.f32 %v4688, %v4692
      %v4701 = vadd.f32 %v4673, %v4693
      %v4702 = vadd.f32 %v4674, %v4694
      %v4703 = vadd.f32 %v4675, %v4695
      %v4704 = vadd.f32 %v4676, %v4696
      %v4705 = vadd.f32 %v4677, %v4697
      %v4706 = vadd.f32 %v4678, %v4698
      %v4707 = vadd.f32 %v4679, %v4699
      %v4708 = vadd.f32 %v4680, %v4700
      %v4709 = vld [vmem:[%s4595 + $0x3] sm:$0xff]
      %v4710 = vld [vmem:[%s4595 + $0x13] sm:$0xff]
      %v4711 = vld [vmem:[%s4595 + $0x23] sm:$0xff]
      %v4712 = vld [vmem:[%s4595 + $0x33] sm:$0xff]
      %v4713 = vld [vmem:[%s4595 + $0x43] sm:$0xff]
      %v4714 = vld [vmem:[%s4595 + $0x53] sm:$0xff]
      %v4715 = vld [vmem:[%s4595 + $0x63] sm:$0xff]
      %v4716 = vld [vmem:[%s4595 + $0x73] sm:$0xff]
      %v4717 = vlaneseq
      %v4718 = vshrl.u32 %v4717, 7
      %v4719 = vsub.s32 0, %v4718
      %v4720 = vrot.slane %v4306, %v4719
      %v4721 = vmul.f32 %v4709, %v4720
      %v4722 = vmul.f32 %v4710, %v4720
      %v4723 = vmul.f32 %v4711, %v4720
      %v4724 = vmul.f32 %v4712, %v4720
      %v4725 = vmul.f32 %v4713, %v4720
      %v4726 = vmul.f32 %v4714, %v4720
      %v4727 = vmul.f32 %v4715, %v4720
      %v4728 = vmul.f32 %v4716, %v4720
      %v4729 = vadd.f32 %v4701, %v4721
      %v4730 = vadd.f32 %v4702, %v4722
      %v4731 = vadd.f32 %v4703, %v4723
      %v4732 = vadd.f32 %v4704, %v4724
      %v4733 = vadd.f32 %v4705, %v4725
      %v4734 = vadd.f32 %v4706, %v4726
      %v4735 = vadd.f32 %v4707, %v4727
      %v4736 = vadd.f32 %v4708, %v4728
      %s4737 = scalar_lea.vmem %s541, 32
      %v4738 = vld [vmem:[%s4737 + $0x1] sm:$0xff]
      %v4739 = vld [vmem:[%s4737 + $0x11] sm:$0xff]
      %v4740 = vld [vmem:[%s4737 + $0x21] sm:$0xff]
      %v4741 = vld [vmem:[%s4737 + $0x31] sm:$0xff]
      %v4742 = vld [vmem:[%s4737 + $0x41] sm:$0xff]
      %v4743 = vld [vmem:[%s4737 + $0x51] sm:$0xff]
      %v4744 = vld [vmem:[%s4737 + $0x61] sm:$0xff]
      %v4745 = vld [vmem:[%s4737 + $0x71] sm:$0xff]
      %v4746 = vlaneseq
      %v4747 = vshrl.u32 %v4746, 7
      %v4748 = vsub.s32 0, %v4747
      %v4749 = vrot.slane %v4308, %v4748
      %v4750 = vmul.f32 %v4738, %v4749
      %v4751 = vmul.f32 %v4739, %v4749
      %v4752 = vmul.f32 %v4740, %v4749
      %v4753 = vmul.f32 %v4741, %v4749
      %v4754 = vmul.f32 %v4742, %v4749
      %v4755 = vmul.f32 %v4743, %v4749
      %v4756 = vmul.f32 %v4744, %v4749
      %v4757 = vmul.f32 %v4745, %v4749
      %v4758 = vadd.f32 %v4729, %v4750
      %v4759 = vadd.f32 %v4730, %v4751
      %v4760 = vadd.f32 %v4731, %v4752
      %v4761 = vadd.f32 %v4732, %v4753
      %v4762 = vadd.f32 %v4733, %v4754
      %v4763 = vadd.f32 %v4734, %v4755
      %v4764 = vadd.f32 %v4735, %v4756
      %v4765 = vadd.f32 %v4736, %v4757
      %s4766 = scalar_lea.vmem %s549, 32
      %v4767 = vld [vmem:[%s4766 + $0x1] sm:$0xff]
      %v4768 = vld [vmem:[%s4766 + $0x11] sm:$0xff]
      %v4769 = vld [vmem:[%s4766 + $0x21] sm:$0xff]
      %v4770 = vld [vmem:[%s4766 + $0x31] sm:$0xff]
      %v4771 = vld [vmem:[%s4766 + $0x41] sm:$0xff]
      %v4772 = vld [vmem:[%s4766 + $0x51] sm:$0xff]
      %v4773 = vld [vmem:[%s4766 + $0x61] sm:$0xff]
      %v4774 = vld [vmem:[%s4766 + $0x71] sm:$0xff]
      %v4775 = vlaneseq
      %v4776 = vshrl.u32 %v4775, 7
      %v4777 = vsub.s32 0, %v4776
      %v4778 = vrot.slane %v4309, %v4777
      %v4779 = vmul.f32 %v4767, %v4778
      %v4780 = vmul.f32 %v4768, %v4778
      %v4781 = vmul.f32 %v4769, %v4778
      %v4782 = vmul.f32 %v4770, %v4778
      %v4783 = vmul.f32 %v4771, %v4778
      %v4784 = vmul.f32 %v4772, %v4778
      %v4785 = vmul.f32 %v4773, %v4778
      %v4786 = vmul.f32 %v4774, %v4778
      %v4787 = vadd.f32 %v4758, %v4779
      %v4788 = vadd.f32 %v4759, %v4780
      %v4789 = vadd.f32 %v4760, %v4781
      %v4790 = vadd.f32 %v4761, %v4782
      %v4791 = vadd.f32 %v4762, %v4783
      %v4792 = vadd.f32 %v4763, %v4784
      %v4793 = vadd.f32 %v4764, %v4785
      %v4794 = vadd.f32 %v4765, %v4786
      %v4795 = vld [vmem:[%s4737 + $0x2] sm:$0xff]
      %v4796 = vld [vmem:[%s4737 + $0x12] sm:$0xff]
      %v4797 = vld [vmem:[%s4737 + $0x22] sm:$0xff]
      %v4798 = vld [vmem:[%s4737 + $0x32] sm:$0xff]
      %v4799 = vld [vmem:[%s4737 + $0x42] sm:$0xff]
      %v4800 = vld [vmem:[%s4737 + $0x52] sm:$0xff]
      %v4801 = vld [vmem:[%s4737 + $0x62] sm:$0xff]
      %v4802 = vld [vmem:[%s4737 + $0x72] sm:$0xff]
      %v4803 = vlaneseq
      %v4804 = vshrl.u32 %v4803, 7
      %v4805 = vsub.s32 0, %v4804
      %v4806 = vrot.slane %v4310, %v4805
      %v4807 = vmul.f32 %v4795, %v4806
      %v4808 = vmul.f32 %v4796, %v4806
      %v4809 = vmul.f32 %v4797, %v4806
      %v4810 = vmul.f32 %v4798, %v4806
      %v4811 = vmul.f32 %v4799, %v4806
      %v4812 = vmul.f32 %v4800, %v4806
      %v4813 = vmul.f32 %v4801, %v4806
      %v4814 = vmul.f32 %v4802, %v4806
      %v4815 = vadd.f32 %v4787, %v4807
      %v4816 = vadd.f32 %v4788, %v4808
      %v4817 = vadd.f32 %v4789, %v4809
      %v4818 = vadd.f32 %v4790, %v4810
      %v4819 = vadd.f32 %v4791, %v4811
      %v4820 = vadd.f32 %v4792, %v4812
      %v4821 = vadd.f32 %v4793, %v4813
      %v4822 = vadd.f32 %v4794, %v4814
      %v4823 = vld [vmem:[%s4766 + $0x2] sm:$0xff]
      %v4824 = vld [vmem:[%s4766 + $0x12] sm:$0xff]
      %v4825 = vld [vmem:[%s4766 + $0x22] sm:$0xff]
      %v4826 = vld [vmem:[%s4766 + $0x32] sm:$0xff]
      %v4827 = vld [vmem:[%s4766 + $0x42] sm:$0xff]
      %v4828 = vld [vmem:[%s4766 + $0x52] sm:$0xff]
      %v4829 = vld [vmem:[%s4766 + $0x62] sm:$0xff]
      %v4830 = vld [vmem:[%s4766 + $0x72] sm:$0xff]
      %v4831 = vlaneseq
      %v4832 = vshrl.u32 %v4831, 7
      %v4833 = vsub.s32 0, %v4832
      %v4834 = vrot.slane %v4311, %v4833
      %v4835 = vmul.f32 %v4823, %v4834
      %v4836 = vmul.f32 %v4824, %v4834
      %v4837 = vmul.f32 %v4825, %v4834
      %v4838 = vmul.f32 %v4826, %v4834
      %v4839 = vmul.f32 %v4827, %v4834
      %v4840 = vmul.f32 %v4828, %v4834
      %v4841 = vmul.f32 %v4829, %v4834
      %v4842 = vmul.f32 %v4830, %v4834
      %v4843 = vadd.f32 %v4815, %v4835
      %v4844 = vadd.f32 %v4816, %v4836
      %v4845 = vadd.f32 %v4817, %v4837
      %v4846 = vadd.f32 %v4818, %v4838
      %v4847 = vadd.f32 %v4819, %v4839
      %v4848 = vadd.f32 %v4820, %v4840
      %v4849 = vadd.f32 %v4821, %v4841
      %v4850 = vadd.f32 %v4822, %v4842
      %v4851 = vld [vmem:[%s4737 + $0x3] sm:$0xff]
      %v4852 = vld [vmem:[%s4737 + $0x13] sm:$0xff]
      %v4853 = vld [vmem:[%s4737 + $0x23] sm:$0xff]
      %v4854 = vld [vmem:[%s4737 + $0x33] sm:$0xff]
      %v4855 = vld [vmem:[%s4737 + $0x43] sm:$0xff]
      %v4856 = vld [vmem:[%s4737 + $0x53] sm:$0xff]
      %v4857 = vld [vmem:[%s4737 + $0x63] sm:$0xff]
      %v4858 = vld [vmem:[%s4737 + $0x73] sm:$0xff]
      %v4859 = vlaneseq
      %v4860 = vshrl.u32 %v4859, 7
      %v4861 = vsub.s32 0, %v4860
      %v4862 = vrot.slane %v4312, %v4861
      %v4863 = vmul.f32 %v4851, %v4862
      %v4864 = vmul.f32 %v4852, %v4862
      %v4865 = vmul.f32 %v4853, %v4862
      %v4866 = vmul.f32 %v4854, %v4862
      %v4867 = vmul.f32 %v4855, %v4862
      %v4868 = vmul.f32 %v4856, %v4862
      %v4869 = vmul.f32 %v4857, %v4862
      %v4870 = vmul.f32 %v4858, %v4862
      %v4871 = vadd.f32 %v4843, %v4863
      %v4872 = vadd.f32 %v4844, %v4864
      %v4873 = vadd.f32 %v4845, %v4865
      %v4874 = vadd.f32 %v4846, %v4866
      %v4875 = vadd.f32 %v4847, %v4867
      %v4876 = vadd.f32 %v4848, %v4868
      %v4877 = vadd.f32 %v4849, %v4869
      %v4878 = vadd.f32 %v4850, %v4870
      %s4879 = scalar_lea.vmem %s525, 48
      %v4880 = vld [vmem:[%s4879 + $0x1] sm:$0xff]
      %v4881 = vld [vmem:[%s4879 + $0x11] sm:$0xff]
      %v4882 = vld [vmem:[%s4879 + $0x21] sm:$0xff]
      %v4883 = vld [vmem:[%s4879 + $0x31] sm:$0xff]
      %v4884 = vld [vmem:[%s4879 + $0x41] sm:$0xff]
      %v4885 = vld [vmem:[%s4879 + $0x51] sm:$0xff]
      %v4886 = vld [vmem:[%s4879 + $0x61] sm:$0xff]
      %v4887 = vld [vmem:[%s4879 + $0x71] sm:$0xff]
      %v4888 = vlaneseq
      %v4889 = vshrl.u32 %v4888, 7
      %v4890 = vsub.s32 0, %v4889
      %v4891 = vrot.slane %v4314, %v4890
      %v4892 = vmul.f32 %v4880, %v4891
      %v4893 = vmul.f32 %v4881, %v4891
      %v4894 = vmul.f32 %v4882, %v4891
      %v4895 = vmul.f32 %v4883, %v4891
      %v4896 = vmul.f32 %v4884, %v4891
      %v4897 = vmul.f32 %v4885, %v4891
      %v4898 = vmul.f32 %v4886, %v4891
      %v4899 = vmul.f32 %v4887, %v4891
      %v4900 = vadd.f32 %v4871, %v4892
      %v4901 = vadd.f32 %v4872, %v4893
      %v4902 = vadd.f32 %v4873, %v4894
      %v4903 = vadd.f32 %v4874, %v4895
      %v4904 = vadd.f32 %v4875, %v4896
      %v4905 = vadd.f32 %v4876, %v4897
      %v4906 = vadd.f32 %v4877, %v4898
      %v4907 = vadd.f32 %v4878, %v4899
      %s4908 = scalar_lea.vmem %s533, 48
      %v4909 = vld [vmem:[%s4908 + $0x1] sm:$0xff]
      %v4910 = vld [vmem:[%s4908 + $0x11] sm:$0xff]
      %v4911 = vld [vmem:[%s4908 + $0x21] sm:$0xff]
      %v4912 = vld [vmem:[%s4908 + $0x31] sm:$0xff]
      %v4913 = vld [vmem:[%s4908 + $0x41] sm:$0xff]
      %v4914 = vld [vmem:[%s4908 + $0x51] sm:$0xff]
      %v4915 = vld [vmem:[%s4908 + $0x61] sm:$0xff]
      %v4916 = vld [vmem:[%s4908 + $0x71] sm:$0xff]
      %v4917 = vlaneseq
      %v4918 = vshrl.u32 %v4917, 7
      %v4919 = vsub.s32 0, %v4918
      %v4920 = vrot.slane %v4315, %v4919
      %v4921 = vmul.f32 %v4909, %v4920
      %v4922 = vmul.f32 %v4910, %v4920
      %v4923 = vmul.f32 %v4911, %v4920
      %v4924 = vmul.f32 %v4912, %v4920
      %v4925 = vmul.f32 %v4913, %v4920
      %v4926 = vmul.f32 %v4914, %v4920
      %v4927 = vmul.f32 %v4915, %v4920
      %v4928 = vmul.f32 %v4916, %v4920
      %v4929 = vadd.f32 %v4900, %v4921
      %v4930 = vadd.f32 %v4901, %v4922
      %v4931 = vadd.f32 %v4902, %v4923
      %v4932 = vadd.f32 %v4903, %v4924
      %v4933 = vadd.f32 %v4904, %v4925
      %v4934 = vadd.f32 %v4905, %v4926
      %v4935 = vadd.f32 %v4906, %v4927
      %v4936 = vadd.f32 %v4907, %v4928
      %v4937 = vld [vmem:[%s4879 + $0x2] sm:$0xff]
      %v4938 = vld [vmem:[%s4879 + $0x12] sm:$0xff]
      %v4939 = vld [vmem:[%s4879 + $0x22] sm:$0xff]
      %v4940 = vld [vmem:[%s4879 + $0x32] sm:$0xff]
      %v4941 = vld [vmem:[%s4879 + $0x42] sm:$0xff]
      %v4942 = vld [vmem:[%s4879 + $0x52] sm:$0xff]
      %v4943 = vld [vmem:[%s4879 + $0x62] sm:$0xff]
      %v4944 = vld [vmem:[%s4879 + $0x72] sm:$0xff]
      %v4945 = vlaneseq
      %v4946 = vshrl.u32 %v4945, 7
      %v4947 = vsub.s32 0, %v4946
      %v4948 = vrot.slane %v4316, %v4947
      %v4949 = vmul.f32 %v4937, %v4948
      %v4950 = vmul.f32 %v4938, %v4948
      %v4951 = vmul.f32 %v4939, %v4948
      %v4952 = vmul.f32 %v4940, %v4948
      %v4953 = vmul.f32 %v4941, %v4948
      %v4954 = vmul.f32 %v4942, %v4948
      %v4955 = vmul.f32 %v4943, %v4948
      %v4956 = vmul.f32 %v4944, %v4948
      %v4957 = vadd.f32 %v4929, %v4949
      %v4958 = vadd.f32 %v4930, %v4950
      %v4959 = vadd.f32 %v4931, %v4951
      %v4960 = vadd.f32 %v4932, %v4952
      %v4961 = vadd.f32 %v4933, %v4953
      %v4962 = vadd.f32 %v4934, %v4954
      %v4963 = vadd.f32 %v4935, %v4955
      %v4964 = vadd.f32 %v4936, %v4956
      %v4965 = vld [vmem:[%s4908 + $0x2] sm:$0xff]
      %v4966 = vld [vmem:[%s4908 + $0x12] sm:$0xff]
      %v4967 = vld [vmem:[%s4908 + $0x22] sm:$0xff]
      %v4968 = vld [vmem:[%s4908 + $0x32] sm:$0xff]
      %v4969 = vld [vmem:[%s4908 + $0x42] sm:$0xff]
      %v4970 = vld [vmem:[%s4908 + $0x52] sm:$0xff]
      %v4971 = vld [vmem:[%s4908 + $0x62] sm:$0xff]
      %v4972 = vld [vmem:[%s4908 + $0x72] sm:$0xff]
      %v4973 = vlaneseq
      %v4974 = vshrl.u32 %v4973, 7
      %v4975 = vsub.s32 0, %v4974
      %v4976 = vrot.slane %v4317, %v4975
      %v4977 = vmul.f32 %v4965, %v4976
      %v4978 = vmul.f32 %v4966, %v4976
      %v4979 = vmul.f32 %v4967, %v4976
      %v4980 = vmul.f32 %v4968, %v4976
      %v4981 = vmul.f32 %v4969, %v4976
      %v4982 = vmul.f32 %v4970, %v4976
      %v4983 = vmul.f32 %v4971, %v4976
      %v4984 = vmul.f32 %v4972, %v4976
      %v4985 = vadd.f32 %v4957, %v4977
      %v4986 = vadd.f32 %v4958, %v4978
      %v4987 = vadd.f32 %v4959, %v4979
      %v4988 = vadd.f32 %v4960, %v4980
      %v4989 = vadd.f32 %v4961, %v4981
      %v4990 = vadd.f32 %v4962, %v4982
      %v4991 = vadd.f32 %v4963, %v4983
      %v4992 = vadd.f32 %v4964, %v4984
      %v4993 = vld [vmem:[%s4879 + $0x3] sm:$0xff]
      %v4994 = vld [vmem:[%s4879 + $0x13] sm:$0xff]
      %v4995 = vld [vmem:[%s4879 + $0x23] sm:$0xff]
      %v4996 = vld [vmem:[%s4879 + $0x33] sm:$0xff]
      %v4997 = vld [vmem:[%s4879 + $0x43] sm:$0xff]
      %v4998 = vld [vmem:[%s4879 + $0x53] sm:$0xff]
      %v4999 = vld [vmem:[%s4879 + $0x63] sm:$0xff]
      %v5000 = vld [vmem:[%s4879 + $0x73] sm:$0xff]
      %v5001 = vlaneseq
      %v5002 = vshrl.u32 %v5001, 7
      %v5003 = vsub.s32 0, %v5002
      %v5004 = vrot.slane %v4318, %v5003
      %v5005 = vmul.f32 %v4993, %v5004
      %v5006 = vmul.f32 %v4994, %v5004
      %v5007 = vmul.f32 %v4995, %v5004
      %v5008 = vmul.f32 %v4996, %v5004
      %v5009 = vmul.f32 %v4997, %v5004
      %v5010 = vmul.f32 %v4998, %v5004
      %v5011 = vmul.f32 %v4999, %v5004
      %v5012 = vmul.f32 %v5000, %v5004
      %v5013 = vadd.f32 %v4985, %v5005
      %v5014 = vadd.f32 %v4986, %v5006
      %v5015 = vadd.f32 %v4987, %v5007
      %v5016 = vadd.f32 %v4988, %v5008
      %v5017 = vadd.f32 %v4989, %v5009
      %v5018 = vadd.f32 %v4990, %v5010
      %v5019 = vadd.f32 %v4991, %v5011
      %v5020 = vadd.f32 %v4992, %v5012
      %v5022 = vlaneseq
      %v5023 = vshrl.u32 %v5022, 7
      %v5024 = vsub.s32 0, %v5023
      %v5025 = vrot.slane %v4289, %v5024
      %v5027 = vadd.f32 %v5013, %v5025
      %v5028 = vadd.f32 %v5014, %v5025
      %v5029 = vadd.f32 %v5015, %v5025
      %v5030 = vadd.f32 %v5016, %v5025
      %v5031 = vadd.f32 %v5017, %v5025
      %v5032 = vadd.f32 %v5018, %v5025
      %v5033 = vadd.f32 %v5019, %v5025
      %v5034 = vadd.f32 %v5020, %v5025
      %v5035 = vld [vmem:[#allocation3] sm:$0xff]
      %v5036 = vld [vmem:[#allocation3 + $0x8] sm:$0xff]
      %v5037 = vld [vmem:[#allocation3 + $0x10] sm:$0xff]
      %v5038 = vld [vmem:[#allocation3 + $0x18] sm:$0xff]
      %v5039 = vld [vmem:[#allocation3 + $0x20] sm:$0xff]
      %v5040 = vld [vmem:[#allocation3 + $0x28] sm:$0xff]
      %v5041 = vld [vmem:[#allocation3 + $0x30] sm:$0xff]
      %v5042 = vld [vmem:[#allocation3 + $0x38] sm:$0xff]
      %v5043 = vadd.f32 %v5027, %v5035
      %v5044 = vadd.f32 %v5028, %v5036
      %v5045 = vadd.f32 %v5029, %v5037
      %v5046 = vadd.f32 %v5030, %v5038
      %v5047 = vadd.f32 %v5031, %v5039
      %v5048 = vadd.f32 %v5032, %v5040
      %v5049 = vadd.f32 %v5033, %v5041
      %v5050 = vadd.f32 %v5034, %v5042
      %v5051 = vld [vmem:[%s2434] sm:$0xff]
      %v5052 = vld [vmem:[%s2434 + $0x8] sm:$0xff]
      %v5053 = vld [vmem:[%s2434 + $0x10] sm:$0xff]
      %v5054 = vld [vmem:[%s2434 + $0x18] sm:$0xff]
      %v5055 = vld [vmem:[%s2434 + $0x20] sm:$0xff]
      %v5056 = vld [vmem:[%s2434 + $0x28] sm:$0xff]
      %v5057 = vld [vmem:[%s2434 + $0x30] sm:$0xff]
      %v5058 = vld [vmem:[%s2434 + $0x38] sm:$0xff]
      %v5059 = vadd.f32 %v5043, %v5051
      %v5060 = vadd.f32 %v5044, %v5052
      %v5061 = vadd.f32 %v5045, %v5053
      %v5062 = vadd.f32 %v5046, %v5054
      %v5063 = vadd.f32 %v5047, %v5055
      %v5064 = vadd.f32 %v5048, %v5056
      %v5065 = vadd.f32 %v5049, %v5057
      %v5066 = vadd.f32 %v5050, %v5058
      %v5067 = vld [vmem:[%s3357] sm:$0xff]
      %v5068 = vld [vmem:[%s3357 + $0x8] sm:$0xff]
      %v5069 = vld [vmem:[%s3357 + $0x10] sm:$0xff]
      %v5070 = vld [vmem:[%s3357 + $0x18] sm:$0xff]
      %v5071 = vld [vmem:[%s3357 + $0x20] sm:$0xff]
      %v5072 = vld [vmem:[%s3357 + $0x28] sm:$0xff]
      %v5073 = vld [vmem:[%s3357 + $0x30] sm:$0xff]
      %v5074 = vld [vmem:[%s3357 + $0x38] sm:$0xff]
      %v5075 = vadd.f32 %v5059, %v5067
      %v5076 = vadd.f32 %v5060, %v5068
      %v5077 = vadd.f32 %v5061, %v5069
      %v5078 = vadd.f32 %v5062, %v5070
      %v5079 = vadd.f32 %v5063, %v5071
      %v5080 = vadd.f32 %v5064, %v5072
      %v5081 = vadd.f32 %v5065, %v5073
      %v5082 = vadd.f32 %v5066, %v5074
      %v5083 = vld [vmem:[%s4280] sm:$0xff]
      %v5084 = vld [vmem:[%s4280 + $0x8] sm:$0xff]
      %v5085 = vld [vmem:[%s4280 + $0x10] sm:$0xff]
      %v5086 = vld [vmem:[%s4280 + $0x18] sm:$0xff]
      %v5087 = vld [vmem:[%s4280 + $0x20] sm:$0xff]
      %v5088 = vld [vmem:[%s4280 + $0x28] sm:$0xff]
      %v5089 = vld [vmem:[%s4280 + $0x30] sm:$0xff]
      %v5090 = vld [vmem:[%s4280 + $0x38] sm:$0xff]
      %v5091 = vadd.f32 %v5075, %v5083
      %v5092 = vadd.f32 %v5076, %v5084
      %v5093 = vadd.f32 %v5077, %v5085
      %v5094 = vadd.f32 %v5078, %v5086
      %v5095 = vadd.f32 %v5079, %v5087
      %v5096 = vadd.f32 %v5080, %v5088
      %v5097 = vadd.f32 %v5081, %v5089
      %v5098 = vadd.f32 %v5082, %v5090
      %5099 = vst.msk [vmem:[%s568] sm:$0xff] %vm761, %v5091
      %5100 = vst.msk [vmem:[%s568 + $0x8] sm:$0xff] %vm761, %v5092
      %5101 = vst.msk [vmem:[%s568 + $0x10] sm:$0xff] %vm761, %v5093
      %5102 = vst.msk [vmem:[%s568 + $0x18] sm:$0xff] %vm761, %v5094
      %5103 = vst.msk [vmem:[%s568 + $0x20] sm:$0xff] %vm761, %v5095
      %5104 = vst.msk [vmem:[%s568 + $0x28] sm:$0xff] %vm761, %v5096
      %5105 = vst.msk [vmem:[%s568 + $0x30] sm:$0xff] %vm761, %v5097
      %5106 = vst.msk [vmem:[%s568 + $0x38] sm:$0xff] %vm761, %v5098
      %v5107 = vld [vmem:[%s4340 + $0x1] sm:$0xff]
      %v5108 = vld [vmem:[%s4340 + $0x11] sm:$0xff]
      %v5109 = vld [vmem:[%s4340 + $0x21] sm:$0xff]
      %v5110 = vld [vmem:[%s4340 + $0x31] sm:$0xff]
      %v5111 = vld [vmem:[%s4340 + $0x41] sm:$0xff]
      %v5112 = vld [vmem:[%s4340 + $0x51] sm:$0xff]
      %v5113 = vld [vmem:[%s4340 + $0x61] sm:$0xff]
      %v5114 = vld [vmem:[%s4340 + $0x71] sm:$0xff]
      %v5115 = vmul.f32 %v5107, %v4331
      %v5116 = vmul.f32 %v5108, %v4331
      %v5117 = vmul.f32 %v5109, %v4331
      %v5118 = vmul.f32 %v5110, %v4331
      %v5119 = vmul.f32 %v5111, %v4331
      %v5120 = vmul.f32 %v5112, %v4331
      %v5121 = vmul.f32 %v5113, %v4331
      %v5122 = vmul.f32 %v5114, %v4331
      %v5123 = vld [vmem:[%s4319 + $0x2] sm:$0xff]
      %v5124 = vld [vmem:[%s4319 + $0x12] sm:$0xff]
      %v5125 = vld [vmem:[%s4319 + $0x22] sm:$0xff]
      %v5126 = vld [vmem:[%s4319 + $0x32] sm:$0xff]
      %v5127 = vld [vmem:[%s4319 + $0x42] sm:$0xff]
      %v5128 = vld [vmem:[%s4319 + $0x52] sm:$0xff]
      %v5129 = vld [vmem:[%s4319 + $0x62] sm:$0xff]
      %v5130 = vld [vmem:[%s4319 + $0x72] sm:$0xff]
      %v5131 = vmul.f32 %v5123, %v4352
      %v5132 = vmul.f32 %v5124, %v4352
      %v5133 = vmul.f32 %v5125, %v4352
      %v5134 = vmul.f32 %v5126, %v4352
      %v5135 = vmul.f32 %v5127, %v4352
      %v5136 = vmul.f32 %v5128, %v4352
      %v5137 = vmul.f32 %v5129, %v4352
      %v5138 = vmul.f32 %v5130, %v4352
      %v5139 = vadd.f32 %v5115, %v5131
      %v5140 = vadd.f32 %v5116, %v5132
      %v5141 = vadd.f32 %v5117, %v5133
      %v5142 = vadd.f32 %v5118, %v5134
      %v5143 = vadd.f32 %v5119, %v5135
      %v5144 = vadd.f32 %v5120, %v5136
      %v5145 = vadd.f32 %v5121, %v5137
      %v5146 = vadd.f32 %v5122, %v5138
      %v5147 = vld [vmem:[%s4340 + $0x2] sm:$0xff]
      %v5148 = vld [vmem:[%s4340 + $0x12] sm:$0xff]
      %v5149 = vld [vmem:[%s4340 + $0x22] sm:$0xff]
      %v5150 = vld [vmem:[%s4340 + $0x32] sm:$0xff]
      %v5151 = vld [vmem:[%s4340 + $0x42] sm:$0xff]
      %v5152 = vld [vmem:[%s4340 + $0x52] sm:$0xff]
      %v5153 = vld [vmem:[%s4340 + $0x62] sm:$0xff]
      %v5154 = vld [vmem:[%s4340 + $0x72] sm:$0xff]
      %v5155 = vmul.f32 %v5147, %v4380
      %v5156 = vmul.f32 %v5148, %v4380
      %v5157 = vmul.f32 %v5149, %v4380
      %v5158 = vmul.f32 %v5150, %v4380
      %v5159 = vmul.f32 %v5151, %v4380
      %v5160 = vmul.f32 %v5152, %v4380
      %v5161 = vmul.f32 %v5153, %v4380
      %v5162 = vmul.f32 %v5154, %v4380
      %v5163 = vadd.f32 %v5139, %v5155
      %v5164 = vadd.f32 %v5140, %v5156
      %v5165 = vadd.f32 %v5141, %v5157
      %v5166 = vadd.f32 %v5142, %v5158
      %v5167 = vadd.f32 %v5143, %v5159
      %v5168 = vadd.f32 %v5144, %v5160
      %v5169 = vadd.f32 %v5145, %v5161
      %v5170 = vadd.f32 %v5146, %v5162
      %v5171 = vld [vmem:[%s4319 + $0x3] sm:$0xff]
      %v5172 = vld [vmem:[%s4319 + $0x13] sm:$0xff]
      %v5173 = vld [vmem:[%s4319 + $0x23] sm:$0xff]
      %v5174 = vld [vmem:[%s4319 + $0x33] sm:$0xff]
      %v5175 = vld [vmem:[%s4319 + $0x43] sm:$0xff]
      %v5176 = vld [vmem:[%s4319 + $0x53] sm:$0xff]
      %v5177 = vld [vmem:[%s4319 + $0x63] sm:$0xff]
      %v5178 = vld [vmem:[%s4319 + $0x73] sm:$0xff]
      %v5179 = vmul.f32 %v5171, %v4408
      %v5180 = vmul.f32 %v5172, %v4408
      %v5181 = vmul.f32 %v5173, %v4408
      %v5182 = vmul.f32 %v5174, %v4408
      %v5183 = vmul.f32 %v5175, %v4408
      %v5184 = vmul.f32 %v5176, %v4408
      %v5185 = vmul.f32 %v5177, %v4408
      %v5186 = vmul.f32 %v5178, %v4408
      %v5187 = vadd.f32 %v5163, %v5179
      %v5188 = vadd.f32 %v5164, %v5180
      %v5189 = vadd.f32 %v5165, %v5181
      %v5190 = vadd.f32 %v5166, %v5182
      %v5191 = vadd.f32 %v5167, %v5183
      %v5192 = vadd.f32 %v5168, %v5184
      %v5193 = vadd.f32 %v5169, %v5185
      %v5194 = vadd.f32 %v5170, %v5186
      %v5195 = vld [vmem:[%s4340 + $0x3] sm:$0xff]
      %v5196 = vld [vmem:[%s4340 + $0x13] sm:$0xff]
      %v5197 = vld [vmem:[%s4340 + $0x23] sm:$0xff]
      %v5198 = vld [vmem:[%s4340 + $0x33] sm:$0xff]
      %v5199 = vld [vmem:[%s4340 + $0x43] sm:$0xff]
      %v5200 = vld [vmem:[%s4340 + $0x53] sm:$0xff]
      %v5201 = vld [vmem:[%s4340 + $0x63] sm:$0xff]
      %v5202 = vld [vmem:[%s4340 + $0x73] sm:$0xff]
      %v5203 = vmul.f32 %v5195, %v4436
      %v5204 = vmul.f32 %v5196, %v4436
      %v5205 = vmul.f32 %v5197, %v4436
      %v5206 = vmul.f32 %v5198, %v4436
      %v5207 = vmul.f32 %v5199, %v4436
      %v5208 = vmul.f32 %v5200, %v4436
      %v5209 = vmul.f32 %v5201, %v4436
      %v5210 = vmul.f32 %v5202, %v4436
      %v5211 = vadd.f32 %v5187, %v5203
      %v5212 = vadd.f32 %v5188, %v5204
      %v5213 = vadd.f32 %v5189, %v5205
      %v5214 = vadd.f32 %v5190, %v5206
      %v5215 = vadd.f32 %v5191, %v5207
      %v5216 = vadd.f32 %v5192, %v5208
      %v5217 = vadd.f32 %v5193, %v5209
      %v5218 = vadd.f32 %v5194, %v5210
      %v5219 = vld [vmem:[%s4482 + $0x1] sm:$0xff]
      %v5220 = vld [vmem:[%s4482 + $0x11] sm:$0xff]
      %v5221 = vld [vmem:[%s4482 + $0x21] sm:$0xff]
      %v5222 = vld [vmem:[%s4482 + $0x31] sm:$0xff]
      %v5223 = vld [vmem:[%s4482 + $0x41] sm:$0xff]
      %v5224 = vld [vmem:[%s4482 + $0x51] sm:$0xff]
      %v5225 = vld [vmem:[%s4482 + $0x61] sm:$0xff]
      %v5226 = vld [vmem:[%s4482 + $0x71] sm:$0xff]
      %v5227 = vmul.f32 %v5219, %v4465
      %v5228 = vmul.f32 %v5220, %v4465
      %v5229 = vmul.f32 %v5221, %v4465
      %v5230 = vmul.f32 %v5222, %v4465
      %v5231 = vmul.f32 %v5223, %v4465
      %v5232 = vmul.f32 %v5224, %v4465
      %v5233 = vmul.f32 %v5225, %v4465
      %v5234 = vmul.f32 %v5226, %v4465
      %v5235 = vadd.f32 %v5211, %v5227
      %v5236 = vadd.f32 %v5212, %v5228
      %v5237 = vadd.f32 %v5213, %v5229
      %v5238 = vadd.f32 %v5214, %v5230
      %v5239 = vadd.f32 %v5215, %v5231
      %v5240 = vadd.f32 %v5216, %v5232
      %v5241 = vadd.f32 %v5217, %v5233
      %v5242 = vadd.f32 %v5218, %v5234
      %v5243 = vld [vmem:[%s4453 + $0x2] sm:$0xff]
      %v5244 = vld [vmem:[%s4453 + $0x12] sm:$0xff]
      %v5245 = vld [vmem:[%s4453 + $0x22] sm:$0xff]
      %v5246 = vld [vmem:[%s4453 + $0x32] sm:$0xff]
      %v5247 = vld [vmem:[%s4453 + $0x42] sm:$0xff]
      %v5248 = vld [vmem:[%s4453 + $0x52] sm:$0xff]
      %v5249 = vld [vmem:[%s4453 + $0x62] sm:$0xff]
      %v5250 = vld [vmem:[%s4453 + $0x72] sm:$0xff]
      %v5251 = vmul.f32 %v5243, %v4494
      %v5252 = vmul.f32 %v5244, %v4494
      %v5253 = vmul.f32 %v5245, %v4494
      %v5254 = vmul.f32 %v5246, %v4494
      %v5255 = vmul.f32 %v5247, %v4494
      %v5256 = vmul.f32 %v5248, %v4494
      %v5257 = vmul.f32 %v5249, %v4494
      %v5258 = vmul.f32 %v5250, %v4494
      %v5259 = vadd.f32 %v5235, %v5251
      %v5260 = vadd.f32 %v5236, %v5252
      %v5261 = vadd.f32 %v5237, %v5253
      %v5262 = vadd.f32 %v5238, %v5254
      %v5263 = vadd.f32 %v5239, %v5255
      %v5264 = vadd.f32 %v5240, %v5256
      %v5265 = vadd.f32 %v5241, %v5257
      %v5266 = vadd.f32 %v5242, %v5258
      %v5267 = vld [vmem:[%s4482 + $0x2] sm:$0xff]
      %v5268 = vld [vmem:[%s4482 + $0x12] sm:$0xff]
      %v5269 = vld [vmem:[%s4482 + $0x22] sm:$0xff]
      %v5270 = vld [vmem:[%s4482 + $0x32] sm:$0xff]
      %v5271 = vld [vmem:[%s4482 + $0x42] sm:$0xff]
      %v5272 = vld [vmem:[%s4482 + $0x52] sm:$0xff]
      %v5273 = vld [vmem:[%s4482 + $0x62] sm:$0xff]
      %v5274 = vld [vmem:[%s4482 + $0x72] sm:$0xff]
      %v5275 = vmul.f32 %v5267, %v4522
      %v5276 = vmul.f32 %v5268, %v4522
      %v5277 = vmul.f32 %v5269, %v4522
      %v5278 = vmul.f32 %v5270, %v4522
      %v5279 = vmul.f32 %v5271, %v4522
      %v5280 = vmul.f32 %v5272, %v4522
      %v5281 = vmul.f32 %v5273, %v4522
      %v5282 = vmul.f32 %v5274, %v4522
      %v5283 = vadd.f32 %v5259, %v5275
      %v5284 = vadd.f32 %v5260, %v5276
      %v5285 = vadd.f32 %v5261, %v5277
      %v5286 = vadd.f32 %v5262, %v5278
      %v5287 = vadd.f32 %v5263, %v5279
      %v5288 = vadd.f32 %v5264, %v5280
      %v5289 = vadd.f32 %v5265, %v5281
      %v5290 = vadd.f32 %v5266, %v5282
      %v5291 = vld [vmem:[%s4453 + $0x3] sm:$0xff]
      %v5292 = vld [vmem:[%s4453 + $0x13] sm:$0xff]
      %v5293 = vld [vmem:[%s4453 + $0x23] sm:$0xff]
      %v5294 = vld [vmem:[%s4453 + $0x33] sm:$0xff]
      %v5295 = vld [vmem:[%s4453 + $0x43] sm:$0xff]
      %v5296 = vld [vmem:[%s4453 + $0x53] sm:$0xff]
      %v5297 = vld [vmem:[%s4453 + $0x63] sm:$0xff]
      %v5298 = vld [vmem:[%s4453 + $0x73] sm:$0xff]
      %v5299 = vmul.f32 %v5291, %v4550
      %v5300 = vmul.f32 %v5292, %v4550
      %v5301 = vmul.f32 %v5293, %v4550
      %v5302 = vmul.f32 %v5294, %v4550
      %v5303 = vmul.f32 %v5295, %v4550
      %v5304 = vmul.f32 %v5296, %v4550
      %v5305 = vmul.f32 %v5297, %v4550
      %v5306 = vmul.f32 %v5298, %v4550
      %v5307 = vadd.f32 %v5283, %v5299
      %v5308 = vadd.f32 %v5284, %v5300
      %v5309 = vadd.f32 %v5285, %v5301
      %v5310 = vadd.f32 %v5286, %v5302
      %v5311 = vadd.f32 %v5287, %v5303
      %v5312 = vadd.f32 %v5288, %v5304
      %v5313 = vadd.f32 %v5289, %v5305
      %v5314 = vadd.f32 %v5290, %v5306
      %v5315 = vld [vmem:[%s4482 + $0x3] sm:$0xff]
      %v5316 = vld [vmem:[%s4482 + $0x13] sm:$0xff]
      %v5317 = vld [vmem:[%s4482 + $0x23] sm:$0xff]
      %v5318 = vld [vmem:[%s4482 + $0x33] sm:$0xff]
      %v5319 = vld [vmem:[%s4482 + $0x43] sm:$0xff]
      %v5320 = vld [vmem:[%s4482 + $0x53] sm:$0xff]
      %v5321 = vld [vmem:[%s4482 + $0x63] sm:$0xff]
      %v5322 = vld [vmem:[%s4482 + $0x73] sm:$0xff]
      %v5323 = vmul.f32 %v5315, %v4578
      %v5324 = vmul.f32 %v5316, %v4578
      %v5325 = vmul.f32 %v5317, %v4578
      %v5326 = vmul.f32 %v5318, %v4578
      %v5327 = vmul.f32 %v5319, %v4578
      %v5328 = vmul.f32 %v5320, %v4578
      %v5329 = vmul.f32 %v5321, %v4578
      %v5330 = vmul.f32 %v5322, %v4578
      %v5331 = vadd.f32 %v5307, %v5323
      %v5332 = vadd.f32 %v5308, %v5324
      %v5333 = vadd.f32 %v5309, %v5325
      %v5334 = vadd.f32 %v5310, %v5326
      %v5335 = vadd.f32 %v5311, %v5327
      %v5336 = vadd.f32 %v5312, %v5328
      %v5337 = vadd.f32 %v5313, %v5329
      %v5338 = vadd.f32 %v5314, %v5330
      %v5339 = vld [vmem:[%s4624 + $0x1] sm:$0xff]
      %v5340 = vld [vmem:[%s4624 + $0x11] sm:$0xff]
      %v5341 = vld [vmem:[%s4624 + $0x21] sm:$0xff]
      %v5342 = vld [vmem:[%s4624 + $0x31] sm:$0xff]
      %v5343 = vld [vmem:[%s4624 + $0x41] sm:$0xff]
      %v5344 = vld [vmem:[%s4624 + $0x51] sm:$0xff]
      %v5345 = vld [vmem:[%s4624 + $0x61] sm:$0xff]
      %v5346 = vld [vmem:[%s4624 + $0x71] sm:$0xff]
      %v5347 = vmul.f32 %v5339, %v4607
      %v5348 = vmul.f32 %v5340, %v4607
      %v5349 = vmul.f32 %v5341, %v4607
      %v5350 = vmul.f32 %v5342, %v4607
      %v5351 = vmul.f32 %v5343, %v4607
      %v5352 = vmul.f32 %v5344, %v4607
      %v5353 = vmul.f32 %v5345, %v4607
      %v5354 = vmul.f32 %v5346, %v4607
      %v5355 = vadd.f32 %v5331, %v5347
      %v5356 = vadd.f32 %v5332, %v5348
      %v5357 = vadd.f32 %v5333, %v5349
      %v5358 = vadd.f32 %v5334, %v5350
      %v5359 = vadd.f32 %v5335, %v5351
      %v5360 = vadd.f32 %v5336, %v5352
      %v5361 = vadd.f32 %v5337, %v5353
      %v5362 = vadd.f32 %v5338, %v5354
      %v5363 = vld [vmem:[%s4595 + $0x2] sm:$0xff]
      %v5364 = vld [vmem:[%s4595 + $0x12] sm:$0xff]
      %v5365 = vld [vmem:[%s4595 + $0x22] sm:$0xff]
      %v5366 = vld [vmem:[%s4595 + $0x32] sm:$0xff]
      %v5367 = vld [vmem:[%s4595 + $0x42] sm:$0xff]
      %v5368 = vld [vmem:[%s4595 + $0x52] sm:$0xff]
      %v5369 = vld [vmem:[%s4595 + $0x62] sm:$0xff]
      %v5370 = vld [vmem:[%s4595 + $0x72] sm:$0xff]
      %v5371 = vmul.f32 %v5363, %v4636
      %v5372 = vmul.f32 %v5364, %v4636
      %v5373 = vmul.f32 %v5365, %v4636
      %v5374 = vmul.f32 %v5366, %v4636
      %v5375 = vmul.f32 %v5367, %v4636
      %v5376 = vmul.f32 %v5368, %v4636
      %v5377 = vmul.f32 %v5369, %v4636
      %v5378 = vmul.f32 %v5370, %v4636
      %v5379 = vadd.f32 %v5355, %v5371
      %v5380 = vadd.f32 %v5356, %v5372
      %v5381 = vadd.f32 %v5357, %v5373
      %v5382 = vadd.f32 %v5358, %v5374
      %v5383 = vadd.f32 %v5359, %v5375
      %v5384 = vadd.f32 %v5360, %v5376
      %v5385 = vadd.f32 %v5361, %v5377
      %v5386 = vadd.f32 %v5362, %v5378
      %v5387 = vld [vmem:[%s4624 + $0x2] sm:$0xff]
      %v5388 = vld [vmem:[%s4624 + $0x12] sm:$0xff]
      %v5389 = vld [vmem:[%s4624 + $0x22] sm:$0xff]
      %v5390 = vld [vmem:[%s4624 + $0x32] sm:$0xff]
      %v5391 = vld [vmem:[%s4624 + $0x42] sm:$0xff]
      %v5392 = vld [vmem:[%s4624 + $0x52] sm:$0xff]
      %v5393 = vld [vmem:[%s4624 + $0x62] sm:$0xff]
      %v5394 = vld [vmem:[%s4624 + $0x72] sm:$0xff]
      %v5395 = vmul.f32 %v5387, %v4664
      %v5396 = vmul.f32 %v5388, %v4664
      %v5397 = vmul.f32 %v5389, %v4664
      %v5398 = vmul.f32 %v5390, %v4664
      %v5399 = vmul.f32 %v5391, %v4664
      %v5400 = vmul.f32 %v5392, %v4664
      %v5401 = vmul.f32 %v5393, %v4664
      %v5402 = vmul.f32 %v5394, %v4664
      %v5403 = vadd.f32 %v5379, %v5395
      %v5404 = vadd.f32 %v5380, %v5396
      %v5405 = vadd.f32 %v5381, %v5397
      %v5406 = vadd.f32 %v5382, %v5398
      %v5407 = vadd.f32 %v5383, %v5399
      %v5408 = vadd.f32 %v5384, %v5400
      %v5409 = vadd.f32 %v5385, %v5401
      %v5410 = vadd.f32 %v5386, %v5402
      %v5411 = vld [vmem:[%s4595 + $0x3] sm:$0xff]
      %v5412 = vld [vmem:[%s4595 + $0x13] sm:$0xff]
      %v5413 = vld [vmem:[%s4595 + $0x23] sm:$0xff]
      %v5414 = vld [vmem:[%s4595 + $0x33] sm:$0xff]
      %v5415 = vld [vmem:[%s4595 + $0x43] sm:$0xff]
      %v5416 = vld [vmem:[%s4595 + $0x53] sm:$0xff]
      %v5417 = vld [vmem:[%s4595 + $0x63] sm:$0xff]
      %v5418 = vld [vmem:[%s4595 + $0x73] sm:$0xff]
      %v5419 = vmul.f32 %v5411, %v4692
      %v5420 = vmul.f32 %v5412, %v4692
      %v5421 = vmul.f32 %v5413, %v4692
      %v5422 = vmul.f32 %v5414, %v4692
      %v5423 = vmul.f32 %v5415, %v4692
      %v5424 = vmul.f32 %v5416, %v4692
      %v5425 = vmul.f32 %v5417, %v4692
      %v5426 = vmul.f32 %v5418, %v4692
      %v5427 = vadd.f32 %v5403, %v5419
      %v5428 = vadd.f32 %v5404, %v5420
      %v5429 = vadd.f32 %v5405, %v5421
      %v5430 = vadd.f32 %v5406, %v5422
      %v5431 = vadd.f32 %v5407, %v5423
      %v5432 = vadd.f32 %v5408, %v5424
      %v5433 = vadd.f32 %v5409, %v5425
      %v5434 = vadd.f32 %v5410, %v5426
      %v5435 = vld [vmem:[%s4624 + $0x3] sm:$0xff]
      %v5436 = vld [vmem:[%s4624 + $0x13] sm:$0xff]
      %v5437 = vld [vmem:[%s4624 + $0x23] sm:$0xff]
      %v5438 = vld [vmem:[%s4624 + $0x33] sm:$0xff]
      %v5439 = vld [vmem:[%s4624 + $0x43] sm:$0xff]
      %v5440 = vld [vmem:[%s4624 + $0x53] sm:$0xff]
      %v5441 = vld [vmem:[%s4624 + $0x63] sm:$0xff]
      %v5442 = vld [vmem:[%s4624 + $0x73] sm:$0xff]
      %v5443 = vmul.f32 %v5435, %v4720
      %v5444 = vmul.f32 %v5436, %v4720
      %v5445 = vmul.f32 %v5437, %v4720
      %v5446 = vmul.f32 %v5438, %v4720
      %v5447 = vmul.f32 %v5439, %v4720
      %v5448 = vmul.f32 %v5440, %v4720
      %v5449 = vmul.f32 %v5441, %v4720
      %v5450 = vmul.f32 %v5442, %v4720
      %v5451 = vadd.f32 %v5427, %v5443
      %v5452 = vadd.f32 %v5428, %v5444
      %v5453 = vadd.f32 %v5429, %v5445
      %v5454 = vadd.f32 %v5430, %v5446
      %v5455 = vadd.f32 %v5431, %v5447
      %v5456 = vadd.f32 %v5432, %v5448
      %v5457 = vadd.f32 %v5433, %v5449
      %v5458 = vadd.f32 %v5434, %v5450
      %v5459 = vld [vmem:[%s4766 + $0x1] sm:$0xff]
      %v5460 = vld [vmem:[%s4766 + $0x11] sm:$0xff]
      %v5461 = vld [vmem:[%s4766 + $0x21] sm:$0xff]
      %v5462 = vld [vmem:[%s4766 + $0x31] sm:$0xff]
      %v5463 = vld [vmem:[%s4766 + $0x41] sm:$0xff]
      %v5464 = vld [vmem:[%s4766 + $0x51] sm:$0xff]
      %v5465 = vld [vmem:[%s4766 + $0x61] sm:$0xff]
      %v5466 = vld [vmem:[%s4766 + $0x71] sm:$0xff]
      %v5467 = vmul.f32 %v5459, %v4749
      %v5468 = vmul.f32 %v5460, %v4749
      %v5469 = vmul.f32 %v5461, %v4749
      %v5470 = vmul.f32 %v5462, %v4749
      %v5471 = vmul.f32 %v5463, %v4749
      %v5472 = vmul.f32 %v5464, %v4749
      %v5473 = vmul.f32 %v5465, %v4749
      %v5474 = vmul.f32 %v5466, %v4749
      %v5475 = vadd.f32 %v5451, %v5467
      %v5476 = vadd.f32 %v5452, %v5468
      %v5477 = vadd.f32 %v5453, %v5469
      %v5478 = vadd.f32 %v5454, %v5470
      %v5479 = vadd.f32 %v5455, %v5471
      %v5480 = vadd.f32 %v5456, %v5472
      %v5481 = vadd.f32 %v5457, %v5473
      %v5482 = vadd.f32 %v5458, %v5474
      %v5483 = vld [vmem:[%s4737 + $0x2] sm:$0xff]
      %v5484 = vld [vmem:[%s4737 + $0x12] sm:$0xff]
      %v5485 = vld [vmem:[%s4737 + $0x22] sm:$0xff]
      %v5486 = vld [vmem:[%s4737 + $0x32] sm:$0xff]
      %v5487 = vld [vmem:[%s4737 + $0x42] sm:$0xff]
      %v5488 = vld [vmem:[%s4737 + $0x52] sm:$0xff]
      %v5489 = vld [vmem:[%s4737 + $0x62] sm:$0xff]
      %v5490 = vld [vmem:[%s4737 + $0x72] sm:$0xff]
      %v5491 = vmul.f32 %v5483, %v4778
      %v5492 = vmul.f32 %v5484, %v4778
      %v5493 = vmul.f32 %v5485, %v4778
      %v5494 = vmul.f32 %v5486, %v4778
      %v5495 = vmul.f32 %v5487, %v4778
      %v5496 = vmul.f32 %v5488, %v4778
      %v5497 = vmul.f32 %v5489, %v4778
      %v5498 = vmul.f32 %v5490, %v4778
      %v5499 = vadd.f32 %v5475, %v5491
      %v5500 = vadd.f32 %v5476, %v5492
      %v5501 = vadd.f32 %v5477, %v5493
      %v5502 = vadd.f32 %v5478, %v5494
      %v5503 = vadd.f32 %v5479, %v5495
      %v5504 = vadd.f32 %v5480, %v5496
      %v5505 = vadd.f32 %v5481, %v5497
      %v5506 = vadd.f32 %v5482, %v5498
      %v5507 = vld [vmem:[%s4766 + $0x2] sm:$0xff]
      %v5508 = vld [vmem:[%s4766 + $0x12] sm:$0xff]
      %v5509 = vld [vmem:[%s4766 + $0x22] sm:$0xff]
      %v5510 = vld [vmem:[%s4766 + $0x32] sm:$0xff]
      %v5511 = vld [vmem:[%s4766 + $0x42] sm:$0xff]
      %v5512 = vld [vmem:[%s4766 + $0x52] sm:$0xff]
      %v5513 = vld [vmem:[%s4766 + $0x62] sm:$0xff]
      %v5514 = vld [vmem:[%s4766 + $0x72] sm:$0xff]
      %v5515 = vmul.f32 %v5507, %v4806
      %v5516 = vmul.f32 %v5508, %v4806
      %v5517 = vmul.f32 %v5509, %v4806
      %v5518 = vmul.f32 %v5510, %v4806
      %v5519 = vmul.f32 %v5511, %v4806
      %v5520 = vmul.f32 %v5512, %v4806
      %v5521 = vmul.f32 %v5513, %v4806
      %v5522 = vmul.f32 %v5514, %v4806
      %v5523 = vadd.f32 %v5499, %v5515
      %v5524 = vadd.f32 %v5500, %v5516
      %v5525 = vadd.f32 %v5501, %v5517
      %v5526 = vadd.f32 %v5502, %v5518
      %v5527 = vadd.f32 %v5503, %v5519
      %v5528 = vadd.f32 %v5504, %v5520
      %v5529 = vadd.f32 %v5505, %v5521
      %v5530 = vadd.f32 %v5506, %v5522
      %v5531 = vld [vmem:[%s4737 + $0x3] sm:$0xff]
      %v5532 = vld [vmem:[%s4737 + $0x13] sm:$0xff]
      %v5533 = vld [vmem:[%s4737 + $0x23] sm:$0xff]
      %v5534 = vld [vmem:[%s4737 + $0x33] sm:$0xff]
      %v5535 = vld [vmem:[%s4737 + $0x43] sm:$0xff]
      %v5536 = vld [vmem:[%s4737 + $0x53] sm:$0xff]
      %v5537 = vld [vmem:[%s4737 + $0x63] sm:$0xff]
      %v5538 = vld [vmem:[%s4737 + $0x73] sm:$0xff]
      %v5539 = vmul.f32 %v5531, %v4834
      %v5540 = vmul.f32 %v5532, %v4834
      %v5541 = vmul.f32 %v5533, %v4834
      %v5542 = vmul.f32 %v5534, %v4834
      %v5543 = vmul.f32 %v5535, %v4834
      %v5544 = vmul.f32 %v5536, %v4834
      %v5545 = vmul.f32 %v5537, %v4834
      %v5546 = vmul.f32 %v5538, %v4834
      %v5547 = vadd.f32 %v5523, %v5539
      %v5548 = vadd.f32 %v5524, %v5540
      %v5549 = vadd.f32 %v5525, %v5541
      %v5550 = vadd.f32 %v5526, %v5542
      %v5551 = vadd.f32 %v5527, %v5543
      %v5552 = vadd.f32 %v5528, %v5544
      %v5553 = vadd.f32 %v5529, %v5545
      %v5554 = vadd.f32 %v5530, %v5546
      %v5555 = vld [vmem:[%s4766 + $0x3] sm:$0xff]
      %v5556 = vld [vmem:[%s4766 + $0x13] sm:$0xff]
      %v5557 = vld [vmem:[%s4766 + $0x23] sm:$0xff]
      %v5558 = vld [vmem:[%s4766 + $0x33] sm:$0xff]
      %v5559 = vld [vmem:[%s4766 + $0x43] sm:$0xff]
      %v5560 = vld [vmem:[%s4766 + $0x53] sm:$0xff]
      %v5561 = vld [vmem:[%s4766 + $0x63] sm:$0xff]
      %v5562 = vld [vmem:[%s4766 + $0x73] sm:$0xff]
      %v5563 = vmul.f32 %v5555, %v4862
      %v5564 = vmul.f32 %v5556, %v4862
      %v5565 = vmul.f32 %v5557, %v4862
      %v5566 = vmul.f32 %v5558, %v4862
      %v5567 = vmul.f32 %v5559, %v4862
      %v5568 = vmul.f32 %v5560, %v4862
      %v5569 = vmul.f32 %v5561, %v4862
      %v5570 = vmul.f32 %v5562, %v4862
      %v5571 = vadd.f32 %v5547, %v5563
      %v5572 = vadd.f32 %v5548, %v5564
      %v5573 = vadd.f32 %v5549, %v5565
      %v5574 = vadd.f32 %v5550, %v5566
      %v5575 = vadd.f32 %v5551, %v5567
      %v5576 = vadd.f32 %v5552, %v5568
      %v5577 = vadd.f32 %v5553, %v5569
      %v5578 = vadd.f32 %v5554, %v5570
      %v5579 = vld [vmem:[%s4908 + $0x1] sm:$0xff]
      %v5580 = vld [vmem:[%s4908 + $0x11] sm:$0xff]
      %v5581 = vld [vmem:[%s4908 + $0x21] sm:$0xff]
      %v5582 = vld [vmem:[%s4908 + $0x31] sm:$0xff]
      %v5583 = vld [vmem:[%s4908 + $0x41] sm:$0xff]
      %v5584 = vld [vmem:[%s4908 + $0x51] sm:$0xff]
      %v5585 = vld [vmem:[%s4908 + $0x61] sm:$0xff]
      %v5586 = vld [vmem:[%s4908 + $0x71] sm:$0xff]
      %v5587 = vmul.f32 %v5579, %v4891
      %v5588 = vmul.f32 %v5580, %v4891
      %v5589 = vmul.f32 %v5581, %v4891
      %v5590 = vmul.f32 %v5582, %v4891
      %v5591 = vmul.f32 %v5583, %v4891
      %v5592 = vmul.f32 %v5584, %v4891
      %v5593 = vmul.f32 %v5585, %v4891
      %v5594 = vmul.f32 %v5586, %v4891
      %v5595 = vadd.f32 %v5571, %v5587
      %v5596 = vadd.f32 %v5572, %v5588
      %v5597 = vadd.f32 %v5573, %v5589
      %v5598 = vadd.f32 %v5574, %v5590
      %v5599 = vadd.f32 %v5575, %v5591
      %v5600 = vadd.f32 %v5576, %v5592
      %v5601 = vadd.f32 %v5577, %v5593
      %v5602 = vadd.f32 %v5578, %v5594
      %v5603 = vld [vmem:[%s4879 + $0x2] sm:$0xff]
      %v5604 = vld [vmem:[%s4879 + $0x12] sm:$0xff]
      %v5605 = vld [vmem:[%s4879 + $0x22] sm:$0xff]
      %v5606 = vld [vmem:[%s4879 + $0x32] sm:$0xff]
      %v5607 = vld [vmem:[%s4879 + $0x42] sm:$0xff]
      %v5608 = vld [vmem:[%s4879 + $0x52] sm:$0xff]
      %v5609 = vld [vmem:[%s4879 + $0x62] sm:$0xff]
      %v5610 = vld [vmem:[%s4879 + $0x72] sm:$0xff]
      %v5611 = vmul.f32 %v5603, %v4920
      %v5612 = vmul.f32 %v5604, %v4920
      %v5613 = vmul.f32 %v5605, %v4920
      %v5614 = vmul.f32 %v5606, %v4920
      %v5615 = vmul.f32 %v5607, %v4920
      %v5616 = vmul.f32 %v5608, %v4920
      %v5617 = vmul.f32 %v5609, %v4920
      %v5618 = vmul.f32 %v5610, %v4920
      %v5619 = vadd.f32 %v5595, %v5611
      %v5620 = vadd.f32 %v5596, %v5612
      %v5621 = vadd.f32 %v5597, %v5613
      %v5622 = vadd.f32 %v5598, %v5614
      %v5623 = vadd.f32 %v5599, %v5615
      %v5624 = vadd.f32 %v5600, %v5616
      %v5625 = vadd.f32 %v5601, %v5617
      %v5626 = vadd.f32 %v5602, %v5618
      %v5627 = vld [vmem:[%s4908 + $0x2] sm:$0xff]
      %v5628 = vld [vmem:[%s4908 + $0x12] sm:$0xff]
      %v5629 = vld [vmem:[%s4908 + $0x22] sm:$0xff]
      %v5630 = vld [vmem:[%s4908 + $0x32] sm:$0xff]
      %v5631 = vld [vmem:[%s4908 + $0x42] sm:$0xff]
      %v5632 = vld [vmem:[%s4908 + $0x52] sm:$0xff]
      %v5633 = vld [vmem:[%s4908 + $0x62] sm:$0xff]
      %v5634 = vld [vmem:[%s4908 + $0x72] sm:$0xff]
      %v5635 = vmul.f32 %v5627, %v4948
      %v5636 = vmul.f32 %v5628, %v4948
      %v5637 = vmul.f32 %v5629, %v4948
      %v5638 = vmul.f32 %v5630, %v4948
      %v5639 = vmul.f32 %v5631, %v4948
      %v5640 = vmul.f32 %v5632, %v4948
      %v5641 = vmul.f32 %v5633, %v4948
      %v5642 = vmul.f32 %v5634, %v4948
      %v5643 = vadd.f32 %v5619, %v5635
      %v5644 = vadd.f32 %v5620, %v5636
      %v5645 = vadd.f32 %v5621, %v5637
      %v5646 = vadd.f32 %v5622, %v5638
      %v5647 = vadd.f32 %v5623, %v5639
      %v5648 = vadd.f32 %v5624, %v5640
      %v5649 = vadd.f32 %v5625, %v5641
      %v5650 = vadd.f32 %v5626, %v5642
      %v5651 = vld [vmem:[%s4879 + $0x3] sm:$0xff]
      %v5652 = vld [vmem:[%s4879 + $0x13] sm:$0xff]
      %v5653 = vld [vmem:[%s4879 + $0x23] sm:$0xff]
      %v5654 = vld [vmem:[%s4879 + $0x33] sm:$0xff]
      %v5655 = vld [vmem:[%s4879 + $0x43] sm:$0xff]
      %v5656 = vld [vmem:[%s4879 + $0x53] sm:$0xff]
      %v5657 = vld [vmem:[%s4879 + $0x63] sm:$0xff]
      %v5658 = vld [vmem:[%s4879 + $0x73] sm:$0xff]
      %v5659 = vmul.f32 %v5651, %v4976
      %v5660 = vmul.f32 %v5652, %v4976
      %v5661 = vmul.f32 %v5653, %v4976
      %v5662 = vmul.f32 %v5654, %v4976
      %v5663 = vmul.f32 %v5655, %v4976
      %v5664 = vmul.f32 %v5656, %v4976
      %v5665 = vmul.f32 %v5657, %v4976
      %v5666 = vmul.f32 %v5658, %v4976
      %v5667 = vadd.f32 %v5643, %v5659
      %v5668 = vadd.f32 %v5644, %v5660
      %v5669 = vadd.f32 %v5645, %v5661
      %v5670 = vadd.f32 %v5646, %v5662
      %v5671 = vadd.f32 %v5647, %v5663
      %v5672 = vadd.f32 %v5648, %v5664
      %v5673 = vadd.f32 %v5649, %v5665
      %v5674 = vadd.f32 %v5650, %v5666
      %v5675 = vld [vmem:[%s4908 + $0x3] sm:$0xff]
      %v5676 = vld [vmem:[%s4908 + $0x13] sm:$0xff]
      %v5677 = vld [vmem:[%s4908 + $0x23] sm:$0xff]
      %v5678 = vld [vmem:[%s4908 + $0x33] sm:$0xff]
      %v5679 = vld [vmem:[%s4908 + $0x43] sm:$0xff]
      %v5680 = vld [vmem:[%s4908 + $0x53] sm:$0xff]
      %v5681 = vld [vmem:[%s4908 + $0x63] sm:$0xff]
      %v5682 = vld [vmem:[%s4908 + $0x73] sm:$0xff]
      %v5683 = vmul.f32 %v5675, %v5004
      %v5684 = vmul.f32 %v5676, %v5004
      %v5685 = vmul.f32 %v5677, %v5004
      %v5686 = vmul.f32 %v5678, %v5004
      %v5687 = vmul.f32 %v5679, %v5004
      %v5688 = vmul.f32 %v5680, %v5004
      %v5689 = vmul.f32 %v5681, %v5004
      %v5690 = vmul.f32 %v5682, %v5004
      %v5691 = vadd.f32 %v5667, %v5683
      %v5692 = vadd.f32 %v5668, %v5684
      %v5693 = vadd.f32 %v5669, %v5685
      %v5694 = vadd.f32 %v5670, %v5686
      %v5695 = vadd.f32 %v5671, %v5687
      %v5696 = vadd.f32 %v5672, %v5688
      %v5697 = vadd.f32 %v5673, %v5689
      %v5698 = vadd.f32 %v5674, %v5690
      %v5699 = vadd.f32 %v5691, %v5025
      %v5700 = vadd.f32 %v5692, %v5025
      %v5701 = vadd.f32 %v5693, %v5025
      %v5702 = vadd.f32 %v5694, %v5025
      %v5703 = vadd.f32 %v5695, %v5025
      %v5704 = vadd.f32 %v5696, %v5025
      %v5705 = vadd.f32 %v5697, %v5025
      %v5706 = vadd.f32 %v5698, %v5025
      %v5707 = vld [vmem:[#allocation3] sm:$0xff]
      %v5708 = vld [vmem:[#allocation3 + $0x8] sm:$0xff]
      %v5709 = vld [vmem:[#allocation3 + $0x10] sm:$0xff]
      %v5710 = vld [vmem:[#allocation3 + $0x18] sm:$0xff]
      %v5711 = vld [vmem:[#allocation3 + $0x20] sm:$0xff]
      %v5712 = vld [vmem:[#allocation3 + $0x28] sm:$0xff]
      %v5713 = vld [vmem:[#allocation3 + $0x30] sm:$0xff]
      %v5714 = vld [vmem:[#allocation3 + $0x38] sm:$0xff]
      %v5715 = vadd.f32 %v5699, %v5707
      %v5716 = vadd.f32 %v5700, %v5708
      %v5717 = vadd.f32 %v5701, %v5709
      %v5718 = vadd.f32 %v5702, %v5710
      %v5719 = vadd.f32 %v5703, %v5711
      %v5720 = vadd.f32 %v5704, %v5712
      %v5721 = vadd.f32 %v5705, %v5713
      %v5722 = vadd.f32 %v5706, %v5714
      %v5723 = vld [vmem:[%s2434] sm:$0xff]
      %v5724 = vld [vmem:[%s2434 + $0x8] sm:$0xff]
      %v5725 = vld [vmem:[%s2434 + $0x10] sm:$0xff]
      %v5726 = vld [vmem:[%s2434 + $0x18] sm:$0xff]
      %v5727 = vld [vmem:[%s2434 + $0x20] sm:$0xff]
      %v5728 = vld [vmem:[%s2434 + $0x28] sm:$0xff]
      %v5729 = vld [vmem:[%s2434 + $0x30] sm:$0xff]
      %v5730 = vld [vmem:[%s2434 + $0x38] sm:$0xff]
      %v5731 = vadd.f32 %v5715, %v5723
      %v5732 = vadd.f32 %v5716, %v5724
      %v5733 = vadd.f32 %v5717, %v5725
      %v5734 = vadd.f32 %v5718, %v5726
      %v5735 = vadd.f32 %v5719, %v5727
      %v5736 = vadd.f32 %v5720, %v5728
      %v5737 = vadd.f32 %v5721, %v5729
      %v5738 = vadd.f32 %v5722, %v5730
      %v5739 = vld [vmem:[%s3357] sm:$0xff]
      %v5740 = vld [vmem:[%s3357 + $0x8] sm:$0xff]
      %v5741 = vld [vmem:[%s3357 + $0x10] sm:$0xff]
      %v5742 = vld [vmem:[%s3357 + $0x18] sm:$0xff]
      %v5743 = vld [vmem:[%s3357 + $0x20] sm:$0xff]
      %v5744 = vld [vmem:[%s3357 + $0x28] sm:$0xff]
      %v5745 = vld [vmem:[%s3357 + $0x30] sm:$0xff]
      %v5746 = vld [vmem:[%s3357 + $0x38] sm:$0xff]
      %v5747 = vsub.f32 %v5731, %v5739
      %v5748 = vsub.f32 %v5732, %v5740
      %v5749 = vsub.f32 %v5733, %v5741
      %v5750 = vsub.f32 %v5734, %v5742
      %v5751 = vsub.f32 %v5735, %v5743
      %v5752 = vsub.f32 %v5736, %v5744
      %v5753 = vsub.f32 %v5737, %v5745
      %v5754 = vsub.f32 %v5738, %v5746
      %v5755 = vld [vmem:[%s4280] sm:$0xff]
      %v5756 = vld [vmem:[%s4280 + $0x8] sm:$0xff]
      %v5757 = vld [vmem:[%s4280 + $0x10] sm:$0xff]
      %v5758 = vld [vmem:[%s4280 + $0x18] sm:$0xff]
      %v5759 = vld [vmem:[%s4280 + $0x20] sm:$0xff]
      %v5760 = vld [vmem:[%s4280 + $0x28] sm:$0xff]
      %v5761 = vld [vmem:[%s4280 + $0x30] sm:$0xff]
      %v5762 = vld [vmem:[%s4280 + $0x38] sm:$0xff]
      %v5763 = vsub.f32 %v5747, %v5755
      %v5764 = vsub.f32 %v5748, %v5756
      %v5765 = vsub.f32 %v5749, %v5757
      %v5766 = vsub.f32 %v5750, %v5758
      %v5767 = vsub.f32 %v5751, %v5759
      %v5768 = vsub.f32 %v5752, %v5760
      %v5769 = vsub.f32 %v5753, %v5761
      %v5770 = vsub.f32 %v5754, %v5762
      %5771 = vst.msk [vmem:[%s576] sm:$0xff] %vm761, %v5763
      %5772 = vst.msk [vmem:[%s576 + $0x8] sm:$0xff] %vm761, %v5764
      %5773 = vst.msk [vmem:[%s576 + $0x10] sm:$0xff] %vm761, %v5765
      %5774 = vst.msk [vmem:[%s576 + $0x18] sm:$0xff] %vm761, %v5766
      %5775 = vst.msk [vmem:[%s576 + $0x20] sm:$0xff] %vm761, %v5767
      %5776 = vst.msk [vmem:[%s576 + $0x28] sm:$0xff] %vm761, %v5768
      %5777 = vst.msk [vmem:[%s576 + $0x30] sm:$0xff] %vm761, %v5769
      %5778 = vst.msk [vmem:[%s576 + $0x38] sm:$0xff] %vm761, %v5770
      %v5779 = vld [vmem:[%s4453 + $0x1] sm:$0xff]
      %v5780 = vld [vmem:[%s4453 + $0x11] sm:$0xff]
      %v5781 = vld [vmem:[%s4453 + $0x21] sm:$0xff]
      %v5782 = vld [vmem:[%s4453 + $0x31] sm:$0xff]
      %v5783 = vld [vmem:[%s4453 + $0x41] sm:$0xff]
      %v5784 = vld [vmem:[%s4453 + $0x51] sm:$0xff]
      %v5785 = vld [vmem:[%s4453 + $0x61] sm:$0xff]
      %v5786 = vld [vmem:[%s4453 + $0x71] sm:$0xff]
      %v5787 = vmul.f32 %v5779, %v4331
      %v5788 = vmul.f32 %v5780, %v4331
      %v5789 = vmul.f32 %v5781, %v4331
      %v5790 = vmul.f32 %v5782, %v4331
      %v5791 = vmul.f32 %v5783, %v4331
      %v5792 = vmul.f32 %v5784, %v4331
      %v5793 = vmul.f32 %v5785, %v4331
      %v5794 = vmul.f32 %v5786, %v4331
      %v5795 = vld [vmem:[%s4482 + $0x1] sm:$0xff]
      %v5796 = vld [vmem:[%s4482 + $0x11] sm:$0xff]
      %v5797 = vld [vmem:[%s4482 + $0x21] sm:$0xff]
      %v5798 = vld [vmem:[%s4482 + $0x31] sm:$0xff]
      %v5799 = vld [vmem:[%s4482 + $0x41] sm:$0xff]
      %v5800 = vld [vmem:[%s4482 + $0x51] sm:$0xff]
      %v5801 = vld [vmem:[%s4482 + $0x61] sm:$0xff]
      %v5802 = vld [vmem:[%s4482 + $0x71] sm:$0xff]
      %v5803 = vmul.f32 %v5795, %v4352
      %v5804 = vmul.f32 %v5796, %v4352
      %v5805 = vmul.f32 %v5797, %v4352
      %v5806 = vmul.f32 %v5798, %v4352
      %v5807 = vmul.f32 %v5799, %v4352
      %v5808 = vmul.f32 %v5800, %v4352
      %v5809 = vmul.f32 %v5801, %v4352
      %v5810 = vmul.f32 %v5802, %v4352
      %v5811 = vadd.f32 %v5787, %v5803
      %v5812 = vadd.f32 %v5788, %v5804
      %v5813 = vadd.f32 %v5789, %v5805
      %v5814 = vadd.f32 %v5790, %v5806
      %v5815 = vadd.f32 %v5791, %v5807
      %v5816 = vadd.f32 %v5792, %v5808
      %v5817 = vadd.f32 %v5793, %v5809
      %v5818 = vadd.f32 %v5794, %v5810
      %v5819 = vld [vmem:[%s4453 + $0x2] sm:$0xff]
      %v5820 = vld [vmem:[%s4453 + $0x12] sm:$0xff]
      %v5821 = vld [vmem:[%s4453 + $0x22] sm:$0xff]
      %v5822 = vld [vmem:[%s4453 + $0x32] sm:$0xff]
      %v5823 = vld [vmem:[%s4453 + $0x42] sm:$0xff]
      %v5824 = vld [vmem:[%s4453 + $0x52] sm:$0xff]
      %v5825 = vld [vmem:[%s4453 + $0x62] sm:$0xff]
      %v5826 = vld [vmem:[%s4453 + $0x72] sm:$0xff]
      %v5827 = vmul.f32 %v5819, %v4380
      %v5828 = vmul.f32 %v5820, %v4380
      %v5829 = vmul.f32 %v5821, %v4380
      %v5830 = vmul.f32 %v5822, %v4380
      %v5831 = vmul.f32 %v5823, %v4380
      %v5832 = vmul.f32 %v5824, %v4380
      %v5833 = vmul.f32 %v5825, %v4380
      %v5834 = vmul.f32 %v5826, %v4380
      %v5835 = vadd.f32 %v5811, %v5827
      %v5836 = vadd.f32 %v5812, %v5828
      %v5837 = vadd.f32 %v5813, %v5829
      %v5838 = vadd.f32 %v5814, %v5830
      %v5839 = vadd.f32 %v5815, %v5831
      %v5840 = vadd.f32 %v5816, %v5832
      %v5841 = vadd.f32 %v5817, %v5833
      %v5842 = vadd.f32 %v5818, %v5834
      %v5843 = vld [vmem:[%s4482 + $0x2] sm:$0xff]
      %v5844 = vld [vmem:[%s4482 + $0x12] sm:$0xff]
      %v5845 = vld [vmem:[%s4482 + $0x22] sm:$0xff]
      %v5846 = vld [vmem:[%s4482 + $0x32] sm:$0xff]
      %v5847 = vld [vmem:[%s4482 + $0x42] sm:$0xff]
      %v5848 = vld [vmem:[%s4482 + $0x52] sm:$0xff]
      %v5849 = vld [vmem:[%s4482 + $0x62] sm:$0xff]
      %v5850 = vld [vmem:[%s4482 + $0x72] sm:$0xff]
      %v5851 = vmul.f32 %v5843, %v4408
      %v5852 = vmul.f32 %v5844, %v4408
      %v5853 = vmul.f32 %v5845, %v4408
      %v5854 = vmul.f32 %v5846, %v4408
      %v5855 = vmul.f32 %v5847, %v4408
      %v5856 = vmul.f32 %v5848, %v4408
      %v5857 = vmul.f32 %v5849, %v4408
      %v5858 = vmul.f32 %v5850, %v4408
      %v5859 = vadd.f32 %v5835, %v5851
      %v5860 = vadd.f32 %v5836, %v5852
      %v5861 = vadd.f32 %v5837, %v5853
      %v5862 = vadd.f32 %v5838, %v5854
      %v5863 = vadd.f32 %v5839, %v5855
      %v5864 = vadd.f32 %v5840, %v5856
      %v5865 = vadd.f32 %v5841, %v5857
      %v5866 = vadd.f32 %v5842, %v5858
      %v5867 = vld [vmem:[%s4453 + $0x3] sm:$0xff]
      %v5868 = vld [vmem:[%s4453 + $0x13] sm:$0xff]
      %v5869 = vld [vmem:[%s4453 + $0x23] sm:$0xff]
      %v5870 = vld [vmem:[%s4453 + $0x33] sm:$0xff]
      %v5871 = vld [vmem:[%s4453 + $0x43] sm:$0xff]
      %v5872 = vld [vmem:[%s4453 + $0x53] sm:$0xff]
      %v5873 = vld [vmem:[%s4453 + $0x63] sm:$0xff]
      %v5874 = vld [vmem:[%s4453 + $0x73] sm:$0xff]
      %v5875 = vmul.f32 %v5867, %v4436
      %v5876 = vmul.f32 %v5868, %v4436
      %v5877 = vmul.f32 %v5869, %v4436
      %v5878 = vmul.f32 %v5870, %v4436
      %v5879 = vmul.f32 %v5871, %v4436
      %v5880 = vmul.f32 %v5872, %v4436
      %v5881 = vmul.f32 %v5873, %v4436
      %v5882 = vmul.f32 %v5874, %v4436
      %v5883 = vadd.f32 %v5859, %v5875
      %v5884 = vadd.f32 %v5860, %v5876
      %v5885 = vadd.f32 %v5861, %v5877
      %v5886 = vadd.f32 %v5862, %v5878
      %v5887 = vadd.f32 %v5863, %v5879
      %v5888 = vadd.f32 %v5864, %v5880
      %v5889 = vadd.f32 %v5865, %v5881
      %v5890 = vadd.f32 %v5866, %v5882
      %v5891 = vld [vmem:[%s4595 + $0x1] sm:$0xff]
      %v5892 = vld [vmem:[%s4595 + $0x11] sm:$0xff]
      %v5893 = vld [vmem:[%s4595 + $0x21] sm:$0xff]
      %v5894 = vld [vmem:[%s4595 + $0x31] sm:$0xff]
      %v5895 = vld [vmem:[%s4595 + $0x41] sm:$0xff]
      %v5896 = vld [vmem:[%s4595 + $0x51] sm:$0xff]
      %v5897 = vld [vmem:[%s4595 + $0x61] sm:$0xff]
      %v5898 = vld [vmem:[%s4595 + $0x71] sm:$0xff]
      %v5899 = vmul.f32 %v5891, %v4465
      %v5900 = vmul.f32 %v5892, %v4465
      %v5901 = vmul.f32 %v5893, %v4465
      %v5902 = vmul.f32 %v5894, %v4465
      %v5903 = vmul.f32 %v5895, %v4465
      %v5904 = vmul.f32 %v5896, %v4465
      %v5905 = vmul.f32 %v5897, %v4465
      %v5906 = vmul.f32 %v5898, %v4465
      %v5907 = vadd.f32 %v5883, %v5899
      %v5908 = vadd.f32 %v5884, %v5900
      %v5909 = vadd.f32 %v5885, %v5901
      %v5910 = vadd.f32 %v5886, %v5902
      %v5911 = vadd.f32 %v5887, %v5903
      %v5912 = vadd.f32 %v5888, %v5904
      %v5913 = vadd.f32 %v5889, %v5905
      %v5914 = vadd.f32 %v5890, %v5906
      %v5915 = vld [vmem:[%s4624 + $0x1] sm:$0xff]
      %v5916 = vld [vmem:[%s4624 + $0x11] sm:$0xff]
      %v5917 = vld [vmem:[%s4624 + $0x21] sm:$0xff]
      %v5918 = vld [vmem:[%s4624 + $0x31] sm:$0xff]
      %v5919 = vld [vmem:[%s4624 + $0x41] sm:$0xff]
      %v5920 = vld [vmem:[%s4624 + $0x51] sm:$0xff]
      %v5921 = vld [vmem:[%s4624 + $0x61] sm:$0xff]
      %v5922 = vld [vmem:[%s4624 + $0x71] sm:$0xff]
      %v5923 = vmul.f32 %v5915, %v4494
      %v5924 = vmul.f32 %v5916, %v4494
      %v5925 = vmul.f32 %v5917, %v4494
      %v5926 = vmul.f32 %v5918, %v4494
      %v5927 = vmul.f32 %v5919, %v4494
      %v5928 = vmul.f32 %v5920, %v4494
      %v5929 = vmul.f32 %v5921, %v4494
      %v5930 = vmul.f32 %v5922, %v4494
      %v5931 = vadd.f32 %v5907, %v5923
      %v5932 = vadd.f32 %v5908, %v5924
      %v5933 = vadd.f32 %v5909, %v5925
      %v5934 = vadd.f32 %v5910, %v5926
      %v5935 = vadd.f32 %v5911, %v5927
      %v5936 = vadd.f32 %v5912, %v5928
      %v5937 = vadd.f32 %v5913, %v5929
      %v5938 = vadd.f32 %v5914, %v5930
      %v5939 = vld [vmem:[%s4595 + $0x2] sm:$0xff]
      %v5940 = vld [vmem:[%s4595 + $0x12] sm:$0xff]
      %v5941 = vld [vmem:[%s4595 + $0x22] sm:$0xff]
      %v5942 = vld [vmem:[%s4595 + $0x32] sm:$0xff]
      %v5943 = vld [vmem:[%s4595 + $0x42] sm:$0xff]
      %v5944 = vld [vmem:[%s4595 + $0x52] sm:$0xff]
      %v5945 = vld [vmem:[%s4595 + $0x62] sm:$0xff]
      %v5946 = vld [vmem:[%s4595 + $0x72] sm:$0xff]
      %v5947 = vmul.f32 %v5939, %v4522
      %v5948 = vmul.f32 %v5940, %v4522
      %v5949 = vmul.f32 %v5941, %v4522
      %v5950 = vmul.f32 %v5942, %v4522
      %v5951 = vmul.f32 %v5943, %v4522
      %v5952 = vmul.f32 %v5944, %v4522
      %v5953 = vmul.f32 %v5945, %v4522
      %v5954 = vmul.f32 %v5946, %v4522
      %v5955 = vadd.f32 %v5931, %v5947
      %v5956 = vadd.f32 %v5932, %v5948
      %v5957 = vadd.f32 %v5933, %v5949
      %v5958 = vadd.f32 %v5934, %v5950
      %v5959 = vadd.f32 %v5935, %v5951
      %v5960 = vadd.f32 %v5936, %v5952
      %v5961 = vadd.f32 %v5937, %v5953
      %v5962 = vadd.f32 %v5938, %v5954
      %v5963 = vld [vmem:[%s4624 + $0x2] sm:$0xff]
      %v5964 = vld [vmem:[%s4624 + $0x12] sm:$0xff]
      %v5965 = vld [vmem:[%s4624 + $0x22] sm:$0xff]
      %v5966 = vld [vmem:[%s4624 + $0x32] sm:$0xff]
      %v5967 = vld [vmem:[%s4624 + $0x42] sm:$0xff]
      %v5968 = vld [vmem:[%s4624 + $0x52] sm:$0xff]
      %v5969 = vld [vmem:[%s4624 + $0x62] sm:$0xff]
      %v5970 = vld [vmem:[%s4624 + $0x72] sm:$0xff]
      %v5971 = vmul.f32 %v5963, %v4550
      %v5972 = vmul.f32 %v5964, %v4550
      %v5973 = vmul.f32 %v5965, %v4550
      %v5974 = vmul.f32 %v5966, %v4550
      %v5975 = vmul.f32 %v5967, %v4550
      %v5976 = vmul.f32 %v5968, %v4550
      %v5977 = vmul.f32 %v5969, %v4550
      %v5978 = vmul.f32 %v5970, %v4550
      %v5979 = vadd.f32 %v5955, %v5971
      %v5980 = vadd.f32 %v5956, %v5972
      %v5981 = vadd.f32 %v5957, %v5973
      %v5982 = vadd.f32 %v5958, %v5974
      %v5983 = vadd.f32 %v5959, %v5975
      %v5984 = vadd.f32 %v5960, %v5976
      %v5985 = vadd.f32 %v5961, %v5977
      %v5986 = vadd.f32 %v5962, %v5978
      %v5987 = vld [vmem:[%s4595 + $0x3] sm:$0xff]
      %v5988 = vld [vmem:[%s4595 + $0x13] sm:$0xff]
      %v5989 = vld [vmem:[%s4595 + $0x23] sm:$0xff]
      %v5990 = vld [vmem:[%s4595 + $0x33] sm:$0xff]
      %v5991 = vld [vmem:[%s4595 + $0x43] sm:$0xff]
      %v5992 = vld [vmem:[%s4595 + $0x53] sm:$0xff]
      %v5993 = vld [vmem:[%s4595 + $0x63] sm:$0xff]
      %v5994 = vld [vmem:[%s4595 + $0x73] sm:$0xff]
      %v5995 = vmul.f32 %v5987, %v4578
      %v5996 = vmul.f32 %v5988, %v4578
      %v5997 = vmul.f32 %v5989, %v4578
      %v5998 = vmul.f32 %v5990, %v4578
      %v5999 = vmul.f32 %v5991, %v4578
      %v6000 = vmul.f32 %v5992, %v4578
      %v6001 = vmul.f32 %v5993, %v4578
      %v6002 = vmul.f32 %v5994, %v4578
      %v6003 = vadd.f32 %v5979, %v5995
      %v6004 = vadd.f32 %v5980, %v5996
      %v6005 = vadd.f32 %v5981, %v5997
      %v6006 = vadd.f32 %v5982, %v5998
      %v6007 = vadd.f32 %v5983, %v5999
      %v6008 = vadd.f32 %v5984, %v6000
      %v6009 = vadd.f32 %v5985, %v6001
      %v6010 = vadd.f32 %v5986, %v6002
      %v6011 = vld [vmem:[%s4737 + $0x1] sm:$0xff]
      %v6012 = vld [vmem:[%s4737 + $0x11] sm:$0xff]
      %v6013 = vld [vmem:[%s4737 + $0x21] sm:$0xff]
      %v6014 = vld [vmem:[%s4737 + $0x31] sm:$0xff]
      %v6015 = vld [vmem:[%s4737 + $0x41] sm:$0xff]
      %v6016 = vld [vmem:[%s4737 + $0x51] sm:$0xff]
      %v6017 = vld [vmem:[%s4737 + $0x61] sm:$0xff]
      %v6018 = vld [vmem:[%s4737 + $0x71] sm:$0xff]
      %v6019 = vmul.f32 %v6011, %v4607
      %v6020 = vmul.f32 %v6012, %v4607
      %v6021 = vmul.f32 %v6013, %v4607
      %v6022 = vmul.f32 %v6014, %v4607
      %v6023 = vmul.f32 %v6015, %v4607
      %v6024 = vmul.f32 %v6016, %v4607
      %v6025 = vmul.f32 %v6017, %v4607
      %v6026 = vmul.f32 %v6018, %v4607
      %v6027 = vadd.f32 %v6003, %v6019
      %v6028 = vadd.f32 %v6004, %v6020
      %v6029 = vadd.f32 %v6005, %v6021
      %v6030 = vadd.f32 %v6006, %v6022
      %v6031 = vadd.f32 %v6007, %v6023
      %v6032 = vadd.f32 %v6008, %v6024
      %v6033 = vadd.f32 %v6009, %v6025
      %v6034 = vadd.f32 %v6010, %v6026
      %v6035 = vld [vmem:[%s4766 + $0x1] sm:$0xff]
      %v6036 = vld [vmem:[%s4766 + $0x11] sm:$0xff]
      %v6037 = vld [vmem:[%s4766 + $0x21] sm:$0xff]
      %v6038 = vld [vmem:[%s4766 + $0x31] sm:$0xff]
      %v6039 = vld [vmem:[%s4766 + $0x41] sm:$0xff]
      %v6040 = vld [vmem:[%s4766 + $0x51] sm:$0xff]
      %v6041 = vld [vmem:[%s4766 + $0x61] sm:$0xff]
      %v6042 = vld [vmem:[%s4766 + $0x71] sm:$0xff]
      %v6043 = vmul.f32 %v6035, %v4636
      %v6044 = vmul.f32 %v6036, %v4636
      %v6045 = vmul.f32 %v6037, %v4636
      %v6046 = vmul.f32 %v6038, %v4636
      %v6047 = vmul.f32 %v6039, %v4636
      %v6048 = vmul.f32 %v6040, %v4636
      %v6049 = vmul.f32 %v6041, %v4636
      %v6050 = vmul.f32 %v6042, %v4636
      %v6051 = vadd.f32 %v6027, %v6043
      %v6052 = vadd.f32 %v6028, %v6044
      %v6053 = vadd.f32 %v6029, %v6045
      %v6054 = vadd.f32 %v6030, %v6046
      %v6055 = vadd.f32 %v6031, %v6047
      %v6056 = vadd.f32 %v6032, %v6048
      %v6057 = vadd.f32 %v6033, %v6049
      %v6058 = vadd.f32 %v6034, %v6050
      %v6059 = vld [vmem:[%s4737 + $0x2] sm:$0xff]
      %v6060 = vld [vmem:[%s4737 + $0x12] sm:$0xff]
      %v6061 = vld [vmem:[%s4737 + $0x22] sm:$0xff]
      %v6062 = vld [vmem:[%s4737 + $0x32] sm:$0xff]
      %v6063 = vld [vmem:[%s4737 + $0x42] sm:$0xff]
      %v6064 = vld [vmem:[%s4737 + $0x52] sm:$0xff]
      %v6065 = vld [vmem:[%s4737 + $0x62] sm:$0xff]
      %v6066 = vld [vmem:[%s4737 + $0x72] sm:$0xff]
      %v6067 = vmul.f32 %v6059, %v4664
      %v6068 = vmul.f32 %v6060, %v4664
      %v6069 = vmul.f32 %v6061, %v4664
      %v6070 = vmul.f32 %v6062, %v4664
      %v6071 = vmul.f32 %v6063, %v4664
      %v6072 = vmul.f32 %v6064, %v4664
      %v6073 = vmul.f32 %v6065, %v4664
      %v6074 = vmul.f32 %v6066, %v4664
      %v6075 = vadd.f32 %v6051, %v6067
      %v6076 = vadd.f32 %v6052, %v6068
      %v6077 = vadd.f32 %v6053, %v6069
      %v6078 = vadd.f32 %v6054, %v6070
      %v6079 = vadd.f32 %v6055, %v6071
      %v6080 = vadd.f32 %v6056, %v6072
      %v6081 = vadd.f32 %v6057, %v6073
      %v6082 = vadd.f32 %v6058, %v6074
      %v6083 = vld [vmem:[%s4766 + $0x2] sm:$0xff]
      %v6084 = vld [vmem:[%s4766 + $0x12] sm:$0xff]
      %v6085 = vld [vmem:[%s4766 + $0x22] sm:$0xff]
      %v6086 = vld [vmem:[%s4766 + $0x32] sm:$0xff]
      %v6087 = vld [vmem:[%s4766 + $0x42] sm:$0xff]
      %v6088 = vld [vmem:[%s4766 + $0x52] sm:$0xff]
      %v6089 = vld [vmem:[%s4766 + $0x62] sm:$0xff]
      %v6090 = vld [vmem:[%s4766 + $0x72] sm:$0xff]
      %v6091 = vmul.f32 %v6083, %v4692
      %v6092 = vmul.f32 %v6084, %v4692
      %v6093 = vmul.f32 %v6085, %v4692
      %v6094 = vmul.f32 %v6086, %v4692
      %v6095 = vmul.f32 %v6087, %v4692
      %v6096 = vmul.f32 %v6088, %v4692
      %v6097 = vmul.f32 %v6089, %v4692
      %v6098 = vmul.f32 %v6090, %v4692
      %v6099 = vadd.f32 %v6075, %v6091
      %v6100 = vadd.f32 %v6076, %v6092
      %v6101 = vadd.f32 %v6077, %v6093
      %v6102 = vadd.f32 %v6078, %v6094
      %v6103 = vadd.f32 %v6079, %v6095
      %v6104 = vadd.f32 %v6080, %v6096
      %v6105 = vadd.f32 %v6081, %v6097
      %v6106 = vadd.f32 %v6082, %v6098
      %v6107 = vld [vmem:[%s4737 + $0x3] sm:$0xff]
      %v6108 = vld [vmem:[%s4737 + $0x13] sm:$0xff]
      %v6109 = vld [vmem:[%s4737 + $0x23] sm:$0xff]
      %v6110 = vld [vmem:[%s4737 + $0x33] sm:$0xff]
      %v6111 = vld [vmem:[%s4737 + $0x43] sm:$0xff]
      %v6112 = vld [vmem:[%s4737 + $0x53] sm:$0xff]
      %v6113 = vld [vmem:[%s4737 + $0x63] sm:$0xff]
      %v6114 = vld [vmem:[%s4737 + $0x73] sm:$0xff]
      %v6115 = vmul.f32 %v6107, %v4720
      %v6116 = vmul.f32 %v6108, %v4720
      %v6117 = vmul.f32 %v6109, %v4720
      %v6118 = vmul.f32 %v6110, %v4720
      %v6119 = vmul.f32 %v6111, %v4720
      %v6120 = vmul.f32 %v6112, %v4720
      %v6121 = vmul.f32 %v6113, %v4720
      %v6122 = vmul.f32 %v6114, %v4720
      %v6123 = vadd.f32 %v6099, %v6115
      %v6124 = vadd.f32 %v6100, %v6116
      %v6125 = vadd.f32 %v6101, %v6117
      %v6126 = vadd.f32 %v6102, %v6118
      %v6127 = vadd.f32 %v6103, %v6119
      %v6128 = vadd.f32 %v6104, %v6120
      %v6129 = vadd.f32 %v6105, %v6121
      %v6130 = vadd.f32 %v6106, %v6122
      %v6131 = vld [vmem:[%s4879 + $0x1] sm:$0xff]
      %v6132 = vld [vmem:[%s4879 + $0x11] sm:$0xff]
      %v6133 = vld [vmem:[%s4879 + $0x21] sm:$0xff]
      %v6134 = vld [vmem:[%s4879 + $0x31] sm:$0xff]
      %v6135 = vld [vmem:[%s4879 + $0x41] sm:$0xff]
      %v6136 = vld [vmem:[%s4879 + $0x51] sm:$0xff]
      %v6137 = vld [vmem:[%s4879 + $0x61] sm:$0xff]
      %v6138 = vld [vmem:[%s4879 + $0x71] sm:$0xff]
      %v6139 = vmul.f32 %v6131, %v4749
      %v6140 = vmul.f32 %v6132, %v4749
      %v6141 = vmul.f32 %v6133, %v4749
      %v6142 = vmul.f32 %v6134, %v4749
      %v6143 = vmul.f32 %v6135, %v4749
      %v6144 = vmul.f32 %v6136, %v4749
      %v6145 = vmul.f32 %v6137, %v4749
      %v6146 = vmul.f32 %v6138, %v4749
      %v6147 = vadd.f32 %v6123, %v6139
      %v6148 = vadd.f32 %v6124, %v6140
      %v6149 = vadd.f32 %v6125, %v6141
      %v6150 = vadd.f32 %v6126, %v6142
      %v6151 = vadd.f32 %v6127, %v6143
      %v6152 = vadd.f32 %v6128, %v6144
      %v6153 = vadd.f32 %v6129, %v6145
      %v6154 = vadd.f32 %v6130, %v6146
      %v6155 = vld [vmem:[%s4908 + $0x1] sm:$0xff]
      %v6156 = vld [vmem:[%s4908 + $0x11] sm:$0xff]
      %v6157 = vld [vmem:[%s4908 + $0x21] sm:$0xff]
      %v6158 = vld [vmem:[%s4908 + $0x31] sm:$0xff]
      %v6159 = vld [vmem:[%s4908 + $0x41] sm:$0xff]
      %v6160 = vld [vmem:[%s4908 + $0x51] sm:$0xff]
      %v6161 = vld [vmem:[%s4908 + $0x61] sm:$0xff]
      %v6162 = vld [vmem:[%s4908 + $0x71] sm:$0xff]
      %v6163 = vmul.f32 %v6155, %v4778
      %v6164 = vmul.f32 %v6156, %v4778
      %v6165 = vmul.f32 %v6157, %v4778
      %v6166 = vmul.f32 %v6158, %v4778
      %v6167 = vmul.f32 %v6159, %v4778
      %v6168 = vmul.f32 %v6160, %v4778
      %v6169 = vmul.f32 %v6161, %v4778
      %v6170 = vmul.f32 %v6162, %v4778
      %v6171 = vadd.f32 %v6147, %v6163
      %v6172 = vadd.f32 %v6148, %v6164
      %v6173 = vadd.f32 %v6149, %v6165
      %v6174 = vadd.f32 %v6150, %v6166
      %v6175 = vadd.f32 %v6151, %v6167
      %v6176 = vadd.f32 %v6152, %v6168
      %v6177 = vadd.f32 %v6153, %v6169
      %v6178 = vadd.f32 %v6154, %v6170
      %v6179 = vld [vmem:[%s4879 + $0x2] sm:$0xff]
      %v6180 = vld [vmem:[%s4879 + $0x12] sm:$0xff]
      %v6181 = vld [vmem:[%s4879 + $0x22] sm:$0xff]
      %v6182 = vld [vmem:[%s4879 + $0x32] sm:$0xff]
      %v6183 = vld [vmem:[%s4879 + $0x42] sm:$0xff]
      %v6184 = vld [vmem:[%s4879 + $0x52] sm:$0xff]
      %v6185 = vld [vmem:[%s4879 + $0x62] sm:$0xff]
      %v6186 = vld [vmem:[%s4879 + $0x72] sm:$0xff]
      %v6187 = vmul.f32 %v6179, %v4806
      %v6188 = vmul.f32 %v6180, %v4806
      %v6189 = vmul.f32 %v6181, %v4806
      %v6190 = vmul.f32 %v6182, %v4806
      %v6191 = vmul.f32 %v6183, %v4806
      %v6192 = vmul.f32 %v6184, %v4806
      %v6193 = vmul.f32 %v6185, %v4806
      %v6194 = vmul.f32 %v6186, %v4806
      %v6195 = vadd.f32 %v6171, %v6187
      %v6196 = vadd.f32 %v6172, %v6188
      %v6197 = vadd.f32 %v6173, %v6189
      %v6198 = vadd.f32 %v6174, %v6190
      %v6199 = vadd.f32 %v6175, %v6191
      %v6200 = vadd.f32 %v6176, %v6192
      %v6201 = vadd.f32 %v6177, %v6193
      %v6202 = vadd.f32 %v6178, %v6194
      %v6203 = vld [vmem:[%s4908 + $0x2] sm:$0xff]
      %v6204 = vld [vmem:[%s4908 + $0x12] sm:$0xff]
      %v6205 = vld [vmem:[%s4908 + $0x22] sm:$0xff]
      %v6206 = vld [vmem:[%s4908 + $0x32] sm:$0xff]
      %v6207 = vld [vmem:[%s4908 + $0x42] sm:$0xff]
      %v6208 = vld [vmem:[%s4908 + $0x52] sm:$0xff]
      %v6209 = vld [vmem:[%s4908 + $0x62] sm:$0xff]
      %v6210 = vld [vmem:[%s4908 + $0x72] sm:$0xff]
      %v6211 = vmul.f32 %v6203, %v4834
      %v6212 = vmul.f32 %v6204, %v4834
      %v6213 = vmul.f32 %v6205, %v4834
      %v6214 = vmul.f32 %v6206, %v4834
      %v6215 = vmul.f32 %v6207, %v4834
      %v6216 = vmul.f32 %v6208, %v4834
      %v6217 = vmul.f32 %v6209, %v4834
      %v6218 = vmul.f32 %v6210, %v4834
      %v6219 = vadd.f32 %v6195, %v6211
      %v6220 = vadd.f32 %v6196, %v6212
      %v6221 = vadd.f32 %v6197, %v6213
      %v6222 = vadd.f32 %v6198, %v6214
      %v6223 = vadd.f32 %v6199, %v6215
      %v6224 = vadd.f32 %v6200, %v6216
      %v6225 = vadd.f32 %v6201, %v6217
      %v6226 = vadd.f32 %v6202, %v6218
      %v6227 = vld [vmem:[%s4879 + $0x3] sm:$0xff]
      %v6228 = vld [vmem:[%s4879 + $0x13] sm:$0xff]
      %v6229 = vld [vmem:[%s4879 + $0x23] sm:$0xff]
      %v6230 = vld [vmem:[%s4879 + $0x33] sm:$0xff]
      %v6231 = vld [vmem:[%s4879 + $0x43] sm:$0xff]
      %v6232 = vld [vmem:[%s4879 + $0x53] sm:$0xff]
      %v6233 = vld [vmem:[%s4879 + $0x63] sm:$0xff]
      %v6234 = vld [vmem:[%s4879 + $0x73] sm:$0xff]
      %v6235 = vmul.f32 %v6227, %v4862
      %v6236 = vmul.f32 %v6228, %v4862
      %v6237 = vmul.f32 %v6229, %v4862
      %v6238 = vmul.f32 %v6230, %v4862
      %v6239 = vmul.f32 %v6231, %v4862
      %v6240 = vmul.f32 %v6232, %v4862
      %v6241 = vmul.f32 %v6233, %v4862
      %v6242 = vmul.f32 %v6234, %v4862
      %v6243 = vadd.f32 %v6219, %v6235
      %v6244 = vadd.f32 %v6220, %v6236
      %v6245 = vadd.f32 %v6221, %v6237
      %v6246 = vadd.f32 %v6222, %v6238
      %v6247 = vadd.f32 %v6223, %v6239
      %v6248 = vadd.f32 %v6224, %v6240
      %v6249 = vadd.f32 %v6225, %v6241
      %v6250 = vadd.f32 %v6226, %v6242
      %s6251 = scalar_lea.vmem %s541, 48
      %v6252 = vld [vmem:[%s6251 + $0x1] sm:$0xff]
      %v6253 = vld [vmem:[%s6251 + $0x11] sm:$0xff]
      %v6254 = vld [vmem:[%s6251 + $0x21] sm:$0xff]
      %v6255 = vld [vmem:[%s6251 + $0x31] sm:$0xff]
      %v6256 = vld [vmem:[%s6251 + $0x41] sm:$0xff]
      %v6257 = vld [vmem:[%s6251 + $0x51] sm:$0xff]
      %v6258 = vld [vmem:[%s6251 + $0x61] sm:$0xff]
      %v6259 = vld [vmem:[%s6251 + $0x71] sm:$0xff]
      %v6260 = vmul.f32 %v6252, %v4891
      %v6261 = vmul.f32 %v6253, %v4891
      %v6262 = vmul.f32 %v6254, %v4891
      %v6263 = vmul.f32 %v6255, %v4891
      %v6264 = vmul.f32 %v6256, %v4891
      %v6265 = vmul.f32 %v6257, %v4891
      %v6266 = vmul.f32 %v6258, %v4891
      %v6267 = vmul.f32 %v6259, %v4891
      %v6268 = vadd.f32 %v6243, %v6260
      %v6269 = vadd.f32 %v6244, %v6261
      %v6270 = vadd.f32 %v6245, %v6262
      %v6271 = vadd.f32 %v6246, %v6263
      %v6272 = vadd.f32 %v6247, %v6264
      %v6273 = vadd.f32 %v6248, %v6265
      %v6274 = vadd.f32 %v6249, %v6266
      %v6275 = vadd.f32 %v6250, %v6267
      %s6276 = scalar_lea.vmem %s549, 48
      %v6277 = vld [vmem:[%s6276 + $0x1] sm:$0xff]
      %v6278 = vld [vmem:[%s6276 + $0x11] sm:$0xff]
      %v6279 = vld [vmem:[%s6276 + $0x21] sm:$0xff]
      %v6280 = vld [vmem:[%s6276 + $0x31] sm:$0xff]
      %v6281 = vld [vmem:[%s6276 + $0x41] sm:$0xff]
      %v6282 = vld [vmem:[%s6276 + $0x51] sm:$0xff]
      %v6283 = vld [vmem:[%s6276 + $0x61] sm:$0xff]
      %v6284 = vld [vmem:[%s6276 + $0x71] sm:$0xff]
      %v6285 = vmul.f32 %v6277, %v4920
      %v6286 = vmul.f32 %v6278, %v4920
      %v6287 = vmul.f32 %v6279, %v4920
      %v6288 = vmul.f32 %v6280, %v4920
      %v6289 = vmul.f32 %v6281, %v4920
      %v6290 = vmul.f32 %v6282, %v4920
      %v6291 = vmul.f32 %v6283, %v4920
      %v6292 = vmul.f32 %v6284, %v4920
      %v6293 = vadd.f32 %v6268, %v6285
      %v6294 = vadd.f32 %v6269, %v6286
      %v6295 = vadd.f32 %v6270, %v6287
      %v6296 = vadd.f32 %v6271, %v6288
      %v6297 = vadd.f32 %v6272, %v6289
      %v6298 = vadd.f32 %v6273, %v6290
      %v6299 = vadd.f32 %v6274, %v6291
      %v6300 = vadd.f32 %v6275, %v6292
      %v6301 = vld [vmem:[%s6251 + $0x2] sm:$0xff]
      %v6302 = vld [vmem:[%s6251 + $0x12] sm:$0xff]
      %v6303 = vld [vmem:[%s6251 + $0x22] sm:$0xff]
      %v6304 = vld [vmem:[%s6251 + $0x32] sm:$0xff]
      %v6305 = vld [vmem:[%s6251 + $0x42] sm:$0xff]
      %v6306 = vld [vmem:[%s6251 + $0x52] sm:$0xff]
      %v6307 = vld [vmem:[%s6251 + $0x62] sm:$0xff]
      %v6308 = vld [vmem:[%s6251 + $0x72] sm:$0xff]
      %v6309 = vmul.f32 %v6301, %v4948
      %v6310 = vmul.f32 %v6302, %v4948
      %v6311 = vmul.f32 %v6303, %v4948
      %v6312 = vmul.f32 %v6304, %v4948
      %v6313 = vmul.f32 %v6305, %v4948
      %v6314 = vmul.f32 %v6306, %v4948
      %v6315 = vmul.f32 %v6307, %v4948
      %v6316 = vmul.f32 %v6308, %v4948
      %v6317 = vadd.f32 %v6293, %v6309
      %v6318 = vadd.f32 %v6294, %v6310
      %v6319 = vadd.f32 %v6295, %v6311
      %v6320 = vadd.f32 %v6296, %v6312
      %v6321 = vadd.f32 %v6297, %v6313
      %v6322 = vadd.f32 %v6298, %v6314
      %v6323 = vadd.f32 %v6299, %v6315
      %v6324 = vadd.f32 %v6300, %v6316
      %v6325 = vld [vmem:[%s6276 + $0x2] sm:$0xff]
      %v6326 = vld [vmem:[%s6276 + $0x12] sm:$0xff]
      %v6327 = vld [vmem:[%s6276 + $0x22] sm:$0xff]
      %v6328 = vld [vmem:[%s6276 + $0x32] sm:$0xff]
      %v6329 = vld [vmem:[%s6276 + $0x42] sm:$0xff]
      %v6330 = vld [vmem:[%s6276 + $0x52] sm:$0xff]
      %v6331 = vld [vmem:[%s6276 + $0x62] sm:$0xff]
      %v6332 = vld [vmem:[%s6276 + $0x72] sm:$0xff]
      %v6333 = vmul.f32 %v6325, %v4976
      %v6334 = vmul.f32 %v6326, %v4976
      %v6335 = vmul.f32 %v6327, %v4976
      %v6336 = vmul.f32 %v6328, %v4976
      %v6337 = vmul.f32 %v6329, %v4976
      %v6338 = vmul.f32 %v6330, %v4976
      %v6339 = vmul.f32 %v6331, %v4976
      %v6340 = vmul.f32 %v6332, %v4976
      %v6341 = vadd.f32 %v6317, %v6333
      %v6342 = vadd.f32 %v6318, %v6334
      %v6343 = vadd.f32 %v6319, %v6335
      %v6344 = vadd.f32 %v6320, %v6336
      %v6345 = vadd.f32 %v6321, %v6337
      %v6346 = vadd.f32 %v6322, %v6338
      %v6347 = vadd.f32 %v6323, %v6339
      %v6348 = vadd.f32 %v6324, %v6340
      %v6349 = vld [vmem:[%s6251 + $0x3] sm:$0xff]
      %v6350 = vld [vmem:[%s6251 + $0x13] sm:$0xff]
      %v6351 = vld [vmem:[%s6251 + $0x23] sm:$0xff]
      %v6352 = vld [vmem:[%s6251 + $0x33] sm:$0xff]
      %v6353 = vld [vmem:[%s6251 + $0x43] sm:$0xff]
      %v6354 = vld [vmem:[%s6251 + $0x53] sm:$0xff]
      %v6355 = vld [vmem:[%s6251 + $0x63] sm:$0xff]
      %v6356 = vld [vmem:[%s6251 + $0x73] sm:$0xff]
      %v6357 = vmul.f32 %v6349, %v5004
      %v6358 = vmul.f32 %v6350, %v5004
      %v6359 = vmul.f32 %v6351, %v5004
      %v6360 = vmul.f32 %v6352, %v5004
      %v6361 = vmul.f32 %v6353, %v5004
      %v6362 = vmul.f32 %v6354, %v5004
      %v6363 = vmul.f32 %v6355, %v5004
      %v6364 = vmul.f32 %v6356, %v5004
      %v6365 = vadd.f32 %v6341, %v6357
      %v6366 = vadd.f32 %v6342, %v6358
      %v6367 = vadd.f32 %v6343, %v6359
      %v6368 = vadd.f32 %v6344, %v6360
      %v6369 = vadd.f32 %v6345, %v6361
      %v6370 = vadd.f32 %v6346, %v6362
      %v6371 = vadd.f32 %v6347, %v6363
      %v6372 = vadd.f32 %v6348, %v6364
      %v6373 = vadd.f32 %v6365, %v5025
      %v6374 = vadd.f32 %v6366, %v5025
      %v6375 = vadd.f32 %v6367, %v5025
      %v6376 = vadd.f32 %v6368, %v5025
      %v6377 = vadd.f32 %v6369, %v5025
      %v6378 = vadd.f32 %v6370, %v5025
      %v6379 = vadd.f32 %v6371, %v5025
      %v6380 = vadd.f32 %v6372, %v5025
      %v6381 = vld [vmem:[#allocation3] sm:$0xff]
      %v6382 = vld [vmem:[#allocation3 + $0x8] sm:$0xff]
      %v6383 = vld [vmem:[#allocation3 + $0x10] sm:$0xff]
      %v6384 = vld [vmem:[#allocation3 + $0x18] sm:$0xff]
      %v6385 = vld [vmem:[#allocation3 + $0x20] sm:$0xff]
      %v6386 = vld [vmem:[#allocation3 + $0x28] sm:$0xff]
      %v6387 = vld [vmem:[#allocation3 + $0x30] sm:$0xff]
      %v6388 = vld [vmem:[#allocation3 + $0x38] sm:$0xff]
      %v6389 = vadd.f32 %v6373, %v6381
      %v6390 = vadd.f32 %v6374, %v6382
      %v6391 = vadd.f32 %v6375, %v6383
      %v6392 = vadd.f32 %v6376, %v6384
      %v6393 = vadd.f32 %v6377, %v6385
      %v6394 = vadd.f32 %v6378, %v6386
      %v6395 = vadd.f32 %v6379, %v6387
      %v6396 = vadd.f32 %v6380, %v6388
      %v6397 = vld [vmem:[%s2434] sm:$0xff]
      %v6398 = vld [vmem:[%s2434 + $0x8] sm:$0xff]
      %v6399 = vld [vmem:[%s2434 + $0x10] sm:$0xff]
      %v6400 = vld [vmem:[%s2434 + $0x18] sm:$0xff]
      %v6401 = vld [vmem:[%s2434 + $0x20] sm:$0xff]
      %v6402 = vld [vmem:[%s2434 + $0x28] sm:$0xff]
      %v6403 = vld [vmem:[%s2434 + $0x30] sm:$0xff]
      %v6404 = vld [vmem:[%s2434 + $0x38] sm:$0xff]
      %v6405 = vsub.f32 %v6389, %v6397
      %v6406 = vsub.f32 %v6390, %v6398
      %v6407 = vsub.f32 %v6391, %v6399
      %v6408 = vsub.f32 %v6392, %v6400
      %v6409 = vsub.f32 %v6393, %v6401
      %v6410 = vsub.f32 %v6394, %v6402
      %v6411 = vsub.f32 %v6395, %v6403
      %v6412 = vsub.f32 %v6396, %v6404
      %v6413 = vld [vmem:[%s3357] sm:$0xff]
      %v6414 = vld [vmem:[%s3357 + $0x8] sm:$0xff]
      %v6415 = vld [vmem:[%s3357 + $0x10] sm:$0xff]
      %v6416 = vld [vmem:[%s3357 + $0x18] sm:$0xff]
      %v6417 = vld [vmem:[%s3357 + $0x20] sm:$0xff]
      %v6418 = vld [vmem:[%s3357 + $0x28] sm:$0xff]
      %v6419 = vld [vmem:[%s3357 + $0x30] sm:$0xff]
      %v6420 = vld [vmem:[%s3357 + $0x38] sm:$0xff]
      %v6421 = vadd.f32 %v6405, %v6413
      %v6422 = vadd.f32 %v6406, %v6414
      %v6423 = vadd.f32 %v6407, %v6415
      %v6424 = vadd.f32 %v6408, %v6416
      %v6425 = vadd.f32 %v6409, %v6417
      %v6426 = vadd.f32 %v6410, %v6418
      %v6427 = vadd.f32 %v6411, %v6419
      %v6428 = vadd.f32 %v6412, %v6420
      %v6429 = vld [vmem:[%s4280] sm:$0xff]
      %v6430 = vld [vmem:[%s4280 + $0x8] sm:$0xff]
      %v6431 = vld [vmem:[%s4280 + $0x10] sm:$0xff]
      %v6432 = vld [vmem:[%s4280 + $0x18] sm:$0xff]
      %v6433 = vld [vmem:[%s4280 + $0x20] sm:$0xff]
      %v6434 = vld [vmem:[%s4280 + $0x28] sm:$0xff]
      %v6435 = vld [vmem:[%s4280 + $0x30] sm:$0xff]
      %v6436 = vld [vmem:[%s4280 + $0x38] sm:$0xff]
      %v6437 = vsub.f32 %v6421, %v6429
      %v6438 = vsub.f32 %v6422, %v6430
      %v6439 = vsub.f32 %v6423, %v6431
      %v6440 = vsub.f32 %v6424, %v6432
      %v6441 = vsub.f32 %v6425, %v6433
      %v6442 = vsub.f32 %v6426, %v6434
      %v6443 = vsub.f32 %v6427, %v6435
      %v6444 = vsub.f32 %v6428, %v6436
      %6445 = vst.msk [vmem:[%s584] sm:$0xff] %vm761, %v6437
      %6446 = vst.msk [vmem:[%s584 + $0x8] sm:$0xff] %vm761, %v6438
      %6447 = vst.msk [vmem:[%s584 + $0x10] sm:$0xff] %vm761, %v6439
      %6448 = vst.msk [vmem:[%s584 + $0x18] sm:$0xff] %vm761, %v6440
      %6449 = vst.msk [vmem:[%s584 + $0x20] sm:$0xff] %vm761, %v6441
      %6450 = vst.msk [vmem:[%s584 + $0x28] sm:$0xff] %vm761, %v6442
      %6451 = vst.msk [vmem:[%s584 + $0x30] sm:$0xff] %vm761, %v6443
      %6452 = vst.msk [vmem:[%s584 + $0x38] sm:$0xff] %vm761, %v6444
      %v6453 = vld [vmem:[%s4482 + $0x1] sm:$0xff]
      %v6454 = vld [vmem:[%s4482 + $0x11] sm:$0xff]
      %v6455 = vld [vmem:[%s4482 + $0x21] sm:$0xff]
      %v6456 = vld [vmem:[%s4482 + $0x31] sm:$0xff]
      %v6457 = vld [vmem:[%s4482 + $0x41] sm:$0xff]
      %v6458 = vld [vmem:[%s4482 + $0x51] sm:$0xff]
      %v6459 = vld [vmem:[%s4482 + $0x61] sm:$0xff]
      %v6460 = vld [vmem:[%s4482 + $0x71] sm:$0xff]
      %v6461 = vmul.f32 %v6453, %v4331
      %v6462 = vmul.f32 %v6454, %v4331
      %v6463 = vmul.f32 %v6455, %v4331
      %v6464 = vmul.f32 %v6456, %v4331
      %v6465 = vmul.f32 %v6457, %v4331
      %v6466 = vmul.f32 %v6458, %v4331
      %v6467 = vmul.f32 %v6459, %v4331
      %v6468 = vmul.f32 %v6460, %v4331
      %v6469 = vld [vmem:[%s4453 + $0x2] sm:$0xff]
      %v6470 = vld [vmem:[%s4453 + $0x12] sm:$0xff]
      %v6471 = vld [vmem:[%s4453 + $0x22] sm:$0xff]
      %v6472 = vld [vmem:[%s4453 + $0x32] sm:$0xff]
      %v6473 = vld [vmem:[%s4453 + $0x42] sm:$0xff]
      %v6474 = vld [vmem:[%s4453 + $0x52] sm:$0xff]
      %v6475 = vld [vmem:[%s4453 + $0x62] sm:$0xff]
      %v6476 = vld [vmem:[%s4453 + $0x72] sm:$0xff]
      %v6477 = vmul.f32 %v6469, %v4352
      %v6478 = vmul.f32 %v6470, %v4352
      %v6479 = vmul.f32 %v6471, %v4352
      %v6480 = vmul.f32 %v6472, %v4352
      %v6481 = vmul.f32 %v6473, %v4352
      %v6482 = vmul.f32 %v6474, %v4352
      %v6483 = vmul.f32 %v6475, %v4352
      %v6484 = vmul.f32 %v6476, %v4352
      %v6485 = vadd.f32 %v6461, %v6477
      %v6486 = vadd.f32 %v6462, %v6478
      %v6487 = vadd.f32 %v6463, %v6479
      %v6488 = vadd.f32 %v6464, %v6480
      %v6489 = vadd.f32 %v6465, %v6481
      %v6490 = vadd.f32 %v6466, %v6482
      %v6491 = vadd.f32 %v6467, %v6483
      %v6492 = vadd.f32 %v6468, %v6484
      %v6493 = vld [vmem:[%s4482 + $0x2] sm:$0xff]
      %v6494 = vld [vmem:[%s4482 + $0x12] sm:$0xff]
      %v6495 = vld [vmem:[%s4482 + $0x22] sm:$0xff]
      %v6496 = vld [vmem:[%s4482 + $0x32] sm:$0xff]
      %v6497 = vld [vmem:[%s4482 + $0x42] sm:$0xff]
      %v6498 = vld [vmem:[%s4482 + $0x52] sm:$0xff]
      %v6499 = vld [vmem:[%s4482 + $0x62] sm:$0xff]
      %v6500 = vld [vmem:[%s4482 + $0x72] sm:$0xff]
      %v6501 = vmul.f32 %v6493, %v4380
      %v6502 = vmul.f32 %v6494, %v4380
      %v6503 = vmul.f32 %v6495, %v4380
      %v6504 = vmul.f32 %v6496, %v4380
      %v6505 = vmul.f32 %v6497, %v4380
      %v6506 = vmul.f32 %v6498, %v4380
      %v6507 = vmul.f32 %v6499, %v4380
      %v6508 = vmul.f32 %v6500, %v4380
      %v6509 = vadd.f32 %v6485, %v6501
      %v6510 = vadd.f32 %v6486, %v6502
      %v6511 = vadd.f32 %v6487, %v6503
      %v6512 = vadd.f32 %v6488, %v6504
      %v6513 = vadd.f32 %v6489, %v6505
      %v6514 = vadd.f32 %v6490, %v6506
      %v6515 = vadd.f32 %v6491, %v6507
      %v6516 = vadd.f32 %v6492, %v6508
      %v6517 = vld [vmem:[%s4453 + $0x3] sm:$0xff]
      %v6518 = vld [vmem:[%s4453 + $0x13] sm:$0xff]
      %v6519 = vld [vmem:[%s4453 + $0x23] sm:$0xff]
      %v6520 = vld [vmem:[%s4453 + $0x33] sm:$0xff]
      %v6521 = vld [vmem:[%s4453 + $0x43] sm:$0xff]
      %v6522 = vld [vmem:[%s4453 + $0x53] sm:$0xff]
      %v6523 = vld [vmem:[%s4453 + $0x63] sm:$0xff]
      %v6524 = vld [vmem:[%s4453 + $0x73] sm:$0xff]
      %v6525 = vmul.f32 %v6517, %v4408
      %v6526 = vmul.f32 %v6518, %v4408
      %v6527 = vmul.f32 %v6519, %v4408
      %v6528 = vmul.f32 %v6520, %v4408
      %v6529 = vmul.f32 %v6521, %v4408
      %v6530 = vmul.f32 %v6522, %v4408
      %v6531 = vmul.f32 %v6523, %v4408
      %v6532 = vmul.f32 %v6524, %v4408
      %v6533 = vadd.f32 %v6509, %v6525
      %v6534 = vadd.f32 %v6510, %v6526
      %v6535 = vadd.f32 %v6511, %v6527
      %v6536 = vadd.f32 %v6512, %v6528
      %v6537 = vadd.f32 %v6513, %v6529
      %v6538 = vadd.f32 %v6514, %v6530
      %v6539 = vadd.f32 %v6515, %v6531
      %v6540 = vadd.f32 %v6516, %v6532
      %v6541 = vld [vmem:[%s4482 + $0x3] sm:$0xff]
      %v6542 = vld [vmem:[%s4482 + $0x13] sm:$0xff]
      %v6543 = vld [vmem:[%s4482 + $0x23] sm:$0xff]
      %v6544 = vld [vmem:[%s4482 + $0x33] sm:$0xff]
      %v6545 = vld [vmem:[%s4482 + $0x43] sm:$0xff]
      %v6546 = vld [vmem:[%s4482 + $0x53] sm:$0xff]
      %v6547 = vld [vmem:[%s4482 + $0x63] sm:$0xff]
      %v6548 = vld [vmem:[%s4482 + $0x73] sm:$0xff]
      %v6549 = vmul.f32 %v6541, %v4436
      %v6550 = vmul.f32 %v6542, %v4436
      %v6551 = vmul.f32 %v6543, %v4436
      %v6552 = vmul.f32 %v6544, %v4436
      %v6553 = vmul.f32 %v6545, %v4436
      %v6554 = vmul.f32 %v6546, %v4436
      %v6555 = vmul.f32 %v6547, %v4436
      %v6556 = vmul.f32 %v6548, %v4436
      %v6557 = vadd.f32 %v6533, %v6549
      %v6558 = vadd.f32 %v6534, %v6550
      %v6559 = vadd.f32 %v6535, %v6551
      %v6560 = vadd.f32 %v6536, %v6552
      %v6561 = vadd.f32 %v6537, %v6553
      %v6562 = vadd.f32 %v6538, %v6554
      %v6563 = vadd.f32 %v6539, %v6555
      %v6564 = vadd.f32 %v6540, %v6556
      %v6565 = vld [vmem:[%s4624 + $0x1] sm:$0xff]
      %v6566 = vld [vmem:[%s4624 + $0x11] sm:$0xff]
      %v6567 = vld [vmem:[%s4624 + $0x21] sm:$0xff]
      %v6568 = vld [vmem:[%s4624 + $0x31] sm:$0xff]
      %v6569 = vld [vmem:[%s4624 + $0x41] sm:$0xff]
      %v6570 = vld [vmem:[%s4624 + $0x51] sm:$0xff]
      %v6571 = vld [vmem:[%s4624 + $0x61] sm:$0xff]
      %v6572 = vld [vmem:[%s4624 + $0x71] sm:$0xff]
      %v6573 = vmul.f32 %v6565, %v4465
      %v6574 = vmul.f32 %v6566, %v4465
      %v6575 = vmul.f32 %v6567, %v4465
      %v6576 = vmul.f32 %v6568, %v4465
      %v6577 = vmul.f32 %v6569, %v4465
      %v6578 = vmul.f32 %v6570, %v4465
      %v6579 = vmul.f32 %v6571, %v4465
      %v6580 = vmul.f32 %v6572, %v4465
      %v6581 = vadd.f32 %v6557, %v6573
      %v6582 = vadd.f32 %v6558, %v6574
      %v6583 = vadd.f32 %v6559, %v6575
      %v6584 = vadd.f32 %v6560, %v6576
      %v6585 = vadd.f32 %v6561, %v6577
      %v6586 = vadd.f32 %v6562, %v6578
      %v6587 = vadd.f32 %v6563, %v6579
      %v6588 = vadd.f32 %v6564, %v6580
      %v6589 = vld [vmem:[%s4595 + $0x2] sm:$0xff]
      %v6590 = vld [vmem:[%s4595 + $0x12] sm:$0xff]
      %v6591 = vld [vmem:[%s4595 + $0x22] sm:$0xff]
      %v6592 = vld [vmem:[%s4595 + $0x32] sm:$0xff]
      %v6593 = vld [vmem:[%s4595 + $0x42] sm:$0xff]
      %v6594 = vld [vmem:[%s4595 + $0x52] sm:$0xff]
      %v6595 = vld [vmem:[%s4595 + $0x62] sm:$0xff]
      %v6596 = vld [vmem:[%s4595 + $0x72] sm:$0xff]
      %v6597 = vmul.f32 %v6589, %v4494
      %v6598 = vmul.f32 %v6590, %v4494
      %v6599 = vmul.f32 %v6591, %v4494
      %v6600 = vmul.f32 %v6592, %v4494
      %v6601 = vmul.f32 %v6593, %v4494
      %v6602 = vmul.f32 %v6594, %v4494
      %v6603 = vmul.f32 %v6595, %v4494
      %v6604 = vmul.f32 %v6596, %v4494
      %v6605 = vadd.f32 %v6581, %v6597
      %v6606 = vadd.f32 %v6582, %v6598
      %v6607 = vadd.f32 %v6583, %v6599
      %v6608 = vadd.f32 %v6584, %v6600
      %v6609 = vadd.f32 %v6585, %v6601
      %v6610 = vadd.f32 %v6586, %v6602
      %v6611 = vadd.f32 %v6587, %v6603
      %v6612 = vadd.f32 %v6588, %v6604
      %v6613 = vld [vmem:[%s4624 + $0x2] sm:$0xff]
      %v6614 = vld [vmem:[%s4624 + $0x12] sm:$0xff]
      %v6615 = vld [vmem:[%s4624 + $0x22] sm:$0xff]
      %v6616 = vld [vmem:[%s4624 + $0x32] sm:$0xff]
      %v6617 = vld [vmem:[%s4624 + $0x42] sm:$0xff]
      %v6618 = vld [vmem:[%s4624 + $0x52] sm:$0xff]
      %v6619 = vld [vmem:[%s4624 + $0x62] sm:$0xff]
      %v6620 = vld [vmem:[%s4624 + $0x72] sm:$0xff]
      %v6621 = vmul.f32 %v6613, %v4522
      %v6622 = vmul.f32 %v6614, %v4522
      %v6623 = vmul.f32 %v6615, %v4522
      %v6624 = vmul.f32 %v6616, %v4522
      %v6625 = vmul.f32 %v6617, %v4522
      %v6626 = vmul.f32 %v6618, %v4522
      %v6627 = vmul.f32 %v6619, %v4522
      %v6628 = vmul.f32 %v6620, %v4522
      %v6629 = vadd.f32 %v6605, %v6621
      %v6630 = vadd.f32 %v6606, %v6622
      %v6631 = vadd.f32 %v6607, %v6623
      %v6632 = vadd.f32 %v6608, %v6624
      %v6633 = vadd.f32 %v6609, %v6625
      %v6634 = vadd.f32 %v6610, %v6626
      %v6635 = vadd.f32 %v6611, %v6627
      %v6636 = vadd.f32 %v6612, %v6628
      %v6637 = vld [vmem:[%s4595 + $0x3] sm:$0xff]
      %v6638 = vld [vmem:[%s4595 + $0x13] sm:$0xff]
      %v6639 = vld [vmem:[%s4595 + $0x23] sm:$0xff]
      %v6640 = vld [vmem:[%s4595 + $0x33] sm:$0xff]
      %v6641 = vld [vmem:[%s4595 + $0x43] sm:$0xff]
      %v6642 = vld [vmem:[%s4595 + $0x53] sm:$0xff]
      %v6643 = vld [vmem:[%s4595 + $0x63] sm:$0xff]
      %v6644 = vld [vmem:[%s4595 + $0x73] sm:$0xff]
      %v6645 = vmul.f32 %v6637, %v4550
      %v6646 = vmul.f32 %v6638, %v4550
      %v6647 = vmul.f32 %v6639, %v4550
      %v6648 = vmul.f32 %v6640, %v4550
      %v6649 = vmul.f32 %v6641, %v4550
      %v6650 = vmul.f32 %v6642, %v4550
      %v6651 = vmul.f32 %v6643, %v4550
      %v6652 = vmul.f32 %v6644, %v4550
      %v6653 = vadd.f32 %v6629, %v6645
      %v6654 = vadd.f32 %v6630, %v6646
      %v6655 = vadd.f32 %v6631, %v6647
      %v6656 = vadd.f32 %v6632, %v6648
      %v6657 = vadd.f32 %v6633, %v6649
      %v6658 = vadd.f32 %v6634, %v6650
      %v6659 = vadd.f32 %v6635, %v6651
      %v6660 = vadd.f32 %v6636, %v6652
      %v6661 = vld [vmem:[%s4624 + $0x3] sm:$0xff]
      %v6662 = vld [vmem:[%s4624 + $0x13] sm:$0xff]
      %v6663 = vld [vmem:[%s4624 + $0x23] sm:$0xff]
      %v6664 = vld [vmem:[%s4624 + $0x33] sm:$0xff]
      %v6665 = vld [vmem:[%s4624 + $0x43] sm:$0xff]
      %v6666 = vld [vmem:[%s4624 + $0x53] sm:$0xff]
      %v6667 = vld [vmem:[%s4624 + $0x63] sm:$0xff]
      %v6668 = vld [vmem:[%s4624 + $0x73] sm:$0xff]
      %v6669 = vmul.f32 %v6661, %v4578
      %v6670 = vmul.f32 %v6662, %v4578
      %v6671 = vmul.f32 %v6663, %v4578
      %v6672 = vmul.f32 %v6664, %v4578
      %v6673 = vmul.f32 %v6665, %v4578
      %v6674 = vmul.f32 %v6666, %v4578
      %v6675 = vmul.f32 %v6667, %v4578
      %v6676 = vmul.f32 %v6668, %v4578
      %v6677 = vadd.f32 %v6653, %v6669
      %v6678 = vadd.f32 %v6654, %v6670
      %v6679 = vadd.f32 %v6655, %v6671
      %v6680 = vadd.f32 %v6656, %v6672
      %v6681 = vadd.f32 %v6657, %v6673
      %v6682 = vadd.f32 %v6658, %v6674
      %v6683 = vadd.f32 %v6659, %v6675
      %v6684 = vadd.f32 %v6660, %v6676
      %v6685 = vld [vmem:[%s4766 + $0x1] sm:$0xff]
      %v6686 = vld [vmem:[%s4766 + $0x11] sm:$0xff]
      %v6687 = vld [vmem:[%s4766 + $0x21] sm:$0xff]
      %v6688 = vld [vmem:[%s4766 + $0x31] sm:$0xff]
      %v6689 = vld [vmem:[%s4766 + $0x41] sm:$0xff]
      %v6690 = vld [vmem:[%s4766 + $0x51] sm:$0xff]
      %v6691 = vld [vmem:[%s4766 + $0x61] sm:$0xff]
      %v6692 = vld [vmem:[%s4766 + $0x71] sm:$0xff]
      %v6693 = vmul.f32 %v6685, %v4607
      %v6694 = vmul.f32 %v6686, %v4607
      %v6695 = vmul.f32 %v6687, %v4607
      %v6696 = vmul.f32 %v6688, %v4607
      %v6697 = vmul.f32 %v6689, %v4607
      %v6698 = vmul.f32 %v6690, %v4607
      %v6699 = vmul.f32 %v6691, %v4607
      %v6700 = vmul.f32 %v6692, %v4607
      %v6701 = vadd.f32 %v6677, %v6693
      %v6702 = vadd.f32 %v6678, %v6694
      %v6703 = vadd.f32 %v6679, %v6695
      %v6704 = vadd.f32 %v6680, %v6696
      %v6705 = vadd.f32 %v6681, %v6697
      %v6706 = vadd.f32 %v6682, %v6698
      %v6707 = vadd.f32 %v6683, %v6699
      %v6708 = vadd.f32 %v6684, %v6700
      %v6709 = vld [vmem:[%s4737 + $0x2] sm:$0xff]
      %v6710 = vld [vmem:[%s4737 + $0x12] sm:$0xff]
      %v6711 = vld [vmem:[%s4737 + $0x22] sm:$0xff]
      %v6712 = vld [vmem:[%s4737 + $0x32] sm:$0xff]
      %v6713 = vld [vmem:[%s4737 + $0x42] sm:$0xff]
      %v6714 = vld [vmem:[%s4737 + $0x52] sm:$0xff]
      %v6715 = vld [vmem:[%s4737 + $0x62] sm:$0xff]
      %v6716 = vld [vmem:[%s4737 + $0x72] sm:$0xff]
      %v6717 = vmul.f32 %v6709, %v4636
      %v6718 = vmul.f32 %v6710, %v4636
      %v6719 = vmul.f32 %v6711, %v4636
      %v6720 = vmul.f32 %v6712, %v4636
      %v6721 = vmul.f32 %v6713, %v4636
      %v6722 = vmul.f32 %v6714, %v4636
      %v6723 = vmul.f32 %v6715, %v4636
      %v6724 = vmul.f32 %v6716, %v4636
      %v6725 = vadd.f32 %v6701, %v6717
      %v6726 = vadd.f32 %v6702, %v6718
      %v6727 = vadd.f32 %v6703, %v6719
      %v6728 = vadd.f32 %v6704, %v6720
      %v6729 = vadd.f32 %v6705, %v6721
      %v6730 = vadd.f32 %v6706, %v6722
      %v6731 = vadd.f32 %v6707, %v6723
      %v6732 = vadd.f32 %v6708, %v6724
      %v6733 = vld [vmem:[%s4766 + $0x2] sm:$0xff]
      %v6734 = vld [vmem:[%s4766 + $0x12] sm:$0xff]
      %v6735 = vld [vmem:[%s4766 + $0x22] sm:$0xff]
      %v6736 = vld [vmem:[%s4766 + $0x32] sm:$0xff]
      %v6737 = vld [vmem:[%s4766 + $0x42] sm:$0xff]
      %v6738 = vld [vmem:[%s4766 + $0x52] sm:$0xff]
      %v6739 = vld [vmem:[%s4766 + $0x62] sm:$0xff]
      %v6740 = vld [vmem:[%s4766 + $0x72] sm:$0xff]
      %v6741 = vmul.f32 %v6733, %v4664
      %v6742 = vmul.f32 %v6734, %v4664
      %v6743 = vmul.f32 %v6735, %v4664
      %v6744 = vmul.f32 %v6736, %v4664
      %v6745 = vmul.f32 %v6737, %v4664
      %v6746 = vmul.f32 %v6738, %v4664
      %v6747 = vmul.f32 %v6739, %v4664
      %v6748 = vmul.f32 %v6740, %v4664
      %v6749 = vadd.f32 %v6725, %v6741
      %v6750 = vadd.f32 %v6726, %v6742
      %v6751 = vadd.f32 %v6727, %v6743
      %v6752 = vadd.f32 %v6728, %v6744
      %v6753 = vadd.f32 %v6729, %v6745
      %v6754 = vadd.f32 %v6730, %v6746
      %v6755 = vadd.f32 %v6731, %v6747
      %v6756 = vadd.f32 %v6732, %v6748
      %v6757 = vld [vmem:[%s4737 + $0x3] sm:$0xff]
      %v6758 = vld [vmem:[%s4737 + $0x13] sm:$0xff]
      %v6759 = vld [vmem:[%s4737 + $0x23] sm:$0xff]
      %v6760 = vld [vmem:[%s4737 + $0x33] sm:$0xff]
      %v6761 = vld [vmem:[%s4737 + $0x43] sm:$0xff]
      %v6762 = vld [vmem:[%s4737 + $0x53] sm:$0xff]
      %v6763 = vld [vmem:[%s4737 + $0x63] sm:$0xff]
      %v6764 = vld [vmem:[%s4737 + $0x73] sm:$0xff]
      %v6765 = vmul.f32 %v6757, %v4692
      %v6766 = vmul.f32 %v6758, %v4692
      %v6767 = vmul.f32 %v6759, %v4692
      %v6768 = vmul.f32 %v6760, %v4692
      %v6769 = vmul.f32 %v6761, %v4692
      %v6770 = vmul.f32 %v6762, %v4692
      %v6771 = vmul.f32 %v6763, %v4692
      %v6772 = vmul.f32 %v6764, %v4692
      %v6773 = vadd.f32 %v6749, %v6765
      %v6774 = vadd.f32 %v6750, %v6766
      %v6775 = vadd.f32 %v6751, %v6767
      %v6776 = vadd.f32 %v6752, %v6768
      %v6777 = vadd.f32 %v6753, %v6769
      %v6778 = vadd.f32 %v6754, %v6770
      %v6779 = vadd.f32 %v6755, %v6771
      %v6780 = vadd.f32 %v6756, %v6772
      %v6781 = vld [vmem:[%s4766 + $0x3] sm:$0xff]
      %v6782 = vld [vmem:[%s4766 + $0x13] sm:$0xff]
      %v6783 = vld [vmem:[%s4766 + $0x23] sm:$0xff]
      %v6784 = vld [vmem:[%s4766 + $0x33] sm:$0xff]
      %v6785 = vld [vmem:[%s4766 + $0x43] sm:$0xff]
      %v6786 = vld [vmem:[%s4766 + $0x53] sm:$0xff]
      %v6787 = vld [vmem:[%s4766 + $0x63] sm:$0xff]
      %v6788 = vld [vmem:[%s4766 + $0x73] sm:$0xff]
      %v6789 = vmul.f32 %v6781, %v4720
      %v6790 = vmul.f32 %v6782, %v4720
      %v6791 = vmul.f32 %v6783, %v4720
      %v6792 = vmul.f32 %v6784, %v4720
      %v6793 = vmul.f32 %v6785, %v4720
      %v6794 = vmul.f32 %v6786, %v4720
      %v6795 = vmul.f32 %v6787, %v4720
      %v6796 = vmul.f32 %v6788, %v4720
      %v6797 = vadd.f32 %v6773, %v6789
      %v6798 = vadd.f32 %v6774, %v6790
      %v6799 = vadd.f32 %v6775, %v6791
      %v6800 = vadd.f32 %v6776, %v6792
      %v6801 = vadd.f32 %v6777, %v6793
      %v6802 = vadd.f32 %v6778, %v6794
      %v6803 = vadd.f32 %v6779, %v6795
      %v6804 = vadd.f32 %v6780, %v6796
      %v6805 = vld [vmem:[%s4908 + $0x1] sm:$0xff]
      %v6806 = vld [vmem:[%s4908 + $0x11] sm:$0xff]
      %v6807 = vld [vmem:[%s4908 + $0x21] sm:$0xff]
      %v6808 = vld [vmem:[%s4908 + $0x31] sm:$0xff]
      %v6809 = vld [vmem:[%s4908 + $0x41] sm:$0xff]
      %v6810 = vld [vmem:[%s4908 + $0x51] sm:$0xff]
      %v6811 = vld [vmem:[%s4908 + $0x61] sm:$0xff]
      %v6812 = vld [vmem:[%s4908 + $0x71] sm:$0xff]
      %v6813 = vmul.f32 %v6805, %v4749
      %v6814 = vmul.f32 %v6806, %v4749
      %v6815 = vmul.f32 %v6807, %v4749
      %v6816 = vmul.f32 %v6808, %v4749
      %v6817 = vmul.f32 %v6809, %v4749
      %v6818 = vmul.f32 %v6810, %v4749
      %v6819 = vmul.f32 %v6811, %v4749
      %v6820 = vmul.f32 %v6812, %v4749
      %v6821 = vadd.f32 %v6797, %v6813
      %v6822 = vadd.f32 %v6798, %v6814
      %v6823 = vadd.f32 %v6799, %v6815
      %v6824 = vadd.f32 %v6800, %v6816
      %v6825 = vadd.f32 %v6801, %v6817
      %v6826 = vadd.f32 %v6802, %v6818
      %v6827 = vadd.f32 %v6803, %v6819
      %v6828 = vadd.f32 %v6804, %v6820
      %v6829 = vld [vmem:[%s4879 + $0x2] sm:$0xff]
      %v6830 = vld [vmem:[%s4879 + $0x12] sm:$0xff]
      %v6831 = vld [vmem:[%s4879 + $0x22] sm:$0xff]
      %v6832 = vld [vmem:[%s4879 + $0x32] sm:$0xff]
      %v6833 = vld [vmem:[%s4879 + $0x42] sm:$0xff]
      %v6834 = vld [vmem:[%s4879 + $0x52] sm:$0xff]
      %v6835 = vld [vmem:[%s4879 + $0x62] sm:$0xff]
      %v6836 = vld [vmem:[%s4879 + $0x72] sm:$0xff]
      %v6837 = vmul.f32 %v6829, %v4778
      %v6838 = vmul.f32 %v6830, %v4778
      %v6839 = vmul.f32 %v6831, %v4778
      %v6840 = vmul.f32 %v6832, %v4778
      %v6841 = vmul.f32 %v6833, %v4778
      %v6842 = vmul.f32 %v6834, %v4778
      %v6843 = vmul.f32 %v6835, %v4778
      %v6844 = vmul.f32 %v6836, %v4778
      %v6845 = vadd.f32 %v6821, %v6837
      %v6846 = vadd.f32 %v6822, %v6838
      %v6847 = vadd.f32 %v6823, %v6839
      %v6848 = vadd.f32 %v6824, %v6840
      %v6849 = vadd.f32 %v6825, %v6841
      %v6850 = vadd.f32 %v6826, %v6842
      %v6851 = vadd.f32 %v6827, %v6843
      %v6852 = vadd.f32 %v6828, %v6844
      %v6853 = vld [vmem:[%s4908 + $0x2] sm:$0xff]
      %v6854 = vld [vmem:[%s4908 + $0x12] sm:$0xff]
      %v6855 = vld [vmem:[%s4908 + $0x22] sm:$0xff]
      %v6856 = vld [vmem:[%s4908 + $0x32] sm:$0xff]
      %v6857 = vld [vmem:[%s4908 + $0x42] sm:$0xff]
      %v6858 = vld [vmem:[%s4908 + $0x52] sm:$0xff]
      %v6859 = vld [vmem:[%s4908 + $0x62] sm:$0xff]
      %v6860 = vld [vmem:[%s4908 + $0x72] sm:$0xff]
      %v6861 = vmul.f32 %v6853, %v4806
      %v6862 = vmul.f32 %v6854, %v4806
      %v6863 = vmul.f32 %v6855, %v4806
      %v6864 = vmul.f32 %v6856, %v4806
      %v6865 = vmul.f32 %v6857, %v4806
      %v6866 = vmul.f32 %v6858, %v4806
      %v6867 = vmul.f32 %v6859, %v4806
      %v6868 = vmul.f32 %v6860, %v4806
      %v6869 = vadd.f32 %v6845, %v6861
      %v6870 = vadd.f32 %v6846, %v6862
      %v6871 = vadd.f32 %v6847, %v6863
      %v6872 = vadd.f32 %v6848, %v6864
      %v6873 = vadd.f32 %v6849, %v6865
      %v6874 = vadd.f32 %v6850, %v6866
      %v6875 = vadd.f32 %v6851, %v6867
      %v6876 = vadd.f32 %v6852, %v6868
      %v6877 = vld [vmem:[%s4879 + $0x3] sm:$0xff]
      %v6878 = vld [vmem:[%s4879 + $0x13] sm:$0xff]
      %v6879 = vld [vmem:[%s4879 + $0x23] sm:$0xff]
      %v6880 = vld [vmem:[%s4879 + $0x33] sm:$0xff]
      %v6881 = vld [vmem:[%s4879 + $0x43] sm:$0xff]
      %v6882 = vld [vmem:[%s4879 + $0x53] sm:$0xff]
      %v6883 = vld [vmem:[%s4879 + $0x63] sm:$0xff]
      %v6884 = vld [vmem:[%s4879 + $0x73] sm:$0xff]
      %v6885 = vmul.f32 %v6877, %v4834
      %v6886 = vmul.f32 %v6878, %v4834
      %v6887 = vmul.f32 %v6879, %v4834
      %v6888 = vmul.f32 %v6880, %v4834
      %v6889 = vmul.f32 %v6881, %v4834
      %v6890 = vmul.f32 %v6882, %v4834
      %v6891 = vmul.f32 %v6883, %v4834
      %v6892 = vmul.f32 %v6884, %v4834
      %v6893 = vadd.f32 %v6869, %v6885
      %v6894 = vadd.f32 %v6870, %v6886
      %v6895 = vadd.f32 %v6871, %v6887
      %v6896 = vadd.f32 %v6872, %v6888
      %v6897 = vadd.f32 %v6873, %v6889
      %v6898 = vadd.f32 %v6874, %v6890
      %v6899 = vadd.f32 %v6875, %v6891
      %v6900 = vadd.f32 %v6876, %v6892
      %v6901 = vld [vmem:[%s4908 + $0x3] sm:$0xff]
      %v6902 = vld [vmem:[%s4908 + $0x13] sm:$0xff]
      %v6903 = vld [vmem:[%s4908 + $0x23] sm:$0xff]
      %v6904 = vld [vmem:[%s4908 + $0x33] sm:$0xff]
      %v6905 = vld [vmem:[%s4908 + $0x43] sm:$0xff]
      %v6906 = vld [vmem:[%s4908 + $0x53] sm:$0xff]
      %v6907 = vld [vmem:[%s4908 + $0x63] sm:$0xff]
      %v6908 = vld [vmem:[%s4908 + $0x73] sm:$0xff]
      %v6909 = vmul.f32 %v6901, %v4862
      %v6910 = vmul.f32 %v6902, %v4862
      %v6911 = vmul.f32 %v6903, %v4862
      %v6912 = vmul.f32 %v6904, %v4862
      %v6913 = vmul.f32 %v6905, %v4862
      %v6914 = vmul.f32 %v6906, %v4862
      %v6915 = vmul.f32 %v6907, %v4862
      %v6916 = vmul.f32 %v6908, %v4862
      %v6917 = vadd.f32 %v6893, %v6909
      %v6918 = vadd.f32 %v6894, %v6910
      %v6919 = vadd.f32 %v6895, %v6911
      %v6920 = vadd.f32 %v6896, %v6912
      %v6921 = vadd.f32 %v6897, %v6913
      %v6922 = vadd.f32 %v6898, %v6914
      %v6923 = vadd.f32 %v6899, %v6915
      %v6924 = vadd.f32 %v6900, %v6916
      %v6925 = vld [vmem:[%s6276 + $0x1] sm:$0xff]
      %v6926 = vld [vmem:[%s6276 + $0x11] sm:$0xff]
      %v6927 = vld [vmem:[%s6276 + $0x21] sm:$0xff]
      %v6928 = vld [vmem:[%s6276 + $0x31] sm:$0xff]
      %v6929 = vld [vmem:[%s6276 + $0x41] sm:$0xff]
      %v6930 = vld [vmem:[%s6276 + $0x51] sm:$0xff]
      %v6931 = vld [vmem:[%s6276 + $0x61] sm:$0xff]
      %v6932 = vld [vmem:[%s6276 + $0x71] sm:$0xff]
      %v6933 = vmul.f32 %v6925, %v4891
      %v6934 = vmul.f32 %v6926, %v4891
      %v6935 = vmul.f32 %v6927, %v4891
      %v6936 = vmul.f32 %v6928, %v4891
      %v6937 = vmul.f32 %v6929, %v4891
      %v6938 = vmul.f32 %v6930, %v4891
      %v6939 = vmul.f32 %v6931, %v4891
      %v6940 = vmul.f32 %v6932, %v4891
      %v6941 = vadd.f32 %v6917, %v6933
      %v6942 = vadd.f32 %v6918, %v6934
      %v6943 = vadd.f32 %v6919, %v6935
      %v6944 = vadd.f32 %v6920, %v6936
      %v6945 = vadd.f32 %v6921, %v6937
      %v6946 = vadd.f32 %v6922, %v6938
      %v6947 = vadd.f32 %v6923, %v6939
      %v6948 = vadd.f32 %v6924, %v6940
      %v6949 = vld [vmem:[%s6251 + $0x2] sm:$0xff]
      %v6950 = vld [vmem:[%s6251 + $0x12] sm:$0xff]
      %v6951 = vld [vmem:[%s6251 + $0x22] sm:$0xff]
      %v6952 = vld [vmem:[%s6251 + $0x32] sm:$0xff]
      %v6953 = vld [vmem:[%s6251 + $0x42] sm:$0xff]
      %v6954 = vld [vmem:[%s6251 + $0x52] sm:$0xff]
      %v6955 = vld [vmem:[%s6251 + $0x62] sm:$0xff]
      %v6956 = vld [vmem:[%s6251 + $0x72] sm:$0xff]
      %v6957 = vmul.f32 %v6949, %v4920
      %v6958 = vmul.f32 %v6950, %v4920
      %v6959 = vmul.f32 %v6951, %v4920
      %v6960 = vmul.f32 %v6952, %v4920
      %v6961 = vmul.f32 %v6953, %v4920
      %v6962 = vmul.f32 %v6954, %v4920
      %v6963 = vmul.f32 %v6955, %v4920
      %v6964 = vmul.f32 %v6956, %v4920
      %v6965 = vadd.f32 %v6941, %v6957
      %v6966 = vadd.f32 %v6942, %v6958
      %v6967 = vadd.f32 %v6943, %v6959
      %v6968 = vadd.f32 %v6944, %v6960
      %v6969 = vadd.f32 %v6945, %v6961
      %v6970 = vadd.f32 %v6946, %v6962
      %v6971 = vadd.f32 %v6947, %v6963
      %v6972 = vadd.f32 %v6948, %v6964
      %v6973 = vld [vmem:[%s6276 + $0x2] sm:$0xff]
      %v6974 = vld [vmem:[%s6276 + $0x12] sm:$0xff]
      %v6975 = vld [vmem:[%s6276 + $0x22] sm:$0xff]
      %v6976 = vld [vmem:[%s6276 + $0x32] sm:$0xff]
      %v6977 = vld [vmem:[%s6276 + $0x42] sm:$0xff]
      %v6978 = vld [vmem:[%s6276 + $0x52] sm:$0xff]
      %v6979 = vld [vmem:[%s6276 + $0x62] sm:$0xff]
      %v6980 = vld [vmem:[%s6276 + $0x72] sm:$0xff]
      %v6981 = vmul.f32 %v6973, %v4948
      %v6982 = vmul.f32 %v6974, %v4948
      %v6983 = vmul.f32 %v6975, %v4948
      %v6984 = vmul.f32 %v6976, %v4948
      %v6985 = vmul.f32 %v6977, %v4948
      %v6986 = vmul.f32 %v6978, %v4948
      %v6987 = vmul.f32 %v6979, %v4948
      %v6988 = vmul.f32 %v6980, %v4948
      %v6989 = vadd.f32 %v6965, %v6981
      %v6990 = vadd.f32 %v6966, %v6982
      %v6991 = vadd.f32 %v6967, %v6983
      %v6992 = vadd.f32 %v6968, %v6984
      %v6993 = vadd.f32 %v6969, %v6985
      %v6994 = vadd.f32 %v6970, %v6986
      %v6995 = vadd.f32 %v6971, %v6987
      %v6996 = vadd.f32 %v6972, %v6988
      %v6997 = vld [vmem:[%s6251 + $0x3] sm:$0xff]
      %v6998 = vld [vmem:[%s6251 + $0x13] sm:$0xff]
      %v6999 = vld [vmem:[%s6251 + $0x23] sm:$0xff]
      %v7000 = vld [vmem:[%s6251 + $0x33] sm:$0xff]
      %v7001 = vld [vmem:[%s6251 + $0x43] sm:$0xff]
      %v7002 = vld [vmem:[%s6251 + $0x53] sm:$0xff]
      %v7003 = vld [vmem:[%s6251 + $0x63] sm:$0xff]
      %v7004 = vld [vmem:[%s6251 + $0x73] sm:$0xff]
      %v7005 = vmul.f32 %v6997, %v4976
      %v7006 = vmul.f32 %v6998, %v4976
      %v7007 = vmul.f32 %v6999, %v4976
      %v7008 = vmul.f32 %v7000, %v4976
      %v7009 = vmul.f32 %v7001, %v4976
      %v7010 = vmul.f32 %v7002, %v4976
      %v7011 = vmul.f32 %v7003, %v4976
      %v7012 = vmul.f32 %v7004, %v4976
      %v7013 = vadd.f32 %v6989, %v7005
      %v7014 = vadd.f32 %v6990, %v7006
      %v7015 = vadd.f32 %v6991, %v7007
      %v7016 = vadd.f32 %v6992, %v7008
      %v7017 = vadd.f32 %v6993, %v7009
      %v7018 = vadd.f32 %v6994, %v7010
      %v7019 = vadd.f32 %v6995, %v7011
      %v7020 = vadd.f32 %v6996, %v7012
      %v7021 = vld [vmem:[%s6276 + $0x3] sm:$0xff]
      %v7022 = vld [vmem:[%s6276 + $0x13] sm:$0xff]
      %v7023 = vld [vmem:[%s6276 + $0x23] sm:$0xff]
      %v7024 = vld [vmem:[%s6276 + $0x33] sm:$0xff]
      %v7025 = vld [vmem:[%s6276 + $0x43] sm:$0xff]
      %v7026 = vld [vmem:[%s6276 + $0x53] sm:$0xff]
      %v7027 = vld [vmem:[%s6276 + $0x63] sm:$0xff]
      %v7028 = vld [vmem:[%s6276 + $0x73] sm:$0xff]
      %v7029 = vmul.f32 %v7021, %v5004
      %v7030 = vmul.f32 %v7022, %v5004
      %v7031 = vmul.f32 %v7023, %v5004
      %v7032 = vmul.f32 %v7024, %v5004
      %v7033 = vmul.f32 %v7025, %v5004
      %v7034 = vmul.f32 %v7026, %v5004
      %v7035 = vmul.f32 %v7027, %v5004
      %v7036 = vmul.f32 %v7028, %v5004
      %v7037 = vadd.f32 %v7013, %v7029
      %v7038 = vadd.f32 %v7014, %v7030
      %v7039 = vadd.f32 %v7015, %v7031
      %v7040 = vadd.f32 %v7016, %v7032
      %v7041 = vadd.f32 %v7017, %v7033
      %v7042 = vadd.f32 %v7018, %v7034
      %v7043 = vadd.f32 %v7019, %v7035
      %v7044 = vadd.f32 %v7020, %v7036
      %v7045 = vadd.f32 %v7037, %v5025
      %v7046 = vadd.f32 %v7038, %v5025
      %v7047 = vadd.f32 %v7039, %v5025
      %v7048 = vadd.f32 %v7040, %v5025
      %v7049 = vadd.f32 %v7041, %v5025
      %v7050 = vadd.f32 %v7042, %v5025
      %v7051 = vadd.f32 %v7043, %v5025
      %v7052 = vadd.f32 %v7044, %v5025
      %v7053 = vld [vmem:[#allocation3] sm:$0xff]
      %v7054 = vld [vmem:[#allocation3 + $0x8] sm:$0xff]
      %v7055 = vld [vmem:[#allocation3 + $0x10] sm:$0xff]
      %v7056 = vld [vmem:[#allocation3 + $0x18] sm:$0xff]
      %v7057 = vld [vmem:[#allocation3 + $0x20] sm:$0xff]
      %v7058 = vld [vmem:[#allocation3 + $0x28] sm:$0xff]
      %v7059 = vld [vmem:[#allocation3 + $0x30] sm:$0xff]
      %v7060 = vld [vmem:[#allocation3 + $0x38] sm:$0xff]
      %v7061 = vadd.f32 %v7045, %v7053
      %v7062 = vadd.f32 %v7046, %v7054
      %v7063 = vadd.f32 %v7047, %v7055
      %v7064 = vadd.f32 %v7048, %v7056
      %v7065 = vadd.f32 %v7049, %v7057
      %v7066 = vadd.f32 %v7050, %v7058
      %v7067 = vadd.f32 %v7051, %v7059
      %v7068 = vadd.f32 %v7052, %v7060
      %v7069 = vld [vmem:[%s2434] sm:$0xff]
      %v7070 = vld [vmem:[%s2434 + $0x8] sm:$0xff]
      %v7071 = vld [vmem:[%s2434 + $0x10] sm:$0xff]
      %v7072 = vld [vmem:[%s2434 + $0x18] sm:$0xff]
      %v7073 = vld [vmem:[%s2434 + $0x20] sm:$0xff]
      %v7074 = vld [vmem:[%s2434 + $0x28] sm:$0xff]
      %v7075 = vld [vmem:[%s2434 + $0x30] sm:$0xff]
      %v7076 = vld [vmem:[%s2434 + $0x38] sm:$0xff]
      %v7077 = vsub.f32 %v7061, %v7069
      %v7078 = vsub.f32 %v7062, %v7070
      %v7079 = vsub.f32 %v7063, %v7071
      %v7080 = vsub.f32 %v7064, %v7072
      %v7081 = vsub.f32 %v7065, %v7073
      %v7082 = vsub.f32 %v7066, %v7074
      %v7083 = vsub.f32 %v7067, %v7075
      %v7084 = vsub.f32 %v7068, %v7076
      %v7085 = vld [vmem:[%s3357] sm:$0xff]
      %v7086 = vld [vmem:[%s3357 + $0x8] sm:$0xff]
      %v7087 = vld [vmem:[%s3357 + $0x10] sm:$0xff]
      %v7088 = vld [vmem:[%s3357 + $0x18] sm:$0xff]
      %v7089 = vld [vmem:[%s3357 + $0x20] sm:$0xff]
      %v7090 = vld [vmem:[%s3357 + $0x28] sm:$0xff]
      %v7091 = vld [vmem:[%s3357 + $0x30] sm:$0xff]
      %v7092 = vld [vmem:[%s3357 + $0x38] sm:$0xff]
      %v7093 = vsub.f32 %v7077, %v7085
      %v7094 = vsub.f32 %v7078, %v7086
      %v7095 = vsub.f32 %v7079, %v7087
      %v7096 = vsub.f32 %v7080, %v7088
      %v7097 = vsub.f32 %v7081, %v7089
      %v7098 = vsub.f32 %v7082, %v7090
      %v7099 = vsub.f32 %v7083, %v7091
      %v7100 = vsub.f32 %v7084, %v7092
      %v7101 = vld [vmem:[%s4280] sm:$0xff]
      %v7102 = vld [vmem:[%s4280 + $0x8] sm:$0xff]
      %v7103 = vld [vmem:[%s4280 + $0x10] sm:$0xff]
      %v7104 = vld [vmem:[%s4280 + $0x18] sm:$0xff]
      %v7105 = vld [vmem:[%s4280 + $0x20] sm:$0xff]
      %v7106 = vld [vmem:[%s4280 + $0x28] sm:$0xff]
      %v7107 = vld [vmem:[%s4280 + $0x30] sm:$0xff]
      %v7108 = vld [vmem:[%s4280 + $0x38] sm:$0xff]
      %v7109 = vadd.f32 %v7093, %v7101
      %v7110 = vadd.f32 %v7094, %v7102
      %v7111 = vadd.f32 %v7095, %v7103
      %v7112 = vadd.f32 %v7096, %v7104
      %v7113 = vadd.f32 %v7097, %v7105
      %v7114 = vadd.f32 %v7098, %v7106
      %v7115 = vadd.f32 %v7099, %v7107
      %v7116 = vadd.f32 %v7100, %v7108
      %7117 = vst.msk [vmem:[%s592] sm:$0xff] %vm761, %v7109
      %7118 = vst.msk [vmem:[%s592 + $0x8] sm:$0xff] %vm761, %v7110
      %7119 = vst.msk [vmem:[%s592 + $0x10] sm:$0xff] %vm761, %v7111
      %7120 = vst.msk [vmem:[%s592 + $0x18] sm:$0xff] %vm761, %v7112
      %7121 = vst.msk [vmem:[%s592 + $0x20] sm:$0xff] %vm761, %v7113
      %7122 = vst.msk [vmem:[%s592 + $0x28] sm:$0xff] %vm761, %v7114
      %7123 = vst.msk [vmem:[%s592 + $0x30] sm:$0xff] %vm761, %v7115
      %7124 = vst.msk [vmem:[%s592 + $0x38] sm:$0xff] %vm761, %v7116
      %p7125 = scmp.lt.s32.totalorder %s26, 1
      %s7126 = scalar_select %p7125, %s26, 1
      %p7127 = scmp.lt.s32.totalorder %s27, 0
      %s7128 = scalar_select %p7127, %s27, 0
      %s7129 = smul.addr %s7126, 8
      %s7130 = sadd.s32 %s7128, %s7129
      %s7131 = smul.addr %s7130, 8
      %s7132 = scalar_lea.vmem %s7, %s7131
      %p7133 = scmp.lt.s32.totalorder %s26, 1
      %s7134 = scalar_select %p7133, %s26, 1
      %p7135 = scmp.lt.s32.totalorder %s27, 0
      %s7136 = scalar_select %p7135, %s27, 0
      %s7137 = smul.addr %s7134, 8
      %s7138 = sadd.s32 %s7136, %s7137
      %s7139 = smul.addr %s7138, 8
      %s7140 = scalar_lea.vmem %s8, %s7139
      %p7141 = scmp.lt.s32.totalorder %s26, 1
      %s7142 = scalar_select %p7141, %s26, 1
      %p7143 = scmp.lt.s32.totalorder %s27, 0
      %s7144 = scalar_select %p7143, %s27, 0
      %s7145 = smul.addr %s7142, 8
      %s7146 = sadd.s32 %s7144, %s7145
      %s7147 = smul.addr %s7146, 8
      %s7148 = scalar_lea.vmem %s9, %s7147
      %p7149 = scmp.lt.s32.totalorder %s26, 1
      %s7150 = scalar_select %p7149, %s26, 1
      %p7151 = scmp.lt.s32.totalorder %s27, 0
      %s7152 = scalar_select %p7151, %s27, 0
      %s7153 = smul.addr %s7150, 8
      %s7154 = sadd.s32 %s7152, %s7153
      %s7155 = smul.addr %s7154, 8
      %s7156 = scalar_lea.vmem %s10, %s7155
      // Predicated region
      $region49: #{tpu_custom_call.1} parent=47 // pred_check
        %p7157 = pneg %p244
      $region50: #{tpu_custom_call.1} parent=47 // pred_check_branch
        %7159 = sbr.rel (%p7157) target = $region52
      $region51: #{tpu_custom_call.1} parent=47 // pred_region
        _
      $region52: #{tpu_custom_call.1} parent=47 // pred_fallthru
        _
      // Predicated region
      $region53: #{tpu_custom_call.1} parent=47 // pred_check
        %p7160 = pneg %p272
      $region54: #{tpu_custom_call.1} parent=47 // pred_check_branch
        %7162 = sbr.rel (%p7160) target = $region56
      $region55: #{tpu_custom_call.1} parent=47 // pred_region
        _
      $region56: #{tpu_custom_call.1} parent=47 // pred_fallthru
        _
      // Predicated region
      $region57: #{tpu_custom_call.1} parent=47 // pred_check
        %p7163 = pneg %p300
      $region58: #{tpu_custom_call.1} parent=47 // pred_check_branch
        %7165 = sbr.rel (%p7163) target = $region60
      $region59: #{tpu_custom_call.1} parent=47 // pred_region
        _
      $region60: #{tpu_custom_call.1} parent=47 // pred_fallthru
        _
      // Predicated region
      $region61: #{tpu_custom_call.1} parent=47 // pred_check
        %p7166 = pneg %p328
      $region62: #{tpu_custom_call.1} parent=47 // pred_check_branch
        %7168 = sbr.rel (%p7166) target = $region64
      $region63: #{tpu_custom_call.1} parent=47 // pred_region
        _
      $region64: #{tpu_custom_call.1} parent=47 // pred_fallthru
        _
    $region48: #{tpu_custom_call.1} parent=5 // pred_fallthru
      _
    %p7169 = scmp.le.s32.totalorder 2, %s17
    // Predicated region
    $region65: #{tpu_custom_call.1} parent=5 // pred_check
      %p7170 = pneg %p7169
    $region66: #{tpu_custom_call.1} parent=5 // pred_check_branch
      %7172 = sbr.rel (%p7170) target = $region68
    $region67: #{tpu_custom_call.1} parent=5 // pred_region
      %s7173 = ssub.s32 %s17, 2
      // Predicated region
      $region69: #{tpu_custom_call.1} parent=67 // pred_check
        %p7174 = pneg %p250
      $region70: #{tpu_custom_call.1} parent=67 // pred_check_branch
        %7176 = sbr.rel (%p7174) target = $region72
      $region71: #{tpu_custom_call.1} parent=67 // pred_region
        %p7177 = scmp.lt.s32.totalorder %s28, 1
        %s7178 = scalar_select %p7177, %s28, 1
        %p7179 = scmp.lt.s32.totalorder %s29, 0
        %s7180 = scalar_select %p7179, %s29, 0
        %s7181 = smul.addr %s7178, 8
        %s7182 = sadd.s32 %s7180, %s7181
        %s7183 = smul.addr %s7182, 8
        %s7184 = scalar_lea.vmem %s7, %s7183
      $region72: #{tpu_custom_call.1} parent=67 // pred_fallthru
        _
      // Predicated region
      $region73: #{tpu_custom_call.1} parent=67 // pred_check
        %p7185 = pneg %p278
      $region74: #{tpu_custom_call.1} parent=67 // pred_check_branch
        %7187 = sbr.rel (%p7185) target = $region76
      $region75: #{tpu_custom_call.1} parent=67 // pred_region
        %p7188 = scmp.lt.s32.totalorder %s28, 1
        %s7189 = scalar_select %p7188, %s28, 1
        %p7190 = scmp.lt.s32.totalorder %s29, 0
        %s7191 = scalar_select %p7190, %s29, 0
        %s7192 = smul.addr %s7189, 8
        %s7193 = sadd.s32 %s7191, %s7192
        %s7194 = smul.addr %s7193, 8
        %s7195 = scalar_lea.vmem %s8, %s7194
      $region76: #{tpu_custom_call.1} parent=67 // pred_fallthru
        _
      // Predicated region
      $region77: #{tpu_custom_call.1} parent=67 // pred_check
        %p7196 = pneg %p306
      $region78: #{tpu_custom_call.1} parent=67 // pred_check_branch
        %7198 = sbr.rel (%p7196) target = $region80
      $region79: #{tpu_custom_call.1} parent=67 // pred_region
        %p7199 = scmp.lt.s32.totalorder %s28, 1
        %s7200 = scalar_select %p7199, %s28, 1
        %p7201 = scmp.lt.s32.totalorder %s29, 0
        %s7202 = scalar_select %p7201, %s29, 0
        %s7203 = smul.addr %s7200, 8
        %s7204 = sadd.s32 %s7202, %s7203
        %s7205 = smul.addr %s7204, 8
        %s7206 = scalar_lea.vmem %s9, %s7205
      $region80: #{tpu_custom_call.1} parent=67 // pred_fallthru
        _
      // Predicated region
      $region81: #{tpu_custom_call.1} parent=67 // pred_check
        %p7207 = pneg %p334
      $region82: #{tpu_custom_call.1} parent=67 // pred_check_branch
        %7209 = sbr.rel (%p7207) target = $region84
      $region83: #{tpu_custom_call.1} parent=67 // pred_region
        %p7210 = scmp.lt.s32.totalorder %s28, 1
        %s7211 = scalar_select %p7210, %s28, 1
        %p7212 = scmp.lt.s32.totalorder %s29, 0
        %s7213 = scalar_select %p7212, %s29, 0
        %s7214 = smul.addr %s7211, 8
        %s7215 = sadd.s32 %s7213, %s7214
        %s7216 = smul.addr %s7215, 8
        %s7217 = scalar_lea.vmem %s10, %s7216
      $region84: #{tpu_custom_call.1} parent=67 // pred_fallthru
        _
    $region68: #{tpu_custom_call.1} parent=5 // pred_fallthru
      _
  $region6: #{tpu_custom_call.1} parent=0 // loop_footer
    %s21 = sadd.s32 1, %s17
  $region7: #{tpu_custom_call.1} parent=0 // loop_footer_branch
    %16 = sbr.rel target = $region3
  $region8: #{tpu_custom_call.1} parent=0 // loop_exit
    _

</llo_original>
